<compile_context>
chip_gen: v5e
topology: v5e:2x2
jax: 0.10.0
libtpu: 0.0.40
codegen_flags: <defaults>
</compile_context>

<pallas_src>
import functools

import jax
import jax.numpy as jnp
from jax.experimental import pallas as pl
from jax.experimental.pallas import tpu as pltpu

LEAKY_SLOPE = 0.01  # nn.LeakyReLU default


# ----------------------------------------------------------------------------
# In-kernel helpers (operate on values / scratch refs)
# ----------------------------------------------------------------------------
def _leaky(x):
    return jnp.where(x >= 0, x, x * LEAKY_SLOPE)


def _sigmoid(x):
    # exact sigmoid via tanh -> rides the EUP slot instead of a VALU divide
    return 0.5 * (jnp.tanh(0.5 * x) + 1.0)


def _fill_pad(pad_ref, v):
    """Write v (Bb,H,W,C) into the interior of the zero-bordered scratch.

    The scratch may have more lanes than C; stale lanes beyond C are never read
    and the 1-pixel border is zeroed once per kernel invocation."""
    _, H, W, C = v.shape
    pad_ref[:, 1:H + 1, 1:W + 1, :C] = v


def _taps_cross(pad_ref, H, W, C):
    """im2col patch for the (3,1)+(1,3) cross pair -> (Bb*H*W, 6*C) bf16.

    Each tap column is cast to bf16 BEFORE the lane concat (no f32 patch)."""
    Bb = pad_ref.shape[0]
    M = Bb * H * W
    cols = [pad_ref[:, i:i + H, 1:1 + W, :C].astype(jnp.bfloat16).reshape(M, C)
            for i in range(3)]
    cols += [pad_ref[:, 1:1 + H, j:j + W, :C].astype(jnp.bfloat16).reshape(M, C)
             for j in range(3)]
    return jnp.concatenate(cols, axis=-1)


def _taps_3x3(pad_ref, H, W, C):
    """im2col patch for a dense 3x3 conv -> (Bb*H*W, 9*C) bf16."""
    Bb = pad_ref.shape[0]
    M = Bb * H * W
    cols = [pad_ref[:, i:i + H, j:j + W, :C].astype(jnp.bfloat16).reshape(M, C)
            for i in range(3) for j in range(3)]
    return jnp.concatenate(cols, axis=-1)


def _cross_body(xin, w_ref, f_ref, pad_ref):
    """One CrossConv, fully in VMEM/vregs.

    xin: (Bb,H,W,C) f32 value.
    w_ref: (12C, C) bf16 -- rows [0:6C) cross pair 1, [6C:12C) cross pair 2.
    f_ref: (16+C+C//16, C) f32 --
        row 0: b(3x1)+b(1x3) pair-1 summed bias
        row 1: pair-2 summed bias
        row 2: adafm bias
        rows 3..11: depthwise 3x3 weights (row = 3*i + j)
        row 12: SE fc1 bias (first C//16 lanes)
        row 13: SE fc2 bias
        rows 16..16+C: SE fc1 weight (C, C//16) (lane-padded)
        rows 16+C..16+C+C//16: SE fc2 weight (C//16, C)
    """
    Bb, H, W, C = xin.shape
    h = C // 16

    # cross pair 1 (+ summed bias) + leaky
    _fill_pad(pad_ref, xin)
    y = jnp.dot(_taps_cross(pad_ref, H, W, C), w_ref[0:6 * C, :],
                preferred_element_type=jnp.float32) + f_ref[0]
    y = _leaky(y)

    # cross pair 2 (+ summed bias)
    _fill_pad(pad_ref, y.reshape(Bb, H, W, C))
    y = jnp.dot(_taps_cross(pad_ref, H, W, C), w_ref[6 * C:12 * C, :],
                preferred_element_type=jnp.float32) + f_ref[1]
    y = y.reshape(Bb, H, W, C)

    # depthwise 3x3 (adafm) + residual: adafm(y) + y   (f32 VPU math, v5e-safe)
    _fill_pad(pad_ref, y)
    acc = pad_ref[:, 0:H, 0:W, :C] * f_ref[3]          # first tap initializes acc
    for t in range(1, 9):
        i, j = divmod(t, 3)
        acc = acc + pad_ref[:, i:i + H, j:j + W, :C] * f_ref[3 + t]
    y = acc + f_ref[2] + y

    # squeeze-excite
    pooled = jnp.mean(y, axis=(1, 2))                   # (Bb, C)
    a = _leaky(jnp.dot(pooled, f_ref[16:16 + C, :h],
                       preferred_element_type=jnp.float32) + f_ref[12, :h])
    s = _sigmoid(jnp.dot(a, f_ref[16 + C:16 + C + h, :],
                         preferred_element_type=jnp.float32) + f_ref[13])
    y = y * s[:, None, None, :]

    # block residual: input + x
    return xin + y


# ----------------------------------------------------------------------------
# Kernels
# ----------------------------------------------------------------------------
def _conv3x3_kernel(x_ref, w_ref, b_ref, o_ref, pad_ref, *, sub_mean):
    """Single dense 3x3 conv (stride 1, pad 1) via one deep-K dot.

    If sub_mean: subtract rgb_mean (stored in b_ref row 1) from the input
    interior before padding (exact, border-correct sub_mean fusion)."""
    Bb, H, W, Cout = o_ref.shape
    Cin = x_ref.shape[-1]
    pad_ref[...] = jnp.zeros_like(pad_ref)
    xin = x_ref[...].astype(jnp.float32)
    if sub_mean:
        xin = xin - b_ref[1, :Cin]
    _fill_pad(pad_ref, xin)
    y = jnp.dot(_taps_3x3(pad_ref, H, W, Cin), w_ref[...],
                preferred_element_type=jnp.float32) + b_ref[0]
    o_ref[...] = y.reshape(Bb, H, W, Cout).astype(o_ref.dtype)


def _tail_kernel(x_ref, res_ref, w_ref, b_ref, o_ref, pad_ref):
    """tail: conv3x3 -> leaky -> conv3x3 -> + head residual, fused."""
    Bb, H, W, C = o_ref.shape
    pad_ref[...] = jnp.zeros_like(pad_ref)
    _fill_pad(pad_ref, x_ref[...].astype(jnp.float32))
    y = jnp.dot(_taps_3x3(pad_ref, H, W, C), w_ref[0:9 * C, :],
                preferred_element_type=jnp.float32) + b_ref[0]
    y = _leaky(y)
    _fill_pad(pad_ref, y.reshape(Bb, H, W, C))
    y = jnp.dot(_taps_3x3(pad_ref, H, W, C), w_ref[9 * C:, :],
                preferred_element_type=jnp.float32) + b_ref[1]
    o_ref[...] = (y.reshape(Bb, H, W, C)
                  + res_ref[...].astype(jnp.float32)).astype(o_ref.dtype)


def _csc_block_kernel(x_ref, c1w_ref, c1f_ref, c2w_ref, c2f_ref,
                      c3w_ref, c3f_ref, tw_ref, tf_ref, o_ref, pad_ref):
    """Whole ChannelSplitConv block fused in one kernel:
       3 CrossConvs (channel-split inputs) + channel concat + SE +
       conv_in + leaky + conv_out + bypath residual."""
    Bb, H, W, N = o_ref.shape                 # N = 64
    c = N // 4
    hn = N // 16

    # zero the halo scratch ONCE; every conv below only rewrites the interior
    pad_ref[...] = jnp.zeros_like(pad_ref)

    x = x_ref[...].astype(jnp.float32)        # (Bb,H,W,64)

    # the three channel-split CrossConvs (l1/l2/l3 stay in vregs/VMEM)
    l1 = _cross_body(x[:, :, :, c:], c1w_ref, c1f_ref, pad_ref)        # 48 ch
    l2 = _cross_body(l1[:, :, :, c:], c2w_ref, c2f_ref, pad_ref)       # 32 ch
    l3 = _cross_body(l2[:, :, :, c:], c3w_ref, c3f_ref, pad_ref)       # 16 ch

    cat = jnp.concatenate([x[:, :, :, :c], l1[:, :, :, :c],
                           l2[:, :, :, :c], l3], axis=-1)               # 64 ch

    # squeeze-excite on the concat
    pooled = jnp.mean(cat, axis=(1, 2))
    a = _leaky(jnp.dot(pooled, tf_ref[8:8 + N, :hn],
                       preferred_element_type=jnp.float32) + tf_ref[2, :hn])
    s = _sigmoid(jnp.dot(a, tf_ref[8 + N:8 + N + hn, :],
                         preferred_element_type=jnp.float32) + tf_ref[3])
    y = cat * s[:, None, None, :]

    # conv_in + leaky + conv_out
    _fill_pad(pad_ref, y)
    y = jnp.dot(_taps_3x3(pad_ref, H, W, N), tw_ref[0:9 * N, :],
                preferred_element_type=jnp.float32) + tf_ref[0]
    y = _leaky(y)
    _fill_pad(pad_ref, y.reshape(Bb, H, W, N))
    y = jnp.dot(_taps_3x3(pad_ref, H, W, N), tw_ref[9 * N:, :],
                preferred_element_type=jnp.float32) + tf_ref[1]

    # bypath residual
    o_ref[...] = (y.reshape(Bb, H, W, N) + x).astype(o_ref.dtype)


# ----------------------------------------------------------------------------
# pallas_call wrappers (grid over batch, per-core parallel)
# ----------------------------------------------------------------------------
_CPARAMS = pltpu.CompilerParams(dimension_semantics=("parallel",))


def _act_spec(shape):
    return pl.BlockSpec((1,) + tuple(shape[1:]), lambda b: (b, 0, 0, 0))


def _full_spec(shape):
    nd = len(shape)
    return pl.BlockSpec(tuple(shape), lambda b, _nd=nd: (0,) * _nd)


def conv3x3(x, p, *, sub_mean=False, out_dtype=None):
    B, H, W, Cin = x.shape
    Cout = p["w"].shape[1]
    out_dtype = out_dtype or x.dtype
    kern = functools.partial(_conv3x3_kernel, sub_mean=sub_mean)
    return pl.pallas_call(
        kern,
        grid=(B,),
        out_shape=jax.ShapeDtypeStruct((B, H, W, Cout), out_dtype),
        in_specs=[_act_spec(x.shape), _full_spec(p["w"].shape), _full_spec(p["b"].shape)],
        out_specs=pl.BlockSpec((1, H, W, Cout), lambda b: (b, 0, 0, 0)),
        scratch_shapes=[pltpu.VMEM((1, H + 2, W + 2, Cin), jnp.float32)],
        compiler_params=_CPARAMS,
    )(x, p["w"], p["b"])


def tail_block(x, head, p):
    B, H, W, C = x.shape
    return pl.pallas_call(
        _tail_kernel,
        grid=(B,),
        out_shape=jax.ShapeDtypeStruct((B, H, W, C), x.dtype),
        in_specs=[_act_spec(x.shape), _act_spec(head.shape),
                  _full_spec(p["w"].shape), _full_spec(p["b"].shape)],
        out_specs=pl.BlockSpec((1, H, W, C), lambda b: (b, 0, 0, 0)),
        scratch_shapes=[pltpu.VMEM((1, H + 2, W + 2, C), jnp.float32)],
        compiler_params=_CPARAMS,
    )(x, head, p["w"], p["b"])


def csc_block(x, p):
    B, H, W, C = x.shape                      # C = 64
    keys = ("c1w", "c1f", "c2w", "c2f", "c3w", "c3f", "tw", "tf")
    return pl.pallas_call(
        _csc_block_kernel,
        grid=(B,),
        out_shape=jax.ShapeDtypeStruct((B, H, W, C), x.dtype),
        in_specs=[_act_spec(x.shape)] + [_full_spec(p[k].shape) for k in keys],
        out_specs=pl.BlockSpec((1, H, W, C), lambda b: (b, 0, 0, 0)),
        scratch_shapes=[pltpu.VMEM((1, H + 2, W + 2, C), jnp.float32)],
        compiler_params=_CPARAMS,
    )(x, *[p[k] for k in keys])


def pixel_shuffle_nhwc(x, r):
    # pure layout op; kept as JAX glue
    B, H, W, Crr = x.shape
    C = Crr // (r * r)
    x = x.reshape(B, H, W, C, r, r)
    x = jnp.transpose(x, (0, 1, 4, 2, 5, 3))
    return x.reshape(B, H * r, W * r, C)


# ----------------------------------------------------------------------------
# Module forward (13 pallas_calls total)
# ----------------------------------------------------------------------------
def net_forward(params, x, *, scale):
    head = conv3x3(x, params["head"], sub_mean=True, out_dtype=jnp.bfloat16)
    h = head
    for bp in params["body"]:                 # unrolled 10-block body
        h = csc_block(h, bp)                  # ONE fused pallas_call per block
    tail = tail_block(h, head, params["tail"])
    u = conv3x3(tail, params["up"], out_dtype=jnp.float32)   # add_mean in bias
    return pixel_shuffle_nhwc(u, scale)


# ----------------------------------------------------------------------------
# Parameter packing (pure JAX, run once outside the forward pass)
# ----------------------------------------------------------------------------
def _flat3x3(w):
    kh, kw, ci, co = w.shape
    return w.reshape(kh * kw * ci, co).astype(jnp.bfloat16)


def pack_cross_params(p):
    c = p["c31a"]["w"].shape[2]
    h = c // 16
    w = jnp.concatenate([p["c31a"]["w"].reshape(3 * c, c),
                         p["c31b"]["w"].reshape(3 * c, c),
                         p["c32a"]["w"].reshape(3 * c, c),
                         p["c32b"]["w"].reshape(3 * c, c)], axis=0).astype(jnp.bfloat16)
    f = jnp.concatenate([
        (p["c31a"]["b"] + p["c31b"]["b"])[None],          # 0  paired biases pre-summed
        (p["c32a"]["b"] + p["c32b"]["b"])[None],          # 1
        p["adafm"]["b"][None],                            # 2
        p["adafm"]["w"].reshape(9, c),                    # 3..11
        jnp.pad(p["se"]["b1"], (0, c - h))[None],         # 12
        p["se"]["b2"][None],                              # 13
        jnp.zeros((2, c), jnp.float32),                   # 14..15 (sublane align)
        jnp.pad(p["se"]["w1"], ((0, 0), (0, c - h))),     # 16..16+c
        p["se"]["w2"],                                    # 16+c..16+c+h
    ], axis=0).astype(jnp.float32)
    return {"w": w, "f": f}


def pack_csc_params(p):
    c1 = pack_cross_params(p["conv_1"])
    c2 = pack_cross_params(p["conv_2"])
    c3 = pack_cross_params(p["conv_3"])
    n = p["conv_in"]["w"].shape[2]                        # 64
    hn = n // 16
    tw = jnp.concatenate([_flat3x3(p["conv_in"]["w"]),
                          _flat3x3(p["conv_out"]["w"])], axis=0)
    tf = jnp.concatenate([
        p["conv_in"]["b"][None],                          # 0
        p["conv_out"]["b"][None],                         # 1
        jnp.pad(p["se"]["b1"], (0, n - hn))[None],        # 2
        p["se"]["b2"][None],                              # 3
        jnp.zeros((4, n), jnp.float32),                   # 4..7 (sublane align)
        jnp.pad(p["se"]["w1"], ((0, 0), (0, n - hn))),    # 8..8+n
        p["se"]["w2"],                                    # 8+n..8+n+hn
    ], axis=0).astype(jnp.float32)
    return {"c1w": c1["w"], "c1f": c1["f"], "c2w": c2["w"], "c2f": c2["f"],
            "c3w": c3["w"], "c3f": c3["f"], "tw": tw, "tf": tf}


def pack_net_params(raw, scale, rgb_range):
    rgb_mean = jnp.array([0.4488, 0.4371, 0.404], jnp.float32) * rgb_range
    n_head = raw["head"]["b"].shape[0]
    head_b = jnp.stack([raw["head"]["b"],
                        jnp.pad(rgb_mean, (0, n_head - 3))], axis=0)      # row1 = mean
    up_b = raw["up"]["b"] + jnp.repeat(rgb_mean, scale * scale)           # add_mean fold
    tail_w = jnp.concatenate([_flat3x3(raw["tail0"]["w"]),
                              _flat3x3(raw["tail1"]["w"])], axis=0)
    return {"head": {"w": _flat3x3(raw["head"]["w"]), "b": head_b},
            "body": [pack_csc_params(bp) for bp in raw["body"]],
            "tail": {"w": tail_w,
                     "b": jnp.stack([raw["tail0"]["b"], raw["tail1"]["b"]], 0)},
            "up": {"w": _flat3x3(raw["up"]["w"]), "b": up_b.reshape(1, -1)}}


# ----------------------------------------------------------------------------
# Deterministic synthetic init (matches the PyTorch module's shapes)
# ----------------------------------------------------------------------------
def _keygen(key):
    i = [0]

    def nxt():
        i[0] += 1
        return jax.random.fold_in(key, i[0])

    return nxt


def _conv_p(nxt, kh, kw, cin, cout, ws=0.02):
    return {"w": jax.random.normal(nxt(), (kh, kw, cin, cout), jnp.float32) * ws,
            "b": jax.random.normal(nxt(), (cout,), jnp.float32) * 0.01}


def _dw_p(nxt, c):
    return {"w": jax.random.normal(nxt(), (3, 3, c), jnp.float32) * 0.05,
            "b": jax.random.normal(nxt(), (c,), jnp.float32) * 0.01}


def _se_p(nxt, c):
    h = c // 16
    return {"w1": jax.random.normal(nxt(), (c, h), jnp.float32) * 0.1,
            "b1": jax.random.normal(nxt(), (h,), jnp.float32) * 0.01,
            "w2": jax.random.normal(nxt(), (h, c), jnp.float32) * 0.1,
            "b2": jax.random.normal(nxt(), (c,), jnp.float32) * 0.01}


def _cross_p(nxt, c):
    return {"c31a": _conv_p(nxt, 3, 1, c, c), "c31b": _conv_p(nxt, 1, 3, c, c),
            "c32a": _conv_p(nxt, 3, 1, c, c), "c32b": _conv_p(nxt, 1, 3, c, c),
            "adafm": _dw_p(nxt, c), "se": _se_p(nxt, c)}


def _csc_p(nxt, n=64):
    c = n // 4
    return {"conv_1": _cross_p(nxt, c * 3), "conv_2": _cross_p(nxt, c * 2),
            "conv_3": _cross_p(nxt, c * 1),
            "conv_out": _conv_p(nxt, 3, 3, n, n),
            "conv_in": _conv_p(nxt, 3, 3, n, n),
            "se": _se_p(nxt, n)}


def init_net_params(key, scale, n_conv=10):
    nxt = _keygen(key)
    body = [_csc_p(nxt, 64) for _ in range(n_conv)]
    return {"head": _conv_p(nxt, 3, 3, 3, 64),
            "body": body,
            "tail0": _conv_p(nxt, 3, 3, 64, 64),
            "tail1": _conv_p(nxt, 3, 3, 64, 64),
            "up": _conv_p(nxt, 3, 3, 64, 3 * scale * scale)}


# ----------------------------------------------------------------------------
if __name__ == "__main__":
    key = jax.random.PRNGKey(0)
    B, H, W = 2, 8, 8
    scale = 2          # args.scale[0]
    rgb_range = 1.0    # args.rgb_range

    raw = init_net_params(key, scale=scale, n_conv=10)
    params = pack_net_params(raw, scale, rgb_range)        # packed once, outside jit

    x = jax.random.uniform(jax.random.fold_in(key, 12345), (B, H, W, 3),
                           jnp.float32) * rgb_range

    fwd = jax.jit(functools.partial(net_forward, scale=scale))
    out = jax.block_until_ready(fwd(params, x))

    assert out.shape == (B, H * scale, W * scale, 3), out.shape
    assert bool(jnp.all(jnp.isfinite(out)))
    print("KERNEL_OK")
</pallas_src>

<mosaic_0001>
module attributes {stable_mosaic.version = 11 : i64} {
  func.func @_conv3x3_kernel(%arg0: i32, %arg1: memref<1x8x8x3xf32, #tpu.memory_space<vmem>>, %arg2: memref<27x64xbf16, #tpu.memory_space<vmem>>, %arg3: memref<2x64xf32, #tpu.memory_space<vmem>>, %arg4: memref<1x8x8x64xbf16, #tpu.memory_space<vmem>>, %arg5: memref<1x10x10x3xf32, #tpu.memory_space<vmem>>) attributes {dimension_semantics = [#tpu.dimension_semantics<parallel>], iteration_bounds = array<i64: 2>, scalar_prefetch = 0 : i64, scratch_operands = 1 : i64, tpu.core_type = #tpu.core_type<tc>, window_params = [{transform_indices = @transform_0, window_bounds = array<i64: 1, 8, 8, 3>}, {pipeline_mode = #tpu.pipeline_mode<synchronous>, transform_indices = @transform_1, window_bounds = array<i64: 27, 64>}, {pipeline_mode = #tpu.pipeline_mode<synchronous>, transform_indices = @transform_2, window_bounds = array<i64: 2, 64>}, {transform_indices = @transform_3, window_bounds = array<i64: 1, 8, 8, 64>}]} {
    %cst = arith.constant 0.000000e+00 : f32
    %0 = vector.broadcast %cst : f32 to vector<1x10x10x3xf32>
    %c0 = arith.constant 0 : index
    %c0_0 = arith.constant 0 : index
    %c0_1 = arith.constant 0 : index
    %c0_2 = arith.constant 0 : index
    %1 = vector.load %arg5[%c0, %c0_0, %c0_1, %c0_2] : memref<1x10x10x3xf32, #tpu.memory_space<vmem>>, vector<1x10x10x3xf32>
    tpu.vector_store %arg5[%c0, %c0_0, %c0_1, %c0_2], %0 {strides = array<i32>} : memref<1x10x10x3xf32, #tpu.memory_space<vmem>>, vector<1x10x10x3xf32>,
    %c0_3 = arith.constant 0 : index
    %c0_4 = arith.constant 0 : index
    %c0_5 = arith.constant 0 : index
    %c0_6 = arith.constant 0 : index
    %2 = vector.load %arg1[%c0_3, %c0_4, %c0_5, %c0_6] : memref<1x8x8x3xf32, #tpu.memory_space<vmem>>, vector<1x8x8x3xf32>
    %c1 = arith.constant 1 : index
    %c0_7 = arith.constant 0 : index
    %3 = vector.load %arg3[%c1, %c0_7] : memref<2x64xf32, #tpu.memory_space<vmem>>, vector<1x3xf32>
    %4 = vector.shape_cast %3 : vector<1x3xf32> to vector<3xf32>
    %5 = vector.shape_cast %4 : vector<3xf32> to vector<1x1x1x3xf32>
    %6 = vector.broadcast %5 : vector<1x1x1x3xf32> to vector<1x8x8x3xf32>
    %7 = arith.subf %2, %6 : vector<1x8x8x3xf32>
    %c0_8 = arith.constant 0 : index
    %c1_9 = arith.constant 1 : index
    %c1_10 = arith.constant 1 : index
    %c0_11 = arith.constant 0 : index
    %8 = vector.load %arg5[%c0_8, %c1_9, %c1_10, %c0_11] : memref<1x10x10x3xf32, #tpu.memory_space<vmem>>, vector<1x8x8x3xf32>
    tpu.vector_store %arg5[%c0_8, %c1_9, %c1_10, %c0_11], %7 {strides = array<i32>} : memref<1x10x10x3xf32, #tpu.memory_space<vmem>>, vector<1x8x8x3xf32>,
    %c0_12 = arith.constant 0 : index
    %c0_13 = arith.constant 0 : index
    %c0_14 = arith.constant 0 : index
    %c0_15 = arith.constant 0 : index
    %9 = vector.load %arg5[%c0_12, %c0_13, %c0_14, %c0_15] : memref<1x10x10x3xf32, #tpu.memory_space<vmem>>, vector<1x8x8x3xf32>
    %10 = arith.truncf %9 : vector<1x8x8x3xf32> to vector<1x8x8x3xbf16>
    %11 = vector.shape_cast %10 : vector<1x8x8x3xbf16> to vector<64x3xbf16>
    %c0_16 = arith.constant 0 : index
    %c0_17 = arith.constant 0 : index
    %c1_18 = arith.constant 1 : index
    %c0_19 = arith.constant 0 : index
    %12 = vector.load %arg5[%c0_16, %c0_17, %c1_18, %c0_19] : memref<1x10x10x3xf32, #tpu.memory_space<vmem>>, vector<1x8x8x3xf32>
    %13 = arith.truncf %12 : vector<1x8x8x3xf32> to vector<1x8x8x3xbf16>
    %14 = vector.shape_cast %13 : vector<1x8x8x3xbf16> to vector<64x3xbf16>
    %c0_20 = arith.constant 0 : index
    %c0_21 = arith.constant 0 : index
    %c2 = arith.constant 2 : index
    %c0_22 = arith.constant 0 : index
    %15 = vector.load %arg5[%c0_20, %c0_21, %c2, %c0_22] : memref<1x10x10x3xf32, #tpu.memory_space<vmem>>, vector<1x8x8x3xf32>
    %16 = arith.truncf %15 : vector<1x8x8x3xf32> to vector<1x8x8x3xbf16>
    %17 = vector.shape_cast %16 : vector<1x8x8x3xbf16> to vector<64x3xbf16>
    %c0_23 = arith.constant 0 : index
    %c1_24 = arith.constant 1 : index
    %c0_25 = arith.constant 0 : index
    %c0_26 = arith.constant 0 : index
    %18 = vector.load %arg5[%c0_23, %c1_24, %c0_25, %c0_26] : memref<1x10x10x3xf32, #tpu.memory_space<vmem>>, vector<1x8x8x3xf32>
    %19 = arith.truncf %18 : vector<1x8x8x3xf32> to vector<1x8x8x3xbf16>
    %20 = vector.shape_cast %19 : vector<1x8x8x3xbf16> to vector<64x3xbf16>
    %c0_27 = arith.constant 0 : index
    %c1_28 = arith.constant 1 : index
    %c1_29 = arith.constant 1 : index
    %c0_30 = arith.constant 0 : index
    %21 = vector.load %arg5[%c0_27, %c1_28, %c1_29, %c0_30] : memref<1x10x10x3xf32, #tpu.memory_space<vmem>>, vector<1x8x8x3xf32>
    %22 = arith.truncf %21 : vector<1x8x8x3xf32> to vector<1x8x8x3xbf16>
    %23 = vector.shape_cast %22 : vector<1x8x8x3xbf16> to vector<64x3xbf16>
    %c0_31 = arith.constant 0 : index
    %c1_32 = arith.constant 1 : index
    %c2_33 = arith.constant 2 : index
    %c0_34 = arith.constant 0 : index
    %24 = vector.load %arg5[%c0_31, %c1_32, %c2_33, %c0_34] : memref<1x10x10x3xf32, #tpu.memory_space<vmem>>, vector<1x8x8x3xf32>
    %25 = arith.truncf %24 : vector<1x8x8x3xf32> to vector<1x8x8x3xbf16>
    %26 = vector.shape_cast %25 : vector<1x8x8x3xbf16> to vector<64x3xbf16>
    %c0_35 = arith.constant 0 : index
    %c2_36 = arith.constant 2 : index
    %c0_37 = arith.constant 0 : index
    %c0_38 = arith.constant 0 : index
    %27 = vector.load %arg5[%c0_35, %c2_36, %c0_37, %c0_38] : memref<1x10x10x3xf32, #tpu.memory_space<vmem>>, vector<1x8x8x3xf32>
    %28 = arith.truncf %27 : vector<1x8x8x3xf32> to vector<1x8x8x3xbf16>
    %29 = vector.shape_cast %28 : vector<1x8x8x3xbf16> to vector<64x3xbf16>
    %c0_39 = arith.constant 0 : index
    %c2_40 = arith.constant 2 : index
    %c1_41 = arith.constant 1 : index
    %c0_42 = arith.constant 0 : index
    %30 = vector.load %arg5[%c0_39, %c2_40, %c1_41, %c0_42] : memref<1x10x10x3xf32, #tpu.memory_space<vmem>>, vector<1x8x8x3xf32>
    %31 = arith.truncf %30 : vector<1x8x8x3xf32> to vector<1x8x8x3xbf16>
    %32 = vector.shape_cast %31 : vector<1x8x8x3xbf16> to vector<64x3xbf16>
    %c0_43 = arith.constant 0 : index
    %c2_44 = arith.constant 2 : index
    %c2_45 = arith.constant 2 : index
    %c0_46 = arith.constant 0 : index
    %33 = vector.load %arg5[%c0_43, %c2_44, %c2_45, %c0_46] : memref<1x10x10x3xf32, #tpu.memory_space<vmem>>, vector<1x8x8x3xf32>
    %34 = arith.truncf %33 : vector<1x8x8x3xf32> to vector<1x8x8x3xbf16>
    %35 = vector.shape_cast %34 : vector<1x8x8x3xbf16> to vector<64x3xbf16>
    %36 = tpu.concatenate %11, %14, %17, %20, %23, %26, %29, %32, %35 in 1 : vector<64x3xbf16>, vector<64x3xbf16>, vector<64x3xbf16>, vector<64x3xbf16>, vector<64x3xbf16>, vector<64x3xbf16>, vector<64x3xbf16>, vector<64x3xbf16>, vector<64x3xbf16> -> vector<64x27xbf16>
    %c0_47 = arith.constant 0 : index
    %c0_48 = arith.constant 0 : index
    %37 = vector.load %arg2[%c0_47, %c0_48] : memref<27x64xbf16, #tpu.memory_space<vmem>>, vector<27x64xbf16>
    %cst_49 = arith.constant dense<0.000000e+00> : vector<64x64xf32>
    %38 = tpu.matmul %36, %37, %cst_49 {dimension_numbers = #tpu.dot_dimension_numbers<[1], [0], [0], [1], [0, 0, 1, 1], [], []>} : vector<64x27xbf16>, vector<27x64xbf16>, vector<64x64xf32> -> vector<64x64xf32>
    %c0_50 = arith.constant 0 : index
    %c0_51 = arith.constant 0 : index
    %39 = vector.load %arg3[%c0_50, %c0_51] : memref<2x64xf32, #tpu.memory_space<vmem>>, vector<1x64xf32>
    %40 = vector.shape_cast %39 : vector<1x64xf32> to vector<64xf32>
    %41 = vector.shape_cast %40 : vector<64xf32> to vector<1x64xf32>
    %42 = vector.broadcast %41 : vector<1x64xf32> to vector<64x64xf32>
    %43 = arith.addf %38, %42 : vector<64x64xf32>
    %44 = vector.shape_cast %43 : vector<64x64xf32> to vector<1x8x8x64xf32>
    %45 = arith.truncf %44 : vector<1x8x8x64xf32> to vector<1x8x8x64xbf16>
    %c0_52 = arith.constant 0 : index
    %c0_53 = arith.constant 0 : index
    %c0_54 = arith.constant 0 : index
    %c0_55 = arith.constant 0 : index
    %46 = vector.load %arg4[%c0_52, %c0_53, %c0_54, %c0_55] : memref<1x8x8x64xbf16, #tpu.memory_space<vmem>>, vector<1x8x8x64xbf16>
    tpu.vector_store %arg4[%c0_52, %c0_53, %c0_54, %c0_55], %45 {strides = array<i32>} : memref<1x8x8x64xbf16, #tpu.memory_space<vmem>>, vector<1x8x8x64xbf16>,
    return
  }
  func.func @transform_0(%arg0: i32) -> (i32, i32, i32, i32) {
    %c0_i32 = arith.constant 0 : i32
    %c0_i32_0 = arith.constant 0 : i32
    %c0_i32_1 = arith.constant 0 : i32
    %c0_i32_2 = arith.constant 0 : i32
    return %arg0, %c0_i32, %c0_i32_0, %c0_i32_1 : i32, i32, i32, i32
  }
  func.func @transform_1(%arg0: i32) -> (i32, i32) {
    %c0_i32 = arith.constant 0 : i32
    %c0_i32_0 = arith.constant 0 : i32
    %c0_i32_1 = arith.constant 0 : i32
    return %c0_i32, %c0_i32_0 : i32, i32
  }
  func.func @transform_2(%arg0: i32) -> (i32, i32) {
    %c0_i32 = arith.constant 0 : i32
    %c0_i32_0 = arith.constant 0 : i32
    %c0_i32_1 = arith.constant 0 : i32
    return %c0_i32, %c0_i32_0 : i32, i32
  }
  func.func @transform_3(%arg0: i32) -> (i32, i32, i32, i32) {
    %c0_i32 = arith.constant 0 : i32
    %c0_i32_0 = arith.constant 0 : i32
    %c0_i32_1 = arith.constant 0 : i32
    %c0_i32_2 = arith.constant 0 : i32
    return %arg0, %c0_i32, %c0_i32_0, %c0_i32_1 : i32, i32, i32, i32
  }
}

module attributes {stable_mosaic.version = 11 : i64} {
  func.func @_tail_kernel(%arg0: i32, %arg1: memref<1x8x8x64xbf16, #tpu.memory_space<vmem>>, %arg2: memref<1x8x8x64xbf16, #tpu.memory_space<vmem>>, %arg3: memref<1152x64xbf16, #tpu.memory_space<vmem>>, %arg4: memref<2x64xf32, #tpu.memory_space<vmem>>, %arg5: memref<1x8x8x64xbf16, #tpu.memory_space<vmem>>, %arg6: memref<1x10x10x64xf32, #tpu.memory_space<vmem>>) attributes {dimension_semantics = [#tpu.dimension_semantics<parallel>], iteration_bounds = array<i64: 2>, scalar_prefetch = 0 : i64, scratch_operands = 1 : i64, tpu.core_type = #tpu.core_type<tc>, window_params = [{transform_indices = @transform_0, window_bounds = array<i64: 1, 8, 8, 64>}, {transform_indices = @transform_1, window_bounds = array<i64: 1, 8, 8, 64>}, {pipeline_mode = #tpu.pipeline_mode<synchronous>, transform_indices = @transform_2, window_bounds = array<i64: 1152, 64>}, {pipeline_mode = #tpu.pipeline_mode<synchronous>, transform_indices = @transform_3, window_bounds = array<i64: 2, 64>}, {transform_indices = @transform_4, window_bounds = array<i64: 1, 8, 8, 64>}]} {
    %cst = arith.constant 0.000000e+00 : f32
    %0 = vector.broadcast %cst : f32 to vector<1x10x10x64xf32>
    %c0 = arith.constant 0 : index
    %c0_0 = arith.constant 0 : index
    %c0_1 = arith.constant 0 : index
    %c0_2 = arith.constant 0 : index
    %1 = vector.load %arg6[%c0, %c0_0, %c0_1, %c0_2] : memref<1x10x10x64xf32, #tpu.memory_space<vmem>>, vector<1x10x10x64xf32>
    tpu.vector_store %arg6[%c0, %c0_0, %c0_1, %c0_2], %0 {strides = array<i32>} : memref<1x10x10x64xf32, #tpu.memory_space<vmem>>, vector<1x10x10x64xf32>,
    %c0_3 = arith.constant 0 : index
    %c0_4 = arith.constant 0 : index
    %c0_5 = arith.constant 0 : index
    %c0_6 = arith.constant 0 : index
    %2 = vector.load %arg1[%c0_3, %c0_4, %c0_5, %c0_6] : memref<1x8x8x64xbf16, #tpu.memory_space<vmem>>, vector<1x8x8x64xbf16>
    %3 = arith.extf %2 : vector<1x8x8x64xbf16> to vector<1x8x8x64xf32>
    %c0_7 = arith.constant 0 : index
    %c1 = arith.constant 1 : index
    %c1_8 = arith.constant 1 : index
    %c0_9 = arith.constant 0 : index
    %4 = vector.load %arg6[%c0_7, %c1, %c1_8, %c0_9] : memref<1x10x10x64xf32, #tpu.memory_space<vmem>>, vector<1x8x8x64xf32>
    tpu.vector_store %arg6[%c0_7, %c1, %c1_8, %c0_9], %3 {strides = array<i32>} : memref<1x10x10x64xf32, #tpu.memory_space<vmem>>, vector<1x8x8x64xf32>,
    %c0_10 = arith.constant 0 : index
    %c0_11 = arith.constant 0 : index
    %c0_12 = arith.constant 0 : index
    %c0_13 = arith.constant 0 : index
    %5 = vector.load %arg6[%c0_10, %c0_11, %c0_12, %c0_13] : memref<1x10x10x64xf32, #tpu.memory_space<vmem>>, vector<1x8x8x64xf32>
    %6 = arith.truncf %5 : vector<1x8x8x64xf32> to vector<1x8x8x64xbf16>
    %7 = vector.shape_cast %6 : vector<1x8x8x64xbf16> to vector<64x64xbf16>
    %c0_14 = arith.constant 0 : index
    %c0_15 = arith.constant 0 : index
    %c1_16 = arith.constant 1 : index
    %c0_17 = arith.constant 0 : index
    %8 = vector.load %arg6[%c0_14, %c0_15, %c1_16, %c0_17] : memref<1x10x10x64xf32, #tpu.memory_space<vmem>>, vector<1x8x8x64xf32>
    %9 = arith.truncf %8 : vector<1x8x8x64xf32> to vector<1x8x8x64xbf16>
    %10 = vector.shape_cast %9 : vector<1x8x8x64xbf16> to vector<64x64xbf16>
    %c0_18 = arith.constant 0 : index
    %c0_19 = arith.constant 0 : index
    %c2 = arith.constant 2 : index
    %c0_20 = arith.constant 0 : index
    %11 = vector.load %arg6[%c0_18, %c0_19, %c2, %c0_20] : memref<1x10x10x64xf32, #tpu.memory_space<vmem>>, vector<1x8x8x64xf32>
    %12 = arith.truncf %11 : vector<1x8x8x64xf32> to vector<1x8x8x64xbf16>
    %13 = vector.shape_cast %12 : vector<1x8x8x64xbf16> to vector<64x64xbf16>
    %c0_21 = arith.constant 0 : index
    %c1_22 = arith.constant 1 : index
    %c0_23 = arith.constant 0 : index
    %c0_24 = arith.constant 0 : index
    %14 = vector.load %arg6[%c0_21, %c1_22, %c0_23, %c0_24] : memref<1x10x10x64xf32, #tpu.memory_space<vmem>>, vector<1x8x8x64xf32>
    %15 = arith.truncf %14 : vector<1x8x8x64xf32> to vector<1x8x8x64xbf16>
    %16 = vector.shape_cast %15 : vector<1x8x8x64xbf16> to vector<64x64xbf16>
    %c0_25 = arith.constant 0 : index
    %c1_26 = arith.constant 1 : index
    %c1_27 = arith.constant 1 : index
    %c0_28 = arith.constant 0 : index
    %17 = vector.load %arg6[%c0_25, %c1_26, %c1_27, %c0_28] : memref<1x10x10x64xf32, #tpu.memory_space<vmem>>, vector<1x8x8x64xf32>
    %18 = arith.truncf %17 : vector<1x8x8x64xf32> to vector<1x8x8x64xbf16>
    %19 = vector.shape_cast %18 : vector<1x8x8x64xbf16> to vector<64x64xbf16>
    %c0_29 = arith.constant 0 : index
    %c1_30 = arith.constant 1 : index
    %c2_31 = arith.constant 2 : index
    %c0_32 = arith.constant 0 : index
    %20 = vector.load %arg6[%c0_29, %c1_30, %c2_31, %c0_32] : memref<1x10x10x64xf32, #tpu.memory_space<vmem>>, vector<1x8x8x64xf32>
    %21 = arith.truncf %20 : vector<1x8x8x64xf32> to vector<1x8x8x64xbf16>
    %22 = vector.shape_cast %21 : vector<1x8x8x64xbf16> to vector<64x64xbf16>
    %c0_33 = arith.constant 0 : index
    %c2_34 = arith.constant 2 : index
    %c0_35 = arith.constant 0 : index
    %c0_36 = arith.constant 0 : index
    %23 = vector.load %arg6[%c0_33, %c2_34, %c0_35, %c0_36] : memref<1x10x10x64xf32, #tpu.memory_space<vmem>>, vector<1x8x8x64xf32>
    %24 = arith.truncf %23 : vector<1x8x8x64xf32> to vector<1x8x8x64xbf16>
    %25 = vector.shape_cast %24 : vector<1x8x8x64xbf16> to vector<64x64xbf16>
    %c0_37 = arith.constant 0 : index
    %c2_38 = arith.constant 2 : index
    %c1_39 = arith.constant 1 : index
    %c0_40 = arith.constant 0 : index
    %26 = vector.load %arg6[%c0_37, %c2_38, %c1_39, %c0_40] : memref<1x10x10x64xf32, #tpu.memory_space<vmem>>, vector<1x8x8x64xf32>
    %27 = arith.truncf %26 : vector<1x8x8x64xf32> to vector<1x8x8x64xbf16>
    %28 = vector.shape_cast %27 : vector<1x8x8x64xbf16> to vector<64x64xbf16>
    %c0_41 = arith.constant 0 : index
    %c2_42 = arith.constant 2 : index
    %c2_43 = arith.constant 2 : index
    %c0_44 = arith.constant 0 : index
    %29 = vector.load %arg6[%c0_41, %c2_42, %c2_43, %c0_44] : memref<1x10x10x64xf32, #tpu.memory_space<vmem>>, vector<1x8x8x64xf32>
    %30 = arith.truncf %29 : vector<1x8x8x64xf32> to vector<1x8x8x64xbf16>
    %31 = vector.shape_cast %30 : vector<1x8x8x64xbf16> to vector<64x64xbf16>
    %32 = tpu.concatenate %7, %10, %13, %16, %19, %22, %25, %28, %31 in 1 : vector<64x64xbf16>, vector<64x64xbf16>, vector<64x64xbf16>, vector<64x64xbf16>, vector<64x64xbf16>, vector<64x64xbf16>, vector<64x64xbf16>, vector<64x64xbf16>, vector<64x64xbf16> -> vector<64x576xbf16>
    %c0_45 = arith.constant 0 : index
    %c0_46 = arith.constant 0 : index
    %33 = vector.load %arg3[%c0_45, %c0_46] : memref<1152x64xbf16, #tpu.memory_space<vmem>>, vector<576x64xbf16>
    %cst_47 = arith.constant dense<0.000000e+00> : vector<64x64xf32>
    %34 = tpu.matmul %32, %33, %cst_47 {dimension_numbers = #tpu.dot_dimension_numbers<[1], [0], [0], [1], [0, 0, 1, 1], [], []>} : vector<64x576xbf16>, vector<576x64xbf16>, vector<64x64xf32> -> vector<64x64xf32>
    %c0_48 = arith.constant 0 : index
    %c0_49 = arith.constant 0 : index
    %35 = vector.load %arg4[%c0_48, %c0_49] : memref<2x64xf32, #tpu.memory_space<vmem>>, vector<1x64xf32>
    %36 = vector.shape_cast %35 : vector<1x64xf32> to vector<64xf32>
    %37 = vector.shape_cast %36 : vector<64xf32> to vector<1x64xf32>
    %38 = vector.broadcast %37 : vector<1x64xf32> to vector<64x64xf32>
    %39 = arith.addf %34, %38 : vector<64x64xf32>
    %cst_50 = arith.constant 0.000000e+00 : f32
    %40 = vector.broadcast %cst_50 : f32 to vector<64x64xf32>
    %41 = arith.cmpf oge, %39, %40 : vector<64x64xf32>
    %cst_51 = arith.constant 0.00999999977 : f32
    %42 = vector.broadcast %cst_51 : f32 to vector<64x64xf32>
    %43 = arith.mulf %39, %42 : vector<64x64xf32>
    %44 = arith.select %41, %39, %43 : vector<64x64xi1>, vector<64x64xf32>
    %45 = vector.shape_cast %44 : vector<64x64xf32> to vector<1x8x8x64xf32>
    %c0_52 = arith.constant 0 : index
    %c1_53 = arith.constant 1 : index
    %c1_54 = arith.constant 1 : index
    %c0_55 = arith.constant 0 : index
    %46 = vector.load %arg6[%c0_52, %c1_53, %c1_54, %c0_55] : memref<1x10x10x64xf32, #tpu.memory_space<vmem>>, vector<1x8x8x64xf32>
    tpu.vector_store %arg6[%c0_52, %c1_53, %c1_54, %c0_55], %45 {strides = array<i32>} : memref<1x10x10x64xf32, #tpu.memory_space<vmem>>, vector<1x8x8x64xf32>,
    %c0_56 = arith.constant 0 : index
    %c0_57 = arith.constant 0 : index
    %c0_58 = arith.constant 0 : index
    %c0_59 = arith.constant 0 : index
    %47 = vector.load %arg6[%c0_56, %c0_57, %c0_58, %c0_59] : memref<1x10x10x64xf32, #tpu.memory_space<vmem>>, vector<1x8x8x64xf32>
    %48 = arith.truncf %47 : vector<1x8x8x64xf32> to vector<1x8x8x64xbf16>
    %49 = vector.shape_cast %48 : vector<1x8x8x64xbf16> to vector<64x64xbf16>
    %c0_60 = arith.constant 0 : index
    %c0_61 = arith.constant 0 : index
    %c1_62 = arith.constant 1 : index
    %c0_63 = arith.constant 0 : index
    %50 = vector.load %arg6[%c0_60, %c0_61, %c1_62, %c0_63] : memref<1x10x10x64xf32, #tpu.memory_space<vmem>>, vector<1x8x8x64xf32>
    %51 = arith.truncf %50 : vector<1x8x8x64xf32> to vector<1x8x8x64xbf16>
    %52 = vector.shape_cast %51 : vector<1x8x8x64xbf16> to vector<64x64xbf16>
    %c0_64 = arith.constant 0 : index
    %c0_65 = arith.constant 0 : index
    %c2_66 = arith.constant 2 : index
    %c0_67 = arith.constant 0 : index
    %53 = vector.load %arg6[%c0_64, %c0_65, %c2_66, %c0_67] : memref<1x10x10x64xf32, #tpu.memory_space<vmem>>, vector<1x8x8x64xf32>
    %54 = arith.truncf %53 : vector<1x8x8x64xf32> to vector<1x8x8x64xbf16>
    %55 = vector.shape_cast %54 : vector<1x8x8x64xbf16> to vector<64x64xbf16>
    %c0_68 = arith.constant 0 : index
    %c1_69 = arith.constant 1 : index
    %c0_70 = arith.constant 0 : index
    %c0_71 = arith.constant 0 : index
    %56 = vector.load %arg6[%c0_68, %c1_69, %c0_70, %c0_71] : memref<1x10x10x64xf32, #tpu.memory_space<vmem>>, vector<1x8x8x64xf32>
    %57 = arith.truncf %56 : vector<1x8x8x64xf32> to vector<1x8x8x64xbf16>
    %58 = vector.shape_cast %57 : vector<1x8x8x64xbf16> to vector<64x64xbf16>
    %c0_72 = arith.constant 0 : index
    %c1_73 = arith.constant 1 : index
    %c1_74 = arith.constant 1 : index
    %c0_75 = arith.constant 0 : index
    %59 = vector.load %arg6[%c0_72, %c1_73, %c1_74, %c0_75] : memref<1x10x10x64xf32, #tpu.memory_space<vmem>>, vector<1x8x8x64xf32>
    %60 = arith.truncf %59 : vector<1x8x8x64xf32> to vector<1x8x8x64xbf16>
    %61 = vector.shape_cast %60 : vector<1x8x8x64xbf16> to vector<64x64xbf16>
    %c0_76 = arith.constant 0 : index
    %c1_77 = arith.constant 1 : index
    %c2_78 = arith.constant 2 : index
    %c0_79 = arith.constant 0 : index
    %62 = vector.load %arg6[%c0_76, %c1_77, %c2_78, %c0_79] : memref<1x10x10x64xf32, #tpu.memory_space<vmem>>, vector<1x8x8x64xf32>
    %63 = arith.truncf %62 : vector<1x8x8x64xf32> to vector<1x8x8x64xbf16>
    %64 = vector.shape_cast %63 : vector<1x8x8x64xbf16> to vector<64x64xbf16>
    %c0_80 = arith.constant 0 : index
    %c2_81 = arith.constant 2 : index
    %c0_82 = arith.constant 0 : index
    %c0_83 = arith.constant 0 : index
    %65 = vector.load %arg6[%c0_80, %c2_81, %c0_82, %c0_83] : memref<1x10x10x64xf32, #tpu.memory_space<vmem>>, vector<1x8x8x64xf32>
    %66 = arith.truncf %65 : vector<1x8x8x64xf32> to vector<1x8x8x64xbf16>
    %67 = vector.shape_cast %66 : vector<1x8x8x64xbf16> to vector<64x64xbf16>
    %c0_84 = arith.constant 0 : index
    %c2_85 = arith.constant 2 : index
    %c1_86 = arith.constant 1 : index
    %c0_87 = arith.constant 0 : index
    %68 = vector.load %arg6[%c0_84, %c2_85, %c1_86, %c0_87] : memref<1x10x10x64xf32, #tpu.memory_space<vmem>>, vector<1x8x8x64xf32>
    %69 = arith.truncf %68 : vector<1x8x8x64xf32> to vector<1x8x8x64xbf16>
    %70 = vector.shape_cast %69 : vector<1x8x8x64xbf16> to vector<64x64xbf16>
    %c0_88 = arith.constant 0 : index
    %c2_89 = arith.constant 2 : index
    %c2_90 = arith.constant 2 : index
    %c0_91 = arith.constant 0 : index
    %71 = vector.load %arg6[%c0_88, %c2_89, %c2_90, %c0_91] : memref<1x10x10x64xf32, #tpu.memory_space<vmem>>, vector<1x8x8x64xf32>
    %72 = arith.truncf %71 : vector<1x8x8x64xf32> to vector<1x8x8x64xbf16>
    %73 = vector.shape_cast %72 : vector<1x8x8x64xbf16> to vector<64x64xbf16>
    %74 = tpu.concatenate %49, %52, %55, %58, %61, %64, %67, %70, %73 in 1 : vector<64x64xbf16>, vector<64x64xbf16>, vector<64x64xbf16>, vector<64x64xbf16>, vector<64x64xbf16>, vector<64x64xbf16>, vector<64x64xbf16>, vector<64x64xbf16>, vector<64x64xbf16> -> vector<64x576xbf16>
    %c576 = arith.constant 576 : index
    %c0_92 = arith.constant 0 : index
    %75 = vector.load %arg3[%c576, %c0_92] : memref<1152x64xbf16, #tpu.memory_space<vmem>>, vector<576x64xbf16>
    %cst_93 = arith.constant dense<0.000000e+00> : vector<64x64xf32>
    %76 = tpu.matmul %74, %75, %cst_93 {dimension_numbers = #tpu.dot_dimension_numbers<[1], [0], [0], [1], [0, 0, 1, 1], [], []>} : vector<64x576xbf16>, vector<576x64xbf16>, vector<64x64xf32> -> vector<64x64xf32>
    %c1_94 = arith.constant 1 : index
    %c0_95 = arith.constant 0 : index
    %77 = vector.load %arg4[%c1_94, %c0_95] : memref<2x64xf32, #tpu.memory_space<vmem>>, vector<1x64xf32>
    %78 = vector.shape_cast %77 : vector<1x64xf32> to vector<64xf32>
    %79 = vector.shape_cast %78 : vector<64xf32> to vector<1x64xf32>
    %80 = vector.broadcast %79 : vector<1x64xf32> to vector<64x64xf32>
    %81 = arith.addf %76, %80 : vector<64x64xf32>
    %82 = vector.shape_cast %81 : vector<64x64xf32> to vector<1x8x8x64xf32>
    %c0_96 = arith.constant 0 : index
    %c0_97 = arith.constant 0 : index
    %c0_98 = arith.constant 0 : index
    %c0_99 = arith.constant 0 : index
    %83 = vector.load %arg2[%c0_96, %c0_97, %c0_98, %c0_99] : memref<1x8x8x64xbf16, #tpu.memory_space<vmem>>, vector<1x8x8x64xbf16>
    %84 = arith.extf %83 : vector<1x8x8x64xbf16> to vector<1x8x8x64xf32>
    %85 = arith.addf %82, %84 : vector<1x8x8x64xf32>
    %86 = arith.truncf %85 : vector<1x8x8x64xf32> to vector<1x8x8x64xbf16>
    %c0_100 = arith.constant 0 : index
    %c0_101 = arith.constant 0 : index
    %c0_102 = arith.constant 0 : index
    %c0_103 = arith.constant 0 : index
    %87 = vector.load %arg5[%c0_100, %c0_101, %c0_102, %c0_103] : memref<1x8x8x64xbf16, #tpu.memory_space<vmem>>, vector<1x8x8x64xbf16>
    tpu.vector_store %arg5[%c0_100, %c0_101, %c0_102, %c0_103], %86 {strides = array<i32>} : memref<1x8x8x64xbf16, #tpu.memory_space<vmem>>, vector<1x8x8x64xbf16>,
    return
  }
  func.func @transform_0(%arg0: i32) -> (i32, i32, i32, i32) {
    %c0_i32 = arith.constant 0 : i32
    %c0_i32_0 = arith.constant 0 : i32
    %c0_i32_1 = arith.constant 0 : i32
    %c0_i32_2 = arith.constant 0 : i32
    return %arg0, %c0_i32, %c0_i32_0, %c0_i32_1 : i32, i32, i32, i32
  }
  func.func @transform_1(%arg0: i32) -> (i32, i32, i32, i32) {
    %c0_i32 = arith.constant 0 : i32
    %c0_i32_0 = arith.constant 0 : i32
    %c0_i32_1 = arith.constant 0 : i32
    %c0_i32_2 = arith.constant 0 : i32
    return %arg0, %c0_i32, %c0_i32_0, %c0_i32_1 : i32, i32, i32, i32
  }
  func.func @transform_2(%arg0: i32) -> (i32, i32) {
    %c0_i32 = arith.constant 0 : i32
    %c0_i32_0 = arith.constant 0 : i32
    %c0_i32_1 = arith.constant 0 : i32
    return %c0_i32, %c0_i32_0 : i32, i32
  }
  func.func @transform_3(%arg0: i32) -> (i32, i32) {
    %c0_i32 = arith.constant 0 : i32
    %c0_i32_0 = arith.constant 0 : i32
    %c0_i32_1 = arith.constant 0 : i32
    return %c0_i32, %c0_i32_0 : i32, i32
  }
  func.func @transform_4(%arg0: i32) -> (i32, i32, i32, i32) {
    %c0_i32 = arith.constant 0 : i32
    %c0_i32_0 = arith.constant 0 : i32
    %c0_i32_1 = arith.constant 0 : i32
    %c0_i32_2 = arith.constant 0 : i32
    return %arg0, %c0_i32, %c0_i32_0, %c0_i32_1 : i32, i32, i32, i32
  }
}

module attributes {stable_mosaic.version = 11 : i64} {
  func.func @_conv3x3_kernel(%arg0: i32, %arg1: memref<1x8x8x64xbf16, #tpu.memory_space<vmem>>, %arg2: memref<576x12xbf16, #tpu.memory_space<vmem>>, %arg3: memref<1x12xf32, #tpu.memory_space<vmem>>, %arg4: memref<1x8x8x12xf32, #tpu.memory_space<vmem>>, %arg5: memref<1x10x10x64xf32, #tpu.memory_space<vmem>>) attributes {dimension_semantics = [#tpu.dimension_semantics<parallel>], iteration_bounds = array<i64: 2>, scalar_prefetch = 0 : i64, scratch_operands = 1 : i64, tpu.core_type = #tpu.core_type<tc>, window_params = [{transform_indices = @transform_0, window_bounds = array<i64: 1, 8, 8, 64>}, {pipeline_mode = #tpu.pipeline_mode<synchronous>, transform_indices = @transform_1, window_bounds = array<i64: 576, 12>}, {pipeline_mode = #tpu.pipeline_mode<synchronous>, transform_indices = @transform_2, window_bounds = array<i64: 1, 12>}, {transform_indices = @transform_3, window_bounds = array<i64: 1, 8, 8, 12>}]} {
    %cst = arith.constant 0.000000e+00 : f32
    %0 = vector.broadcast %cst : f32 to vector<1x10x10x64xf32>
    %c0 = arith.constant 0 : index
    %c0_0 = arith.constant 0 : index
    %c0_1 = arith.constant 0 : index
    %c0_2 = arith.constant 0 : index
    %1 = vector.load %arg5[%c0, %c0_0, %c0_1, %c0_2] : memref<1x10x10x64xf32, #tpu.memory_space<vmem>>, vector<1x10x10x64xf32>
    tpu.vector_store %arg5[%c0, %c0_0, %c0_1, %c0_2], %0 {strides = array<i32>} : memref<1x10x10x64xf32, #tpu.memory_space<vmem>>, vector<1x10x10x64xf32>,
    %c0_3 = arith.constant 0 : index
    %c0_4 = arith.constant 0 : index
    %c0_5 = arith.constant 0 : index
    %c0_6 = arith.constant 0 : index
    %2 = vector.load %arg1[%c0_3, %c0_4, %c0_5, %c0_6] : memref<1x8x8x64xbf16, #tpu.memory_space<vmem>>, vector<1x8x8x64xbf16>
    %3 = arith.extf %2 : vector<1x8x8x64xbf16> to vector<1x8x8x64xf32>
    %c0_7 = arith.constant 0 : index
    %c1 = arith.constant 1 : index
    %c1_8 = arith.constant 1 : index
    %c0_9 = arith.constant 0 : index
    %4 = vector.load %arg5[%c0_7, %c1, %c1_8, %c0_9] : memref<1x10x10x64xf32, #tpu.memory_space<vmem>>, vector<1x8x8x64xf32>
    tpu.vector_store %arg5[%c0_7, %c1, %c1_8, %c0_9], %3 {strides = array<i32>} : memref<1x10x10x64xf32, #tpu.memory_space<vmem>>, vector<1x8x8x64xf32>,
    %c0_10 = arith.constant 0 : index
    %c0_11 = arith.constant 0 : index
    %c0_12 = arith.constant 0 : index
    %c0_13 = arith.constant 0 : index
    %5 = vector.load %arg5[%c0_10, %c0_11, %c0_12, %c0_13] : memref<1x10x10x64xf32, #tpu.memory_space<vmem>>, vector<1x8x8x64xf32>
    %6 = arith.truncf %5 : vector<1x8x8x64xf32> to vector<1x8x8x64xbf16>
    %7 = vector.shape_cast %6 : vector<1x8x8x64xbf16> to vector<64x64xbf16>
    %c0_14 = arith.constant 0 : index
    %c0_15 = arith.constant 0 : index
    %c1_16 = arith.constant 1 : index
    %c0_17 = arith.constant 0 : index
    %8 = vector.load %arg5[%c0_14, %c0_15, %c1_16, %c0_17] : memref<1x10x10x64xf32, #tpu.memory_space<vmem>>, vector<1x8x8x64xf32>
    %9 = arith.truncf %8 : vector<1x8x8x64xf32> to vector<1x8x8x64xbf16>
    %10 = vector.shape_cast %9 : vector<1x8x8x64xbf16> to vector<64x64xbf16>
    %c0_18 = arith.constant 0 : index
    %c0_19 = arith.constant 0 : index
    %c2 = arith.constant 2 : index
    %c0_20 = arith.constant 0 : index
    %11 = vector.load %arg5[%c0_18, %c0_19, %c2, %c0_20] : memref<1x10x10x64xf32, #tpu.memory_space<vmem>>, vector<1x8x8x64xf32>
    %12 = arith.truncf %11 : vector<1x8x8x64xf32> to vector<1x8x8x64xbf16>
    %13 = vector.shape_cast %12 : vector<1x8x8x64xbf16> to vector<64x64xbf16>
    %c0_21 = arith.constant 0 : index
    %c1_22 = arith.constant 1 : index
    %c0_23 = arith.constant 0 : index
    %c0_24 = arith.constant 0 : index
    %14 = vector.load %arg5[%c0_21, %c1_22, %c0_23, %c0_24] : memref<1x10x10x64xf32, #tpu.memory_space<vmem>>, vector<1x8x8x64xf32>
    %15 = arith.truncf %14 : vector<1x8x8x64xf32> to vector<1x8x8x64xbf16>
    %16 = vector.shape_cast %15 : vector<1x8x8x64xbf16> to vector<64x64xbf16>
    %c0_25 = arith.constant 0 : index
    %c1_26 = arith.constant 1 : index
    %c1_27 = arith.constant 1 : index
    %c0_28 = arith.constant 0 : index
    %17 = vector.load %arg5[%c0_25, %c1_26, %c1_27, %c0_28] : memref<1x10x10x64xf32, #tpu.memory_space<vmem>>, vector<1x8x8x64xf32>
    %18 = arith.truncf %17 : vector<1x8x8x64xf32> to vector<1x8x8x64xbf16>
    %19 = vector.shape_cast %18 : vector<1x8x8x64xbf16> to vector<64x64xbf16>
    %c0_29 = arith.constant 0 : index
    %c1_30 = arith.constant 1 : index
    %c2_31 = arith.constant 2 : index
    %c0_32 = arith.constant 0 : index
    %20 = vector.load %arg5[%c0_29, %c1_30, %c2_31, %c0_32] : memref<1x10x10x64xf32, #tpu.memory_space<vmem>>, vector<1x8x8x64xf32>
    %21 = arith.truncf %20 : vector<1x8x8x64xf32> to vector<1x8x8x64xbf16>
    %22 = vector.shape_cast %21 : vector<1x8x8x64xbf16> to vector<64x64xbf16>
    %c0_33 = arith.constant 0 : index
    %c2_34 = arith.constant 2 : index
    %c0_35 = arith.constant 0 : index
    %c0_36 = arith.constant 0 : index
    %23 = vector.load %arg5[%c0_33, %c2_34, %c0_35, %c0_36] : memref<1x10x10x64xf32, #tpu.memory_space<vmem>>, vector<1x8x8x64xf32>
    %24 = arith.truncf %23 : vector<1x8x8x64xf32> to vector<1x8x8x64xbf16>
    %25 = vector.shape_cast %24 : vector<1x8x8x64xbf16> to vector<64x64xbf16>
    %c0_37 = arith.constant 0 : index
    %c2_38 = arith.constant 2 : index
    %c1_39 = arith.constant 1 : index
    %c0_40 = arith.constant 0 : index
    %26 = vector.load %arg5[%c0_37, %c2_38, %c1_39, %c0_40] : memref<1x10x10x64xf32, #tpu.memory_space<vmem>>, vector<1x8x8x64xf32>
    %27 = arith.truncf %26 : vector<1x8x8x64xf32> to vector<1x8x8x64xbf16>
    %28 = vector.shape_cast %27 : vector<1x8x8x64xbf16> to vector<64x64xbf16>
    %c0_41 = arith.constant 0 : index
    %c2_42 = arith.constant 2 : index
    %c2_43 = arith.constant 2 : index
    %c0_44 = arith.constant 0 : index
    %29 = vector.load %arg5[%c0_41, %c2_42, %c2_43, %c0_44] : memref<1x10x10x64xf32, #tpu.memory_space<vmem>>, vector<1x8x8x64xf32>
    %30 = arith.truncf %29 : vector<1x8x8x64xf32> to vector<1x8x8x64xbf16>
    %31 = vector.shape_cast %30 : vector<1x8x8x64xbf16> to vector<64x64xbf16>
    %32 = tpu.concatenate %7, %10, %13, %16, %19, %22, %25, %28, %31 in 1 : vector<64x64xbf16>, vector<64x64xbf16>, vector<64x64xbf16>, vector<64x64xbf16>, vector<64x64xbf16>, vector<64x64xbf16>, vector<64x64xbf16>, vector<64x64xbf16>, vector<64x64xbf16> -> vector<64x576xbf16>
    %c0_45 = arith.constant 0 : index
    %c0_46 = arith.constant 0 : index
    %33 = vector.load %arg2[%c0_45, %c0_46] : memref<576x12xbf16, #tpu.memory_space<vmem>>, vector<576x12xbf16>
    %cst_47 = arith.constant dense<0.000000e+00> : vector<64x12xf32>
    %34 = tpu.matmul %32, %33, %cst_47 {dimension_numbers = #tpu.dot_dimension_numbers<[1], [0], [0], [1], [0, 0, 1, 1], [], []>} : vector<64x576xbf16>, vector<576x12xbf16>, vector<64x12xf32> -> vector<64x12xf32>
    %c0_48 = arith.constant 0 : index
    %c0_49 = arith.constant 0 : index
    %35 = vector.load %arg3[%c0_48, %c0_49] : memref<1x12xf32, #tpu.memory_space<vmem>>, vector<1x12xf32>
    %36 = vector.shape_cast %35 : vector<1x12xf32> to vector<12xf32>
    %37 = vector.shape_cast %36 : vector<12xf32> to vector<1x12xf32>
    %38 = vector.broadcast %37 : vector<1x12xf32> to vector<64x12xf32>
    %39 = arith.addf %34, %38 : vector<64x12xf32>
    %40 = vector.shape_cast %39 : vector<64x12xf32> to vector<1x8x8x12xf32>
    %c0_50 = arith.constant 0 : index
    %c0_51 = arith.constant 0 : index
    %c0_52 = arith.constant 0 : index
    %c0_53 = arith.constant 0 : index
    %41 = vector.load %arg4[%c0_50, %c0_51, %c0_52, %c0_53] : memref<1x8x8x12xf32, #tpu.memory_space<vmem>>, vector<1x8x8x12xf32>
    tpu.vector_store %arg4[%c0_50, %c0_51, %c0_52, %c0_53], %40 {strides = array<i32>} : memref<1x8x8x12xf32, #tpu.memory_space<vmem>>, vector<1x8x8x12xf32>,
    return
  }
  func.func @transform_0(%arg0: i32) -> (i32, i32, i32, i32) {
    %c0_i32 = arith.constant 0 : i32
    %c0_i32_0 = arith.constant 0 : i32
    %c0_i32_1 = arith.constant 0 : i32
    %c0_i32_2 = arith.constant 0 : i32
    return %arg0, %c0_i32, %c0_i32_0, %c0_i32_1 : i32, i32, i32, i32
  }
  func.func @transform_1(%arg0: i32) -> (i32, i32) {
    %c0_i32 = arith.constant 0 : i32
    %c0_i32_0 = arith.constant 0 : i32
    %c0_i32_1 = arith.constant 0 : i32
    return %c0_i32, %c0_i32_0 : i32, i32
  }
  func.func @transform_2(%arg0: i32) -> (i32, i32) {
    %c0_i32 = arith.constant 0 : i32
    %c0_i32_0 = arith.constant 0 : i32
    %c0_i32_1 = arith.constant 0 : i32
    return %c0_i32, %c0_i32_0 : i32, i32
  }
  func.func @transform_3(%arg0: i32) -> (i32, i32, i32, i32) {
    %c0_i32 = arith.constant 0 : i32
    %c0_i32_0 = arith.constant 0 : i32
    %c0_i32_1 = arith.constant 0 : i32
    %c0_i32_2 = arith.constant 0 : i32
    return %arg0, %c0_i32, %c0_i32_0, %c0_i32_1 : i32, i32, i32, i32
  }
}

module attributes {stable_mosaic.version = 11 : i64} {
  func.func @_csc_block_kernel(%arg0: i32, %arg1: memref<1x8x8x64xbf16, #tpu.memory_space<vmem>>, %arg2: memref<576x48xbf16, #tpu.memory_space<vmem>>, %arg3: memref<67x48xf32, #tpu.memory_space<vmem>>, %arg4: memref<384x32xbf16, #tpu.memory_space<vmem>>, %arg5: memref<50x32xf32, #tpu.memory_space<vmem>>, %arg6: memref<192x16xbf16, #tpu.memory_space<vmem>>, %arg7: memref<33x16xf32, #tpu.memory_space<vmem>>, %arg8: memref<1152x64xbf16, #tpu.memory_space<vmem>>, %arg9: memref<76x64xf32, #tpu.memory_space<vmem>>, %arg10: memref<1x8x8x64xbf16, #tpu.memory_space<vmem>>, %arg11: memref<1x10x10x64xf32, #tpu.memory_space<vmem>>) attributes {dimension_semantics = [#tpu.dimension_semantics<parallel>], iteration_bounds = array<i64: 2>, scalar_prefetch = 0 : i64, scratch_operands = 1 : i64, tpu.core_type = #tpu.core_type<tc>, window_params = [{transform_indices = @transform_0, window_bounds = array<i64: 1, 8, 8, 64>}, {pipeline_mode = #tpu.pipeline_mode<synchronous>, transform_indices = @transform_1, window_bounds = array<i64: 576, 48>}, {pipeline_mode = #tpu.pipeline_mode<synchronous>, transform_indices = @transform_2, window_bounds = array<i64: 67, 48>}, {pipeline_mode = #tpu.pipeline_mode<synchronous>, transform_indices = @transform_3, window_bounds = array<i64: 384, 32>}, {pipeline_mode = #tpu.pipeline_mode<synchronous>, transform_indices = @transform_4, window_bounds = array<i64: 50, 32>}, {pipeline_mode = #tpu.pipeline_mode<synchronous>, transform_indices = @transform_5, window_bounds = array<i64: 192, 16>}, {pipeline_mode = #tpu.pipeline_mode<synchronous>, transform_indices = @transform_6, window_bounds = array<i64: 33, 16>}, {pipeline_mode = #tpu.pipeline_mode<synchronous>, transform_indices = @transform_7, window_bounds = array<i64: 1152, 64>}, {pipeline_mode = #tpu.pipeline_mode<synchronous>, transform_indices = @transform_8, window_bounds = array<i64: 76, 64>}, {transform_indices = @transform_9, window_bounds = array<i64: 1, 8, 8, 64>}]} {
    %cst = arith.constant 0.000000e+00 : f32
    %0 = vector.broadcast %cst : f32 to vector<1x10x10x64xf32>
    %c0 = arith.constant 0 : index
    %c0_0 = arith.constant 0 : index
    %c0_1 = arith.constant 0 : index
    %c0_2 = arith.constant 0 : index
    %1 = vector.load %arg11[%c0, %c0_0, %c0_1, %c0_2] : memref<1x10x10x64xf32, #tpu.memory_space<vmem>>, vector<1x10x10x64xf32>
    tpu.vector_store %arg11[%c0, %c0_0, %c0_1, %c0_2], %0 {strides = array<i32>} : memref<1x10x10x64xf32, #tpu.memory_space<vmem>>, vector<1x10x10x64xf32>,
    %c0_3 = arith.constant 0 : index
    %c0_4 = arith.constant 0 : index
    %c0_5 = arith.constant 0 : index
    %c0_6 = arith.constant 0 : index
    %2 = vector.load %arg1[%c0_3, %c0_4, %c0_5, %c0_6] : memref<1x8x8x64xbf16, #tpu.memory_space<vmem>>, vector<1x8x8x64xbf16>
    %3 = arith.extf %2 : vector<1x8x8x64xbf16> to vector<1x8x8x64xf32>
    %4 = vector.extract_strided_slice %3 {offsets = [0, 0, 0, 16], sizes = [1, 8, 8, 48], strides = [1, 1, 1, 1]} : vector<1x8x8x64xf32> to vector<1x8x8x48xf32>
    %c0_7 = arith.constant 0 : index
    %c1 = arith.constant 1 : index
    %c1_8 = arith.constant 1 : index
    %c0_9 = arith.constant 0 : index
    %5 = vector.load %arg11[%c0_7, %c1, %c1_8, %c0_9] : memref<1x10x10x64xf32, #tpu.memory_space<vmem>>, vector<1x8x8x48xf32>
    tpu.vector_store %arg11[%c0_7, %c1, %c1_8, %c0_9], %4 {strides = array<i32>} : memref<1x10x10x64xf32, #tpu.memory_space<vmem>>, vector<1x8x8x48xf32>,
    %c0_10 = arith.constant 0 : index
    %c0_11 = arith.constant 0 : index
    %c1_12 = arith.constant 1 : index
    %c0_13 = arith.constant 0 : index
    %6 = vector.load %arg11[%c0_10, %c0_11, %c1_12, %c0_13] : memref<1x10x10x64xf32, #tpu.memory_space<vmem>>, vector<1x8x8x48xf32>
    %7 = arith.truncf %6 : vector<1x8x8x48xf32> to vector<1x8x8x48xbf16>
    %8 = vector.shape_cast %7 : vector<1x8x8x48xbf16> to vector<64x48xbf16>
    %c0_14 = arith.constant 0 : index
    %c1_15 = arith.constant 1 : index
    %c1_16 = arith.constant 1 : index
    %c0_17 = arith.constant 0 : index
    %9 = vector.load %arg11[%c0_14, %c1_15, %c1_16, %c0_17] : memref<1x10x10x64xf32, #tpu.memory_space<vmem>>, vector<1x8x8x48xf32>
    %10 = arith.truncf %9 : vector<1x8x8x48xf32> to vector<1x8x8x48xbf16>
    %11 = vector.shape_cast %10 : vector<1x8x8x48xbf16> to vector<64x48xbf16>
    %c0_18 = arith.constant 0 : index
    %c2 = arith.constant 2 : index
    %c1_19 = arith.constant 1 : index
    %c0_20 = arith.constant 0 : index
    %12 = vector.load %arg11[%c0_18, %c2, %c1_19, %c0_20] : memref<1x10x10x64xf32, #tpu.memory_space<vmem>>, vector<1x8x8x48xf32>
    %13 = arith.truncf %12 : vector<1x8x8x48xf32> to vector<1x8x8x48xbf16>
    %14 = vector.shape_cast %13 : vector<1x8x8x48xbf16> to vector<64x48xbf16>
    %c0_21 = arith.constant 0 : index
    %c1_22 = arith.constant 1 : index
    %c0_23 = arith.constant 0 : index
    %c0_24 = arith.constant 0 : index
    %15 = vector.load %arg11[%c0_21, %c1_22, %c0_23, %c0_24] : memref<1x10x10x64xf32, #tpu.memory_space<vmem>>, vector<1x8x8x48xf32>
    %16 = arith.truncf %15 : vector<1x8x8x48xf32> to vector<1x8x8x48xbf16>
    %17 = vector.shape_cast %16 : vector<1x8x8x48xbf16> to vector<64x48xbf16>
    %c0_25 = arith.constant 0 : index
    %c1_26 = arith.constant 1 : index
    %c1_27 = arith.constant 1 : index
    %c0_28 = arith.constant 0 : index
    %18 = vector.load %arg11[%c0_25, %c1_26, %c1_27, %c0_28] : memref<1x10x10x64xf32, #tpu.memory_space<vmem>>, vector<1x8x8x48xf32>
    %19 = arith.truncf %18 : vector<1x8x8x48xf32> to vector<1x8x8x48xbf16>
    %20 = vector.shape_cast %19 : vector<1x8x8x48xbf16> to vector<64x48xbf16>
    %c0_29 = arith.constant 0 : index
    %c1_30 = arith.constant 1 : index
    %c2_31 = arith.constant 2 : index
    %c0_32 = arith.constant 0 : index
    %21 = vector.load %arg11[%c0_29, %c1_30, %c2_31, %c0_32] : memref<1x10x10x64xf32, #tpu.memory_space<vmem>>, vector<1x8x8x48xf32>
    %22 = arith.truncf %21 : vector<1x8x8x48xf32> to vector<1x8x8x48xbf16>
    %23 = vector.shape_cast %22 : vector<1x8x8x48xbf16> to vector<64x48xbf16>
    %24 = tpu.concatenate %8, %11, %14, %17, %20, %23 in 1 : vector<64x48xbf16>, vector<64x48xbf16>, vector<64x48xbf16>, vector<64x48xbf16>, vector<64x48xbf16>, vector<64x48xbf16> -> vector<64x288xbf16>
    %c0_33 = arith.constant 0 : index
    %c0_34 = arith.constant 0 : index
    %25 = vector.load %arg2[%c0_33, %c0_34] : memref<576x48xbf16, #tpu.memory_space<vmem>>, vector<288x48xbf16>
    %cst_35 = arith.constant dense<0.000000e+00> : vector<64x48xf32>
    %26 = tpu.matmul %24, %25, %cst_35 {dimension_numbers = #tpu.dot_dimension_numbers<[1], [0], [0], [1], [0, 0, 1, 1], [], []>} : vector<64x288xbf16>, vector<288x48xbf16>, vector<64x48xf32> -> vector<64x48xf32>
    %c0_36 = arith.constant 0 : index
    %c0_37 = arith.constant 0 : index
    %27 = vector.load %arg3[%c0_36, %c0_37] : memref<67x48xf32, #tpu.memory_space<vmem>>, vector<1x48xf32>
    %28 = vector.shape_cast %27 : vector<1x48xf32> to vector<48xf32>
    %29 = vector.shape_cast %28 : vector<48xf32> to vector<1x48xf32>
    %30 = vector.broadcast %29 : vector<1x48xf32> to vector<64x48xf32>
    %31 = arith.addf %26, %30 : vector<64x48xf32>
    %cst_38 = arith.constant 0.000000e+00 : f32
    %32 = vector.broadcast %cst_38 : f32 to vector<64x48xf32>
    %33 = arith.cmpf oge, %31, %32 : vector<64x48xf32>
    %cst_39 = arith.constant 0.00999999977 : f32
    %34 = vector.broadcast %cst_39 : f32 to vector<64x48xf32>
    %35 = arith.mulf %31, %34 : vector<64x48xf32>
    %36 = arith.select %33, %31, %35 : vector<64x48xi1>, vector<64x48xf32>
    %37 = vector.shape_cast %36 : vector<64x48xf32> to vector<1x8x8x48xf32>
    %c0_40 = arith.constant 0 : index
    %c1_41 = arith.constant 1 : index
    %c1_42 = arith.constant 1 : index
    %c0_43 = arith.constant 0 : index
    %38 = vector.load %arg11[%c0_40, %c1_41, %c1_42, %c0_43] : memref<1x10x10x64xf32, #tpu.memory_space<vmem>>, vector<1x8x8x48xf32>
    tpu.vector_store %arg11[%c0_40, %c1_41, %c1_42, %c0_43], %37 {strides = array<i32>} : memref<1x10x10x64xf32, #tpu.memory_space<vmem>>, vector<1x8x8x48xf32>,
    %c0_44 = arith.constant 0 : index
    %c0_45 = arith.constant 0 : index
    %c1_46 = arith.constant 1 : index
    %c0_47 = arith.constant 0 : index
    %39 = vector.load %arg11[%c0_44, %c0_45, %c1_46, %c0_47] : memref<1x10x10x64xf32, #tpu.memory_space<vmem>>, vector<1x8x8x48xf32>
    %40 = arith.truncf %39 : vector<1x8x8x48xf32> to vector<1x8x8x48xbf16>
    %41 = vector.shape_cast %40 : vector<1x8x8x48xbf16> to vector<64x48xbf16>
    %c0_48 = arith.constant 0 : index
    %c1_49 = arith.constant 1 : index
    %c1_50 = arith.constant 1 : index
    %c0_51 = arith.constant 0 : index
    %42 = vector.load %arg11[%c0_48, %c1_49, %c1_50, %c0_51] : memref<1x10x10x64xf32, #tpu.memory_space<vmem>>, vector<1x8x8x48xf32>
    %43 = arith.truncf %42 : vector<1x8x8x48xf32> to vector<1x8x8x48xbf16>
    %44 = vector.shape_cast %43 : vector<1x8x8x48xbf16> to vector<64x48xbf16>
    %c0_52 = arith.constant 0 : index
    %c2_53 = arith.constant 2 : index
    %c1_54 = arith.constant 1 : index
    %c0_55 = arith.constant 0 : index
    %45 = vector.load %arg11[%c0_52, %c2_53, %c1_54, %c0_55] : memref<1x10x10x64xf32, #tpu.memory_space<vmem>>, vector<1x8x8x48xf32>
    %46 = arith.truncf %45 : vector<1x8x8x48xf32> to vector<1x8x8x48xbf16>
    %47 = vector.shape_cast %46 : vector<1x8x8x48xbf16> to vector<64x48xbf16>
    %c0_56 = arith.constant 0 : index
    %c1_57 = arith.constant 1 : index
    %c0_58 = arith.constant 0 : index
    %c0_59 = arith.constant 0 : index
    %48 = vector.load %arg11[%c0_56, %c1_57, %c0_58, %c0_59] : memref<1x10x10x64xf32, #tpu.memory_space<vmem>>, vector<1x8x8x48xf32>
    %49 = arith.truncf %48 : vector<1x8x8x48xf32> to vector<1x8x8x48xbf16>
    %50 = vector.shape_cast %49 : vector<1x8x8x48xbf16> to vector<64x48xbf16>
    %c0_60 = arith.constant 0 : index
    %c1_61 = arith.constant 1 : index
    %c1_62 = arith.constant 1 : index
    %c0_63 = arith.constant 0 : index
    %51 = vector.load %arg11[%c0_60, %c1_61, %c1_62, %c0_63] : memref<1x10x10x64xf32, #tpu.memory_space<vmem>>, vector<1x8x8x48xf32>
    %52 = arith.truncf %51 : vector<1x8x8x48xf32> to vector<1x8x8x48xbf16>
    %53 = vector.shape_cast %52 : vector<1x8x8x48xbf16> to vector<64x48xbf16>
    %c0_64 = arith.constant 0 : index
    %c1_65 = arith.constant 1 : index
    %c2_66 = arith.constant 2 : index
    %c0_67 = arith.constant 0 : index
    %54 = vector.load %arg11[%c0_64, %c1_65, %c2_66, %c0_67] : memref<1x10x10x64xf32, #tpu.memory_space<vmem>>, vector<1x8x8x48xf32>
    %55 = arith.truncf %54 : vector<1x8x8x48xf32> to vector<1x8x8x48xbf16>
    %56 = vector.shape_cast %55 : vector<1x8x8x48xbf16> to vector<64x48xbf16>
    %57 = tpu.concatenate %41, %44, %47, %50, %53, %56 in 1 : vector<64x48xbf16>, vector<64x48xbf16>, vector<64x48xbf16>, vector<64x48xbf16>, vector<64x48xbf16>, vector<64x48xbf16> -> vector<64x288xbf16>
    %c288 = arith.constant 288 : index
    %c0_68 = arith.constant 0 : index
    %58 = vector.load %arg2[%c288, %c0_68] : memref<576x48xbf16, #tpu.memory_space<vmem>>, vector<288x48xbf16>
    %cst_69 = arith.constant dense<0.000000e+00> : vector<64x48xf32>
    %59 = tpu.matmul %57, %58, %cst_69 {dimension_numbers = #tpu.dot_dimension_numbers<[1], [0], [0], [1], [0, 0, 1, 1], [], []>} : vector<64x288xbf16>, vector<288x48xbf16>, vector<64x48xf32> -> vector<64x48xf32>
    %c1_70 = arith.constant 1 : index
    %c0_71 = arith.constant 0 : index
    %60 = vector.load %arg3[%c1_70, %c0_71] : memref<67x48xf32, #tpu.memory_space<vmem>>, vector<1x48xf32>
    %61 = vector.shape_cast %60 : vector<1x48xf32> to vector<48xf32>
    %62 = vector.shape_cast %61 : vector<48xf32> to vector<1x48xf32>
    %63 = vector.broadcast %62 : vector<1x48xf32> to vector<64x48xf32>
    %64 = arith.addf %59, %63 : vector<64x48xf32>
    %65 = vector.shape_cast %64 : vector<64x48xf32> to vector<1x8x8x48xf32>
    %c0_72 = arith.constant 0 : index
    %c1_73 = arith.constant 1 : index
    %c1_74 = arith.constant 1 : index
    %c0_75 = arith.constant 0 : index
    %66 = vector.load %arg11[%c0_72, %c1_73, %c1_74, %c0_75] : memref<1x10x10x64xf32, #tpu.memory_space<vmem>>, vector<1x8x8x48xf32>
    tpu.vector_store %arg11[%c0_72, %c1_73, %c1_74, %c0_75], %65 {strides = array<i32>} : memref<1x10x10x64xf32, #tpu.memory_space<vmem>>, vector<1x8x8x48xf32>,
    %c0_76 = arith.constant 0 : index
    %c0_77 = arith.constant 0 : index
    %c0_78 = arith.constant 0 : index
    %c0_79 = arith.constant 0 : index
    %67 = vector.load %arg11[%c0_76, %c0_77, %c0_78, %c0_79] : memref<1x10x10x64xf32, #tpu.memory_space<vmem>>, vector<1x8x8x48xf32>
    %c3 = arith.constant 3 : index
    %c0_80 = arith.constant 0 : index
    %68 = vector.load %arg3[%c3, %c0_80] : memref<67x48xf32, #tpu.memory_space<vmem>>, vector<1x48xf32>
    %69 = vector.shape_cast %68 : vector<1x48xf32> to vector<48xf32>
    %70 = vector.shape_cast %69 : vector<48xf32> to vector<1x1x1x48xf32>
    %71 = vector.broadcast %70 : vector<1x1x1x48xf32> to vector<1x8x8x48xf32>
    %72 = arith.mulf %67, %71 : vector<1x8x8x48xf32>
    %c0_81 = arith.constant 0 : index
    %c0_82 = arith.constant 0 : index
    %c1_83 = arith.constant 1 : index
    %c0_84 = arith.constant 0 : index
    %73 = vector.load %arg11[%c0_81, %c0_82, %c1_83, %c0_84] : memref<1x10x10x64xf32, #tpu.memory_space<vmem>>, vector<1x8x8x48xf32>
    %c4 = arith.constant 4 : index
    %c0_85 = arith.constant 0 : index
    %74 = vector.load %arg3[%c4, %c0_85] : memref<67x48xf32, #tpu.memory_space<vmem>>, vector<1x48xf32>
    %75 = vector.shape_cast %74 : vector<1x48xf32> to vector<48xf32>
    %76 = vector.shape_cast %75 : vector<48xf32> to vector<1x1x1x48xf32>
    %77 = vector.broadcast %76 : vector<1x1x1x48xf32> to vector<1x8x8x48xf32>
    %78 = arith.mulf %73, %77 : vector<1x8x8x48xf32>
    %79 = arith.addf %72, %78 : vector<1x8x8x48xf32>
    %c0_86 = arith.constant 0 : index
    %c0_87 = arith.constant 0 : index
    %c2_88 = arith.constant 2 : index
    %c0_89 = arith.constant 0 : index
    %80 = vector.load %arg11[%c0_86, %c0_87, %c2_88, %c0_89] : memref<1x10x10x64xf32, #tpu.memory_space<vmem>>, vector<1x8x8x48xf32>
    %c5 = arith.constant 5 : index
    %c0_90 = arith.constant 0 : index
    %81 = vector.load %arg3[%c5, %c0_90] : memref<67x48xf32, #tpu.memory_space<vmem>>, vector<1x48xf32>
    %82 = vector.shape_cast %81 : vector<1x48xf32> to vector<48xf32>
    %83 = vector.shape_cast %82 : vector<48xf32> to vector<1x1x1x48xf32>
    %84 = vector.broadcast %83 : vector<1x1x1x48xf32> to vector<1x8x8x48xf32>
    %85 = arith.mulf %80, %84 : vector<1x8x8x48xf32>
    %86 = arith.addf %79, %85 : vector<1x8x8x48xf32>
    %c0_91 = arith.constant 0 : index
    %c1_92 = arith.constant 1 : index
    %c0_93 = arith.constant 0 : index
    %c0_94 = arith.constant 0 : index
    %87 = vector.load %arg11[%c0_91, %c1_92, %c0_93, %c0_94] : memref<1x10x10x64xf32, #tpu.memory_space<vmem>>, vector<1x8x8x48xf32>
    %c6 = arith.constant 6 : index
    %c0_95 = arith.constant 0 : index
    %88 = vector.load %arg3[%c6, %c0_95] : memref<67x48xf32, #tpu.memory_space<vmem>>, vector<1x48xf32>
    %89 = vector.shape_cast %88 : vector<1x48xf32> to vector<48xf32>
    %90 = vector.shape_cast %89 : vector<48xf32> to vector<1x1x1x48xf32>
    %91 = vector.broadcast %90 : vector<1x1x1x48xf32> to vector<1x8x8x48xf32>
    %92 = arith.mulf %87, %91 : vector<1x8x8x48xf32>
    %93 = arith.addf %86, %92 : vector<1x8x8x48xf32>
    %c0_96 = arith.constant 0 : index
    %c1_97 = arith.constant 1 : index
    %c1_98 = arith.constant 1 : index
    %c0_99 = arith.constant 0 : index
    %94 = vector.load %arg11[%c0_96, %c1_97, %c1_98, %c0_99] : memref<1x10x10x64xf32, #tpu.memory_space<vmem>>, vector<1x8x8x48xf32>
    %c7 = arith.constant 7 : index
    %c0_100 = arith.constant 0 : index
    %95 = vector.load %arg3[%c7, %c0_100] : memref<67x48xf32, #tpu.memory_space<vmem>>, vector<1x48xf32>
    %96 = vector.shape_cast %95 : vector<1x48xf32> to vector<48xf32>
    %97 = vector.shape_cast %96 : vector<48xf32> to vector<1x1x1x48xf32>
    %98 = vector.broadcast %97 : vector<1x1x1x48xf32> to vector<1x8x8x48xf32>
    %99 = arith.mulf %94, %98 : vector<1x8x8x48xf32>
    %100 = arith.addf %93, %99 : vector<1x8x8x48xf32>
    %c0_101 = arith.constant 0 : index
    %c1_102 = arith.constant 1 : index
    %c2_103 = arith.constant 2 : index
    %c0_104 = arith.constant 0 : index
    %101 = vector.load %arg11[%c0_101, %c1_102, %c2_103, %c0_104] : memref<1x10x10x64xf32, #tpu.memory_space<vmem>>, vector<1x8x8x48xf32>
    %c8 = arith.constant 8 : index
    %c0_105 = arith.constant 0 : index
    %102 = vector.load %arg3[%c8, %c0_105] : memref<67x48xf32, #tpu.memory_space<vmem>>, vector<1x48xf32>
    %103 = vector.shape_cast %102 : vector<1x48xf32> to vector<48xf32>
    %104 = vector.shape_cast %103 : vector<48xf32> to vector<1x1x1x48xf32>
    %105 = vector.broadcast %104 : vector<1x1x1x48xf32> to vector<1x8x8x48xf32>
    %106 = arith.mulf %101, %105 : vector<1x8x8x48xf32>
    %107 = arith.addf %100, %106 : vector<1x8x8x48xf32>
    %c0_106 = arith.constant 0 : index
    %c2_107 = arith.constant 2 : index
    %c0_108 = arith.constant 0 : index
    %c0_109 = arith.constant 0 : index
    %108 = vector.load %arg11[%c0_106, %c2_107, %c0_108, %c0_109] : memref<1x10x10x64xf32, #tpu.memory_space<vmem>>, vector<1x8x8x48xf32>
    %c9 = arith.constant 9 : index
    %c0_110 = arith.constant 0 : index
    %109 = vector.load %arg3[%c9, %c0_110] : memref<67x48xf32, #tpu.memory_space<vmem>>, vector<1x48xf32>
    %110 = vector.shape_cast %109 : vector<1x48xf32> to vector<48xf32>
    %111 = vector.shape_cast %110 : vector<48xf32> to vector<1x1x1x48xf32>
    %112 = vector.broadcast %111 : vector<1x1x1x48xf32> to vector<1x8x8x48xf32>
    %113 = arith.mulf %108, %112 : vector<1x8x8x48xf32>
    %114 = arith.addf %107, %113 : vector<1x8x8x48xf32>
    %c0_111 = arith.constant 0 : index
    %c2_112 = arith.constant 2 : index
    %c1_113 = arith.constant 1 : index
    %c0_114 = arith.constant 0 : index
    %115 = vector.load %arg11[%c0_111, %c2_112, %c1_113, %c0_114] : memref<1x10x10x64xf32, #tpu.memory_space<vmem>>, vector<1x8x8x48xf32>
    %c10 = arith.constant 10 : index
    %c0_115 = arith.constant 0 : index
    %116 = vector.load %arg3[%c10, %c0_115] : memref<67x48xf32, #tpu.memory_space<vmem>>, vector<1x48xf32>
    %117 = vector.shape_cast %116 : vector<1x48xf32> to vector<48xf32>
    %118 = vector.shape_cast %117 : vector<48xf32> to vector<1x1x1x48xf32>
    %119 = vector.broadcast %118 : vector<1x1x1x48xf32> to vector<1x8x8x48xf32>
    %120 = arith.mulf %115, %119 : vector<1x8x8x48xf32>
    %121 = arith.addf %114, %120 : vector<1x8x8x48xf32>
    %c0_116 = arith.constant 0 : index
    %c2_117 = arith.constant 2 : index
    %c2_118 = arith.constant 2 : index
    %c0_119 = arith.constant 0 : index
    %122 = vector.load %arg11[%c0_116, %c2_117, %c2_118, %c0_119] : memref<1x10x10x64xf32, #tpu.memory_space<vmem>>, vector<1x8x8x48xf32>
    %c11 = arith.constant 11 : index
    %c0_120 = arith.constant 0 : index
    %123 = vector.load %arg3[%c11, %c0_120] : memref<67x48xf32, #tpu.memory_space<vmem>>, vector<1x48xf32>
    %124 = vector.shape_cast %123 : vector<1x48xf32> to vector<48xf32>
    %125 = vector.shape_cast %124 : vector<48xf32> to vector<1x1x1x48xf32>
    %126 = vector.broadcast %125 : vector<1x1x1x48xf32> to vector<1x8x8x48xf32>
    %127 = arith.mulf %122, %126 : vector<1x8x8x48xf32>
    %128 = arith.addf %121, %127 : vector<1x8x8x48xf32>
    %c2_121 = arith.constant 2 : index
    %c0_122 = arith.constant 0 : index
    %129 = vector.load %arg3[%c2_121, %c0_122] : memref<67x48xf32, #tpu.memory_space<vmem>>, vector<1x48xf32>
    %130 = vector.shape_cast %129 : vector<1x48xf32> to vector<48xf32>
    %131 = vector.shape_cast %130 : vector<48xf32> to vector<1x1x1x48xf32>
    %132 = vector.broadcast %131 : vector<1x1x1x48xf32> to vector<1x8x8x48xf32>
    %133 = arith.addf %128, %132 : vector<1x8x8x48xf32>
    %134 = arith.addf %133, %65 : vector<1x8x8x48xf32>
    %cst_123 = arith.constant dense<0.000000e+00> : vector<1x48xf32>
    %135 = vector.multi_reduction <add>, %134, %cst_123 [1, 2] : vector<1x8x8x48xf32> to vector<1x48xf32>
    %cst_124 = arith.constant 6.400000e+01 : f32
    %136 = vector.broadcast %cst_124 : f32 to vector<1x48xf32>
    %137 = arith.divf %135, %136 : vector<1x48xf32>
    %c16 = arith.constant 16 : index
    %c0_125 = arith.constant 0 : index
    %138 = vector.load %arg3[%c16, %c0_125] : memref<67x48xf32, #tpu.memory_space<vmem>>, vector<48x3xf32>
    %cst_126 = arith.constant dense<0.000000e+00> : vector<1x3xf32>
    %139 = tpu.matmul %137, %138, %cst_126 {dimension_numbers = #tpu.dot_dimension_numbers<[1], [0], [0], [1], [0, 0, 1, 1], [], []>} : vector<1x48xf32>, vector<48x3xf32>, vector<1x3xf32> -> vector<1x3xf32>
    %c12 = arith.constant 12 : index
    %c0_127 = arith.constant 0 : index
    %140 = vector.load %arg3[%c12, %c0_127] : memref<67x48xf32, #tpu.memory_space<vmem>>, vector<1x3xf32>
    %141 = vector.shape_cast %140 : vector<1x3xf32> to vector<3xf32>
    %142 = vector.shape_cast %141 : vector<3xf32> to vector<1x3xf32>
    %143 = arith.addf %139, %142 : vector<1x3xf32>
    %cst_128 = arith.constant 0.000000e+00 : f32
    %144 = vector.broadcast %cst_128 : f32 to vector<1x3xf32>
    %145 = arith.cmpf oge, %143, %144 : vector<1x3xf32>
    %cst_129 = arith.constant 0.00999999977 : f32
    %146 = vector.broadcast %cst_129 : f32 to vector<1x3xf32>
    %147 = arith.mulf %143, %146 : vector<1x3xf32>
    %148 = arith.select %145, %143, %147 : vector<1x3xi1>, vector<1x3xf32>
    %c64 = arith.constant 64 : index
    %c0_130 = arith.constant 0 : index
    %149 = vector.load %arg3[%c64, %c0_130] : memref<67x48xf32, #tpu.memory_space<vmem>>, vector<3x48xf32>
    %cst_131 = arith.constant dense<0.000000e+00> : vector<1x48xf32>
    %150 = tpu.matmul %148, %149, %cst_131 {dimension_numbers = #tpu.dot_dimension_numbers<[1], [0], [0], [1], [0, 0, 1, 1], [], []>} : vector<1x3xf32>, vector<3x48xf32>, vector<1x48xf32> -> vector<1x48xf32>
    %c13 = arith.constant 13 : index
    %c0_132 = arith.constant 0 : index
    %151 = vector.load %arg3[%c13, %c0_132] : memref<67x48xf32, #tpu.memory_space<vmem>>, vector<1x48xf32>
    %152 = vector.shape_cast %151 : vector<1x48xf32> to vector<48xf32>
    %153 = vector.shape_cast %152 : vector<48xf32> to vector<1x48xf32>
    %154 = arith.addf %150, %153 : vector<1x48xf32>
    %cst_133 = arith.constant 5.000000e-01 : f32
    %155 = vector.broadcast %cst_133 : f32 to vector<1x48xf32>
    %156 = arith.mulf %155, %154 : vector<1x48xf32>
    %157 = math.tanh %156 : vector<1x48xf32>
    %cst_134 = arith.constant 1.000000e+00 : f32
    %158 = vector.broadcast %cst_134 : f32 to vector<1x48xf32>
    %159 = arith.addf %157, %158 : vector<1x48xf32>
    %cst_135 = arith.constant 5.000000e-01 : f32
    %160 = vector.broadcast %cst_135 : f32 to vector<1x48xf32>
    %161 = arith.mulf %160, %159 : vector<1x48xf32>
    %162 = vector.shape_cast %161 : vector<1x48xf32> to vector<1x1x1x48xf32>
    %163 = vector.broadcast %162 : vector<1x1x1x48xf32> to vector<1x8x8x48xf32>
    %164 = arith.mulf %134, %163 : vector<1x8x8x48xf32>
    %165 = arith.addf %4, %164 : vector<1x8x8x48xf32>
    %166 = vector.extract_strided_slice %165 {offsets = [0, 0, 0, 16], sizes = [1, 8, 8, 32], strides = [1, 1, 1, 1]} : vector<1x8x8x48xf32> to vector<1x8x8x32xf32>
    %c0_136 = arith.constant 0 : index
    %c1_137 = arith.constant 1 : index
    %c1_138 = arith.constant 1 : index
    %c0_139 = arith.constant 0 : index
    %167 = vector.load %arg11[%c0_136, %c1_137, %c1_138, %c0_139] : memref<1x10x10x64xf32, #tpu.memory_space<vmem>>, vector<1x8x8x32xf32>
    tpu.vector_store %arg11[%c0_136, %c1_137, %c1_138, %c0_139], %166 {strides = array<i32>} : memref<1x10x10x64xf32, #tpu.memory_space<vmem>>, vector<1x8x8x32xf32>,
    %c0_140 = arith.constant 0 : index
    %c0_141 = arith.constant 0 : index
    %c1_142 = arith.constant 1 : index
    %c0_143 = arith.constant 0 : index
    %168 = vector.load %arg11[%c0_140, %c0_141, %c1_142, %c0_143] : memref<1x10x10x64xf32, #tpu.memory_space<vmem>>, vector<1x8x8x32xf32>
    %169 = arith.truncf %168 : vector<1x8x8x32xf32> to vector<1x8x8x32xbf16>
    %170 = vector.shape_cast %169 : vector<1x8x8x32xbf16> to vector<64x32xbf16>
    %c0_144 = arith.constant 0 : index
    %c1_145 = arith.constant 1 : index
    %c1_146 = arith.constant 1 : index
    %c0_147 = arith.constant 0 : index
    %171 = vector.load %arg11[%c0_144, %c1_145, %c1_146, %c0_147] : memref<1x10x10x64xf32, #tpu.memory_space<vmem>>, vector<1x8x8x32xf32>
    %172 = arith.truncf %171 : vector<1x8x8x32xf32> to vector<1x8x8x32xbf16>
    %173 = vector.shape_cast %172 : vector<1x8x8x32xbf16> to vector<64x32xbf16>
    %c0_148 = arith.constant 0 : index
    %c2_149 = arith.constant 2 : index
    %c1_150 = arith.constant 1 : index
    %c0_151 = arith.constant 0 : index
    %174 = vector.load %arg11[%c0_148, %c2_149, %c1_150, %c0_151] : memref<1x10x10x64xf32, #tpu.memory_space<vmem>>, vector<1x8x8x32xf32>
    %175 = arith.truncf %174 : vector<1x8x8x32xf32> to vector<1x8x8x32xbf16>
    %176 = vector.shape_cast %175 : vector<1x8x8x32xbf16> to vector<64x32xbf16>
    %c0_152 = arith.constant 0 : index
    %c1_153 = arith.constant 1 : index
    %c0_154 = arith.constant 0 : index
    %c0_155 = arith.constant 0 : index
    %177 = vector.load %arg11[%c0_152, %c1_153, %c0_154, %c0_155] : memref<1x10x10x64xf32, #tpu.memory_space<vmem>>, vector<1x8x8x32xf32>
    %178 = arith.truncf %177 : vector<1x8x8x32xf32> to vector<1x8x8x32xbf16>
    %179 = vector.shape_cast %178 : vector<1x8x8x32xbf16> to vector<64x32xbf16>
    %c0_156 = arith.constant 0 : index
    %c1_157 = arith.constant 1 : index
    %c1_158 = arith.constant 1 : index
    %c0_159 = arith.constant 0 : index
    %180 = vector.load %arg11[%c0_156, %c1_157, %c1_158, %c0_159] : memref<1x10x10x64xf32, #tpu.memory_space<vmem>>, vector<1x8x8x32xf32>
    %181 = arith.truncf %180 : vector<1x8x8x32xf32> to vector<1x8x8x32xbf16>
    %182 = vector.shape_cast %181 : vector<1x8x8x32xbf16> to vector<64x32xbf16>
    %c0_160 = arith.constant 0 : index
    %c1_161 = arith.constant 1 : index
    %c2_162 = arith.constant 2 : index
    %c0_163 = arith.constant 0 : index
    %183 = vector.load %arg11[%c0_160, %c1_161, %c2_162, %c0_163] : memref<1x10x10x64xf32, #tpu.memory_space<vmem>>, vector<1x8x8x32xf32>
    %184 = arith.truncf %183 : vector<1x8x8x32xf32> to vector<1x8x8x32xbf16>
    %185 = vector.shape_cast %184 : vector<1x8x8x32xbf16> to vector<64x32xbf16>
    %186 = tpu.concatenate %170, %173, %176, %179, %182, %185 in 1 : vector<64x32xbf16>, vector<64x32xbf16>, vector<64x32xbf16>, vector<64x32xbf16>, vector<64x32xbf16>, vector<64x32xbf16> -> vector<64x192xbf16>
    %c0_164 = arith.constant 0 : index
    %c0_165 = arith.constant 0 : index
    %187 = vector.load %arg4[%c0_164, %c0_165] : memref<384x32xbf16, #tpu.memory_space<vmem>>, vector<192x32xbf16>
    %cst_166 = arith.constant dense<0.000000e+00> : vector<64x32xf32>
    %188 = tpu.matmul %186, %187, %cst_166 {dimension_numbers = #tpu.dot_dimension_numbers<[1], [0], [0], [1], [0, 0, 1, 1], [], []>} : vector<64x192xbf16>, vector<192x32xbf16>, vector<64x32xf32> -> vector<64x32xf32>
    %c0_167 = arith.constant 0 : index
    %c0_168 = arith.constant 0 : index
    %189 = vector.load %arg5[%c0_167, %c0_168] : memref<50x32xf32, #tpu.memory_space<vmem>>, vector<1x32xf32>
    %190 = vector.shape_cast %189 : vector<1x32xf32> to vector<32xf32>
    %191 = vector.shape_cast %190 : vector<32xf32> to vector<1x32xf32>
    %192 = vector.broadcast %191 : vector<1x32xf32> to vector<64x32xf32>
    %193 = arith.addf %188, %192 : vector<64x32xf32>
    %cst_169 = arith.constant 0.000000e+00 : f32
    %194 = vector.broadcast %cst_169 : f32 to vector<64x32xf32>
    %195 = arith.cmpf oge, %193, %194 : vector<64x32xf32>
    %cst_170 = arith.constant 0.00999999977 : f32
    %196 = vector.broadcast %cst_170 : f32 to vector<64x32xf32>
    %197 = arith.mulf %193, %196 : vector<64x32xf32>
    %198 = arith.select %195, %193, %197 : vector<64x32xi1>, vector<64x32xf32>
    %199 = vector.shape_cast %198 : vector<64x32xf32> to vector<1x8x8x32xf32>
    %c0_171 = arith.constant 0 : index
    %c1_172 = arith.constant 1 : index
    %c1_173 = arith.constant 1 : index
    %c0_174 = arith.constant 0 : index
    %200 = vector.load %arg11[%c0_171, %c1_172, %c1_173, %c0_174] : memref<1x10x10x64xf32, #tpu.memory_space<vmem>>, vector<1x8x8x32xf32>
    tpu.vector_store %arg11[%c0_171, %c1_172, %c1_173, %c0_174], %199 {strides = array<i32>} : memref<1x10x10x64xf32, #tpu.memory_space<vmem>>, vector<1x8x8x32xf32>,
    %c0_175 = arith.constant 0 : index
    %c0_176 = arith.constant 0 : index
    %c1_177 = arith.constant 1 : index
    %c0_178 = arith.constant 0 : index
    %201 = vector.load %arg11[%c0_175, %c0_176, %c1_177, %c0_178] : memref<1x10x10x64xf32, #tpu.memory_space<vmem>>, vector<1x8x8x32xf32>
    %202 = arith.truncf %201 : vector<1x8x8x32xf32> to vector<1x8x8x32xbf16>
    %203 = vector.shape_cast %202 : vector<1x8x8x32xbf16> to vector<64x32xbf16>
    %c0_179 = arith.constant 0 : index
    %c1_180 = arith.constant 1 : index
    %c1_181 = arith.constant 1 : index
    %c0_182 = arith.constant 0 : index
    %204 = vector.load %arg11[%c0_179, %c1_180, %c1_181, %c0_182] : memref<1x10x10x64xf32, #tpu.memory_space<vmem>>, vector<1x8x8x32xf32>
    %205 = arith.truncf %204 : vector<1x8x8x32xf32> to vector<1x8x8x32xbf16>
    %206 = vector.shape_cast %205 : vector<1x8x8x32xbf16> to vector<64x32xbf16>
    %c0_183 = arith.constant 0 : index
    %c2_184 = arith.constant 2 : index
    %c1_185 = arith.constant 1 : index
    %c0_186 = arith.constant 0 : index
    %207 = vector.load %arg11[%c0_183, %c2_184, %c1_185, %c0_186] : memref<1x10x10x64xf32, #tpu.memory_space<vmem>>, vector<1x8x8x32xf32>
    %208 = arith.truncf %207 : vector<1x8x8x32xf32> to vector<1x8x8x32xbf16>
    %209 = vector.shape_cast %208 : vector<1x8x8x32xbf16> to vector<64x32xbf16>
    %c0_187 = arith.constant 0 : index
    %c1_188 = arith.constant 1 : index
    %c0_189 = arith.constant 0 : index
    %c0_190 = arith.constant 0 : index
    %210 = vector.load %arg11[%c0_187, %c1_188, %c0_189, %c0_190] : memref<1x10x10x64xf32, #tpu.memory_space<vmem>>, vector<1x8x8x32xf32>
    %211 = arith.truncf %210 : vector<1x8x8x32xf32> to vector<1x8x8x32xbf16>
    %212 = vector.shape_cast %211 : vector<1x8x8x32xbf16> to vector<64x32xbf16>
    %c0_191 = arith.constant 0 : index
    %c1_192 = arith.constant 1 : index
    %c1_193 = arith.constant 1 : index
    %c0_194 = arith.constant 0 : index
    %213 = vector.load %arg11[%c0_191, %c1_192, %c1_193, %c0_194] : memref<1x10x10x64xf32, #tpu.memory_space<vmem>>, vector<1x8x8x32xf32>
    %214 = arith.truncf %213 : vector<1x8x8x32xf32> to vector<1x8x8x32xbf16>
    %215 = vector.shape_cast %214 : vector<1x8x8x32xbf16> to vector<64x32xbf16>
    %c0_195 = arith.constant 0 : index
    %c1_196 = arith.constant 1 : index
    %c2_197 = arith.constant 2 : index
    %c0_198 = arith.constant 0 : index
    %216 = vector.load %arg11[%c0_195, %c1_196, %c2_197, %c0_198] : memref<1x10x10x64xf32, #tpu.memory_space<vmem>>, vector<1x8x8x32xf32>
    %217 = arith.truncf %216 : vector<1x8x8x32xf32> to vector<1x8x8x32xbf16>
    %218 = vector.shape_cast %217 : vector<1x8x8x32xbf16> to vector<64x32xbf16>
    %219 = tpu.concatenate %203, %206, %209, %212, %215, %218 in 1 : vector<64x32xbf16>, vector<64x32xbf16>, vector<64x32xbf16>, vector<64x32xbf16>, vector<64x32xbf16>, vector<64x32xbf16> -> vector<64x192xbf16>
    %c192 = arith.constant 192 : index
    %c0_199 = arith.constant 0 : index
    %220 = vector.load %arg4[%c192, %c0_199] : memref<384x32xbf16, #tpu.memory_space<vmem>>, vector<192x32xbf16>
    %cst_200 = arith.constant dense<0.000000e+00> : vector<64x32xf32>
    %221 = tpu.matmul %219, %220, %cst_200 {dimension_numbers = #tpu.dot_dimension_numbers<[1], [0], [0], [1], [0, 0, 1, 1], [], []>} : vector<64x192xbf16>, vector<192x32xbf16>, vector<64x32xf32> -> vector<64x32xf32>
    %c1_201 = arith.constant 1 : index
    %c0_202 = arith.constant 0 : index
    %222 = vector.load %arg5[%c1_201, %c0_202] : memref<50x32xf32, #tpu.memory_space<vmem>>, vector<1x32xf32>
    %223 = vector.shape_cast %222 : vector<1x32xf32> to vector<32xf32>
    %224 = vector.shape_cast %223 : vector<32xf32> to vector<1x32xf32>
    %225 = vector.broadcast %224 : vector<1x32xf32> to vector<64x32xf32>
    %226 = arith.addf %221, %225 : vector<64x32xf32>
    %227 = vector.shape_cast %226 : vector<64x32xf32> to vector<1x8x8x32xf32>
    %c0_203 = arith.constant 0 : index
    %c1_204 = arith.constant 1 : index
    %c1_205 = arith.constant 1 : index
    %c0_206 = arith.constant 0 : index
    %228 = vector.load %arg11[%c0_203, %c1_204, %c1_205, %c0_206] : memref<1x10x10x64xf32, #tpu.memory_space<vmem>>, vector<1x8x8x32xf32>
    tpu.vector_store %arg11[%c0_203, %c1_204, %c1_205, %c0_206], %227 {strides = array<i32>} : memref<1x10x10x64xf32, #tpu.memory_space<vmem>>, vector<1x8x8x32xf32>,
    %c0_207 = arith.constant 0 : index
    %c0_208 = arith.constant 0 : index
    %c0_209 = arith.constant 0 : index
    %c0_210 = arith.constant 0 : index
    %229 = vector.load %arg11[%c0_207, %c0_208, %c0_209, %c0_210] : memref<1x10x10x64xf32, #tpu.memory_space<vmem>>, vector<1x8x8x32xf32>
    %c3_211 = arith.constant 3 : index
    %c0_212 = arith.constant 0 : index
    %230 = vector.load %arg5[%c3_211, %c0_212] : memref<50x32xf32, #tpu.memory_space<vmem>>, vector<1x32xf32>
    %231 = vector.shape_cast %230 : vector<1x32xf32> to vector<32xf32>
    %232 = vector.shape_cast %231 : vector<32xf32> to vector<1x1x1x32xf32>
    %233 = vector.broadcast %232 : vector<1x1x1x32xf32> to vector<1x8x8x32xf32>
    %234 = arith.mulf %229, %233 : vector<1x8x8x32xf32>
    %c0_213 = arith.constant 0 : index
    %c0_214 = arith.constant 0 : index
    %c1_215 = arith.constant 1 : index
    %c0_216 = arith.constant 0 : index
    %235 = vector.load %arg11[%c0_213, %c0_214, %c1_215, %c0_216] : memref<1x10x10x64xf32, #tpu.memory_space<vmem>>, vector<1x8x8x32xf32>
    %c4_217 = arith.constant 4 : index
    %c0_218 = arith.constant 0 : index
    %236 = vector.load %arg5[%c4_217, %c0_218] : memref<50x32xf32, #tpu.memory_space<vmem>>, vector<1x32xf32>
    %237 = vector.shape_cast %236 : vector<1x32xf32> to vector<32xf32>
    %238 = vector.shape_cast %237 : vector<32xf32> to vector<1x1x1x32xf32>
    %239 = vector.broadcast %238 : vector<1x1x1x32xf32> to vector<1x8x8x32xf32>
    %240 = arith.mulf %235, %239 : vector<1x8x8x32xf32>
    %241 = arith.addf %234, %240 : vector<1x8x8x32xf32>
    %c0_219 = arith.constant 0 : index
    %c0_220 = arith.constant 0 : index
    %c2_221 = arith.constant 2 : index
    %c0_222 = arith.constant 0 : index
    %242 = vector.load %arg11[%c0_219, %c0_220, %c2_221, %c0_222] : memref<1x10x10x64xf32, #tpu.memory_space<vmem>>, vector<1x8x8x32xf32>
    %c5_223 = arith.constant 5 : index
    %c0_224 = arith.constant 0 : index
    %243 = vector.load %arg5[%c5_223, %c0_224] : memref<50x32xf32, #tpu.memory_space<vmem>>, vector<1x32xf32>
    %244 = vector.shape_cast %243 : vector<1x32xf32> to vector<32xf32>
    %245 = vector.shape_cast %244 : vector<32xf32> to vector<1x1x1x32xf32>
    %246 = vector.broadcast %245 : vector<1x1x1x32xf32> to vector<1x8x8x32xf32>
    %247 = arith.mulf %242, %246 : vector<1x8x8x32xf32>
    %248 = arith.addf %241, %247 : vector<1x8x8x32xf32>
    %c0_225 = arith.constant 0 : index
    %c1_226 = arith.constant 1 : index
    %c0_227 = arith.constant 0 : index
    %c0_228 = arith.constant 0 : index
    %249 = vector.load %arg11[%c0_225, %c1_226, %c0_227, %c0_228] : memref<1x10x10x64xf32, #tpu.memory_space<vmem>>, vector<1x8x8x32xf32>
    %c6_229 = arith.constant 6 : index
    %c0_230 = arith.constant 0 : index
    %250 = vector.load %arg5[%c6_229, %c0_230] : memref<50x32xf32, #tpu.memory_space<vmem>>, vector<1x32xf32>
    %251 = vector.shape_cast %250 : vector<1x32xf32> to vector<32xf32>
    %252 = vector.shape_cast %251 : vector<32xf32> to vector<1x1x1x32xf32>
    %253 = vector.broadcast %252 : vector<1x1x1x32xf32> to vector<1x8x8x32xf32>
    %254 = arith.mulf %249, %253 : vector<1x8x8x32xf32>
    %255 = arith.addf %248, %254 : vector<1x8x8x32xf32>
    %c0_231 = arith.constant 0 : index
    %c1_232 = arith.constant 1 : index
    %c1_233 = arith.constant 1 : index
    %c0_234 = arith.constant 0 : index
    %256 = vector.load %arg11[%c0_231, %c1_232, %c1_233, %c0_234] : memref<1x10x10x64xf32, #tpu.memory_space<vmem>>, vector<1x8x8x32xf32>
    %c7_235 = arith.constant 7 : index
    %c0_236 = arith.constant 0 : index
    %257 = vector.load %arg5[%c7_235, %c0_236] : memref<50x32xf32, #tpu.memory_space<vmem>>, vector<1x32xf32>
    %258 = vector.shape_cast %257 : vector<1x32xf32> to vector<32xf32>
    %259 = vector.shape_cast %258 : vector<32xf32> to vector<1x1x1x32xf32>
    %260 = vector.broadcast %259 : vector<1x1x1x32xf32> to vector<1x8x8x32xf32>
    %261 = arith.mulf %256, %260 : vector<1x8x8x32xf32>
    %262 = arith.addf %255, %261 : vector<1x8x8x32xf32>
    %c0_237 = arith.constant 0 : index
    %c1_238 = arith.constant 1 : index
    %c2_239 = arith.constant 2 : index
    %c0_240 = arith.constant 0 : index
    %263 = vector.load %arg11[%c0_237, %c1_238, %c2_239, %c0_240] : memref<1x10x10x64xf32, #tpu.memory_space<vmem>>, vector<1x8x8x32xf32>
    %c8_241 = arith.constant 8 : index
    %c0_242 = arith.constant 0 : index
    %264 = vector.load %arg5[%c8_241, %c0_242] : memref<50x32xf32, #tpu.memory_space<vmem>>, vector<1x32xf32>
    %265 = vector.shape_cast %264 : vector<1x32xf32> to vector<32xf32>
    %266 = vector.shape_cast %265 : vector<32xf32> to vector<1x1x1x32xf32>
    %267 = vector.broadcast %266 : vector<1x1x1x32xf32> to vector<1x8x8x32xf32>
    %268 = arith.mulf %263, %267 : vector<1x8x8x32xf32>
    %269 = arith.addf %262, %268 : vector<1x8x8x32xf32>
    %c0_243 = arith.constant 0 : index
    %c2_244 = arith.constant 2 : index
    %c0_245 = arith.constant 0 : index
    %c0_246 = arith.constant 0 : index
    %270 = vector.load %arg11[%c0_243, %c2_244, %c0_245, %c0_246] : memref<1x10x10x64xf32, #tpu.memory_space<vmem>>, vector<1x8x8x32xf32>
    %c9_247 = arith.constant 9 : index
    %c0_248 = arith.constant 0 : index
    %271 = vector.load %arg5[%c9_247, %c0_248] : memref<50x32xf32, #tpu.memory_space<vmem>>, vector<1x32xf32>
    %272 = vector.shape_cast %271 : vector<1x32xf32> to vector<32xf32>
    %273 = vector.shape_cast %272 : vector<32xf32> to vector<1x1x1x32xf32>
    %274 = vector.broadcast %273 : vector<1x1x1x32xf32> to vector<1x8x8x32xf32>
    %275 = arith.mulf %270, %274 : vector<1x8x8x32xf32>
    %276 = arith.addf %269, %275 : vector<1x8x8x32xf32>
    %c0_249 = arith.constant 0 : index
    %c2_250 = arith.constant 2 : index
    %c1_251 = arith.constant 1 : index
    %c0_252 = arith.constant 0 : index
    %277 = vector.load %arg11[%c0_249, %c2_250, %c1_251, %c0_252] : memref<1x10x10x64xf32, #tpu.memory_space<vmem>>, vector<1x8x8x32xf32>
    %c10_253 = arith.constant 10 : index
    %c0_254 = arith.constant 0 : index
    %278 = vector.load %arg5[%c10_253, %c0_254] : memref<50x32xf32, #tpu.memory_space<vmem>>, vector<1x32xf32>
    %279 = vector.shape_cast %278 : vector<1x32xf32> to vector<32xf32>
    %280 = vector.shape_cast %279 : vector<32xf32> to vector<1x1x1x32xf32>
    %281 = vector.broadcast %280 : vector<1x1x1x32xf32> to vector<1x8x8x32xf32>
    %282 = arith.mulf %277, %281 : vector<1x8x8x32xf32>
    %283 = arith.addf %276, %282 : vector<1x8x8x32xf32>
    %c0_255 = arith.constant 0 : index
    %c2_256 = arith.constant 2 : index
    %c2_257 = arith.constant 2 : index
    %c0_258 = arith.constant 0 : index
    %284 = vector.load %arg11[%c0_255, %c2_256, %c2_257, %c0_258] : memref<1x10x10x64xf32, #tpu.memory_space<vmem>>, vector<1x8x8x32xf32>
    %c11_259 = arith.constant 11 : index
    %c0_260 = arith.constant 0 : index
    %285 = vector.load %arg5[%c11_259, %c0_260] : memref<50x32xf32, #tpu.memory_space<vmem>>, vector<1x32xf32>
    %286 = vector.shape_cast %285 : vector<1x32xf32> to vector<32xf32>
    %287 = vector.shape_cast %286 : vector<32xf32> to vector<1x1x1x32xf32>
    %288 = vector.broadcast %287 : vector<1x1x1x32xf32> to vector<1x8x8x32xf32>
    %289 = arith.mulf %284, %288 : vector<1x8x8x32xf32>
    %290 = arith.addf %283, %289 : vector<1x8x8x32xf32>
    %c2_261 = arith.constant 2 : index
    %c0_262 = arith.constant 0 : index
    %291 = vector.load %arg5[%c2_261, %c0_262] : memref<50x32xf32, #tpu.memory_space<vmem>>, vector<1x32xf32>
    %292 = vector.shape_cast %291 : vector<1x32xf32> to vector<32xf32>
    %293 = vector.shape_cast %292 : vector<32xf32> to vector<1x1x1x32xf32>
    %294 = vector.broadcast %293 : vector<1x1x1x32xf32> to vector<1x8x8x32xf32>
    %295 = arith.addf %290, %294 : vector<1x8x8x32xf32>
    %296 = arith.addf %295, %227 : vector<1x8x8x32xf32>
    %cst_263 = arith.constant dense<0.000000e+00> : vector<1x32xf32>
    %297 = vector.multi_reduction <add>, %296, %cst_263 [1, 2] : vector<1x8x8x32xf32> to vector<1x32xf32>
    %cst_264 = arith.constant 6.400000e+01 : f32
    %298 = vector.broadcast %cst_264 : f32 to vector<1x32xf32>
    %299 = arith.divf %297, %298 : vector<1x32xf32>
    %c16_265 = arith.constant 16 : index
    %c0_266 = arith.constant 0 : index
    %300 = vector.load %arg5[%c16_265, %c0_266] : memref<50x32xf32, #tpu.memory_space<vmem>>, vector<32x2xf32>
    %cst_267 = arith.constant dense<0.000000e+00> : vector<1x2xf32>
    %301 = tpu.matmul %299, %300, %cst_267 {dimension_numbers = #tpu.dot_dimension_numbers<[1], [0], [0], [1], [0, 0, 1, 1], [], []>} : vector<1x32xf32>, vector<32x2xf32>, vector<1x2xf32> -> vector<1x2xf32>
    %c12_268 = arith.constant 12 : index
    %c0_269 = arith.constant 0 : index
    %302 = vector.load %arg5[%c12_268, %c0_269] : memref<50x32xf32, #tpu.memory_space<vmem>>, vector<1x2xf32>
    %303 = vector.shape_cast %302 : vector<1x2xf32> to vector<2xf32>
    %304 = vector.shape_cast %303 : vector<2xf32> to vector<1x2xf32>
    %305 = arith.addf %301, %304 : vector<1x2xf32>
    %cst_270 = arith.constant 0.000000e+00 : f32
    %306 = vector.broadcast %cst_270 : f32 to vector<1x2xf32>
    %307 = arith.cmpf oge, %305, %306 : vector<1x2xf32>
    %cst_271 = arith.constant 0.00999999977 : f32
    %308 = vector.broadcast %cst_271 : f32 to vector<1x2xf32>
    %309 = arith.mulf %305, %308 : vector<1x2xf32>
    %310 = arith.select %307, %305, %309 : vector<1x2xi1>, vector<1x2xf32>
    %c48 = arith.constant 48 : index
    %c0_272 = arith.constant 0 : index
    %311 = vector.load %arg5[%c48, %c0_272] : memref<50x32xf32, #tpu.memory_space<vmem>>, vector<2x32xf32>
    %cst_273 = arith.constant dense<0.000000e+00> : vector<1x32xf32>
    %312 = tpu.matmul %310, %311, %cst_273 {dimension_numbers = #tpu.dot_dimension_numbers<[1], [0], [0], [1], [0, 0, 1, 1], [], []>} : vector<1x2xf32>, vector<2x32xf32>, vector<1x32xf32> -> vector<1x32xf32>
    %c13_274 = arith.constant 13 : index
    %c0_275 = arith.constant 0 : index
    %313 = vector.load %arg5[%c13_274, %c0_275] : memref<50x32xf32, #tpu.memory_space<vmem>>, vector<1x32xf32>
    %314 = vector.shape_cast %313 : vector<1x32xf32> to vector<32xf32>
    %315 = vector.shape_cast %314 : vector<32xf32> to vector<1x32xf32>
    %316 = arith.addf %312, %315 : vector<1x32xf32>
    %cst_276 = arith.constant 5.000000e-01 : f32
    %317 = vector.broadcast %cst_276 : f32 to vector<1x32xf32>
    %318 = arith.mulf %317, %316 : vector<1x32xf32>
    %319 = math.tanh %318 : vector<1x32xf32>
    %cst_277 = arith.constant 1.000000e+00 : f32
    %320 = vector.broadcast %cst_277 : f32 to vector<1x32xf32>
    %321 = arith.addf %319, %320 : vector<1x32xf32>
    %cst_278 = arith.constant 5.000000e-01 : f32
    %322 = vector.broadcast %cst_278 : f32 to vector<1x32xf32>
    %323 = arith.mulf %322, %321 : vector<1x32xf32>
    %324 = vector.shape_cast %323 : vector<1x32xf32> to vector<1x1x1x32xf32>
    %325 = vector.broadcast %324 : vector<1x1x1x32xf32> to vector<1x8x8x32xf32>
    %326 = arith.mulf %296, %325 : vector<1x8x8x32xf32>
    %327 = arith.addf %166, %326 : vector<1x8x8x32xf32>
    %328 = vector.extract_strided_slice %327 {offsets = [0, 0, 0, 16], sizes = [1, 8, 8, 16], strides = [1, 1, 1, 1]} : vector<1x8x8x32xf32> to vector<1x8x8x16xf32>
    %c0_279 = arith.constant 0 : index
    %c1_280 = arith.constant 1 : index
    %c1_281 = arith.constant 1 : index
    %c0_282 = arith.constant 0 : index
    %329 = vector.load %arg11[%c0_279, %c1_280, %c1_281, %c0_282] : memref<1x10x10x64xf32, #tpu.memory_space<vmem>>, vector<1x8x8x16xf32>
    tpu.vector_store %arg11[%c0_279, %c1_280, %c1_281, %c0_282], %328 {strides = array<i32>} : memref<1x10x10x64xf32, #tpu.memory_space<vmem>>, vector<1x8x8x16xf32>,
    %c0_283 = arith.constant 0 : index
    %c0_284 = arith.constant 0 : index
    %c1_285 = arith.constant 1 : index
    %c0_286 = arith.constant 0 : index
    %330 = vector.load %arg11[%c0_283, %c0_284, %c1_285, %c0_286] : memref<1x10x10x64xf32, #tpu.memory_space<vmem>>, vector<1x8x8x16xf32>
    %331 = arith.truncf %330 : vector<1x8x8x16xf32> to vector<1x8x8x16xbf16>
    %332 = vector.shape_cast %331 : vector<1x8x8x16xbf16> to vector<64x16xbf16>
    %c0_287 = arith.constant 0 : index
    %c1_288 = arith.constant 1 : index
    %c1_289 = arith.constant 1 : index
    %c0_290 = arith.constant 0 : index
    %333 = vector.load %arg11[%c0_287, %c1_288, %c1_289, %c0_290] : memref<1x10x10x64xf32, #tpu.memory_space<vmem>>, vector<1x8x8x16xf32>
    %334 = arith.truncf %333 : vector<1x8x8x16xf32> to vector<1x8x8x16xbf16>
    %335 = vector.shape_cast %334 : vector<1x8x8x16xbf16> to vector<64x16xbf16>
    %c0_291 = arith.constant 0 : index
    %c2_292 = arith.constant 2 : index
    %c1_293 = arith.constant 1 : index
    %c0_294 = arith.constant 0 : index
    %336 = vector.load %arg11[%c0_291, %c2_292, %c1_293, %c0_294] : memref<1x10x10x64xf32, #tpu.memory_space<vmem>>, vector<1x8x8x16xf32>
    %337 = arith.truncf %336 : vector<1x8x8x16xf32> to vector<1x8x8x16xbf16>
    %338 = vector.shape_cast %337 : vector<1x8x8x16xbf16> to vector<64x16xbf16>
    %c0_295 = arith.constant 0 : index
    %c1_296 = arith.constant 1 : index
    %c0_297 = arith.constant 0 : index
    %c0_298 = arith.constant 0 : index
    %339 = vector.load %arg11[%c0_295, %c1_296, %c0_297, %c0_298] : memref<1x10x10x64xf32, #tpu.memory_space<vmem>>, vector<1x8x8x16xf32>
    %340 = arith.truncf %339 : vector<1x8x8x16xf32> to vector<1x8x8x16xbf16>
    %341 = vector.shape_cast %340 : vector<1x8x8x16xbf16> to vector<64x16xbf16>
    %c0_299 = arith.constant 0 : index
    %c1_300 = arith.constant 1 : index
    %c1_301 = arith.constant 1 : index
    %c0_302 = arith.constant 0 : index
    %342 = vector.load %arg11[%c0_299, %c1_300, %c1_301, %c0_302] : memref<1x10x10x64xf32, #tpu.memory_space<vmem>>, vector<1x8x8x16xf32>
    %343 = arith.truncf %342 : vector<1x8x8x16xf32> to vector<1x8x8x16xbf16>
    %344 = vector.shape_cast %343 : vector<1x8x8x16xbf16> to vector<64x16xbf16>
    %c0_303 = arith.constant 0 : index
    %c1_304 = arith.constant 1 : index
    %c2_305 = arith.constant 2 : index
    %c0_306 = arith.constant 0 : index
    %345 = vector.load %arg11[%c0_303, %c1_304, %c2_305, %c0_306] : memref<1x10x10x64xf32, #tpu.memory_space<vmem>>, vector<1x8x8x16xf32>
    %346 = arith.truncf %345 : vector<1x8x8x16xf32> to vector<1x8x8x16xbf16>
    %347 = vector.shape_cast %346 : vector<1x8x8x16xbf16> to vector<64x16xbf16>
    %348 = tpu.concatenate %332, %335, %338, %341, %344, %347 in 1 : vector<64x16xbf16>, vector<64x16xbf16>, vector<64x16xbf16>, vector<64x16xbf16>, vector<64x16xbf16>, vector<64x16xbf16> -> vector<64x96xbf16>
    %c0_307 = arith.constant 0 : index
    %c0_308 = arith.constant 0 : index
    %349 = vector.load %arg6[%c0_307, %c0_308] : memref<192x16xbf16, #tpu.memory_space<vmem>>, vector<96x16xbf16>
    %cst_309 = arith.constant dense<0.000000e+00> : vector<64x16xf32>
    %350 = tpu.matmul %348, %349, %cst_309 {dimension_numbers = #tpu.dot_dimension_numbers<[1], [0], [0], [1], [0, 0, 1, 1], [], []>} : vector<64x96xbf16>, vector<96x16xbf16>, vector<64x16xf32> -> vector<64x16xf32>
    %c0_310 = arith.constant 0 : index
    %c0_311 = arith.constant 0 : index
    %351 = vector.load %arg7[%c0_310, %c0_311] : memref<33x16xf32, #tpu.memory_space<vmem>>, vector<1x16xf32>
    %352 = vector.shape_cast %351 : vector<1x16xf32> to vector<16xf32>
    %353 = vector.shape_cast %352 : vector<16xf32> to vector<1x16xf32>
    %354 = vector.broadcast %353 : vector<1x16xf32> to vector<64x16xf32>
    %355 = arith.addf %350, %354 : vector<64x16xf32>
    %cst_312 = arith.constant 0.000000e+00 : f32
    %356 = vector.broadcast %cst_312 : f32 to vector<64x16xf32>
    %357 = arith.cmpf oge, %355, %356 : vector<64x16xf32>
    %cst_313 = arith.constant 0.00999999977 : f32
    %358 = vector.broadcast %cst_313 : f32 to vector<64x16xf32>
    %359 = arith.mulf %355, %358 : vector<64x16xf32>
    %360 = arith.select %357, %355, %359 : vector<64x16xi1>, vector<64x16xf32>
    %361 = vector.shape_cast %360 : vector<64x16xf32> to vector<1x8x8x16xf32>
    %c0_314 = arith.constant 0 : index
    %c1_315 = arith.constant 1 : index
    %c1_316 = arith.constant 1 : index
    %c0_317 = arith.constant 0 : index
    %362 = vector.load %arg11[%c0_314, %c1_315, %c1_316, %c0_317] : memref<1x10x10x64xf32, #tpu.memory_space<vmem>>, vector<1x8x8x16xf32>
    tpu.vector_store %arg11[%c0_314, %c1_315, %c1_316, %c0_317], %361 {strides = array<i32>} : memref<1x10x10x64xf32, #tpu.memory_space<vmem>>, vector<1x8x8x16xf32>,
    %c0_318 = arith.constant 0 : index
    %c0_319 = arith.constant 0 : index
    %c1_320 = arith.constant 1 : index
    %c0_321 = arith.constant 0 : index
    %363 = vector.load %arg11[%c0_318, %c0_319, %c1_320, %c0_321] : memref<1x10x10x64xf32, #tpu.memory_space<vmem>>, vector<1x8x8x16xf32>
    %364 = arith.truncf %363 : vector<1x8x8x16xf32> to vector<1x8x8x16xbf16>
    %365 = vector.shape_cast %364 : vector<1x8x8x16xbf16> to vector<64x16xbf16>
    %c0_322 = arith.constant 0 : index
    %c1_323 = arith.constant 1 : index
    %c1_324 = arith.constant 1 : index
    %c0_325 = arith.constant 0 : index
    %366 = vector.load %arg11[%c0_322, %c1_323, %c1_324, %c0_325] : memref<1x10x10x64xf32, #tpu.memory_space<vmem>>, vector<1x8x8x16xf32>
    %367 = arith.truncf %366 : vector<1x8x8x16xf32> to vector<1x8x8x16xbf16>
    %368 = vector.shape_cast %367 : vector<1x8x8x16xbf16> to vector<64x16xbf16>
    %c0_326 = arith.constant 0 : index
    %c2_327 = arith.constant 2 : index
    %c1_328 = arith.constant 1 : index
    %c0_329 = arith.constant 0 : index
    %369 = vector.load %arg11[%c0_326, %c2_327, %c1_328, %c0_329] : memref<1x10x10x64xf32, #tpu.memory_space<vmem>>, vector<1x8x8x16xf32>
    %370 = arith.truncf %369 : vector<1x8x8x16xf32> to vector<1x8x8x16xbf16>
    %371 = vector.shape_cast %370 : vector<1x8x8x16xbf16> to vector<64x16xbf16>
    %c0_330 = arith.constant 0 : index
    %c1_331 = arith.constant 1 : index
    %c0_332 = arith.constant 0 : index
    %c0_333 = arith.constant 0 : index
    %372 = vector.load %arg11[%c0_330, %c1_331, %c0_332, %c0_333] : memref<1x10x10x64xf32, #tpu.memory_space<vmem>>, vector<1x8x8x16xf32>
    %373 = arith.truncf %372 : vector<1x8x8x16xf32> to vector<1x8x8x16xbf16>
    %374 = vector.shape_cast %373 : vector<1x8x8x16xbf16> to vector<64x16xbf16>
    %c0_334 = arith.constant 0 : index
    %c1_335 = arith.constant 1 : index
    %c1_336 = arith.constant 1 : index
    %c0_337 = arith.constant 0 : index
    %375 = vector.load %arg11[%c0_334, %c1_335, %c1_336, %c0_337] : memref<1x10x10x64xf32, #tpu.memory_space<vmem>>, vector<1x8x8x16xf32>
    %376 = arith.truncf %375 : vector<1x8x8x16xf32> to vector<1x8x8x16xbf16>
    %377 = vector.shape_cast %376 : vector<1x8x8x16xbf16> to vector<64x16xbf16>
    %c0_338 = arith.constant 0 : index
    %c1_339 = arith.constant 1 : index
    %c2_340 = arith.constant 2 : index
    %c0_341 = arith.constant 0 : index
    %378 = vector.load %arg11[%c0_338, %c1_339, %c2_340, %c0_341] : memref<1x10x10x64xf32, #tpu.memory_space<vmem>>, vector<1x8x8x16xf32>
    %379 = arith.truncf %378 : vector<1x8x8x16xf32> to vector<1x8x8x16xbf16>
    %380 = vector.shape_cast %379 : vector<1x8x8x16xbf16> to vector<64x16xbf16>
    %381 = tpu.concatenate %365, %368, %371, %374, %377, %380 in 1 : vector<64x16xbf16>, vector<64x16xbf16>, vector<64x16xbf16>, vector<64x16xbf16>, vector<64x16xbf16>, vector<64x16xbf16> -> vector<64x96xbf16>
    %c96 = arith.constant 96 : index
    %c0_342 = arith.constant 0 : index
    %382 = vector.load %arg6[%c96, %c0_342] : memref<192x16xbf16, #tpu.memory_space<vmem>>, vector<96x16xbf16>
    %cst_343 = arith.constant dense<0.000000e+00> : vector<64x16xf32>
    %383 = tpu.matmul %381, %382, %cst_343 {dimension_numbers = #tpu.dot_dimension_numbers<[1], [0], [0], [1], [0, 0, 1, 1], [], []>} : vector<64x96xbf16>, vector<96x16xbf16>, vector<64x16xf32> -> vector<64x16xf32>
    %c1_344 = arith.constant 1 : index
    %c0_345 = arith.constant 0 : index
    %384 = vector.load %arg7[%c1_344, %c0_345] : memref<33x16xf32, #tpu.memory_space<vmem>>, vector<1x16xf32>
    %385 = vector.shape_cast %384 : vector<1x16xf32> to vector<16xf32>
    %386 = vector.shape_cast %385 : vector<16xf32> to vector<1x16xf32>
    %387 = vector.broadcast %386 : vector<1x16xf32> to vector<64x16xf32>
    %388 = arith.addf %383, %387 : vector<64x16xf32>
    %389 = vector.shape_cast %388 : vector<64x16xf32> to vector<1x8x8x16xf32>
    %c0_346 = arith.constant 0 : index
    %c1_347 = arith.constant 1 : index
    %c1_348 = arith.constant 1 : index
    %c0_349 = arith.constant 0 : index
    %390 = vector.load %arg11[%c0_346, %c1_347, %c1_348, %c0_349] : memref<1x10x10x64xf32, #tpu.memory_space<vmem>>, vector<1x8x8x16xf32>
    tpu.vector_store %arg11[%c0_346, %c1_347, %c1_348, %c0_349], %389 {strides = array<i32>} : memref<1x10x10x64xf32, #tpu.memory_space<vmem>>, vector<1x8x8x16xf32>,
    %c0_350 = arith.constant 0 : index
    %c0_351 = arith.constant 0 : index
    %c0_352 = arith.constant 0 : index
    %c0_353 = arith.constant 0 : index
    %391 = vector.load %arg11[%c0_350, %c0_351, %c0_352, %c0_353] : memref<1x10x10x64xf32, #tpu.memory_space<vmem>>, vector<1x8x8x16xf32>
    %c3_354 = arith.constant 3 : index
    %c0_355 = arith.constant 0 : index
    %392 = vector.load %arg7[%c3_354, %c0_355] : memref<33x16xf32, #tpu.memory_space<vmem>>, vector<1x16xf32>
    %393 = vector.shape_cast %392 : vector<1x16xf32> to vector<16xf32>
    %394 = vector.shape_cast %393 : vector<16xf32> to vector<1x1x1x16xf32>
    %395 = vector.broadcast %394 : vector<1x1x1x16xf32> to vector<1x8x8x16xf32>
    %396 = arith.mulf %391, %395 : vector<1x8x8x16xf32>
    %c0_356 = arith.constant 0 : index
    %c0_357 = arith.constant 0 : index
    %c1_358 = arith.constant 1 : index
    %c0_359 = arith.constant 0 : index
    %397 = vector.load %arg11[%c0_356, %c0_357, %c1_358, %c0_359] : memref<1x10x10x64xf32, #tpu.memory_space<vmem>>, vector<1x8x8x16xf32>
    %c4_360 = arith.constant 4 : index
    %c0_361 = arith.constant 0 : index
    %398 = vector.load %arg7[%c4_360, %c0_361] : memref<33x16xf32, #tpu.memory_space<vmem>>, vector<1x16xf32>
    %399 = vector.shape_cast %398 : vector<1x16xf32> to vector<16xf32>
    %400 = vector.shape_cast %399 : vector<16xf32> to vector<1x1x1x16xf32>
    %401 = vector.broadcast %400 : vector<1x1x1x16xf32> to vector<1x8x8x16xf32>
    %402 = arith.mulf %397, %401 : vector<1x8x8x16xf32>
    %403 = arith.addf %396, %402 : vector<1x8x8x16xf32>
    %c0_362 = arith.constant 0 : index
    %c0_363 = arith.constant 0 : index
    %c2_364 = arith.constant 2 : index
    %c0_365 = arith.constant 0 : index
    %404 = vector.load %arg11[%c0_362, %c0_363, %c2_364, %c0_365] : memref<1x10x10x64xf32, #tpu.memory_space<vmem>>, vector<1x8x8x16xf32>
    %c5_366 = arith.constant 5 : index
    %c0_367 = arith.constant 0 : index
    %405 = vector.load %arg7[%c5_366, %c0_367] : memref<33x16xf32, #tpu.memory_space<vmem>>, vector<1x16xf32>
    %406 = vector.shape_cast %405 : vector<1x16xf32> to vector<16xf32>
    %407 = vector.shape_cast %406 : vector<16xf32> to vector<1x1x1x16xf32>
    %408 = vector.broadcast %407 : vector<1x1x1x16xf32> to vector<1x8x8x16xf32>
    %409 = arith.mulf %404, %408 : vector<1x8x8x16xf32>
    %410 = arith.addf %403, %409 : vector<1x8x8x16xf32>
    %c0_368 = arith.constant 0 : index
    %c1_369 = arith.constant 1 : index
    %c0_370 = arith.constant 0 : index
    %c0_371 = arith.constant 0 : index
    %411 = vector.load %arg11[%c0_368, %c1_369, %c0_370, %c0_371] : memref<1x10x10x64xf32, #tpu.memory_space<vmem>>, vector<1x8x8x16xf32>
    %c6_372 = arith.constant 6 : index
    %c0_373 = arith.constant 0 : index
    %412 = vector.load %arg7[%c6_372, %c0_373] : memref<33x16xf32, #tpu.memory_space<vmem>>, vector<1x16xf32>
    %413 = vector.shape_cast %412 : vector<1x16xf32> to vector<16xf32>
    %414 = vector.shape_cast %413 : vector<16xf32> to vector<1x1x1x16xf32>
    %415 = vector.broadcast %414 : vector<1x1x1x16xf32> to vector<1x8x8x16xf32>
    %416 = arith.mulf %411, %415 : vector<1x8x8x16xf32>
    %417 = arith.addf %410, %416 : vector<1x8x8x16xf32>
    %c0_374 = arith.constant 0 : index
    %c1_375 = arith.constant 1 : index
    %c1_376 = arith.constant 1 : index
    %c0_377 = arith.constant 0 : index
    %418 = vector.load %arg11[%c0_374, %c1_375, %c1_376, %c0_377] : memref<1x10x10x64xf32, #tpu.memory_space<vmem>>, vector<1x8x8x16xf32>
    %c7_378 = arith.constant 7 : index
    %c0_379 = arith.constant 0 : index
    %419 = vector.load %arg7[%c7_378, %c0_379] : memref<33x16xf32, #tpu.memory_space<vmem>>, vector<1x16xf32>
    %420 = vector.shape_cast %419 : vector<1x16xf32> to vector<16xf32>
    %421 = vector.shape_cast %420 : vector<16xf32> to vector<1x1x1x16xf32>
    %422 = vector.broadcast %421 : vector<1x1x1x16xf32> to vector<1x8x8x16xf32>
    %423 = arith.mulf %418, %422 : vector<1x8x8x16xf32>
    %424 = arith.addf %417, %423 : vector<1x8x8x16xf32>
    %c0_380 = arith.constant 0 : index
    %c1_381 = arith.constant 1 : index
    %c2_382 = arith.constant 2 : index
    %c0_383 = arith.constant 0 : index
    %425 = vector.load %arg11[%c0_380, %c1_381, %c2_382, %c0_383] : memref<1x10x10x64xf32, #tpu.memory_space<vmem>>, vector<1x8x8x16xf32>
    %c8_384 = arith.constant 8 : index
    %c0_385 = arith.constant 0 : index
    %426 = vector.load %arg7[%c8_384, %c0_385] : memref<33x16xf32, #tpu.memory_space<vmem>>, vector<1x16xf32>
    %427 = vector.shape_cast %426 : vector<1x16xf32> to vector<16xf32>
    %428 = vector.shape_cast %427 : vector<16xf32> to vector<1x1x1x16xf32>
    %429 = vector.broadcast %428 : vector<1x1x1x16xf32> to vector<1x8x8x16xf32>
    %430 = arith.mulf %425, %429 : vector<1x8x8x16xf32>
    %431 = arith.addf %424, %430 : vector<1x8x8x16xf32>
    %c0_386 = arith.constant 0 : index
    %c2_387 = arith.constant 2 : index
    %c0_388 = arith.constant 0 : index
    %c0_389 = arith.constant 0 : index
    %432 = vector.load %arg11[%c0_386, %c2_387, %c0_388, %c0_389] : memref<1x10x10x64xf32, #tpu.memory_space<vmem>>, vector<1x8x8x16xf32>
    %c9_390 = arith.constant 9 : index
    %c0_391 = arith.constant 0 : index
    %433 = vector.load %arg7[%c9_390, %c0_391] : memref<33x16xf32, #tpu.memory_space<vmem>>, vector<1x16xf32>
    %434 = vector.shape_cast %433 : vector<1x16xf32> to vector<16xf32>
    %435 = vector.shape_cast %434 : vector<16xf32> to vector<1x1x1x16xf32>
    %436 = vector.broadcast %435 : vector<1x1x1x16xf32> to vector<1x8x8x16xf32>
    %437 = arith.mulf %432, %436 : vector<1x8x8x16xf32>
    %438 = arith.addf %431, %437 : vector<1x8x8x16xf32>
    %c0_392 = arith.constant 0 : index
    %c2_393 = arith.constant 2 : index
    %c1_394 = arith.constant 1 : index
    %c0_395 = arith.constant 0 : index
    %439 = vector.load %arg11[%c0_392, %c2_393, %c1_394, %c0_395] : memref<1x10x10x64xf32, #tpu.memory_space<vmem>>, vector<1x8x8x16xf32>
    %c10_396 = arith.constant 10 : index
    %c0_397 = arith.constant 0 : index
    %440 = vector.load %arg7[%c10_396, %c0_397] : memref<33x16xf32, #tpu.memory_space<vmem>>, vector<1x16xf32>
    %441 = vector.shape_cast %440 : vector<1x16xf32> to vector<16xf32>
    %442 = vector.shape_cast %441 : vector<16xf32> to vector<1x1x1x16xf32>
    %443 = vector.broadcast %442 : vector<1x1x1x16xf32> to vector<1x8x8x16xf32>
    %444 = arith.mulf %439, %443 : vector<1x8x8x16xf32>
    %445 = arith.addf %438, %444 : vector<1x8x8x16xf32>
    %c0_398 = arith.constant 0 : index
    %c2_399 = arith.constant 2 : index
    %c2_400 = arith.constant 2 : index
    %c0_401 = arith.constant 0 : index
    %446 = vector.load %arg11[%c0_398, %c2_399, %c2_400, %c0_401] : memref<1x10x10x64xf32, #tpu.memory_space<vmem>>, vector<1x8x8x16xf32>
    %c11_402 = arith.constant 11 : index
    %c0_403 = arith.constant 0 : index
    %447 = vector.load %arg7[%c11_402, %c0_403] : memref<33x16xf32, #tpu.memory_space<vmem>>, vector<1x16xf32>
    %448 = vector.shape_cast %447 : vector<1x16xf32> to vector<16xf32>
    %449 = vector.shape_cast %448 : vector<16xf32> to vector<1x1x1x16xf32>
    %450 = vector.broadcast %449 : vector<1x1x1x16xf32> to vector<1x8x8x16xf32>
    %451 = arith.mulf %446, %450 : vector<1x8x8x16xf32>
    %452 = arith.addf %445, %451 : vector<1x8x8x16xf32>
    %c2_404 = arith.constant 2 : index
    %c0_405 = arith.constant 0 : index
    %453 = vector.load %arg7[%c2_404, %c0_405] : memref<33x16xf32, #tpu.memory_space<vmem>>, vector<1x16xf32>
    %454 = vector.shape_cast %453 : vector<1x16xf32> to vector<16xf32>
    %455 = vector.shape_cast %454 : vector<16xf32> to vector<1x1x1x16xf32>
    %456 = vector.broadcast %455 : vector<1x1x1x16xf32> to vector<1x8x8x16xf32>
    %457 = arith.addf %452, %456 : vector<1x8x8x16xf32>
    %458 = arith.addf %457, %389 : vector<1x8x8x16xf32>
    %cst_406 = arith.constant dense<0.000000e+00> : vector<1x16xf32>
    %459 = vector.multi_reduction <add>, %458, %cst_406 [1, 2] : vector<1x8x8x16xf32> to vector<1x16xf32>
    %cst_407 = arith.constant 6.400000e+01 : f32
    %460 = vector.broadcast %cst_407 : f32 to vector<1x16xf32>
    %461 = arith.divf %459, %460 : vector<1x16xf32>
    %c16_408 = arith.constant 16 : index
    %c0_409 = arith.constant 0 : index
    %462 = vector.load %arg7[%c16_408, %c0_409] : memref<33x16xf32, #tpu.memory_space<vmem>>, vector<16x1xf32>
    %cst_410 = arith.constant dense<0.000000e+00> : vector<1x1xf32>
    %463 = tpu.matmul %461, %462, %cst_410 {dimension_numbers = #tpu.dot_dimension_numbers<[1], [0], [0], [1], [0, 0, 1, 1], [], []>} : vector<1x16xf32>, vector<16x1xf32>, vector<1x1xf32> -> vector<1x1xf32>
    %c12_411 = arith.constant 12 : index
    %c0_412 = arith.constant 0 : index
    %464 = vector.load %arg7[%c12_411, %c0_412] : memref<33x16xf32, #tpu.memory_space<vmem>>, vector<1x1xf32>
    %465 = vector.shape_cast %464 : vector<1x1xf32> to vector<1xf32>
    %466 = vector.shape_cast %465 : vector<1xf32> to vector<1x1xf32>
    %467 = arith.addf %463, %466 : vector<1x1xf32>
    %cst_413 = arith.constant 0.000000e+00 : f32
    %468 = vector.broadcast %cst_413 : f32 to vector<1x1xf32>
    %469 = arith.cmpf oge, %467, %468 : vector<1x1xf32>
    %cst_414 = arith.constant 0.00999999977 : f32
    %470 = vector.broadcast %cst_414 : f32 to vector<1x1xf32>
    %471 = arith.mulf %467, %470 : vector<1x1xf32>
    %472 = arith.select %469, %467, %471 : vector<1x1xi1>, vector<1x1xf32>
    %c32 = arith.constant 32 : index
    %c0_415 = arith.constant 0 : index
    %473 = vector.load %arg7[%c32, %c0_415] : memref<33x16xf32, #tpu.memory_space<vmem>>, vector<1x16xf32>
    %cst_416 = arith.constant dense<0.000000e+00> : vector<1x16xf32>
    %474 = tpu.matmul %472, %473, %cst_416 {dimension_numbers = #tpu.dot_dimension_numbers<[1], [0], [0], [1], [0, 0, 1, 1], [], []>} : vector<1x1xf32>, vector<1x16xf32>, vector<1x16xf32> -> vector<1x16xf32>
    %c13_417 = arith.constant 13 : index
    %c0_418 = arith.constant 0 : index
    %475 = vector.load %arg7[%c13_417, %c0_418] : memref<33x16xf32, #tpu.memory_space<vmem>>, vector<1x16xf32>
    %476 = vector.shape_cast %475 : vector<1x16xf32> to vector<16xf32>
    %477 = vector.shape_cast %476 : vector<16xf32> to vector<1x16xf32>
    %478 = arith.addf %474, %477 : vector<1x16xf32>
    %cst_419 = arith.constant 5.000000e-01 : f32
    %479 = vector.broadcast %cst_419 : f32 to vector<1x16xf32>
    %480 = arith.mulf %479, %478 : vector<1x16xf32>
    %481 = math.tanh %480 : vector<1x16xf32>
    %cst_420 = arith.constant 1.000000e+00 : f32
    %482 = vector.broadcast %cst_420 : f32 to vector<1x16xf32>
    %483 = arith.addf %481, %482 : vector<1x16xf32>
    %cst_421 = arith.constant 5.000000e-01 : f32
    %484 = vector.broadcast %cst_421 : f32 to vector<1x16xf32>
    %485 = arith.mulf %484, %483 : vector<1x16xf32>
    %486 = vector.shape_cast %485 : vector<1x16xf32> to vector<1x1x1x16xf32>
    %487 = vector.broadcast %486 : vector<1x1x1x16xf32> to vector<1x8x8x16xf32>
    %488 = arith.mulf %458, %487 : vector<1x8x8x16xf32>
    %489 = arith.addf %328, %488 : vector<1x8x8x16xf32>
    %490 = vector.extract_strided_slice %3 {offsets = [0, 0, 0, 0], sizes = [1, 8, 8, 16], strides = [1, 1, 1, 1]} : vector<1x8x8x64xf32> to vector<1x8x8x16xf32>
    %491 = vector.extract_strided_slice %165 {offsets = [0, 0, 0, 0], sizes = [1, 8, 8, 16], strides = [1, 1, 1, 1]} : vector<1x8x8x48xf32> to vector<1x8x8x16xf32>
    %492 = vector.extract_strided_slice %327 {offsets = [0, 0, 0, 0], sizes = [1, 8, 8, 16], strides = [1, 1, 1, 1]} : vector<1x8x8x32xf32> to vector<1x8x8x16xf32>
    %493 = tpu.concatenate %490, %491, %492, %489 in 3 : vector<1x8x8x16xf32>, vector<1x8x8x16xf32>, vector<1x8x8x16xf32>, vector<1x8x8x16xf32> -> vector<1x8x8x64xf32>
    %cst_422 = arith.constant dense<0.000000e+00> : vector<1x64xf32>
    %494 = vector.multi_reduction <add>, %493, %cst_422 [1, 2] : vector<1x8x8x64xf32> to vector<1x64xf32>
    %cst_423 = arith.constant 6.400000e+01 : f32
    %495 = vector.broadcast %cst_423 : f32 to vector<1x64xf32>
    %496 = arith.divf %494, %495 : vector<1x64xf32>
    %c8_424 = arith.constant 8 : index
    %c0_425 = arith.constant 0 : index
    %497 = vector.load %arg9[%c8_424, %c0_425] : memref<76x64xf32, #tpu.memory_space<vmem>>, vector<64x4xf32>
    %cst_426 = arith.constant dense<0.000000e+00> : vector<1x4xf32>
    %498 = tpu.matmul %496, %497, %cst_426 {dimension_numbers = #tpu.dot_dimension_numbers<[1], [0], [0], [1], [0, 0, 1, 1], [], []>} : vector<1x64xf32>, vector<64x4xf32>, vector<1x4xf32> -> vector<1x4xf32>
    %c2_427 = arith.constant 2 : index
    %c0_428 = arith.constant 0 : index
    %499 = vector.load %arg9[%c2_427, %c0_428] : memref<76x64xf32, #tpu.memory_space<vmem>>, vector<1x4xf32>
    %500 = vector.shape_cast %499 : vector<1x4xf32> to vector<4xf32>
    %501 = vector.shape_cast %500 : vector<4xf32> to vector<1x4xf32>
    %502 = arith.addf %498, %501 : vector<1x4xf32>
    %cst_429 = arith.constant 0.000000e+00 : f32
    %503 = vector.broadcast %cst_429 : f32 to vector<1x4xf32>
    %504 = arith.cmpf oge, %502, %503 : vector<1x4xf32>
    %cst_430 = arith.constant 0.00999999977 : f32
    %505 = vector.broadcast %cst_430 : f32 to vector<1x4xf32>
    %506 = arith.mulf %502, %505 : vector<1x4xf32>
    %507 = arith.select %504, %502, %506 : vector<1x4xi1>, vector<1x4xf32>
    %c72 = arith.constant 72 : index
    %c0_431 = arith.constant 0 : index
    %508 = vector.load %arg9[%c72, %c0_431] : memref<76x64xf32, #tpu.memory_space<vmem>>, vector<4x64xf32>
    %cst_432 = arith.constant dense<0.000000e+00> : vector<1x64xf32>
    %509 = tpu.matmul %507, %508, %cst_432 {dimension_numbers = #tpu.dot_dimension_numbers<[1], [0], [0], [1], [0, 0, 1, 1], [], []>} : vector<1x4xf32>, vector<4x64xf32>, vector<1x64xf32> -> vector<1x64xf32>
    %c3_433 = arith.constant 3 : index
    %c0_434 = arith.constant 0 : index
    %510 = vector.load %arg9[%c3_433, %c0_434] : memref<76x64xf32, #tpu.memory_space<vmem>>, vector<1x64xf32>
    %511 = vector.shape_cast %510 : vector<1x64xf32> to vector<64xf32>
    %512 = vector.shape_cast %511 : vector<64xf32> to vector<1x64xf32>
    %513 = arith.addf %509, %512 : vector<1x64xf32>
    %cst_435 = arith.constant 5.000000e-01 : f32
    %514 = vector.broadcast %cst_435 : f32 to vector<1x64xf32>
    %515 = arith.mulf %514, %513 : vector<1x64xf32>
    %516 = math.tanh %515 : vector<1x64xf32>
    %cst_436 = arith.constant 1.000000e+00 : f32
    %517 = vector.broadcast %cst_436 : f32 to vector<1x64xf32>
    %518 = arith.addf %516, %517 : vector<1x64xf32>
    %cst_437 = arith.constant 5.000000e-01 : f32
    %519 = vector.broadcast %cst_437 : f32 to vector<1x64xf32>
    %520 = arith.mulf %519, %518 : vector<1x64xf32>
    %521 = vector.shape_cast %520 : vector<1x64xf32> to vector<1x1x1x64xf32>
    %522 = vector.broadcast %521 : vector<1x1x1x64xf32> to vector<1x8x8x64xf32>
    %523 = arith.mulf %493, %522 : vector<1x8x8x64xf32>
    %c0_438 = arith.constant 0 : index
    %c1_439 = arith.constant 1 : index
    %c1_440 = arith.constant 1 : index
    %c0_441 = arith.constant 0 : index
    %524 = vector.load %arg11[%c0_438, %c1_439, %c1_440, %c0_441] : memref<1x10x10x64xf32, #tpu.memory_space<vmem>>, vector<1x8x8x64xf32>
    tpu.vector_store %arg11[%c0_438, %c1_439, %c1_440, %c0_441], %523 {strides = array<i32>} : memref<1x10x10x64xf32, #tpu.memory_space<vmem>>, vector<1x8x8x64xf32>,
    %c0_442 = arith.constant 0 : index
    %c0_443 = arith.constant 0 : index
    %c0_444 = arith.constant 0 : index
    %c0_445 = arith.constant 0 : index
    %525 = vector.load %arg11[%c0_442, %c0_443, %c0_444, %c0_445] : memref<1x10x10x64xf32, #tpu.memory_space<vmem>>, vector<1x8x8x64xf32>
    %526 = arith.truncf %525 : vector<1x8x8x64xf32> to vector<1x8x8x64xbf16>
    %527 = vector.shape_cast %526 : vector<1x8x8x64xbf16> to vector<64x64xbf16>
    %c0_446 = arith.constant 0 : index
    %c0_447 = arith.constant 0 : index
    %c1_448 = arith.constant 1 : index
    %c0_449 = arith.constant 0 : index
    %528 = vector.load %arg11[%c0_446, %c0_447, %c1_448, %c0_449] : memref<1x10x10x64xf32, #tpu.memory_space<vmem>>, vector<1x8x8x64xf32>
    %529 = arith.truncf %528 : vector<1x8x8x64xf32> to vector<1x8x8x64xbf16>
    %530 = vector.shape_cast %529 : vector<1x8x8x64xbf16> to vector<64x64xbf16>
    %c0_450 = arith.constant 0 : index
    %c0_451 = arith.constant 0 : index
    %c2_452 = arith.constant 2 : index
    %c0_453 = arith.constant 0 : index
    %531 = vector.load %arg11[%c0_450, %c0_451, %c2_452, %c0_453] : memref<1x10x10x64xf32, #tpu.memory_space<vmem>>, vector<1x8x8x64xf32>
    %532 = arith.truncf %531 : vector<1x8x8x64xf32> to vector<1x8x8x64xbf16>
    %533 = vector.shape_cast %532 : vector<1x8x8x64xbf16> to vector<64x64xbf16>
    %c0_454 = arith.constant 0 : index
    %c1_455 = arith.constant 1 : index
    %c0_456 = arith.constant 0 : index
    %c0_457 = arith.constant 0 : index
    %534 = vector.load %arg11[%c0_454, %c1_455, %c0_456, %c0_457] : memref<1x10x10x64xf32, #tpu.memory_space<vmem>>, vector<1x8x8x64xf32>
    %535 = arith.truncf %534 : vector<1x8x8x64xf32> to vector<1x8x8x64xbf16>
    %536 = vector.shape_cast %535 : vector<1x8x8x64xbf16> to vector<64x64xbf16>
    %c0_458 = arith.constant 0 : index
    %c1_459 = arith.constant 1 : index
    %c1_460 = arith.constant 1 : index
    %c0_461 = arith.constant 0 : index
    %537 = vector.load %arg11[%c0_458, %c1_459, %c1_460, %c0_461] : memref<1x10x10x64xf32, #tpu.memory_space<vmem>>, vector<1x8x8x64xf32>
    %538 = arith.truncf %537 : vector<1x8x8x64xf32> to vector<1x8x8x64xbf16>
    %539 = vector.shape_cast %538 : vector<1x8x8x64xbf16> to vector<64x64xbf16>
    %c0_462 = arith.constant 0 : index
    %c1_463 = arith.constant 1 : index
    %c2_464 = arith.constant 2 : index
    %c0_465 = arith.constant 0 : index
    %540 = vector.load %arg11[%c0_462, %c1_463, %c2_464, %c0_465] : memref<1x10x10x64xf32, #tpu.memory_space<vmem>>, vector<1x8x8x64xf32>
    %541 = arith.truncf %540 : vector<1x8x8x64xf32> to vector<1x8x8x64xbf16>
    %542 = vector.shape_cast %541 : vector<1x8x8x64xbf16> to vector<64x64xbf16>
    %c0_466 = arith.constant 0 : index
    %c2_467 = arith.constant 2 : index
    %c0_468 = arith.constant 0 : index
    %c0_469 = arith.constant 0 : index
    %543 = vector.load %arg11[%c0_466, %c2_467, %c0_468, %c0_469] : memref<1x10x10x64xf32, #tpu.memory_space<vmem>>, vector<1x8x8x64xf32>
    %544 = arith.truncf %543 : vector<1x8x8x64xf32> to vector<1x8x8x64xbf16>
    %545 = vector.shape_cast %544 : vector<1x8x8x64xbf16> to vector<64x64xbf16>
    %c0_470 = arith.constant 0 : index
    %c2_471 = arith.constant 2 : index
    %c1_472 = arith.constant 1 : index
    %c0_473 = arith.constant 0 : index
    %546 = vector.load %arg11[%c0_470, %c2_471, %c1_472, %c0_473] : memref<1x10x10x64xf32, #tpu.memory_space<vmem>>, vector<1x8x8x64xf32>
    %547 = arith.truncf %546 : vector<1x8x8x64xf32> to vector<1x8x8x64xbf16>
    %548 = vector.shape_cast %547 : vector<1x8x8x64xbf16> to vector<64x64xbf16>
    %c0_474 = arith.constant 0 : index
    %c2_475 = arith.constant 2 : index
    %c2_476 = arith.constant 2 : index
    %c0_477 = arith.constant 0 : index
    %549 = vector.load %arg11[%c0_474, %c2_475, %c2_476, %c0_477] : memref<1x10x10x64xf32, #tpu.memory_space<vmem>>, vector<1x8x8x64xf32>
    %550 = arith.truncf %549 : vector<1x8x8x64xf32> to vector<1x8x8x64xbf16>
    %551 = vector.shape_cast %550 : vector<1x8x8x64xbf16> to vector<64x64xbf16>
    %552 = tpu.concatenate %527, %530, %533, %536, %539, %542, %545, %548, %551 in 1 : vector<64x64xbf16>, vector<64x64xbf16>, vector<64x64xbf16>, vector<64x64xbf16>, vector<64x64xbf16>, vector<64x64xbf16>, vector<64x64xbf16>, vector<64x64xbf16>, vector<64x64xbf16> -> vector<64x576xbf16>
    %c0_478 = arith.constant 0 : index
    %c0_479 = arith.constant 0 : index
    %553 = vector.load %arg8[%c0_478, %c0_479] : memref<1152x64xbf16, #tpu.memory_space<vmem>>, vector<576x64xbf16>
    %cst_480 = arith.constant dense<0.000000e+00> : vector<64x64xf32>
    %554 = tpu.matmul %552, %553, %cst_480 {dimension_numbers = #tpu.dot_dimension_numbers<[1], [0], [0], [1], [0, 0, 1, 1], [], []>} : vector<64x576xbf16>, vector<576x64xbf16>, vector<64x64xf32> -> vector<64x64xf32>
    %c0_481 = arith.constant 0 : index
    %c0_482 = arith.constant 0 : index
    %555 = vector.load %arg9[%c0_481, %c0_482] : memref<76x64xf32, #tpu.memory_space<vmem>>, vector<1x64xf32>
    %556 = vector.shape_cast %555 : vector<1x64xf32> to vector<64xf32>
    %557 = vector.shape_cast %556 : vector<64xf32> to vector<1x64xf32>
    %558 = vector.broadcast %557 : vector<1x64xf32> to vector<64x64xf32>
    %559 = arith.addf %554, %558 : vector<64x64xf32>
    %cst_483 = arith.constant 0.000000e+00 : f32
    %560 = vector.broadcast %cst_483 : f32 to vector<64x64xf32>
    %561 = arith.cmpf oge, %559, %560 : vector<64x64xf32>
    %cst_484 = arith.constant 0.00999999977 : f32
    %562 = vector.broadcast %cst_484 : f32 to vector<64x64xf32>
    %563 = arith.mulf %559, %562 : vector<64x64xf32>
    %564 = arith.select %561, %559, %563 : vector<64x64xi1>, vector<64x64xf32>
    %565 = vector.shape_cast %564 : vector<64x64xf32> to vector<1x8x8x64xf32>
    %c0_485 = arith.constant 0 : index
    %c1_486 = arith.constant 1 : index
    %c1_487 = arith.constant 1 : index
    %c0_488 = arith.constant 0 : index
    %566 = vector.load %arg11[%c0_485, %c1_486, %c1_487, %c0_488] : memref<1x10x10x64xf32, #tpu.memory_space<vmem>>, vector<1x8x8x64xf32>
    tpu.vector_store %arg11[%c0_485, %c1_486, %c1_487, %c0_488], %565 {strides = array<i32>} : memref<1x10x10x64xf32, #tpu.memory_space<vmem>>, vector<1x8x8x64xf32>,
    %c0_489 = arith.constant 0 : index
    %c0_490 = arith.constant 0 : index
    %c0_491 = arith.constant 0 : index
    %c0_492 = arith.constant 0 : index
    %567 = vector.load %arg11[%c0_489, %c0_490, %c0_491, %c0_492] : memref<1x10x10x64xf32, #tpu.memory_space<vmem>>, vector<1x8x8x64xf32>
    %568 = arith.truncf %567 : vector<1x8x8x64xf32> to vector<1x8x8x64xbf16>
    %569 = vector.shape_cast %568 : vector<1x8x8x64xbf16> to vector<64x64xbf16>
    %c0_493 = arith.constant 0 : index
    %c0_494 = arith.constant 0 : index
    %c1_495 = arith.constant 1 : index
    %c0_496 = arith.constant 0 : index
    %570 = vector.load %arg11[%c0_493, %c0_494, %c1_495, %c0_496] : memref<1x10x10x64xf32, #tpu.memory_space<vmem>>, vector<1x8x8x64xf32>
    %571 = arith.truncf %570 : vector<1x8x8x64xf32> to vector<1x8x8x64xbf16>
    %572 = vector.shape_cast %571 : vector<1x8x8x64xbf16> to vector<64x64xbf16>
    %c0_497 = arith.constant 0 : index
    %c0_498 = arith.constant 0 : index
    %c2_499 = arith.constant 2 : index
    %c0_500 = arith.constant 0 : index
    %573 = vector.load %arg11[%c0_497, %c0_498, %c2_499, %c0_500] : memref<1x10x10x64xf32, #tpu.memory_space<vmem>>, vector<1x8x8x64xf32>
    %574 = arith.truncf %573 : vector<1x8x8x64xf32> to vector<1x8x8x64xbf16>
    %575 = vector.shape_cast %574 : vector<1x8x8x64xbf16> to vector<64x64xbf16>
    %c0_501 = arith.constant 0 : index
    %c1_502 = arith.constant 1 : index
    %c0_503 = arith.constant 0 : index
    %c0_504 = arith.constant 0 : index
    %576 = vector.load %arg11[%c0_501, %c1_502, %c0_503, %c0_504] : memref<1x10x10x64xf32, #tpu.memory_space<vmem>>, vector<1x8x8x64xf32>
    %577 = arith.truncf %576 : vector<1x8x8x64xf32> to vector<1x8x8x64xbf16>
    %578 = vector.shape_cast %577 : vector<1x8x8x64xbf16> to vector<64x64xbf16>
    %c0_505 = arith.constant 0 : index
    %c1_506 = arith.constant 1 : index
    %c1_507 = arith.constant 1 : index
    %c0_508 = arith.constant 0 : index
    %579 = vector.load %arg11[%c0_505, %c1_506, %c1_507, %c0_508] : memref<1x10x10x64xf32, #tpu.memory_space<vmem>>, vector<1x8x8x64xf32>
    %580 = arith.truncf %579 : vector<1x8x8x64xf32> to vector<1x8x8x64xbf16>
    %581 = vector.shape_cast %580 : vector<1x8x8x64xbf16> to vector<64x64xbf16>
    %c0_509 = arith.constant 0 : index
    %c1_510 = arith.constant 1 : index
    %c2_511 = arith.constant 2 : index
    %c0_512 = arith.constant 0 : index
    %582 = vector.load %arg11[%c0_509, %c1_510, %c2_511, %c0_512] : memref<1x10x10x64xf32, #tpu.memory_space<vmem>>, vector<1x8x8x64xf32>
    %583 = arith.truncf %582 : vector<1x8x8x64xf32> to vector<1x8x8x64xbf16>
    %584 = vector.shape_cast %583 : vector<1x8x8x64xbf16> to vector<64x64xbf16>
    %c0_513 = arith.constant 0 : index
    %c2_514 = arith.constant 2 : index
    %c0_515 = arith.constant 0 : index
    %c0_516 = arith.constant 0 : index
    %585 = vector.load %arg11[%c0_513, %c2_514, %c0_515, %c0_516] : memref<1x10x10x64xf32, #tpu.memory_space<vmem>>, vector<1x8x8x64xf32>
    %586 = arith.truncf %585 : vector<1x8x8x64xf32> to vector<1x8x8x64xbf16>
    %587 = vector.shape_cast %586 : vector<1x8x8x64xbf16> to vector<64x64xbf16>
    %c0_517 = arith.constant 0 : index
    %c2_518 = arith.constant 2 : index
    %c1_519 = arith.constant 1 : index
    %c0_520 = arith.constant 0 : index
    %588 = vector.load %arg11[%c0_517, %c2_518, %c1_519, %c0_520] : memref<1x10x10x64xf32, #tpu.memory_space<vmem>>, vector<1x8x8x64xf32>
    %589 = arith.truncf %588 : vector<1x8x8x64xf32> to vector<1x8x8x64xbf16>
    %590 = vector.shape_cast %589 : vector<1x8x8x64xbf16> to vector<64x64xbf16>
    %c0_521 = arith.constant 0 : index
    %c2_522 = arith.constant 2 : index
    %c2_523 = arith.constant 2 : index
    %c0_524 = arith.constant 0 : index
    %591 = vector.load %arg11[%c0_521, %c2_522, %c2_523, %c0_524] : memref<1x10x10x64xf32, #tpu.memory_space<vmem>>, vector<1x8x8x64xf32>
    %592 = arith.truncf %591 : vector<1x8x8x64xf32> to vector<1x8x8x64xbf16>
    %593 = vector.shape_cast %592 : vector<1x8x8x64xbf16> to vector<64x64xbf16>
    %594 = tpu.concatenate %569, %572, %575, %578, %581, %584, %587, %590, %593 in 1 : vector<64x64xbf16>, vector<64x64xbf16>, vector<64x64xbf16>, vector<64x64xbf16>, vector<64x64xbf16>, vector<64x64xbf16>, vector<64x64xbf16>, vector<64x64xbf16>, vector<64x64xbf16> -> vector<64x576xbf16>
    %c576 = arith.constant 576 : index
    %c0_525 = arith.constant 0 : index
    %595 = vector.load %arg8[%c576, %c0_525] : memref<1152x64xbf16, #tpu.memory_space<vmem>>, vector<576x64xbf16>
    %cst_526 = arith.constant dense<0.000000e+00> : vector<64x64xf32>
    %596 = tpu.matmul %594, %595, %cst_526 {dimension_numbers = #tpu.dot_dimension_numbers<[1], [0], [0], [1], [0, 0, 1, 1], [], []>} : vector<64x576xbf16>, vector<576x64xbf16>, vector<64x64xf32> -> vector<64x64xf32>
    %c1_527 = arith.constant 1 : index
    %c0_528 = arith.constant 0 : index
    %597 = vector.load %arg9[%c1_527, %c0_528] : memref<76x64xf32, #tpu.memory_space<vmem>>, vector<1x64xf32>
    %598 = vector.shape_cast %597 : vector<1x64xf32> to vector<64xf32>
    %599 = vector.shape_cast %598 : vector<64xf32> to vector<1x64xf32>
    %600 = vector.broadcast %599 : vector<1x64xf32> to vector<64x64xf32>
    %601 = arith.addf %596, %600 : vector<64x64xf32>
    %602 = vector.shape_cast %601 : vector<64x64xf32> to vector<1x8x8x64xf32>
    %603 = arith.addf %602, %3 : vector<1x8x8x64xf32>
    %604 = arith.truncf %603 : vector<1x8x8x64xf32> to vector<1x8x8x64xbf16>
    %c0_529 = arith.constant 0 : index
    %c0_530 = arith.constant 0 : index
    %c0_531 = arith.constant 0 : index
    %c0_532 = arith.constant 0 : index
    %605 = vector.load %arg10[%c0_529, %c0_530, %c0_531, %c0_532] : memref<1x8x8x64xbf16, #tpu.memory_space<vmem>>, vector<1x8x8x64xbf16>
    tpu.vector_store %arg10[%c0_529, %c0_530, %c0_531, %c0_532], %604 {strides = array<i32>} : memref<1x8x8x64xbf16, #tpu.memory_space<vmem>>, vector<1x8x8x64xbf16>,
    return
  }
  func.func @transform_0(%arg0: i32) -> (i32, i32, i32, i32) {
    %c0_i32 = arith.constant 0 : i32
    %c0_i32_0 = arith.constant 0 : i32
    %c0_i32_1 = arith.constant 0 : i32
    %c0_i32_2 = arith.constant 0 : i32
    return %arg0, %c0_i32, %c0_i32_0, %c0_i32_1 : i32, i32, i32, i32
  }
  func.func @transform_1(%arg0: i32) -> (i32, i32) {
    %c0_i32 = arith.constant 0 : i32
    %c0_i32_0 = arith.constant 0 : i32
    %c0_i32_1 = arith.constant 0 : i32
    return %c0_i32, %c0_i32_0 : i32, i32
  }
  func.func @transform_2(%arg0: i32) -> (i32, i32) {
    %c0_i32 = arith.constant 0 : i32
    %c0_i32_0 = arith.constant 0 : i32
    %c0_i32_1 = arith.constant 0 : i32
    return %c0_i32, %c0_i32_0 : i32, i32
  }
  func.func @transform_3(%arg0: i32) -> (i32, i32) {
    %c0_i32 = arith.constant 0 : i32
    %c0_i32_0 = arith.constant 0 : i32
    %c0_i32_1 = arith.constant 0 : i32
    return %c0_i32, %c0_i32_0 : i32, i32
  }
  func.func @transform_4(%arg0: i32) -> (i32, i32) {
    %c0_i32 = arith.constant 0 : i32
    %c0_i32_0 = arith.constant 0 : i32
    %c0_i32_1 = arith.constant 0 : i32
    return %c0_i32, %c0_i32_0 : i32, i32
  }
  func.func @transform_5(%arg0: i32) -> (i32, i32) {
    %c0_i32 = arith.constant 0 : i32
    %c0_i32_0 = arith.constant 0 : i32
    %c0_i32_1 = arith.constant 0 : i32
    return %c0_i32, %c0_i32_0 : i32, i32
  }
  func.func @transform_6(%arg0: i32) -> (i32, i32) {
    %c0_i32 = arith.constant 0 : i32
    %c0_i32_0 = arith.constant 0 : i32
    %c0_i32_1 = arith.constant 0 : i32
    return %c0_i32, %c0_i32_0 : i32, i32
  }
  func.func @transform_7(%arg0: i32) -> (i32, i32) {
    %c0_i32 = arith.constant 0 : i32
    %c0_i32_0 = arith.constant 0 : i32
    %c0_i32_1 = arith.constant 0 : i32
    return %c0_i32, %c0_i32_0 : i32, i32
  }
  func.func @transform_8(%arg0: i32) -> (i32, i32) {
    %c0_i32 = arith.constant 0 : i32
    %c0_i32_0 = arith.constant 0 : i32
    %c0_i32_1 = arith.constant 0 : i32
    return %c0_i32, %c0_i32_0 : i32, i32
  }
  func.func @transform_9(%arg0: i32) -> (i32, i32, i32, i32) {
    %c0_i32 = arith.constant 0 : i32
    %c0_i32_0 = arith.constant 0 : i32
    %c0_i32_1 = arith.constant 0 : i32
    %c0_i32_2 = arith.constant 0 : i32
    return %arg0, %c0_i32, %c0_i32_0, %c0_i32_1 : i32, i32, i32, i32
  }
}

</mosaic_0001>

<llo_original>
// kernel: net_forward.13
$region0: #{net_forward.13}
  #allocation0 [shape = 'u32[]', space=smem, size = 0x4, offset = 0x4, fixed_abs, tag = 'smem constant byte address 0x4 - core index']
  #allocation1 [shape = 'u32[72,128]{1,0:T(1,128)}', space=vmem, size = 0x9000, scoped, tag = 'internal scratch']
  #allocation2 [shape = 'f32[1,10,10,3]{3,2,1,0:T(8,128)}', space=vmem, size = 0x14000, scoped, tag = 'scratch operand']
  %s0 = inlined_call_operand.vmem [shape: f32[2,8,8,3], index: 0, kind: input, shape index: {}]
  %s1 = inlined_call_operand.vmem [shape: bf16[27,64], index: 1, kind: input, shape index: {}]
  %s2 = inlined_call_operand.vmem [shape: f32[2,64], index: 2, kind: input, shape index: {}]
  %s3 = inlined_call_operand.vmem [shape: bf16[2,8,8,64], index: 3, kind: output, shape index: {}]
  %s4 = sld [smem:[#allocation0]]
  $region45: #{net_forward.13} parent=0
    _
  %s6 = ssub.s32 1, %s4
  %s7 = scalar_select 0, %s6, %s4
  loop: start=0, step=1, limit=4
  $region2: #{net_forward.13} parent=0 // loop_pre_header
    _
  $region3: #{net_forward.13} parent=0 // loop_header
    %s9 = sphi 0, %s13
    %p10 = scmp.ge.s32.totalorder %s9, 4
    %s19 = sphi 0, %s21
    %s22 = sphi 0, %s19
    %s23 = sphi 0, %s22
    %s39 = sphi 0, %s23
    %s43 = sphi 0, %s43
    %s45 = sphi 0, %s43
    %s46 = sphi 0, %s45
    %s60 = sphi 0, %s46
    %s64 = sphi 0, %s64
    %s66 = sphi 0, %s64
    %s67 = sphi 0, %s66
    %s81 = sphi 0, %s67
    %s87 = sphi 0, %s89
    %s90 = sphi 0, %s87
    %s91 = sphi 0, %s90
    %s107 = sphi 0, %s91
  $region4: #{net_forward.13} parent=0 // loop_header_branch
    %12 = sbr.rel (%p10) target = $region8
  $region5: #{net_forward.13} parent=0 // loop_body
    %s14 = ssub.s32 %s9, 1
    %s15 = ssub.s32 %s9, 2
    %s16 = sadd.s32 %s9, 1
    %s17 = ssub.s32 %s9, %s16
    %p18 = scmp.eq.s32.totalorder %s17, 0
    %s20 = sadd.s32 %s19, 1
    %s21 = scalar_select %p18, %s19, %s20
    %p24 = pneg %p18
    %p25 = scmp.eq.s32.totalorder %s9, 1
    %p26 = por %p24, %p25
    %p27 = scmp.ne.s32.totalorder %s19, %s22
    %p28 = scmp.eq.s32.totalorder %s9, 0
    %p29 = por %p27, %p28
    %p30 = scmp.ne.s32.totalorder %s19, %s22
    %p31 = scmp.eq.s32.totalorder %s14, 1
    %p32 = por %p30, %p31
    %p33 = scmp.ne.s32.totalorder %s22, %s23
    %p34 = scmp.eq.s32.totalorder %s14, 0
    %p35 = por %p33, %p34
    %p36 = scmp.ne.s32.totalorder %s22, %s23
    %p37 = scmp.eq.s32.totalorder %s15, 1
    %p38 = por %p36, %p37
    %p40 = scmp.ne.s32.totalorder %s23, %s39
    %p41 = scmp.eq.s32.totalorder %s15, 0
    %p42 = por %p40, %p41
    %s44 = sadd.s32 %s43, 1
    %p47 = scmp.eq.s32.totalorder %s9, 1
    %p48 = scmp.ne.s32.totalorder %s43, %s45
    %p49 = scmp.eq.s32.totalorder %s9, 0
    %p50 = por %p48, %p49
    %p51 = scmp.ne.s32.totalorder %s43, %s45
    %p52 = scmp.eq.s32.totalorder %s14, 1
    %p53 = por %p51, %p52
    %p54 = scmp.ne.s32.totalorder %s45, %s46
    %p55 = scmp.eq.s32.totalorder %s14, 0
    %p56 = por %p54, %p55
    %p57 = scmp.ne.s32.totalorder %s45, %s46
    %p58 = scmp.eq.s32.totalorder %s15, 1
    %p59 = por %p57, %p58
    %p61 = scmp.ne.s32.totalorder %s46, %s60
    %p62 = scmp.eq.s32.totalorder %s15, 0
    %p63 = por %p61, %p62
    %s65 = sadd.s32 %s64, 1
    %p68 = scmp.eq.s32.totalorder %s9, 1
    %p69 = scmp.ne.s32.totalorder %s64, %s66
    %p70 = scmp.eq.s32.totalorder %s9, 0
    %p71 = por %p69, %p70
    %p72 = scmp.ne.s32.totalorder %s64, %s66
    %p73 = scmp.eq.s32.totalorder %s14, 1
    %p74 = por %p72, %p73
    %p75 = scmp.ne.s32.totalorder %s66, %s67
    %p76 = scmp.eq.s32.totalorder %s14, 0
    %p77 = por %p75, %p76
    %p78 = scmp.ne.s32.totalorder %s66, %s67
    %p79 = scmp.eq.s32.totalorder %s15, 1
    %p80 = por %p78, %p79
    %p82 = scmp.ne.s32.totalorder %s67, %s81
    %p83 = scmp.eq.s32.totalorder %s15, 0
    %p84 = por %p82, %p83
    %s85 = ssub.s32 %s9, %s16
    %p86 = scmp.eq.s32.totalorder %s85, 0
    %s88 = sadd.s32 %s87, 1
    %s89 = scalar_select %p86, %s87, %s88
    %p92 = pneg %p86
    %p93 = scmp.eq.s32.totalorder %s9, 1
    %p94 = por %p92, %p93
    %p95 = scmp.ne.s32.totalorder %s87, %s90
    %p96 = scmp.eq.s32.totalorder %s9, 0
    %p97 = por %p95, %p96
    %p98 = scmp.ne.s32.totalorder %s87, %s90
    %p99 = scmp.eq.s32.totalorder %s14, 1
    %p100 = por %p98, %p99
    %p101 = scmp.ne.s32.totalorder %s90, %s91
    %p102 = scmp.eq.s32.totalorder %s14, 0
    %p103 = por %p101, %p102
    %p104 = scmp.ne.s32.totalorder %s90, %s91
    %p105 = scmp.eq.s32.totalorder %s15, 1
    %p106 = por %p104, %p105
    %p108 = scmp.ne.s32.totalorder %s91, %s107
    %p109 = scmp.eq.s32.totalorder %s15, 0
    %p110 = por %p108, %p109
    %p111 = scmp.le.s32.totalorder 1, %s9
    %p112 = scmp.lt.s32.totalorder %s9, 3
    %p113 = pnand %p111, %p112
    %p114 = pneg %p113
    // Predicated region
    $region9: #{net_forward.13} parent=5 // pred_check
      _
    $region10: #{net_forward.13} parent=5 // pred_check_branch
      %116 = sbr.rel (%p113) target = $region12
    $region11: #{net_forward.13} parent=5 // pred_region
      %s117 = ssub.s32 %s9, 1
      // Predicated region
      $region13: #{net_forward.13} parent=11 // pred_check
        %p118 = pneg %p56
      $region14: #{net_forward.13} parent=11 // pred_check_branch
        %120 = sbr.rel (%p118) target = $region16
      $region15: #{net_forward.13} parent=11 // pred_region
        _
      $region16: #{net_forward.13} parent=11 // pred_fallthru
        _
      // Predicated region
      $region17: #{net_forward.13} parent=11 // pred_check
        %p121 = pneg %p77
      $region18: #{net_forward.13} parent=11 // pred_check_branch
        %123 = sbr.rel (%p121) target = $region20
      $region19: #{net_forward.13} parent=11 // pred_region
        _
      $region20: #{net_forward.13} parent=11 // pred_fallthru
        _
    $region12: #{net_forward.13} parent=5 // pred_fallthru
      _
    %p124 = scmp.lt.s32.totalorder %s9, 2
    // Predicated region
    $region21: #{net_forward.13} parent=5 // pred_check
      %p125 = pneg %p124
    $region22: #{net_forward.13} parent=5 // pred_check_branch
      %127 = sbr.rel (%p125) target = $region24
    $region23: #{net_forward.13} parent=5 // pred_region
      // Predicated region
      $region25: #{net_forward.13} parent=23 // pred_check
        %p128 = pneg %p29
      $region26: #{net_forward.13} parent=23 // pred_check_branch
        %130 = sbr.rel (%p128) target = $region28
      $region27: #{net_forward.13} parent=23 // pred_region
        %p131 = scmp.lt.s32.totalorder %s9, 1
        %s132 = scalar_select %p131, %s9, 1
        %s133 = smul.addr %s132, 8
        %s134 = smul.addr %s133, 8
        %s135 = scalar_lea.vmem %s0, %s134
      $region28: #{net_forward.13} parent=23 // pred_fallthru
        _
    $region24: #{net_forward.13} parent=5 // pred_fallthru
      _
    %p136 = scmp.le.s32.totalorder 1, %s9
    %p137 = scmp.lt.s32.totalorder %s9, 3
    %p138 = pnand %p136, %p137
    %p139 = pneg %p138
    // Predicated region
    $region29: #{net_forward.13} parent=5 // pred_check
      _
    $region30: #{net_forward.13} parent=5 // pred_check_branch
      %141 = sbr.rel (%p138) target = $region32
    $region31: #{net_forward.13} parent=5 // pred_region
      %s142 = ssub.s32 %s9, 1
      %p143 = scmp.lt.s32.totalorder %s14, 1
      %s144 = scalar_select %p143, %s14, 1
      %s145 = smul.addr %s144, 8
      %s146 = smul.addr %s145, 8
      %s147 = scalar_lea.vmem %s0, %s146
      %p148 = pneg %p35
      %p149 = pneg %p32
      %p150 = pneg %p56
      %p151 = pneg %p53
      %p152 = pneg %p77
      %p153 = pneg %p74
      %p154 = pneg %p103
      %p155 = pneg %p100
      %p156 = scmp.lt.s32.totalorder %s14, 1
      %s157 = scalar_select %p156, %s14, 1
      %s158 = smul.addr %s157, 8
      %s159 = smul.addr %s158, 4
      %s160 = scalar_lea.vmem %s3, %s159
      %p161 = scmp.lt.s32.totalorder %s14, 1
      %s162 = scalar_select %p161, %s14, 1
      %s163 = smul.addr %s162, 8
      %s164 = smul.addr %s163, 8
      %s165 = scalar_lea.vmem %s0, %s164
      %p166 = scmp.lt.s32.totalorder %s14, 1
      %s167 = scalar_select %p166, %s14, 1
      %s168 = smul.addr %s167, 8
      %s169 = smul.addr %s168, 4
      %s170 = scalar_lea.vmem %s3, %s169
      %vm172 = vcmask 23552
      %173 = vst.msk [vmem:[#allocation2] sm:$0xff] %vm172, 0.0
      %vm174 = vcmask 17408
      %175 = vst.msk [vmem:[#allocation2 + $0x8] sm:$0x3] %vm174, 0.0
      %176 = vst.msk [vmem:[#allocation2 + $0x10] sm:$0xff] %vm172, 0.0
      %177 = vst.msk [vmem:[#allocation2 + $0x18] sm:$0x3] %vm174, 0.0
      %178 = vst.msk [vmem:[#allocation2 + $0x20] sm:$0xff] %vm172, 0.0
      %179 = vst.msk [vmem:[#allocation2 + $0x28] sm:$0x3] %vm174, 0.0
      %180 = vst.msk [vmem:[#allocation2 + $0x30] sm:$0xff] %vm172, 0.0
      %181 = vst.msk [vmem:[#allocation2 + $0x38] sm:$0x3] %vm174, 0.0
      %182 = vst.msk [vmem:[#allocation2 + $0x40] sm:$0xff] %vm172, 0.0
      %183 = vst.msk [vmem:[#allocation2 + $0x48] sm:$0x3] %vm174, 0.0
      %184 = vst.msk [vmem:[#allocation2 + $0x50] sm:$0xff] %vm172, 0.0
      %185 = vst.msk [vmem:[#allocation2 + $0x58] sm:$0x3] %vm174, 0.0
      %186 = vst.msk [vmem:[#allocation2 + $0x60] sm:$0xff] %vm172, 0.0
      %187 = vst.msk [vmem:[#allocation2 + $0x68] sm:$0x3] %vm174, 0.0
      %188 = vst.msk [vmem:[#allocation2 + $0x70] sm:$0xff] %vm172, 0.0
      %189 = vst.msk [vmem:[#allocation2 + $0x78] sm:$0x3] %vm174, 0.0
      %190 = vst.msk [vmem:[#allocation2 + $0x80] sm:$0xff] %vm172, 0.0
      %191 = vst.msk [vmem:[#allocation2 + $0x88] sm:$0x3] %vm174, 0.0
      %192 = vst.msk [vmem:[#allocation2 + $0x90] sm:$0xff] %vm172, 0.0
      %193 = vst.msk [vmem:[#allocation2 + $0x98] sm:$0x3] %vm174, 0.0
      %v194 = vld [vmem:[%s165] sm:$0xff]
      %v195 = vld [vmem:[%s165 + $0x8] sm:$0xff]
      %v196 = vld [vmem:[%s165 + $0x10] sm:$0xff]
      %v197 = vld [vmem:[%s165 + $0x18] sm:$0xff]
      %v198 = vld [vmem:[%s165 + $0x20] sm:$0xff]
      %v199 = vld [vmem:[%s165 + $0x28] sm:$0xff]
      %v200 = vld [vmem:[%s165 + $0x30] sm:$0xff]
      %v201 = vld [vmem:[%s165 + $0x38] sm:$0xff]
      %v202 = vld [vmem:[%s2 + $0x1] sm:$0x1]
      %v203 = vperm.slane %v202, 0
      %v204 = vsub.f32 %v194, %v203
      %v205 = vsub.f32 %v195, %v203
      %v206 = vsub.f32 %v196, %v203
      %v207 = vsub.f32 %v197, %v203
      %v208 = vsub.f32 %v198, %v203
      %v209 = vsub.f32 %v199, %v203
      %v210 = vsub.f32 %v200, %v203
      %v211 = vsub.f32 %v201, %v203
      %s212 = scalar_lea.vmem [#allocation2], 16
      %213 = vst.msk [vmem:[%s212 + $0x1] sm:$0xff] %vm172, %v204
      %214 = vst.msk [vmem:[%s212 + $0x11] sm:$0xff] %vm172, %v205
      %215 = vst.msk [vmem:[%s212 + $0x21] sm:$0xff] %vm172, %v206
      %216 = vst.msk [vmem:[%s212 + $0x31] sm:$0xff] %vm172, %v207
      %217 = vst.msk [vmem:[%s212 + $0x41] sm:$0xff] %vm172, %v208
      %218 = vst.msk [vmem:[%s212 + $0x51] sm:$0xff] %vm172, %v209
      %219 = vst.msk [vmem:[%s212 + $0x61] sm:$0xff] %vm172, %v210
      %220 = vst.msk [vmem:[%s212 + $0x71] sm:$0xff] %vm172, %v211
      %v221 = vld [vmem:[#allocation2] sm:$0xff]
      %v222 = vld [vmem:[#allocation2 + $0x10] sm:$0xff]
      %v223 = vld [vmem:[#allocation2 + $0x20] sm:$0xff]
      %v224 = vld [vmem:[#allocation2 + $0x30] sm:$0xff]
      %v225 = vld [vmem:[#allocation2 + $0x40] sm:$0xff]
      %v226 = vld [vmem:[#allocation2 + $0x50] sm:$0xff]
      %v227 = vld [vmem:[#allocation2 + $0x60] sm:$0xff]
      %v228 = vld [vmem:[#allocation2 + $0x70] sm:$0xff]
      %v229 = vpack.c.bf16 %v221, %v221
      %v230 = vpack.c.bf16 %v222, %v222
      %v231 = vpack.c.bf16 %v223, %v223
      %v232 = vpack.c.bf16 %v224, %v224
      %v233 = vpack.c.bf16 %v225, %v225
      %v234 = vpack.c.bf16 %v226, %v226
      %v235 = vpack.c.bf16 %v227, %v227
      %v236 = vpack.c.bf16 %v228, %v228
      %v237 = vld [vmem:[#allocation2 + $0x1] sm:$0xff]
      %v238 = vld [vmem:[#allocation2 + $0x11] sm:$0xff]
      %v239 = vld [vmem:[#allocation2 + $0x21] sm:$0xff]
      %v240 = vld [vmem:[#allocation2 + $0x31] sm:$0xff]
      %v241 = vld [vmem:[#allocation2 + $0x41] sm:$0xff]
      %v242 = vld [vmem:[#allocation2 + $0x51] sm:$0xff]
      %v243 = vld [vmem:[#allocation2 + $0x61] sm:$0xff]
      %v244 = vld [vmem:[#allocation2 + $0x71] sm:$0xff]
      %v245 = vpack.c.bf16 %v237, %v237
      %v246 = vpack.c.bf16 %v238, %v238
      %v247 = vpack.c.bf16 %v239, %v239
      %v248 = vpack.c.bf16 %v240, %v240
      %v249 = vpack.c.bf16 %v241, %v241
      %v250 = vpack.c.bf16 %v242, %v242
      %v251 = vpack.c.bf16 %v243, %v243
      %v252 = vpack.c.bf16 %v244, %v244
      %v253 = vld [vmem:[#allocation2 + $0x2] sm:$0xff]
      %v254 = vld [vmem:[#allocation2 + $0x12] sm:$0xff]
      %v255 = vld [vmem:[#allocation2 + $0x22] sm:$0xff]
      %v256 = vld [vmem:[#allocation2 + $0x32] sm:$0xff]
      %v257 = vld [vmem:[#allocation2 + $0x42] sm:$0xff]
      %v258 = vld [vmem:[#allocation2 + $0x52] sm:$0xff]
      %v259 = vld [vmem:[#allocation2 + $0x62] sm:$0xff]
      %v260 = vld [vmem:[#allocation2 + $0x72] sm:$0xff]
      %v261 = vpack.c.bf16 %v253, %v253
      %v262 = vpack.c.bf16 %v254, %v254
      %v263 = vpack.c.bf16 %v255, %v255
      %v264 = vpack.c.bf16 %v256, %v256
      %v265 = vpack.c.bf16 %v257, %v257
      %v266 = vpack.c.bf16 %v258, %v258
      %v267 = vpack.c.bf16 %v259, %v259
      %v268 = vpack.c.bf16 %v260, %v260
      %v269 = vld [vmem:[%s212] sm:$0xff]
      %v270 = vld [vmem:[%s212 + $0x10] sm:$0xff]
      %v271 = vld [vmem:[%s212 + $0x20] sm:$0xff]
      %v272 = vld [vmem:[%s212 + $0x30] sm:$0xff]
      %v273 = vld [vmem:[%s212 + $0x40] sm:$0xff]
      %v274 = vld [vmem:[%s212 + $0x50] sm:$0xff]
      %v275 = vld [vmem:[%s212 + $0x60] sm:$0xff]
      %v276 = vld [vmem:[%s212 + $0x70] sm:$0xff]
      %v277 = vpack.c.bf16 %v269, %v269
      %v278 = vpack.c.bf16 %v270, %v270
      %v279 = vpack.c.bf16 %v271, %v271
      %v280 = vpack.c.bf16 %v272, %v272
      %v281 = vpack.c.bf16 %v273, %v273
      %v282 = vpack.c.bf16 %v274, %v274
      %v283 = vpack.c.bf16 %v275, %v275
      %v284 = vpack.c.bf16 %v276, %v276
      %v285 = vld [vmem:[%s212 + $0x1] sm:$0xff]
      %v286 = vld [vmem:[%s212 + $0x11] sm:$0xff]
      %v287 = vld [vmem:[%s212 + $0x21] sm:$0xff]
      %v288 = vld [vmem:[%s212 + $0x31] sm:$0xff]
      %v289 = vld [vmem:[%s212 + $0x41] sm:$0xff]
      %v290 = vld [vmem:[%s212 + $0x51] sm:$0xff]
      %v291 = vld [vmem:[%s212 + $0x61] sm:$0xff]
      %v292 = vld [vmem:[%s212 + $0x71] sm:$0xff]
      %v293 = vpack.c.bf16 %v285, %v285
      %v294 = vpack.c.bf16 %v286, %v286
      %v295 = vpack.c.bf16 %v287, %v287
      %v296 = vpack.c.bf16 %v288, %v288
      %v297 = vpack.c.bf16 %v289, %v289
      %v298 = vpack.c.bf16 %v290, %v290
      %v299 = vpack.c.bf16 %v291, %v291
      %v300 = vpack.c.bf16 %v292, %v292
      %v301 = vld [vmem:[%s212 + $0x2] sm:$0xff]
      %v302 = vld [vmem:[%s212 + $0x12] sm:$0xff]
      %v303 = vld [vmem:[%s212 + $0x22] sm:$0xff]
      %v304 = vld [vmem:[%s212 + $0x32] sm:$0xff]
      %v305 = vld [vmem:[%s212 + $0x42] sm:$0xff]
      %v306 = vld [vmem:[%s212 + $0x52] sm:$0xff]
      %v307 = vld [vmem:[%s212 + $0x62] sm:$0xff]
      %v308 = vld [vmem:[%s212 + $0x72] sm:$0xff]
      %v309 = vpack.c.bf16 %v301, %v301
      %v310 = vpack.c.bf16 %v302, %v302
      %v311 = vpack.c.bf16 %v303, %v303
      %v312 = vpack.c.bf16 %v304, %v304
      %v313 = vpack.c.bf16 %v305, %v305
      %v314 = vpack.c.bf16 %v306, %v306
      %v315 = vpack.c.bf16 %v307, %v307
      %v316 = vpack.c.bf16 %v308, %v308
      %s317 = scalar_lea.vmem [#allocation2], 32
      %v318 = vld [vmem:[%s317] sm:$0xff]
      %v319 = vld [vmem:[%s317 + $0x10] sm:$0xff]
      %v320 = vld [vmem:[%s317 + $0x20] sm:$0xff]
      %v321 = vld [vmem:[%s317 + $0x30] sm:$0xff]
      %v322 = vld [vmem:[%s317 + $0x40] sm:$0xff]
      %v323 = vld [vmem:[%s317 + $0x50] sm:$0xff]
      %v324 = vld [vmem:[%s317 + $0x60] sm:$0xff]
      %v325 = vld [vmem:[%s317 + $0x70] sm:$0xff]
      %v326 = vpack.c.bf16 %v318, %v318
      %v327 = vpack.c.bf16 %v319, %v319
      %v328 = vpack.c.bf16 %v320, %v320
      %v329 = vpack.c.bf16 %v321, %v321
      %v330 = vpack.c.bf16 %v322, %v322
      %v331 = vpack.c.bf16 %v323, %v323
      %v332 = vpack.c.bf16 %v324, %v324
      %v333 = vpack.c.bf16 %v325, %v325
      %v334 = vld [vmem:[%s317 + $0x1] sm:$0xff]
      %v335 = vld [vmem:[%s317 + $0x11] sm:$0xff]
      %v336 = vld [vmem:[%s317 + $0x21] sm:$0xff]
      %v337 = vld [vmem:[%s317 + $0x31] sm:$0xff]
      %v338 = vld [vmem:[%s317 + $0x41] sm:$0xff]
      %v339 = vld [vmem:[%s317 + $0x51] sm:$0xff]
      %v340 = vld [vmem:[%s317 + $0x61] sm:$0xff]
      %v341 = vld [vmem:[%s317 + $0x71] sm:$0xff]
      %v342 = vpack.c.bf16 %v334, %v334
      %v343 = vpack.c.bf16 %v335, %v335
      %v344 = vpack.c.bf16 %v336, %v336
      %v345 = vpack.c.bf16 %v337, %v337
      %v346 = vpack.c.bf16 %v338, %v338
      %v347 = vpack.c.bf16 %v339, %v339
      %v348 = vpack.c.bf16 %v340, %v340
      %v349 = vpack.c.bf16 %v341, %v341
      %v350 = vld [vmem:[%s317 + $0x2] sm:$0xff]
      %v351 = vld [vmem:[%s317 + $0x12] sm:$0xff]
      %v352 = vld [vmem:[%s317 + $0x22] sm:$0xff]
      %v353 = vld [vmem:[%s317 + $0x32] sm:$0xff]
      %v354 = vld [vmem:[%s317 + $0x42] sm:$0xff]
      %v355 = vld [vmem:[%s317 + $0x52] sm:$0xff]
      %v356 = vld [vmem:[%s317 + $0x62] sm:$0xff]
      %v357 = vld [vmem:[%s317 + $0x72] sm:$0xff]
      %v358 = vpack.c.bf16 %v350, %v350
      %v359 = vpack.c.bf16 %v351, %v351
      %v360 = vpack.c.bf16 %v352, %v352
      %v361 = vpack.c.bf16 %v353, %v353
      %v362 = vpack.c.bf16 %v354, %v354
      %v363 = vpack.c.bf16 %v355, %v355
      %v364 = vpack.c.bf16 %v356, %v356
      %v365 = vpack.c.bf16 %v357, %v357
      %v374 = vunpack.c.l.b16 %v229
      %v375 = vunpack.c.l.b16 %v230
      %v376 = vunpack.c.l.b16 %v231
      %v377 = vunpack.c.l.b16 %v232
      %v378 = vunpack.c.l.b16 %v233
      %v379 = vunpack.c.l.b16 %v234
      %v380 = vunpack.c.l.b16 %v235
      %v381 = vunpack.c.l.b16 %v236
      %v382 = vpack.c.b16 %v375, %v374
      %v383 = vpack.c.b16 %v377, %v376
      %v384 = vpack.c.b16 %v379, %v378
      %v385 = vpack.c.b16 %v381, %v380
      %v394 = vunpack.c.l.b16 %v245
      %v395 = vunpack.c.l.b16 %v246
      %v396 = vunpack.c.l.b16 %v247
      %v397 = vunpack.c.l.b16 %v248
      %v398 = vunpack.c.l.b16 %v249
      %v399 = vunpack.c.l.b16 %v250
      %v400 = vunpack.c.l.b16 %v251
      %v401 = vunpack.c.l.b16 %v252
      %v402 = vpack.c.b16 %v395, %v394
      %v403 = vpack.c.b16 %v397, %v396
      %v404 = vpack.c.b16 %v399, %v398
      %v405 = vpack.c.b16 %v401, %v400
      %406 = vrot.lane.b32.xlu0 %v402, 3
      %v407 = vpop.permute.xlu0 %406
      %408 = vrot.lane.b32.xlu0 %v403, 3
      %v409 = vpop.permute.xlu0 %408
      %410 = vrot.lane.b32.xlu0 %v404, 3
      %v411 = vpop.permute.xlu0 %410
      %412 = vrot.lane.b32.xlu0 %v405, 3
      %v413 = vpop.permute.xlu0 %412
      %v422 = vunpack.c.l.b16 %v261
      %v423 = vunpack.c.l.b16 %v262
      %v424 = vunpack.c.l.b16 %v263
      %v425 = vunpack.c.l.b16 %v264
      %v426 = vunpack.c.l.b16 %v265
      %v427 = vunpack.c.l.b16 %v266
      %v428 = vunpack.c.l.b16 %v267
      %v429 = vunpack.c.l.b16 %v268
      %v430 = vpack.c.b16 %v423, %v422
      %v431 = vpack.c.b16 %v425, %v424
      %v432 = vpack.c.b16 %v427, %v426
      %v433 = vpack.c.b16 %v429, %v428
      %434 = vrot.lane.b32.xlu0 %v430, 6
      %v435 = vpop.permute.xlu0 %434
      %436 = vrot.lane.b32.xlu0 %v431, 6
      %v437 = vpop.permute.xlu0 %436
      %438 = vrot.lane.b32.xlu0 %v432, 6
      %v439 = vpop.permute.xlu0 %438
      %440 = vrot.lane.b32.xlu0 %v433, 6
      %v441 = vpop.permute.xlu0 %440
      %v450 = vunpack.c.l.b16 %v277
      %v451 = vunpack.c.l.b16 %v278
      %v452 = vunpack.c.l.b16 %v279
      %v453 = vunpack.c.l.b16 %v280
      %v454 = vunpack.c.l.b16 %v281
      %v455 = vunpack.c.l.b16 %v282
      %v456 = vunpack.c.l.b16 %v283
      %v457 = vunpack.c.l.b16 %v284
      %v458 = vpack.c.b16 %v451, %v450
      %v459 = vpack.c.b16 %v453, %v452
      %v460 = vpack.c.b16 %v455, %v454
      %v461 = vpack.c.b16 %v457, %v456
      %462 = vrot.lane.b32.xlu0 %v458, 9
      %v463 = vpop.permute.xlu0 %462
      %464 = vrot.lane.b32.xlu0 %v459, 9
      %v465 = vpop.permute.xlu0 %464
      %466 = vrot.lane.b32.xlu0 %v460, 9
      %v467 = vpop.permute.xlu0 %466
      %468 = vrot.lane.b32.xlu0 %v461, 9
      %v469 = vpop.permute.xlu0 %468
      %v478 = vunpack.c.l.b16 %v293
      %v479 = vunpack.c.l.b16 %v294
      %v480 = vunpack.c.l.b16 %v295
      %v481 = vunpack.c.l.b16 %v296
      %v482 = vunpack.c.l.b16 %v297
      %v483 = vunpack.c.l.b16 %v298
      %v484 = vunpack.c.l.b16 %v299
      %v485 = vunpack.c.l.b16 %v300
      %v486 = vpack.c.b16 %v479, %v478
      %v487 = vpack.c.b16 %v481, %v480
      %v488 = vpack.c.b16 %v483, %v482
      %v489 = vpack.c.b16 %v485, %v484
      %490 = vrot.lane.b32.xlu0 %v486, 12
      %v491 = vpop.permute.xlu0 %490
      %492 = vrot.lane.b32.xlu0 %v487, 12
      %v493 = vpop.permute.xlu0 %492
      %494 = vrot.lane.b32.xlu0 %v488, 12
      %v495 = vpop.permute.xlu0 %494
      %496 = vrot.lane.b32.xlu0 %v489, 12
      %v497 = vpop.permute.xlu0 %496
      %v506 = vunpack.c.l.b16 %v309
      %v507 = vunpack.c.l.b16 %v310
      %v508 = vunpack.c.l.b16 %v311
      %v509 = vunpack.c.l.b16 %v312
      %v510 = vunpack.c.l.b16 %v313
      %v511 = vunpack.c.l.b16 %v314
      %v512 = vunpack.c.l.b16 %v315
      %v513 = vunpack.c.l.b16 %v316
      %v514 = vpack.c.b16 %v507, %v506
      %v515 = vpack.c.b16 %v509, %v508
      %v516 = vpack.c.b16 %v511, %v510
      %v517 = vpack.c.b16 %v513, %v512
      %518 = vrot.lane.b32.xlu0 %v514, 15
      %v519 = vpop.permute.xlu0 %518
      %520 = vrot.lane.b32.xlu0 %v515, 15
      %v521 = vpop.permute.xlu0 %520
      %522 = vrot.lane.b32.xlu0 %v516, 15
      %v523 = vpop.permute.xlu0 %522
      %524 = vrot.lane.b32.xlu0 %v517, 15
      %v525 = vpop.permute.xlu0 %524
      %v534 = vunpack.c.l.b16 %v326
      %v535 = vunpack.c.l.b16 %v327
      %v536 = vunpack.c.l.b16 %v328
      %v537 = vunpack.c.l.b16 %v329
      %v538 = vunpack.c.l.b16 %v330
      %v539 = vunpack.c.l.b16 %v331
      %v540 = vunpack.c.l.b16 %v332
      %v541 = vunpack.c.l.b16 %v333
      %v542 = vpack.c.b16 %v535, %v534
      %v543 = vpack.c.b16 %v537, %v536
      %v544 = vpack.c.b16 %v539, %v538
      %v545 = vpack.c.b16 %v541, %v540
      %546 = vrot.lane.b32.xlu0 %v542, 18
      %v547 = vpop.permute.xlu0 %546
      %548 = vrot.lane.b32.xlu0 %v543, 18
      %v549 = vpop.permute.xlu0 %548
      %550 = vrot.lane.b32.xlu0 %v544, 18
      %v551 = vpop.permute.xlu0 %550
      %552 = vrot.lane.b32.xlu0 %v545, 18
      %v553 = vpop.permute.xlu0 %552
      %v562 = vunpack.c.l.b16 %v342
      %v563 = vunpack.c.l.b16 %v343
      %v564 = vunpack.c.l.b16 %v344
      %v565 = vunpack.c.l.b16 %v345
      %v566 = vunpack.c.l.b16 %v346
      %v567 = vunpack.c.l.b16 %v347
      %v568 = vunpack.c.l.b16 %v348
      %v569 = vunpack.c.l.b16 %v349
      %v570 = vpack.c.b16 %v563, %v562
      %v571 = vpack.c.b16 %v565, %v564
      %v572 = vpack.c.b16 %v567, %v566
      %v573 = vpack.c.b16 %v569, %v568
      %574 = vrot.lane.b32.xlu0 %v570, 21
      %v575 = vpop.permute.xlu0 %574
      %576 = vrot.lane.b32.xlu0 %v571, 21
      %v577 = vpop.permute.xlu0 %576
      %578 = vrot.lane.b32.xlu0 %v572, 21
      %v579 = vpop.permute.xlu0 %578
      %580 = vrot.lane.b32.xlu0 %v573, 21
      %v581 = vpop.permute.xlu0 %580
      %v590 = vunpack.c.l.b16 %v358
      %v591 = vunpack.c.l.b16 %v359
      %v592 = vunpack.c.l.b16 %v360
      %v593 = vunpack.c.l.b16 %v361
      %v594 = vunpack.c.l.b16 %v362
      %v595 = vunpack.c.l.b16 %v363
      %v596 = vunpack.c.l.b16 %v364
      %v597 = vunpack.c.l.b16 %v365
      %v598 = vpack.c.b16 %v591, %v590
      %v599 = vpack.c.b16 %v593, %v592
      %v600 = vpack.c.b16 %v595, %v594
      %v601 = vpack.c.b16 %v597, %v596
      %602 = vrot.lane.b32.xlu0 %v598, 24
      %v603 = vpop.permute.xlu0 %602
      %604 = vrot.lane.b32.xlu0 %v599, 24
      %v605 = vpop.permute.xlu0 %604
      %606 = vrot.lane.b32.xlu0 %v600, 24
      %v607 = vpop.permute.xlu0 %606
      %608 = vrot.lane.b32.xlu0 %v601, 24
      %v609 = vpop.permute.xlu0 %608
      %v612 = vsel %vm172, %v382, %v407
      %v615 = vsel %vm172, %v383, %v409
      %v618 = vsel %vm172, %v384, %v411
      %v621 = vsel %vm172, %v385, %v413
      %vm622 = vcmask 48128
      %v624 = vsel %vm622, %v612, %v435
      %v626 = vsel %vm622, %v615, %v437
      %v628 = vsel %vm622, %v618, %v439
      %v630 = vsel %vm622, %v621, %v441
      %vm631 = vcmask 72704
      %v633 = vsel %vm631, %v624, %v463
      %v635 = vsel %vm631, %v626, %v465
      %v637 = vsel %vm631, %v628, %v467
      %v639 = vsel %vm631, %v630, %v469
      %vm640 = vcmask 97280
      %v642 = vsel %vm640, %v633, %v491
      %v644 = vsel %vm640, %v635, %v493
      %v646 = vsel %vm640, %v637, %v495
      %v648 = vsel %vm640, %v639, %v497
      %vm649 = vcmask 121856
      %v651 = vsel %vm649, %v642, %v519
      %v653 = vsel %vm649, %v644, %v521
      %v655 = vsel %vm649, %v646, %v523
      %v657 = vsel %vm649, %v648, %v525
      %vm658 = vcmask 146432
      %v660 = vsel %vm658, %v651, %v547
      %v662 = vsel %vm658, %v653, %v549
      %v664 = vsel %vm658, %v655, %v551
      %v666 = vsel %vm658, %v657, %v553
      %vm667 = vcmask 171008
      %v669 = vsel %vm667, %v660, %v575
      %v671 = vsel %vm667, %v662, %v577
      %v673 = vsel %vm667, %v664, %v579
      %v675 = vsel %vm667, %v666, %v581
      %vm676 = vcmask 195584
      %v678 = vsel %vm676, %v669, %v603
      %v680 = vsel %vm676, %v671, %v605
      %v682 = vsel %vm676, %v673, %v607
      %v684 = vsel %vm676, %v675, %v609
      %v685 = vld [vmem:[%s1] sm:$0xf]
      %v686 = vld [vmem:[%s1 + $0x4] sm:$0xf]
      %v687 = vld [vmem:[%s1 + $0x8] sm:$0xf]
      %v688 = vld [vmem:[%s1 + $0xc] sm:$0x3]
      %v689 = vld [vmem:[%s2] sm:$0x1]
      %v690 = vperm.slane %v689, 0
      %v695 = vunpack.c.l.b16 %v685
      %v696 = vunpack.c.l.b16 %v686
      %v697 = vunpack.c.l.b16 %v687
      %v698 = vunpack.c.l.b16 %v688
      %v699 = vpack.c.b16 %v696, %v695
      %v700 = vpack.c.b16 %v698, %v697
      %vm702 = vcmask 220160
      %v703 = vsel %vm702, %v678, 0
      %v705 = vsel %vm702, %v680, 0
      %v707 = vsel %vm702, %v682, 0
      %v709 = vsel %vm702, %v684, 0
      %vm711 = vcmask 1044480
      %vm712 = vcmask 1045504
      %v713 = vsel %vm711, 4294967295, 65535
      %v714 = vsel %vm712, %v713, 0
      %v716 = vand.u32 %v700, %v714
      %718 = vmatpush.bf16.msra.mxu0 0
      %719 = vmatpush.bf16.msra.mxu0 0
      %720 = vmatpush.bf16.msra.mxu0 0
      %721 = vmatpush.bf16.msra.mxu0 0
      %722 = vmatpush.bf16.msra.mxu0 0
      %723 = vmatpush.bf16.msra.mxu0 0
      %724 = vmatpush.bf16.msra.mxu0 %v716
      %725 = vmatpush.bf16.msra.mxu0 %v699
      %726 = vmatmul.bf16.gmra.mxu0 %v703
      %v727 = vpop.f32.mrf.mxu0
      %v728 = vadd.f32 %v690, %v727
      %v729 = vpop.f32.mrf.mxu0
      %v730 = vadd.f32 %v690, %v729
      %731 = vmatmul.bf16.gmra.mxu0 %v705
      %v732 = vpop.f32.mrf.mxu0
      %v733 = vadd.f32 %v690, %v732
      %v734 = vpop.f32.mrf.mxu0
      %v735 = vadd.f32 %v690, %v734
      %736 = vmatmul.bf16.gmra.mxu0 %v707
      %v737 = vpop.f32.mrf.mxu0
      %v738 = vadd.f32 %v690, %v737
      %v739 = vpop.f32.mrf.mxu0
      %v740 = vadd.f32 %v690, %v739
      %741 = vmatmul.bf16.gmra.mxu0 %v709
      %v742 = vpop.f32.mrf.mxu0
      %v743 = vadd.f32 %v690, %v742
      %v744 = vpop.f32.mrf.mxu0
      %v745 = vadd.f32 %v690, %v744
      %746 = vdwg.mxu0
      %v747 = vpack.c.bf16 %v728, %v728
      %v748 = vpack.c.bf16 %v730, %v730
      %v749 = vpack.c.bf16 %v733, %v733
      %v750 = vpack.c.bf16 %v735, %v735
      %v751 = vpack.c.bf16 %v738, %v738
      %v752 = vpack.c.bf16 %v740, %v740
      %v753 = vpack.c.bf16 %v743, %v743
      %v754 = vpack.c.bf16 %v745, %v745
      %vm755 = vcmask 519168
      %756 = vst.msk [vmem:[%s170] sm:$0xf] %vm755, %v747
      %757 = vst.msk [vmem:[%s170 + $0x4] sm:$0xf] %vm755, %v748
      %758 = vst.msk [vmem:[%s170 + $0x8] sm:$0xf] %vm755, %v749
      %759 = vst.msk [vmem:[%s170 + $0xc] sm:$0xf] %vm755, %v750
      %760 = vst.msk [vmem:[%s170 + $0x10] sm:$0xf] %vm755, %v751
      %761 = vst.msk [vmem:[%s170 + $0x14] sm:$0xf] %vm755, %v752
      %762 = vst.msk [vmem:[%s170 + $0x18] sm:$0xf] %vm755, %v753
      %763 = vst.msk [vmem:[%s170 + $0x1c] sm:$0xf] %vm755, %v754
      %p764 = scmp.lt.s32.totalorder %s14, 1
      %s765 = scalar_select %p764, %s14, 1
      %s766 = smul.addr %s765, 8
      %s767 = smul.addr %s766, 4
      %s768 = scalar_lea.vmem %s3, %s767
      // Predicated region
      $region33: #{net_forward.13} parent=31 // pred_check
        %p769 = pneg %p100
      $region34: #{net_forward.13} parent=31 // pred_check_branch
        %771 = sbr.rel (%p769) target = $region36
      $region35: #{net_forward.13} parent=31 // pred_region
        _
      $region36: #{net_forward.13} parent=31 // pred_fallthru
        _
    $region32: #{net_forward.13} parent=5 // pred_fallthru
      _
    %p772 = scmp.le.s32.totalorder 2, %s9
    // Predicated region
    $region37: #{net_forward.13} parent=5 // pred_check
      %p773 = pneg %p772
    $region38: #{net_forward.13} parent=5 // pred_check_branch
      %775 = sbr.rel (%p773) target = $region40
    $region39: #{net_forward.13} parent=5 // pred_region
      %s776 = ssub.s32 %s9, 2
      // Predicated region
      $region41: #{net_forward.13} parent=39 // pred_check
        %p777 = pneg %p106
      $region42: #{net_forward.13} parent=39 // pred_check_branch
        %779 = sbr.rel (%p777) target = $region44
      $region43: #{net_forward.13} parent=39 // pred_region
        %p780 = scmp.lt.s32.totalorder %s15, 1
        %s781 = scalar_select %p780, %s15, 1
        %s782 = smul.addr %s781, 8
        %s783 = smul.addr %s782, 4
        %s784 = scalar_lea.vmem %s3, %s783
      $region44: #{net_forward.13} parent=39 // pred_fallthru
        _
    $region40: #{net_forward.13} parent=5 // pred_fallthru
      _
  $region6: #{net_forward.13} parent=0 // loop_footer
    %s13 = sadd.s32 1, %s9
  $region7: #{net_forward.13} parent=0 // loop_footer_branch
    %8 = sbr.rel target = $region3
  $region8: #{net_forward.13} parent=0 // loop_exit
    _

// kernel: net_forward.25
$region0: #{net_forward.25}
  #allocation0 [shape = 'u32[]', space=smem, size = 0x4, offset = 0x4, fixed_abs, tag = 'smem constant byte address 0x4 - core index']
  #allocation1 [shape = 'u32[72,128]{1,0:T(1,128)}', space=vmem, size = 0x9000, scoped, tag = 'internal scratch']
  #allocation2 [shape = 'f32[1,10,10,64]{3,2,1,0:T(8,128)}', space=vmem, size = 0x14000, scoped, tag = 'scratch operand']
  %s0 = inlined_call_operand.vmem [shape: bf16[2,8,8,64], index: 0, kind: input, shape index: {}]
  %s1 = inlined_call_operand.vmem [shape: bf16[576,12], index: 1, kind: input, shape index: {}]
  %s2 = inlined_call_operand.vmem [shape: f32[1,12], index: 2, kind: input, shape index: {}]
  %s3 = inlined_call_operand.vmem [shape: f32[2,8,8,12], index: 3, kind: output, shape index: {}]
  %s4 = sld [smem:[#allocation0]]
  $region45: #{net_forward.25} parent=0
    _
  %s6 = ssub.s32 1, %s4
  %s7 = scalar_select 0, %s6, %s4
  loop: start=0, step=1, limit=4
  $region2: #{net_forward.25} parent=0 // loop_pre_header
    _
  $region3: #{net_forward.25} parent=0 // loop_header
    %s9 = sphi 0, %s13
    %p10 = scmp.ge.s32.totalorder %s9, 4
    %s19 = sphi 0, %s21
    %s22 = sphi 0, %s19
    %s23 = sphi 0, %s22
    %s39 = sphi 0, %s23
    %s43 = sphi 0, %s43
    %s45 = sphi 0, %s43
    %s46 = sphi 0, %s45
    %s60 = sphi 0, %s46
    %s64 = sphi 0, %s64
    %s66 = sphi 0, %s64
    %s67 = sphi 0, %s66
    %s81 = sphi 0, %s67
    %s87 = sphi 0, %s89
    %s90 = sphi 0, %s87
    %s91 = sphi 0, %s90
    %s107 = sphi 0, %s91
  $region4: #{net_forward.25} parent=0 // loop_header_branch
    %12 = sbr.rel (%p10) target = $region8
  $region5: #{net_forward.25} parent=0 // loop_body
    %s14 = ssub.s32 %s9, 1
    %s15 = ssub.s32 %s9, 2
    %s16 = sadd.s32 %s9, 1
    %s17 = ssub.s32 %s9, %s16
    %p18 = scmp.eq.s32.totalorder %s17, 0
    %s20 = sadd.s32 %s19, 1
    %s21 = scalar_select %p18, %s19, %s20
    %p24 = pneg %p18
    %p25 = scmp.eq.s32.totalorder %s9, 1
    %p26 = por %p24, %p25
    %p27 = scmp.ne.s32.totalorder %s19, %s22
    %p28 = scmp.eq.s32.totalorder %s9, 0
    %p29 = por %p27, %p28
    %p30 = scmp.ne.s32.totalorder %s19, %s22
    %p31 = scmp.eq.s32.totalorder %s14, 1
    %p32 = por %p30, %p31
    %p33 = scmp.ne.s32.totalorder %s22, %s23
    %p34 = scmp.eq.s32.totalorder %s14, 0
    %p35 = por %p33, %p34
    %p36 = scmp.ne.s32.totalorder %s22, %s23
    %p37 = scmp.eq.s32.totalorder %s15, 1
    %p38 = por %p36, %p37
    %p40 = scmp.ne.s32.totalorder %s23, %s39
    %p41 = scmp.eq.s32.totalorder %s15, 0
    %p42 = por %p40, %p41
    %s44 = sadd.s32 %s43, 1
    %p47 = scmp.eq.s32.totalorder %s9, 1
    %p48 = scmp.ne.s32.totalorder %s43, %s45
    %p49 = scmp.eq.s32.totalorder %s9, 0
    %p50 = por %p48, %p49
    %p51 = scmp.ne.s32.totalorder %s43, %s45
    %p52 = scmp.eq.s32.totalorder %s14, 1
    %p53 = por %p51, %p52
    %p54 = scmp.ne.s32.totalorder %s45, %s46
    %p55 = scmp.eq.s32.totalorder %s14, 0
    %p56 = por %p54, %p55
    %p57 = scmp.ne.s32.totalorder %s45, %s46
    %p58 = scmp.eq.s32.totalorder %s15, 1
    %p59 = por %p57, %p58
    %p61 = scmp.ne.s32.totalorder %s46, %s60
    %p62 = scmp.eq.s32.totalorder %s15, 0
    %p63 = por %p61, %p62
    %s65 = sadd.s32 %s64, 1
    %p68 = scmp.eq.s32.totalorder %s9, 1
    %p69 = scmp.ne.s32.totalorder %s64, %s66
    %p70 = scmp.eq.s32.totalorder %s9, 0
    %p71 = por %p69, %p70
    %p72 = scmp.ne.s32.totalorder %s64, %s66
    %p73 = scmp.eq.s32.totalorder %s14, 1
    %p74 = por %p72, %p73
    %p75 = scmp.ne.s32.totalorder %s66, %s67
    %p76 = scmp.eq.s32.totalorder %s14, 0
    %p77 = por %p75, %p76
    %p78 = scmp.ne.s32.totalorder %s66, %s67
    %p79 = scmp.eq.s32.totalorder %s15, 1
    %p80 = por %p78, %p79
    %p82 = scmp.ne.s32.totalorder %s67, %s81
    %p83 = scmp.eq.s32.totalorder %s15, 0
    %p84 = por %p82, %p83
    %s85 = ssub.s32 %s9, %s16
    %p86 = scmp.eq.s32.totalorder %s85, 0
    %s88 = sadd.s32 %s87, 1
    %s89 = scalar_select %p86, %s87, %s88
    %p92 = pneg %p86
    %p93 = scmp.eq.s32.totalorder %s9, 1
    %p94 = por %p92, %p93
    %p95 = scmp.ne.s32.totalorder %s87, %s90
    %p96 = scmp.eq.s32.totalorder %s9, 0
    %p97 = por %p95, %p96
    %p98 = scmp.ne.s32.totalorder %s87, %s90
    %p99 = scmp.eq.s32.totalorder %s14, 1
    %p100 = por %p98, %p99
    %p101 = scmp.ne.s32.totalorder %s90, %s91
    %p102 = scmp.eq.s32.totalorder %s14, 0
    %p103 = por %p101, %p102
    %p104 = scmp.ne.s32.totalorder %s90, %s91
    %p105 = scmp.eq.s32.totalorder %s15, 1
    %p106 = por %p104, %p105
    %p108 = scmp.ne.s32.totalorder %s91, %s107
    %p109 = scmp.eq.s32.totalorder %s15, 0
    %p110 = por %p108, %p109
    %p111 = scmp.le.s32.totalorder 1, %s9
    %p112 = scmp.lt.s32.totalorder %s9, 3
    %p113 = pnand %p111, %p112
    %p114 = pneg %p113
    // Predicated region
    $region9: #{net_forward.25} parent=5 // pred_check
      _
    $region10: #{net_forward.25} parent=5 // pred_check_branch
      %116 = sbr.rel (%p113) target = $region12
    $region11: #{net_forward.25} parent=5 // pred_region
      %s117 = ssub.s32 %s9, 1
      // Predicated region
      $region13: #{net_forward.25} parent=11 // pred_check
        %p118 = pneg %p56
      $region14: #{net_forward.25} parent=11 // pred_check_branch
        %120 = sbr.rel (%p118) target = $region16
      $region15: #{net_forward.25} parent=11 // pred_region
        _
      $region16: #{net_forward.25} parent=11 // pred_fallthru
        _
      // Predicated region
      $region17: #{net_forward.25} parent=11 // pred_check
        %p121 = pneg %p77
      $region18: #{net_forward.25} parent=11 // pred_check_branch
        %123 = sbr.rel (%p121) target = $region20
      $region19: #{net_forward.25} parent=11 // pred_region
        _
      $region20: #{net_forward.25} parent=11 // pred_fallthru
        _
    $region12: #{net_forward.25} parent=5 // pred_fallthru
      _
    %p124 = scmp.lt.s32.totalorder %s9, 2
    // Predicated region
    $region21: #{net_forward.25} parent=5 // pred_check
      %p125 = pneg %p124
    $region22: #{net_forward.25} parent=5 // pred_check_branch
      %127 = sbr.rel (%p125) target = $region24
    $region23: #{net_forward.25} parent=5 // pred_region
      // Predicated region
      $region25: #{net_forward.25} parent=23 // pred_check
        %p128 = pneg %p29
      $region26: #{net_forward.25} parent=23 // pred_check_branch
        %130 = sbr.rel (%p128) target = $region28
      $region27: #{net_forward.25} parent=23 // pred_region
        %p131 = scmp.lt.s32.totalorder %s9, 1
        %s132 = scalar_select %p131, %s9, 1
        %s133 = smul.addr %s132, 8
        %s134 = smul.addr %s133, 4
        %s135 = scalar_lea.vmem %s0, %s134
      $region28: #{net_forward.25} parent=23 // pred_fallthru
        _
    $region24: #{net_forward.25} parent=5 // pred_fallthru
      _
    %p136 = scmp.le.s32.totalorder 1, %s9
    %p137 = scmp.lt.s32.totalorder %s9, 3
    %p138 = pnand %p136, %p137
    %p139 = pneg %p138
    // Predicated region
    $region29: #{net_forward.25} parent=5 // pred_check
      _
    $region30: #{net_forward.25} parent=5 // pred_check_branch
      %141 = sbr.rel (%p138) target = $region32
    $region31: #{net_forward.25} parent=5 // pred_region
      %s142 = ssub.s32 %s9, 1
      %p143 = scmp.lt.s32.totalorder %s14, 1
      %s144 = scalar_select %p143, %s14, 1
      %s145 = smul.addr %s144, 8
      %s146 = smul.addr %s145, 4
      %s147 = scalar_lea.vmem %s0, %s146
      %p148 = pneg %p35
      %p149 = pneg %p32
      %p150 = pneg %p56
      %p151 = pneg %p53
      %p152 = pneg %p77
      %p153 = pneg %p74
      %p154 = pneg %p103
      %p155 = pneg %p100
      %p156 = scmp.lt.s32.totalorder %s14, 1
      %s157 = scalar_select %p156, %s14, 1
      %s158 = smul.addr %s157, 8
      %s159 = smul.addr %s158, 8
      %s160 = scalar_lea.vmem %s3, %s159
      %p161 = scmp.lt.s32.totalorder %s14, 1
      %s162 = scalar_select %p161, %s14, 1
      %s163 = smul.addr %s162, 8
      %s164 = smul.addr %s163, 4
      %s165 = scalar_lea.vmem %s0, %s164
      %p166 = scmp.lt.s32.totalorder %s14, 1
      %s167 = scalar_select %p166, %s14, 1
      %s168 = smul.addr %s167, 8
      %s169 = smul.addr %s168, 8
      %s170 = scalar_lea.vmem %s3, %s169
      %vm172 = vcmask 523264
      %173 = vst.msk [vmem:[#allocation2] sm:$0xff] %vm172, 0.0
      %vm174 = vcmask 517120
      %175 = vst.msk [vmem:[#allocation2 + $0x8] sm:$0x3] %vm174, 0.0
      %176 = vst.msk [vmem:[#allocation2 + $0x10] sm:$0xff] %vm172, 0.0
      %177 = vst.msk [vmem:[#allocation2 + $0x18] sm:$0x3] %vm174, 0.0
      %178 = vst.msk [vmem:[#allocation2 + $0x20] sm:$0xff] %vm172, 0.0
      %179 = vst.msk [vmem:[#allocation2 + $0x28] sm:$0x3] %vm174, 0.0
      %180 = vst.msk [vmem:[#allocation2 + $0x30] sm:$0xff] %vm172, 0.0
      %181 = vst.msk [vmem:[#allocation2 + $0x38] sm:$0x3] %vm174, 0.0
      %182 = vst.msk [vmem:[#allocation2 + $0x40] sm:$0xff] %vm172, 0.0
      %183 = vst.msk [vmem:[#allocation2 + $0x48] sm:$0x3] %vm174, 0.0
      %184 = vst.msk [vmem:[#allocation2 + $0x50] sm:$0xff] %vm172, 0.0
      %185 = vst.msk [vmem:[#allocation2 + $0x58] sm:$0x3] %vm174, 0.0
      %186 = vst.msk [vmem:[#allocation2 + $0x60] sm:$0xff] %vm172, 0.0
      %187 = vst.msk [vmem:[#allocation2 + $0x68] sm:$0x3] %vm174, 0.0
      %188 = vst.msk [vmem:[#allocation2 + $0x70] sm:$0xff] %vm172, 0.0
      %189 = vst.msk [vmem:[#allocation2 + $0x78] sm:$0x3] %vm174, 0.0
      %190 = vst.msk [vmem:[#allocation2 + $0x80] sm:$0xff] %vm172, 0.0
      %191 = vst.msk [vmem:[#allocation2 + $0x88] sm:$0x3] %vm174, 0.0
      %192 = vst.msk [vmem:[#allocation2 + $0x90] sm:$0xff] %vm172, 0.0
      %193 = vst.msk [vmem:[#allocation2 + $0x98] sm:$0x3] %vm174, 0.0
      %v194 = vld [vmem:[%s165] sm:$0xf]
      %v195 = vld [vmem:[%s165 + $0x4] sm:$0xf]
      %v196 = vld [vmem:[%s165 + $0x8] sm:$0xf]
      %v197 = vld [vmem:[%s165 + $0xc] sm:$0xf]
      %v198 = vld [vmem:[%s165 + $0x10] sm:$0xf]
      %v199 = vld [vmem:[%s165 + $0x14] sm:$0xf]
      %v200 = vld [vmem:[%s165 + $0x18] sm:$0xf]
      %v201 = vld [vmem:[%s165 + $0x1c] sm:$0xf]
      %v202 = vunpack.c.l.bf16 %v194
      %v203 = vunpack.c.l.bf16 %v195
      %v204 = vunpack.c.l.bf16 %v196
      %v205 = vunpack.c.l.bf16 %v197
      %v206 = vunpack.c.l.bf16 %v198
      %v207 = vunpack.c.l.bf16 %v199
      %v208 = vunpack.c.l.bf16 %v200
      %v209 = vunpack.c.l.bf16 %v201
      %s210 = scalar_lea.vmem [#allocation2], 16
      %211 = vst.msk [vmem:[%s210 + $0x1] sm:$0xff] %vm172, %v202
      %212 = vst.msk [vmem:[%s210 + $0x11] sm:$0xff] %vm172, %v203
      %213 = vst.msk [vmem:[%s210 + $0x21] sm:$0xff] %vm172, %v204
      %214 = vst.msk [vmem:[%s210 + $0x31] sm:$0xff] %vm172, %v205
      %215 = vst.msk [vmem:[%s210 + $0x41] sm:$0xff] %vm172, %v206
      %216 = vst.msk [vmem:[%s210 + $0x51] sm:$0xff] %vm172, %v207
      %217 = vst.msk [vmem:[%s210 + $0x61] sm:$0xff] %vm172, %v208
      %218 = vst.msk [vmem:[%s210 + $0x71] sm:$0xff] %vm172, %v209
      %v219 = vld [vmem:[#allocation2] sm:$0xff]
      %v220 = vld [vmem:[#allocation2 + $0x10] sm:$0xff]
      %v221 = vld [vmem:[#allocation2 + $0x20] sm:$0xff]
      %v222 = vld [vmem:[#allocation2 + $0x30] sm:$0xff]
      %v223 = vld [vmem:[#allocation2 + $0x40] sm:$0xff]
      %v224 = vld [vmem:[#allocation2 + $0x50] sm:$0xff]
      %v225 = vld [vmem:[#allocation2 + $0x60] sm:$0xff]
      %v226 = vld [vmem:[#allocation2 + $0x70] sm:$0xff]
      %v227 = vpack.c.bf16 %v219, %v219
      %v228 = vpack.c.bf16 %v220, %v220
      %v229 = vpack.c.bf16 %v221, %v221
      %v230 = vpack.c.bf16 %v222, %v222
      %v231 = vpack.c.bf16 %v223, %v223
      %v232 = vpack.c.bf16 %v224, %v224
      %v233 = vpack.c.bf16 %v225, %v225
      %v234 = vpack.c.bf16 %v226, %v226
      %v235 = vld [vmem:[#allocation2 + $0x1] sm:$0xff]
      %v236 = vld [vmem:[#allocation2 + $0x11] sm:$0xff]
      %v237 = vld [vmem:[#allocation2 + $0x21] sm:$0xff]
      %v238 = vld [vmem:[#allocation2 + $0x31] sm:$0xff]
      %v239 = vld [vmem:[#allocation2 + $0x41] sm:$0xff]
      %v240 = vld [vmem:[#allocation2 + $0x51] sm:$0xff]
      %v241 = vld [vmem:[#allocation2 + $0x61] sm:$0xff]
      %v242 = vld [vmem:[#allocation2 + $0x71] sm:$0xff]
      %v243 = vpack.c.bf16 %v235, %v235
      %v244 = vpack.c.bf16 %v236, %v236
      %v245 = vpack.c.bf16 %v237, %v237
      %v246 = vpack.c.bf16 %v238, %v238
      %v247 = vpack.c.bf16 %v239, %v239
      %v248 = vpack.c.bf16 %v240, %v240
      %v249 = vpack.c.bf16 %v241, %v241
      %v250 = vpack.c.bf16 %v242, %v242
      %v251 = vld [vmem:[#allocation2 + $0x2] sm:$0xff]
      %v252 = vld [vmem:[#allocation2 + $0x12] sm:$0xff]
      %v253 = vld [vmem:[#allocation2 + $0x22] sm:$0xff]
      %v254 = vld [vmem:[#allocation2 + $0x32] sm:$0xff]
      %v255 = vld [vmem:[#allocation2 + $0x42] sm:$0xff]
      %v256 = vld [vmem:[#allocation2 + $0x52] sm:$0xff]
      %v257 = vld [vmem:[#allocation2 + $0x62] sm:$0xff]
      %v258 = vld [vmem:[#allocation2 + $0x72] sm:$0xff]
      %v259 = vpack.c.bf16 %v251, %v251
      %v260 = vpack.c.bf16 %v252, %v252
      %v261 = vpack.c.bf16 %v253, %v253
      %v262 = vpack.c.bf16 %v254, %v254
      %v263 = vpack.c.bf16 %v255, %v255
      %v264 = vpack.c.bf16 %v256, %v256
      %v265 = vpack.c.bf16 %v257, %v257
      %v266 = vpack.c.bf16 %v258, %v258
      %v267 = vld [vmem:[%s210] sm:$0xff]
      %v268 = vld [vmem:[%s210 + $0x10] sm:$0xff]
      %v269 = vld [vmem:[%s210 + $0x20] sm:$0xff]
      %v270 = vld [vmem:[%s210 + $0x30] sm:$0xff]
      %v271 = vld [vmem:[%s210 + $0x40] sm:$0xff]
      %v272 = vld [vmem:[%s210 + $0x50] sm:$0xff]
      %v273 = vld [vmem:[%s210 + $0x60] sm:$0xff]
      %v274 = vld [vmem:[%s210 + $0x70] sm:$0xff]
      %v275 = vpack.c.bf16 %v267, %v267
      %v276 = vpack.c.bf16 %v268, %v268
      %v277 = vpack.c.bf16 %v269, %v269
      %v278 = vpack.c.bf16 %v270, %v270
      %v279 = vpack.c.bf16 %v271, %v271
      %v280 = vpack.c.bf16 %v272, %v272
      %v281 = vpack.c.bf16 %v273, %v273
      %v282 = vpack.c.bf16 %v274, %v274
      %v283 = vld [vmem:[%s210 + $0x1] sm:$0xff]
      %v284 = vld [vmem:[%s210 + $0x11] sm:$0xff]
      %v285 = vld [vmem:[%s210 + $0x21] sm:$0xff]
      %v286 = vld [vmem:[%s210 + $0x31] sm:$0xff]
      %v287 = vld [vmem:[%s210 + $0x41] sm:$0xff]
      %v288 = vld [vmem:[%s210 + $0x51] sm:$0xff]
      %v289 = vld [vmem:[%s210 + $0x61] sm:$0xff]
      %v290 = vld [vmem:[%s210 + $0x71] sm:$0xff]
      %v291 = vpack.c.bf16 %v283, %v283
      %v292 = vpack.c.bf16 %v284, %v284
      %v293 = vpack.c.bf16 %v285, %v285
      %v294 = vpack.c.bf16 %v286, %v286
      %v295 = vpack.c.bf16 %v287, %v287
      %v296 = vpack.c.bf16 %v288, %v288
      %v297 = vpack.c.bf16 %v289, %v289
      %v298 = vpack.c.bf16 %v290, %v290
      %v299 = vld [vmem:[%s210 + $0x2] sm:$0xff]
      %v300 = vld [vmem:[%s210 + $0x12] sm:$0xff]
      %v301 = vld [vmem:[%s210 + $0x22] sm:$0xff]
      %v302 = vld [vmem:[%s210 + $0x32] sm:$0xff]
      %v303 = vld [vmem:[%s210 + $0x42] sm:$0xff]
      %v304 = vld [vmem:[%s210 + $0x52] sm:$0xff]
      %v305 = vld [vmem:[%s210 + $0x62] sm:$0xff]
      %v306 = vld [vmem:[%s210 + $0x72] sm:$0xff]
      %v307 = vpack.c.bf16 %v299, %v299
      %v308 = vpack.c.bf16 %v300, %v300
      %v309 = vpack.c.bf16 %v301, %v301
      %v310 = vpack.c.bf16 %v302, %v302
      %v311 = vpack.c.bf16 %v303, %v303
      %v312 = vpack.c.bf16 %v304, %v304
      %v313 = vpack.c.bf16 %v305, %v305
      %v314 = vpack.c.bf16 %v306, %v306
      %s315 = scalar_lea.vmem [#allocation2], 32
      %v316 = vld [vmem:[%s315] sm:$0xff]
      %v317 = vld [vmem:[%s315 + $0x10] sm:$0xff]
      %v318 = vld [vmem:[%s315 + $0x20] sm:$0xff]
      %v319 = vld [vmem:[%s315 + $0x30] sm:$0xff]
      %v320 = vld [vmem:[%s315 + $0x40] sm:$0xff]
      %v321 = vld [vmem:[%s315 + $0x50] sm:$0xff]
      %v322 = vld [vmem:[%s315 + $0x60] sm:$0xff]
      %v323 = vld [vmem:[%s315 + $0x70] sm:$0xff]
      %v324 = vpack.c.bf16 %v316, %v316
      %v325 = vpack.c.bf16 %v317, %v317
      %v326 = vpack.c.bf16 %v318, %v318
      %v327 = vpack.c.bf16 %v319, %v319
      %v328 = vpack.c.bf16 %v320, %v320
      %v329 = vpack.c.bf16 %v321, %v321
      %v330 = vpack.c.bf16 %v322, %v322
      %v331 = vpack.c.bf16 %v323, %v323
      %v332 = vld [vmem:[%s315 + $0x1] sm:$0xff]
      %v333 = vld [vmem:[%s315 + $0x11] sm:$0xff]
      %v334 = vld [vmem:[%s315 + $0x21] sm:$0xff]
      %v335 = vld [vmem:[%s315 + $0x31] sm:$0xff]
      %v336 = vld [vmem:[%s315 + $0x41] sm:$0xff]
      %v337 = vld [vmem:[%s315 + $0x51] sm:$0xff]
      %v338 = vld [vmem:[%s315 + $0x61] sm:$0xff]
      %v339 = vld [vmem:[%s315 + $0x71] sm:$0xff]
      %v340 = vpack.c.bf16 %v332, %v332
      %v341 = vpack.c.bf16 %v333, %v333
      %v342 = vpack.c.bf16 %v334, %v334
      %v343 = vpack.c.bf16 %v335, %v335
      %v344 = vpack.c.bf16 %v336, %v336
      %v345 = vpack.c.bf16 %v337, %v337
      %v346 = vpack.c.bf16 %v338, %v338
      %v347 = vpack.c.bf16 %v339, %v339
      %v348 = vld [vmem:[%s315 + $0x2] sm:$0xff]
      %v349 = vld [vmem:[%s315 + $0x12] sm:$0xff]
      %v350 = vld [vmem:[%s315 + $0x22] sm:$0xff]
      %v351 = vld [vmem:[%s315 + $0x32] sm:$0xff]
      %v352 = vld [vmem:[%s315 + $0x42] sm:$0xff]
      %v353 = vld [vmem:[%s315 + $0x52] sm:$0xff]
      %v354 = vld [vmem:[%s315 + $0x62] sm:$0xff]
      %v355 = vld [vmem:[%s315 + $0x72] sm:$0xff]
      %v356 = vpack.c.bf16 %v348, %v348
      %v357 = vpack.c.bf16 %v349, %v349
      %v358 = vpack.c.bf16 %v350, %v350
      %v359 = vpack.c.bf16 %v351, %v351
      %v360 = vpack.c.bf16 %v352, %v352
      %v361 = vpack.c.bf16 %v353, %v353
      %v362 = vpack.c.bf16 %v354, %v354
      %v363 = vpack.c.bf16 %v355, %v355
      %v372 = vunpack.c.l.b16 %v227
      %v373 = vunpack.c.l.b16 %v228
      %v374 = vunpack.c.l.b16 %v229
      %v375 = vunpack.c.l.b16 %v230
      %v376 = vunpack.c.l.b16 %v231
      %v377 = vunpack.c.l.b16 %v232
      %v378 = vunpack.c.l.b16 %v233
      %v379 = vunpack.c.l.b16 %v234
      %v380 = vpack.c.b16 %v373, %v372
      %v381 = vpack.c.b16 %v375, %v374
      %v382 = vpack.c.b16 %v377, %v376
      %v383 = vpack.c.b16 %v379, %v378
      %v392 = vunpack.c.l.b16 %v243
      %v393 = vunpack.c.l.b16 %v244
      %v394 = vunpack.c.l.b16 %v245
      %v395 = vunpack.c.l.b16 %v246
      %v396 = vunpack.c.l.b16 %v247
      %v397 = vunpack.c.l.b16 %v248
      %v398 = vunpack.c.l.b16 %v249
      %v399 = vunpack.c.l.b16 %v250
      %v400 = vpack.c.b16 %v393, %v392
      %v401 = vpack.c.b16 %v395, %v394
      %v402 = vpack.c.b16 %v397, %v396
      %v403 = vpack.c.b16 %v399, %v398
      %404 = vrot.lane.b32.xlu0 %v400, 64
      %v405 = vpop.permute.xlu0 %404
      %406 = vrot.lane.b32.xlu0 %v401, 64
      %v407 = vpop.permute.xlu0 %406
      %408 = vrot.lane.b32.xlu0 %v402, 64
      %v409 = vpop.permute.xlu0 %408
      %410 = vrot.lane.b32.xlu0 %v403, 64
      %v411 = vpop.permute.xlu0 %410
      %v420 = vunpack.c.l.b16 %v259
      %v421 = vunpack.c.l.b16 %v260
      %v422 = vunpack.c.l.b16 %v261
      %v423 = vunpack.c.l.b16 %v262
      %v424 = vunpack.c.l.b16 %v263
      %v425 = vunpack.c.l.b16 %v264
      %v426 = vunpack.c.l.b16 %v265
      %v427 = vunpack.c.l.b16 %v266
      %v428 = vpack.c.b16 %v421, %v420
      %v429 = vpack.c.b16 %v423, %v422
      %v430 = vpack.c.b16 %v425, %v424
      %v431 = vpack.c.b16 %v427, %v426
      %v440 = vunpack.c.l.b16 %v275
      %v441 = vunpack.c.l.b16 %v276
      %v442 = vunpack.c.l.b16 %v277
      %v443 = vunpack.c.l.b16 %v278
      %v444 = vunpack.c.l.b16 %v279
      %v445 = vunpack.c.l.b16 %v280
      %v446 = vunpack.c.l.b16 %v281
      %v447 = vunpack.c.l.b16 %v282
      %v448 = vpack.c.b16 %v441, %v440
      %v449 = vpack.c.b16 %v443, %v442
      %v450 = vpack.c.b16 %v445, %v444
      %v451 = vpack.c.b16 %v447, %v446
      %452 = vrot.lane.b32.xlu0 %v448, 64
      %v453 = vpop.permute.xlu0 %452
      %454 = vrot.lane.b32.xlu0 %v449, 64
      %v455 = vpop.permute.xlu0 %454
      %456 = vrot.lane.b32.xlu0 %v450, 64
      %v457 = vpop.permute.xlu0 %456
      %458 = vrot.lane.b32.xlu0 %v451, 64
      %v459 = vpop.permute.xlu0 %458
      %v468 = vunpack.c.l.b16 %v291
      %v469 = vunpack.c.l.b16 %v292
      %v470 = vunpack.c.l.b16 %v293
      %v471 = vunpack.c.l.b16 %v294
      %v472 = vunpack.c.l.b16 %v295
      %v473 = vunpack.c.l.b16 %v296
      %v474 = vunpack.c.l.b16 %v297
      %v475 = vunpack.c.l.b16 %v298
      %v476 = vpack.c.b16 %v469, %v468
      %v477 = vpack.c.b16 %v471, %v470
      %v478 = vpack.c.b16 %v473, %v472
      %v479 = vpack.c.b16 %v475, %v474
      %v488 = vunpack.c.l.b16 %v307
      %v489 = vunpack.c.l.b16 %v308
      %v490 = vunpack.c.l.b16 %v309
      %v491 = vunpack.c.l.b16 %v310
      %v492 = vunpack.c.l.b16 %v311
      %v493 = vunpack.c.l.b16 %v312
      %v494 = vunpack.c.l.b16 %v313
      %v495 = vunpack.c.l.b16 %v314
      %v496 = vpack.c.b16 %v489, %v488
      %v497 = vpack.c.b16 %v491, %v490
      %v498 = vpack.c.b16 %v493, %v492
      %v499 = vpack.c.b16 %v495, %v494
      %500 = vrot.lane.b32.xlu0 %v496, 64
      %v501 = vpop.permute.xlu0 %500
      %502 = vrot.lane.b32.xlu0 %v497, 64
      %v503 = vpop.permute.xlu0 %502
      %504 = vrot.lane.b32.xlu0 %v498, 64
      %v505 = vpop.permute.xlu0 %504
      %506 = vrot.lane.b32.xlu0 %v499, 64
      %v507 = vpop.permute.xlu0 %506
      %v516 = vunpack.c.l.b16 %v324
      %v517 = vunpack.c.l.b16 %v325
      %v518 = vunpack.c.l.b16 %v326
      %v519 = vunpack.c.l.b16 %v327
      %v520 = vunpack.c.l.b16 %v328
      %v521 = vunpack.c.l.b16 %v329
      %v522 = vunpack.c.l.b16 %v330
      %v523 = vunpack.c.l.b16 %v331
      %v524 = vpack.c.b16 %v517, %v516
      %v525 = vpack.c.b16 %v519, %v518
      %v526 = vpack.c.b16 %v521, %v520
      %v527 = vpack.c.b16 %v523, %v522
      %v536 = vunpack.c.l.b16 %v340
      %v537 = vunpack.c.l.b16 %v341
      %v538 = vunpack.c.l.b16 %v342
      %v539 = vunpack.c.l.b16 %v343
      %v540 = vunpack.c.l.b16 %v344
      %v541 = vunpack.c.l.b16 %v345
      %v542 = vunpack.c.l.b16 %v346
      %v543 = vunpack.c.l.b16 %v347
      %v544 = vpack.c.b16 %v537, %v536
      %v545 = vpack.c.b16 %v539, %v538
      %v546 = vpack.c.b16 %v541, %v540
      %v547 = vpack.c.b16 %v543, %v542
      %548 = vrot.lane.b32.xlu0 %v544, 64
      %v549 = vpop.permute.xlu0 %548
      %550 = vrot.lane.b32.xlu0 %v545, 64
      %v551 = vpop.permute.xlu0 %550
      %552 = vrot.lane.b32.xlu0 %v546, 64
      %v553 = vpop.permute.xlu0 %552
      %554 = vrot.lane.b32.xlu0 %v547, 64
      %v555 = vpop.permute.xlu0 %554
      %v564 = vunpack.c.l.b16 %v356
      %v565 = vunpack.c.l.b16 %v357
      %v566 = vunpack.c.l.b16 %v358
      %v567 = vunpack.c.l.b16 %v359
      %v568 = vunpack.c.l.b16 %v360
      %v569 = vunpack.c.l.b16 %v361
      %v570 = vunpack.c.l.b16 %v362
      %v571 = vunpack.c.l.b16 %v363
      %v572 = vpack.c.b16 %v565, %v564
      %v573 = vpack.c.b16 %v567, %v566
      %v574 = vpack.c.b16 %v569, %v568
      %v575 = vpack.c.b16 %v571, %v570
      %v578 = vsel %vm172, %v380, %v405
      %v582 = vsel %vm172, %v381, %v407
      %v586 = vsel %vm172, %v382, %v409
      %v590 = vsel %vm172, %v383, %v411
      %v594 = vsel %vm172, %v428, %v453
      %v598 = vsel %vm172, %v429, %v455
      %v602 = vsel %vm172, %v430, %v457
      %v606 = vsel %vm172, %v431, %v459
      %v610 = vsel %vm172, %v476, %v501
      %v614 = vsel %vm172, %v477, %v503
      %v618 = vsel %vm172, %v478, %v505
      %v622 = vsel %vm172, %v479, %v507
      %v626 = vsel %vm172, %v524, %v549
      %v630 = vsel %vm172, %v525, %v551
      %v634 = vsel %vm172, %v526, %v553
      %v638 = vsel %vm172, %v527, %v555
      %v640 = vld [vmem:[%s1] sm:$0xf]
      %v641 = vld [vmem:[%s1 + $0x4] sm:$0xf]
      %v642 = vld [vmem:[%s1 + $0x8] sm:$0xf]
      %v643 = vld [vmem:[%s1 + $0xc] sm:$0xf]
      %v644 = vld [vmem:[%s1 + $0x10] sm:$0xf]
      %v645 = vld [vmem:[%s1 + $0x14] sm:$0xf]
      %v646 = vld [vmem:[%s1 + $0x18] sm:$0xf]
      %v647 = vld [vmem:[%s1 + $0x1c] sm:$0xf]
      %v648 = vld [vmem:[%s1 + $0x20] sm:$0xf]
      %v649 = vld [vmem:[%s1 + $0x24] sm:$0xf]
      %v650 = vld [vmem:[%s1 + $0x28] sm:$0xf]
      %v651 = vld [vmem:[%s1 + $0x2c] sm:$0xf]
      %v652 = vld [vmem:[%s1 + $0x30] sm:$0xf]
      %v653 = vld [vmem:[%s1 + $0x34] sm:$0xf]
      %v654 = vld [vmem:[%s1 + $0x38] sm:$0xf]
      %v655 = vld [vmem:[%s1 + $0x3c] sm:$0xf]
      %v656 = vld [vmem:[%s1 + $0x40] sm:$0xf]
      %v657 = vld [vmem:[%s1 + $0x44] sm:$0xf]
      %v658 = vld [vmem:[%s1 + $0x48] sm:$0xf]
      %v659 = vld [vmem:[%s1 + $0x4c] sm:$0xf]
      %v660 = vld [vmem:[%s1 + $0x50] sm:$0xf]
      %v661 = vld [vmem:[%s1 + $0x54] sm:$0xf]
      %v662 = vld [vmem:[%s1 + $0x58] sm:$0xf]
      %v663 = vld [vmem:[%s1 + $0x5c] sm:$0xf]
      %v664 = vld [vmem:[%s1 + $0x60] sm:$0xf]
      %v665 = vld [vmem:[%s1 + $0x64] sm:$0xf]
      %v666 = vld [vmem:[%s1 + $0x68] sm:$0xf]
      %v667 = vld [vmem:[%s1 + $0x6c] sm:$0xf]
      %v668 = vld [vmem:[%s1 + $0x70] sm:$0xf]
      %v669 = vld [vmem:[%s1 + $0x74] sm:$0xf]
      %v670 = vld [vmem:[%s1 + $0x78] sm:$0xf]
      %v671 = vld [vmem:[%s1 + $0x7c] sm:$0xf]
      %v672 = vld [vmem:[%s1 + $0x80] sm:$0xf]
      %v673 = vld [vmem:[%s1 + $0x84] sm:$0xf]
      %v674 = vld [vmem:[%s1 + $0x88] sm:$0xf]
      %v675 = vld [vmem:[%s1 + $0x8c] sm:$0xf]
      %v676 = vld [vmem:[%s1 + $0x90] sm:$0xf]
      %v677 = vld [vmem:[%s1 + $0x94] sm:$0xf]
      %v678 = vld [vmem:[%s1 + $0x98] sm:$0xf]
      %v679 = vld [vmem:[%s1 + $0x9c] sm:$0xf]
      %v680 = vld [vmem:[%s1 + $0xa0] sm:$0xf]
      %v681 = vld [vmem:[%s1 + $0xa4] sm:$0xf]
      %v682 = vld [vmem:[%s1 + $0xa8] sm:$0xf]
      %v683 = vld [vmem:[%s1 + $0xac] sm:$0xf]
      %v684 = vld [vmem:[%s1 + $0xb0] sm:$0xf]
      %v685 = vld [vmem:[%s1 + $0xb4] sm:$0xf]
      %v686 = vld [vmem:[%s1 + $0xb8] sm:$0xf]
      %v687 = vld [vmem:[%s1 + $0xbc] sm:$0xf]
      %v688 = vld [vmem:[%s1 + $0xc0] sm:$0xf]
      %v689 = vld [vmem:[%s1 + $0xc4] sm:$0xf]
      %v690 = vld [vmem:[%s1 + $0xc8] sm:$0xf]
      %v691 = vld [vmem:[%s1 + $0xcc] sm:$0xf]
      %v692 = vld [vmem:[%s1 + $0xd0] sm:$0xf]
      %v693 = vld [vmem:[%s1 + $0xd4] sm:$0xf]
      %v694 = vld [vmem:[%s1 + $0xd8] sm:$0xf]
      %v695 = vld [vmem:[%s1 + $0xdc] sm:$0xf]
      %v696 = vld [vmem:[%s1 + $0xe0] sm:$0xf]
      %v697 = vld [vmem:[%s1 + $0xe4] sm:$0xf]
      %v698 = vld [vmem:[%s1 + $0xe8] sm:$0xf]
      %v699 = vld [vmem:[%s1 + $0xec] sm:$0xf]
      %v700 = vld [vmem:[%s1 + $0xf0] sm:$0xf]
      %v701 = vld [vmem:[%s1 + $0xf4] sm:$0xf]
      %v702 = vld [vmem:[%s1 + $0xf8] sm:$0xf]
      %v703 = vld [vmem:[%s1 + $0xfc] sm:$0xf]
      %v704 = vld [vmem:[%s1 + $0x100] sm:$0xf]
      %v705 = vld [vmem:[%s1 + $0x104] sm:$0xf]
      %v706 = vld [vmem:[%s1 + $0x108] sm:$0xf]
      %v707 = vld [vmem:[%s1 + $0x10c] sm:$0xf]
      %v708 = vld [vmem:[%s1 + $0x110] sm:$0xf]
      %v709 = vld [vmem:[%s1 + $0x114] sm:$0xf]
      %v710 = vld [vmem:[%s1 + $0x118] sm:$0xf]
      %v711 = vld [vmem:[%s1 + $0x11c] sm:$0xf]
      %v712 = vld [vmem:[%s2] sm:$0x1]
      %v714 = vperm.slane %v712, 0
      %v788 = vunpack.c.l.b16 %v640
      %v789 = vunpack.c.l.b16 %v641
      %v790 = vunpack.c.l.b16 %v642
      %v791 = vunpack.c.l.b16 %v643
      %v792 = vunpack.c.l.b16 %v644
      %v793 = vunpack.c.l.b16 %v645
      %v794 = vunpack.c.l.b16 %v646
      %v795 = vunpack.c.l.b16 %v647
      %v796 = vunpack.c.l.b16 %v648
      %v797 = vunpack.c.l.b16 %v649
      %v798 = vunpack.c.l.b16 %v650
      %v799 = vunpack.c.l.b16 %v651
      %v800 = vunpack.c.l.b16 %v652
      %v801 = vunpack.c.l.b16 %v653
      %v802 = vunpack.c.l.b16 %v654
      %v803 = vunpack.c.l.b16 %v655
      %v804 = vunpack.c.l.b16 %v656
      %v805 = vunpack.c.l.b16 %v657
      %v806 = vunpack.c.l.b16 %v658
      %v807 = vunpack.c.l.b16 %v659
      %v808 = vunpack.c.l.b16 %v660
      %v809 = vunpack.c.l.b16 %v661
      %v810 = vunpack.c.l.b16 %v662
      %v811 = vunpack.c.l.b16 %v663
      %v812 = vunpack.c.l.b16 %v664
      %v813 = vunpack.c.l.b16 %v665
      %v814 = vunpack.c.l.b16 %v666
      %v815 = vunpack.c.l.b16 %v667
      %v816 = vunpack.c.l.b16 %v668
      %v817 = vunpack.c.l.b16 %v669
      %v818 = vunpack.c.l.b16 %v670
      %v819 = vunpack.c.l.b16 %v671
      %v820 = vunpack.c.l.b16 %v672
      %v821 = vunpack.c.l.b16 %v673
      %v822 = vunpack.c.l.b16 %v674
      %v823 = vunpack.c.l.b16 %v675
      %v824 = vunpack.c.l.b16 %v676
      %v825 = vunpack.c.l.b16 %v677
      %v826 = vunpack.c.l.b16 %v678
      %v827 = vunpack.c.l.b16 %v679
      %v828 = vunpack.c.l.b16 %v680
      %v829 = vunpack.c.l.b16 %v681
      %v830 = vunpack.c.l.b16 %v682
      %v831 = vunpack.c.l.b16 %v683
      %v832 = vunpack.c.l.b16 %v684
      %v833 = vunpack.c.l.b16 %v685
      %v834 = vunpack.c.l.b16 %v686
      %v835 = vunpack.c.l.b16 %v687
      %v836 = vunpack.c.l.b16 %v688
      %v837 = vunpack.c.l.b16 %v689
      %v838 = vunpack.c.l.b16 %v690
      %v839 = vunpack.c.l.b16 %v691
      %v840 = vunpack.c.l.b16 %v692
      %v841 = vunpack.c.l.b16 %v693
      %v842 = vunpack.c.l.b16 %v694
      %v843 = vunpack.c.l.b16 %v695
      %v844 = vunpack.c.l.b16 %v696
      %v845 = vunpack.c.l.b16 %v697
      %v846 = vunpack.c.l.b16 %v698
      %v847 = vunpack.c.l.b16 %v699
      %v848 = vunpack.c.l.b16 %v700
      %v849 = vunpack.c.l.b16 %v701
      %v850 = vunpack.c.l.b16 %v702
      %v851 = vunpack.c.l.b16 %v703
      %v852 = vunpack.c.l.b16 %v704
      %v853 = vunpack.c.l.b16 %v705
      %v854 = vunpack.c.l.b16 %v706
      %v855 = vunpack.c.l.b16 %v707
      %v856 = vunpack.c.l.b16 %v708
      %v857 = vunpack.c.l.b16 %v709
      %v858 = vunpack.c.l.b16 %v710
      %v859 = vunpack.c.l.b16 %v711
      %v860 = vpack.c.b16 %v789, %v788
      %v861 = vpack.c.b16 %v791, %v790
      %v862 = vpack.c.b16 %v793, %v792
      %v863 = vpack.c.b16 %v795, %v794
      %v864 = vpack.c.b16 %v797, %v796
      %v865 = vpack.c.b16 %v799, %v798
      %v866 = vpack.c.b16 %v801, %v800
      %v867 = vpack.c.b16 %v803, %v802
      %v868 = vpack.c.b16 %v805, %v804
      %v869 = vpack.c.b16 %v807, %v806
      %v870 = vpack.c.b16 %v809, %v808
      %v871 = vpack.c.b16 %v811, %v810
      %v872 = vpack.c.b16 %v813, %v812
      %v873 = vpack.c.b16 %v815, %v814
      %v874 = vpack.c.b16 %v817, %v816
      %v875 = vpack.c.b16 %v819, %v818
      %v876 = vpack.c.b16 %v821, %v820
      %v877 = vpack.c.b16 %v823, %v822
      %v878 = vpack.c.b16 %v825, %v824
      %v879 = vpack.c.b16 %v827, %v826
      %v880 = vpack.c.b16 %v829, %v828
      %v881 = vpack.c.b16 %v831, %v830
      %v882 = vpack.c.b16 %v833, %v832
      %v883 = vpack.c.b16 %v835, %v834
      %v884 = vpack.c.b16 %v837, %v836
      %v885 = vpack.c.b16 %v839, %v838
      %v886 = vpack.c.b16 %v841, %v840
      %v887 = vpack.c.b16 %v843, %v842
      %v888 = vpack.c.b16 %v845, %v844
      %v889 = vpack.c.b16 %v847, %v846
      %v890 = vpack.c.b16 %v849, %v848
      %v891 = vpack.c.b16 %v851, %v850
      %v892 = vpack.c.b16 %v853, %v852
      %v893 = vpack.c.b16 %v855, %v854
      %v894 = vpack.c.b16 %v857, %v856
      %v895 = vpack.c.b16 %v859, %v858
      %v933 = vsel %vm172, %v572, 0
      %v936 = vsel %vm172, %v573, 0
      %v939 = vsel %vm172, %v574, 0
      %v942 = vsel %vm172, %v575, 0
      %944 = vmatpush.bf16.msra.mxu0 %v867
      %945 = vmatpush.bf16.msra.mxu0 %v866
      %946 = vmatpush.bf16.msra.mxu0 %v865
      %947 = vmatpush.bf16.msra.mxu0 %v864
      %948 = vmatpush.bf16.msra.mxu0 %v863
      %949 = vmatpush.bf16.msra.mxu0 %v862
      %950 = vmatpush.bf16.msra.mxu0 %v861
      %951 = vmatpush.bf16.msra.mxu0 %v860
      %952 = vmatmul.bf16.gmra.mxu0 %v578
      %v953 = vpop.f32.mrf.mxu0
      %v954 = vadd.f32 %v714, %v953
      %v955 = vpop.f32.mrf.mxu0
      %v956 = vadd.f32 %v714, %v955
      %957 = vmatmul.bf16.gmra.mxu0 %v582
      %v958 = vpop.f32.mrf.mxu0
      %v959 = vadd.f32 %v714, %v958
      %v960 = vpop.f32.mrf.mxu0
      %v961 = vadd.f32 %v714, %v960
      %962 = vmatmul.bf16.gmra.mxu0 %v586
      %v963 = vpop.f32.mrf.mxu0
      %v964 = vadd.f32 %v714, %v963
      %v965 = vpop.f32.mrf.mxu0
      %v966 = vadd.f32 %v714, %v965
      %967 = vmatmul.bf16.gmra.mxu0 %v590
      %v968 = vpop.f32.mrf.mxu0
      %v969 = vadd.f32 %v714, %v968
      %v970 = vpop.f32.mrf.mxu0
      %v971 = vadd.f32 %v714, %v970
      %972 = vdwg.mxu0
      %973 = vmatpush.bf16.msra.mxu0 %v875
      %974 = vmatpush.bf16.msra.mxu0 %v874
      %975 = vmatpush.bf16.msra.mxu0 %v873
      %976 = vmatpush.bf16.msra.mxu0 %v872
      %977 = vmatpush.bf16.msra.mxu0 %v871
      %978 = vmatpush.bf16.msra.mxu0 %v870
      %979 = vmatpush.bf16.msra.mxu0 %v869
      %980 = vmatpush.bf16.msra.mxu0 %v868
      %981 = vmatmul.bf16.gmra.mxu0 %v594
      %v982 = vpop.f32.mrf.mxu0
      %v983 = vadd.f32 %v954, %v982
      %v984 = vpop.f32.mrf.mxu0
      %v985 = vadd.f32 %v956, %v984
      %986 = vmatmul.bf16.gmra.mxu0 %v598
      %v987 = vpop.f32.mrf.mxu0
      %v988 = vadd.f32 %v959, %v987
      %v989 = vpop.f32.mrf.mxu0
      %v990 = vadd.f32 %v961, %v989
      %991 = vmatmul.bf16.gmra.mxu0 %v602
      %v992 = vpop.f32.mrf.mxu0
      %v993 = vadd.f32 %v964, %v992
      %v994 = vpop.f32.mrf.mxu0
      %v995 = vadd.f32 %v966, %v994
      %996 = vmatmul.bf16.gmra.mxu0 %v606
      %v997 = vpop.f32.mrf.mxu0
      %v998 = vadd.f32 %v969, %v997
      %v999 = vpop.f32.mrf.mxu0
      %v1000 = vadd.f32 %v971, %v999
      %1001 = vdwg.mxu0
      %1002 = vmatpush.bf16.msra.mxu0 %v883
      %1003 = vmatpush.bf16.msra.mxu0 %v882
      %1004 = vmatpush.bf16.msra.mxu0 %v881
      %1005 = vmatpush.bf16.msra.mxu0 %v880
      %1006 = vmatpush.bf16.msra.mxu0 %v879
      %1007 = vmatpush.bf16.msra.mxu0 %v878
      %1008 = vmatpush.bf16.msra.mxu0 %v877
      %1009 = vmatpush.bf16.msra.mxu0 %v876
      %1010 = vmatmul.bf16.gmra.mxu0 %v610
      %v1011 = vpop.f32.mrf.mxu0
      %v1012 = vadd.f32 %v983, %v1011
      %v1013 = vpop.f32.mrf.mxu0
      %v1014 = vadd.f32 %v985, %v1013
      %1015 = vmatmul.bf16.gmra.mxu0 %v614
      %v1016 = vpop.f32.mrf.mxu0
      %v1017 = vadd.f32 %v988, %v1016
      %v1018 = vpop.f32.mrf.mxu0
      %v1019 = vadd.f32 %v990, %v1018
      %1020 = vmatmul.bf16.gmra.mxu0 %v618
      %v1021 = vpop.f32.mrf.mxu0
      %v1022 = vadd.f32 %v993, %v1021
      %v1023 = vpop.f32.mrf.mxu0
      %v1024 = vadd.f32 %v995, %v1023
      %1025 = vmatmul.bf16.gmra.mxu0 %v622
      %v1026 = vpop.f32.mrf.mxu0
      %v1027 = vadd.f32 %v998, %v1026
      %v1028 = vpop.f32.mrf.mxu0
      %v1029 = vadd.f32 %v1000, %v1028
      %1030 = vdwg.mxu0
      %1031 = vmatpush.bf16.msra.mxu0 %v891
      %1032 = vmatpush.bf16.msra.mxu0 %v890
      %1033 = vmatpush.bf16.msra.mxu0 %v889
      %1034 = vmatpush.bf16.msra.mxu0 %v888
      %1035 = vmatpush.bf16.msra.mxu0 %v887
      %1036 = vmatpush.bf16.msra.mxu0 %v886
      %1037 = vmatpush.bf16.msra.mxu0 %v885
      %1038 = vmatpush.bf16.msra.mxu0 %v884
      %1039 = vmatmul.bf16.gmra.mxu0 %v626
      %v1040 = vpop.f32.mrf.mxu0
      %v1041 = vadd.f32 %v1012, %v1040
      %v1042 = vpop.f32.mrf.mxu0
      %v1043 = vadd.f32 %v1014, %v1042
      %1044 = vmatmul.bf16.gmra.mxu0 %v630
      %v1045 = vpop.f32.mrf.mxu0
      %v1046 = vadd.f32 %v1017, %v1045
      %v1047 = vpop.f32.mrf.mxu0
      %v1048 = vadd.f32 %v1019, %v1047
      %1049 = vmatmul.bf16.gmra.mxu0 %v634
      %v1050 = vpop.f32.mrf.mxu0
      %v1051 = vadd.f32 %v1022, %v1050
      %v1052 = vpop.f32.mrf.mxu0
      %v1053 = vadd.f32 %v1024, %v1052
      %1054 = vmatmul.bf16.gmra.mxu0 %v638
      %v1055 = vpop.f32.mrf.mxu0
      %v1056 = vadd.f32 %v1027, %v1055
      %v1057 = vpop.f32.mrf.mxu0
      %v1058 = vadd.f32 %v1029, %v1057
      %1059 = vdwg.mxu0
      %1060 = vmatpush.bf16.msra.mxu0 0
      %1061 = vmatpush.bf16.msra.mxu0 0
      %1062 = vmatpush.bf16.msra.mxu0 0
      %1063 = vmatpush.bf16.msra.mxu0 0
      %1064 = vmatpush.bf16.msra.mxu0 %v895
      %1065 = vmatpush.bf16.msra.mxu0 %v894
      %1066 = vmatpush.bf16.msra.mxu0 %v893
      %1067 = vmatpush.bf16.msra.mxu0 %v892
      %1068 = vmatmul.bf16.gmra.mxu0 %v933
      %v1069 = vpop.f32.mrf.mxu0
      %v1070 = vadd.f32 %v1041, %v1069
      %v1071 = vpop.f32.mrf.mxu0
      %v1072 = vadd.f32 %v1043, %v1071
      %1073 = vmatmul.bf16.gmra.mxu0 %v936
      %v1074 = vpop.f32.mrf.mxu0
      %v1075 = vadd.f32 %v1046, %v1074
      %v1076 = vpop.f32.mrf.mxu0
      %v1077 = vadd.f32 %v1048, %v1076
      %1078 = vmatmul.bf16.gmra.mxu0 %v939
      %v1079 = vpop.f32.mrf.mxu0
      %v1080 = vadd.f32 %v1051, %v1079
      %v1081 = vpop.f32.mrf.mxu0
      %v1082 = vadd.f32 %v1053, %v1081
      %1083 = vmatmul.bf16.gmra.mxu0 %v942
      %v1084 = vpop.f32.mrf.mxu0
      %v1085 = vadd.f32 %v1056, %v1084
      %v1086 = vpop.f32.mrf.mxu0
      %v1087 = vadd.f32 %v1058, %v1086
      %1088 = vdwg.mxu0
      %vm1089 = vcmask 97280
      %1090 = vst.msk [vmem:[%s170] sm:$0xff] %vm1089, %v1070
      %1091 = vst.msk [vmem:[%s170 + $0x8] sm:$0xff] %vm1089, %v1072
      %1092 = vst.msk [vmem:[%s170 + $0x10] sm:$0xff] %vm1089, %v1075
      %1093 = vst.msk [vmem:[%s170 + $0x18] sm:$0xff] %vm1089, %v1077
      %1094 = vst.msk [vmem:[%s170 + $0x20] sm:$0xff] %vm1089, %v1080
      %1095 = vst.msk [vmem:[%s170 + $0x28] sm:$0xff] %vm1089, %v1082
      %1096 = vst.msk [vmem:[%s170 + $0x30] sm:$0xff] %vm1089, %v1085
      %1097 = vst.msk [vmem:[%s170 + $0x38] sm:$0xff] %vm1089, %v1087
      %p1098 = scmp.lt.s32.totalorder %s14, 1
      %s1099 = scalar_select %p1098, %s14, 1
      %s1100 = smul.addr %s1099, 8
      %s1101 = smul.addr %s1100, 8
      %s1102 = scalar_lea.vmem %s3, %s1101
      // Predicated region
      $region33: #{net_forward.25} parent=31 // pred_check
        %p1103 = pneg %p100
      $region34: #{net_forward.25} parent=31 // pred_check_branch
        %1105 = sbr.rel (%p1103) target = $region36
      $region35: #{net_forward.25} parent=31 // pred_region
        _
      $region36: #{net_forward.25} parent=31 // pred_fallthru
        _
    $region32: #{net_forward.25} parent=5 // pred_fallthru
      _
    %p1106 = scmp.le.s32.totalorder 2, %s9
    // Predicated region
    $region37: #{net_forward.25} parent=5 // pred_check
      %p1107 = pneg %p1106
    $region38: #{net_forward.25} parent=5 // pred_check_branch
      %1109 = sbr.rel (%p1107) target = $region40
    $region39: #{net_forward.25} parent=5 // pred_region
      %s1110 = ssub.s32 %s9, 2
      // Predicated region
      $region41: #{net_forward.25} parent=39 // pred_check
        %p1111 = pneg %p106
      $region42: #{net_forward.25} parent=39 // pred_check_branch
        %1113 = sbr.rel (%p1111) target = $region44
      $region43: #{net_forward.25} parent=39 // pred_region
        %p1114 = scmp.lt.s32.totalorder %s15, 1
        %s1115 = scalar_select %p1114, %s15, 1
        %s1116 = smul.addr %s1115, 8
        %s1117 = smul.addr %s1116, 8
        %s1118 = scalar_lea.vmem %s3, %s1117
      $region44: #{net_forward.25} parent=39 // pred_fallthru
        _
    $region40: #{net_forward.25} parent=5 // pred_fallthru
      _
  $region6: #{net_forward.25} parent=0 // loop_footer
    %s13 = sadd.s32 1, %s9
  $region7: #{net_forward.25} parent=0 // loop_footer_branch
    %8 = sbr.rel target = $region3
  $region8: #{net_forward.25} parent=0 // loop_exit
    _

// kernel: net_forward.24
$region0: #{net_forward.24}
  #allocation0 [shape = 'u32[]', space=smem, size = 0x4, offset = 0x4, fixed_abs, tag = 'smem constant byte address 0x4 - core index']
  #allocation1 [shape = 'u32[72,128]{1,0:T(1,128)}', space=vmem, size = 0x9000, scoped, tag = 'internal scratch']
  #allocation2 [shape = 'f32[1,10,10,64]{3,2,1,0:T(8,128)}', space=vmem, size = 0x14000, scoped, tag = 'scratch operand']
  %s0 = inlined_call_operand.vmem [shape: bf16[2,8,8,64], index: 0, kind: input, shape index: {}]
  %s1 = inlined_call_operand.vmem [shape: bf16[2,8,8,64], index: 1, kind: input, shape index: {}]
  %s2 = inlined_call_operand.vmem [shape: bf16[1152,64], index: 2, kind: input, shape index: {}]
  %s3 = inlined_call_operand.vmem [shape: f32[2,64], index: 3, kind: input, shape index: {}]
  %s4 = inlined_call_operand.vmem [shape: bf16[2,8,8,64], index: 4, kind: output, shape index: {}]
  %s5 = sld [smem:[#allocation0]]
  $region49: #{net_forward.24} parent=0
    _
  %s7 = ssub.s32 1, %s5
  %s8 = scalar_select 0, %s7, %s5
  loop: start=0, step=1, limit=4
  $region2: #{net_forward.24} parent=0 // loop_pre_header
    _
  $region3: #{net_forward.24} parent=0 // loop_header
    %s10 = sphi 0, %s14
    %p11 = scmp.ge.s32.totalorder %s10, 4
    %s20 = sphi 0, %s22
    %s23 = sphi 0, %s20
    %s24 = sphi 0, %s23
    %s40 = sphi 0, %s24
    %s46 = sphi 0, %s48
    %s49 = sphi 0, %s46
    %s50 = sphi 0, %s49
    %s66 = sphi 0, %s50
    %s70 = sphi 0, %s70
    %s72 = sphi 0, %s70
    %s73 = sphi 0, %s72
    %s87 = sphi 0, %s73
    %s91 = sphi 0, %s91
    %s93 = sphi 0, %s91
    %s94 = sphi 0, %s93
    %s108 = sphi 0, %s94
    %s114 = sphi 0, %s116
    %s117 = sphi 0, %s114
    %s118 = sphi 0, %s117
    %s134 = sphi 0, %s118
  $region4: #{net_forward.24} parent=0 // loop_header_branch
    %13 = sbr.rel (%p11) target = $region8
  $region5: #{net_forward.24} parent=0 // loop_body
    %s15 = ssub.s32 %s10, 1
    %s16 = ssub.s32 %s10, 2
    %s17 = sadd.s32 %s10, 1
    %s18 = ssub.s32 %s10, %s17
    %p19 = scmp.eq.s32.totalorder %s18, 0
    %s21 = sadd.s32 %s20, 1
    %s22 = scalar_select %p19, %s20, %s21
    %p25 = pneg %p19
    %p26 = scmp.eq.s32.totalorder %s10, 1
    %p27 = por %p25, %p26
    %p28 = scmp.ne.s32.totalorder %s20, %s23
    %p29 = scmp.eq.s32.totalorder %s10, 0
    %p30 = por %p28, %p29
    %p31 = scmp.ne.s32.totalorder %s20, %s23
    %p32 = scmp.eq.s32.totalorder %s15, 1
    %p33 = por %p31, %p32
    %p34 = scmp.ne.s32.totalorder %s23, %s24
    %p35 = scmp.eq.s32.totalorder %s15, 0
    %p36 = por %p34, %p35
    %p37 = scmp.ne.s32.totalorder %s23, %s24
    %p38 = scmp.eq.s32.totalorder %s16, 1
    %p39 = por %p37, %p38
    %p41 = scmp.ne.s32.totalorder %s24, %s40
    %p42 = scmp.eq.s32.totalorder %s16, 0
    %p43 = por %p41, %p42
    %s44 = ssub.s32 %s10, %s17
    %p45 = scmp.eq.s32.totalorder %s44, 0
    %s47 = sadd.s32 %s46, 1
    %s48 = scalar_select %p45, %s46, %s47
    %p51 = pneg %p45
    %p52 = scmp.eq.s32.totalorder %s10, 1
    %p53 = por %p51, %p52
    %p54 = scmp.ne.s32.totalorder %s46, %s49
    %p55 = scmp.eq.s32.totalorder %s10, 0
    %p56 = por %p54, %p55
    %p57 = scmp.ne.s32.totalorder %s46, %s49
    %p58 = scmp.eq.s32.totalorder %s15, 1
    %p59 = por %p57, %p58
    %p60 = scmp.ne.s32.totalorder %s49, %s50
    %p61 = scmp.eq.s32.totalorder %s15, 0
    %p62 = por %p60, %p61
    %p63 = scmp.ne.s32.totalorder %s49, %s50
    %p64 = scmp.eq.s32.totalorder %s16, 1
    %p65 = por %p63, %p64
    %p67 = scmp.ne.s32.totalorder %s50, %s66
    %p68 = scmp.eq.s32.totalorder %s16, 0
    %p69 = por %p67, %p68
    %s71 = sadd.s32 %s70, 1
    %p74 = scmp.eq.s32.totalorder %s10, 1
    %p75 = scmp.ne.s32.totalorder %s70, %s72
    %p76 = scmp.eq.s32.totalorder %s10, 0
    %p77 = por %p75, %p76
    %p78 = scmp.ne.s32.totalorder %s70, %s72
    %p79 = scmp.eq.s32.totalorder %s15, 1
    %p80 = por %p78, %p79
    %p81 = scmp.ne.s32.totalorder %s72, %s73
    %p82 = scmp.eq.s32.totalorder %s15, 0
    %p83 = por %p81, %p82
    %p84 = scmp.ne.s32.totalorder %s72, %s73
    %p85 = scmp.eq.s32.totalorder %s16, 1
    %p86 = por %p84, %p85
    %p88 = scmp.ne.s32.totalorder %s73, %s87
    %p89 = scmp.eq.s32.totalorder %s16, 0
    %p90 = por %p88, %p89
    %s92 = sadd.s32 %s91, 1
    %p95 = scmp.eq.s32.totalorder %s10, 1
    %p96 = scmp.ne.s32.totalorder %s91, %s93
    %p97 = scmp.eq.s32.totalorder %s10, 0
    %p98 = por %p96, %p97
    %p99 = scmp.ne.s32.totalorder %s91, %s93
    %p100 = scmp.eq.s32.totalorder %s15, 1
    %p101 = por %p99, %p100
    %p102 = scmp.ne.s32.totalorder %s93, %s94
    %p103 = scmp.eq.s32.totalorder %s15, 0
    %p104 = por %p102, %p103
    %p105 = scmp.ne.s32.totalorder %s93, %s94
    %p106 = scmp.eq.s32.totalorder %s16, 1
    %p107 = por %p105, %p106
    %p109 = scmp.ne.s32.totalorder %s94, %s108
    %p110 = scmp.eq.s32.totalorder %s16, 0
    %p111 = por %p109, %p110
    %s112 = ssub.s32 %s10, %s17
    %p113 = scmp.eq.s32.totalorder %s112, 0
    %s115 = sadd.s32 %s114, 1
    %s116 = scalar_select %p113, %s114, %s115
    %p119 = pneg %p113
    %p120 = scmp.eq.s32.totalorder %s10, 1
    %p121 = por %p119, %p120
    %p122 = scmp.ne.s32.totalorder %s114, %s117
    %p123 = scmp.eq.s32.totalorder %s10, 0
    %p124 = por %p122, %p123
    %p125 = scmp.ne.s32.totalorder %s114, %s117
    %p126 = scmp.eq.s32.totalorder %s15, 1
    %p127 = por %p125, %p126
    %p128 = scmp.ne.s32.totalorder %s117, %s118
    %p129 = scmp.eq.s32.totalorder %s15, 0
    %p130 = por %p128, %p129
    %p131 = scmp.ne.s32.totalorder %s117, %s118
    %p132 = scmp.eq.s32.totalorder %s16, 1
    %p133 = por %p131, %p132
    %p135 = scmp.ne.s32.totalorder %s118, %s134
    %p136 = scmp.eq.s32.totalorder %s16, 0
    %p137 = por %p135, %p136
    %p138 = scmp.le.s32.totalorder 1, %s10
    %p139 = scmp.lt.s32.totalorder %s10, 3
    %p140 = pnand %p138, %p139
    %p141 = pneg %p140
    // Predicated region
    $region9: #{net_forward.24} parent=5 // pred_check
      _
    $region10: #{net_forward.24} parent=5 // pred_check_branch
      %143 = sbr.rel (%p140) target = $region12
    $region11: #{net_forward.24} parent=5 // pred_region
      %s144 = ssub.s32 %s10, 1
      // Predicated region
      $region13: #{net_forward.24} parent=11 // pred_check
        %p145 = pneg %p83
      $region14: #{net_forward.24} parent=11 // pred_check_branch
        %147 = sbr.rel (%p145) target = $region16
      $region15: #{net_forward.24} parent=11 // pred_region
        _
      $region16: #{net_forward.24} parent=11 // pred_fallthru
        _
      // Predicated region
      $region17: #{net_forward.24} parent=11 // pred_check
        %p148 = pneg %p104
      $region18: #{net_forward.24} parent=11 // pred_check_branch
        %150 = sbr.rel (%p148) target = $region20
      $region19: #{net_forward.24} parent=11 // pred_region
        _
      $region20: #{net_forward.24} parent=11 // pred_fallthru
        _
    $region12: #{net_forward.24} parent=5 // pred_fallthru
      _
    %p151 = scmp.lt.s32.totalorder %s10, 2
    // Predicated region
    $region21: #{net_forward.24} parent=5 // pred_check
      %p152 = pneg %p151
    $region22: #{net_forward.24} parent=5 // pred_check_branch
      %154 = sbr.rel (%p152) target = $region24
    $region23: #{net_forward.24} parent=5 // pred_region
      // Predicated region
      $region25: #{net_forward.24} parent=23 // pred_check
        %p155 = pneg %p30
      $region26: #{net_forward.24} parent=23 // pred_check_branch
        %157 = sbr.rel (%p155) target = $region28
      $region27: #{net_forward.24} parent=23 // pred_region
        %p158 = scmp.lt.s32.totalorder %s10, 1
        %s159 = scalar_select %p158, %s10, 1
        %s160 = smul.addr %s159, 8
        %s161 = smul.addr %s160, 4
        %s162 = scalar_lea.vmem %s0, %s161
      $region28: #{net_forward.24} parent=23 // pred_fallthru
        _
      // Predicated region
      $region29: #{net_forward.24} parent=23 // pred_check
        %p163 = pneg %p56
      $region30: #{net_forward.24} parent=23 // pred_check_branch
        %165 = sbr.rel (%p163) target = $region32
      $region31: #{net_forward.24} parent=23 // pred_region
        %p166 = scmp.lt.s32.totalorder %s10, 1
        %s167 = scalar_select %p166, %s10, 1
        %s168 = smul.addr %s167, 8
        %s169 = smul.addr %s168, 4
        %s170 = scalar_lea.vmem %s1, %s169
      $region32: #{net_forward.24} parent=23 // pred_fallthru
        _
    $region24: #{net_forward.24} parent=5 // pred_fallthru
      _
    %p171 = scmp.le.s32.totalorder 1, %s10
    %p172 = scmp.lt.s32.totalorder %s10, 3
    %p173 = pnand %p171, %p172
    %p174 = pneg %p173
    // Predicated region
    $region33: #{net_forward.24} parent=5 // pred_check
      _
    $region34: #{net_forward.24} parent=5 // pred_check_branch
      %176 = sbr.rel (%p173) target = $region36
    $region35: #{net_forward.24} parent=5 // pred_region
      %s177 = ssub.s32 %s10, 1
      %p178 = scmp.lt.s32.totalorder %s15, 1
      %s179 = scalar_select %p178, %s15, 1
      %s180 = smul.addr %s179, 8
      %s181 = smul.addr %s180, 4
      %s182 = scalar_lea.vmem %s0, %s181
      %p183 = pneg %p36
      %p184 = pneg %p33
      %p185 = scmp.lt.s32.totalorder %s15, 1
      %s186 = scalar_select %p185, %s15, 1
      %s187 = smul.addr %s186, 8
      %s188 = smul.addr %s187, 4
      %s189 = scalar_lea.vmem %s1, %s188
      %p190 = pneg %p62
      %p191 = pneg %p59
      %p192 = pneg %p83
      %p193 = pneg %p80
      %p194 = pneg %p104
      %p195 = pneg %p101
      %p196 = pneg %p130
      %p197 = pneg %p127
      %p198 = scmp.lt.s32.totalorder %s15, 1
      %s199 = scalar_select %p198, %s15, 1
      %s200 = smul.addr %s199, 8
      %s201 = smul.addr %s200, 4
      %s202 = scalar_lea.vmem %s4, %s201
      %p203 = scmp.lt.s32.totalorder %s15, 1
      %s204 = scalar_select %p203, %s15, 1
      %s205 = smul.addr %s204, 8
      %s206 = smul.addr %s205, 4
      %s207 = scalar_lea.vmem %s0, %s206
      %p208 = scmp.lt.s32.totalorder %s15, 1
      %s209 = scalar_select %p208, %s15, 1
      %s210 = smul.addr %s209, 8
      %s211 = smul.addr %s210, 4
      %s212 = scalar_lea.vmem %s1, %s211
      %p213 = scmp.lt.s32.totalorder %s15, 1
      %s214 = scalar_select %p213, %s15, 1
      %s215 = smul.addr %s214, 8
      %s216 = smul.addr %s215, 4
      %s217 = scalar_lea.vmem %s4, %s216
      %vm219 = vcmask 523264
      %220 = vst.msk [vmem:[#allocation2] sm:$0xff] %vm219, 0.0
      %vm221 = vcmask 517120
      %222 = vst.msk [vmem:[#allocation2 + $0x8] sm:$0x3] %vm221, 0.0
      %223 = vst.msk [vmem:[#allocation2 + $0x10] sm:$0xff] %vm219, 0.0
      %224 = vst.msk [vmem:[#allocation2 + $0x18] sm:$0x3] %vm221, 0.0
      %225 = vst.msk [vmem:[#allocation2 + $0x20] sm:$0xff] %vm219, 0.0
      %226 = vst.msk [vmem:[#allocation2 + $0x28] sm:$0x3] %vm221, 0.0
      %227 = vst.msk [vmem:[#allocation2 + $0x30] sm:$0xff] %vm219, 0.0
      %228 = vst.msk [vmem:[#allocation2 + $0x38] sm:$0x3] %vm221, 0.0
      %229 = vst.msk [vmem:[#allocation2 + $0x40] sm:$0xff] %vm219, 0.0
      %230 = vst.msk [vmem:[#allocation2 + $0x48] sm:$0x3] %vm221, 0.0
      %231 = vst.msk [vmem:[#allocation2 + $0x50] sm:$0xff] %vm219, 0.0
      %232 = vst.msk [vmem:[#allocation2 + $0x58] sm:$0x3] %vm221, 0.0
      %233 = vst.msk [vmem:[#allocation2 + $0x60] sm:$0xff] %vm219, 0.0
      %234 = vst.msk [vmem:[#allocation2 + $0x68] sm:$0x3] %vm221, 0.0
      %235 = vst.msk [vmem:[#allocation2 + $0x70] sm:$0xff] %vm219, 0.0
      %236 = vst.msk [vmem:[#allocation2 + $0x78] sm:$0x3] %vm221, 0.0
      %237 = vst.msk [vmem:[#allocation2 + $0x80] sm:$0xff] %vm219, 0.0
      %238 = vst.msk [vmem:[#allocation2 + $0x88] sm:$0x3] %vm221, 0.0
      %239 = vst.msk [vmem:[#allocation2 + $0x90] sm:$0xff] %vm219, 0.0
      %240 = vst.msk [vmem:[#allocation2 + $0x98] sm:$0x3] %vm221, 0.0
      %v241 = vld [vmem:[%s207] sm:$0xf]
      %v242 = vld [vmem:[%s207 + $0x4] sm:$0xf]
      %v243 = vld [vmem:[%s207 + $0x8] sm:$0xf]
      %v244 = vld [vmem:[%s207 + $0xc] sm:$0xf]
      %v245 = vld [vmem:[%s207 + $0x10] sm:$0xf]
      %v246 = vld [vmem:[%s207 + $0x14] sm:$0xf]
      %v247 = vld [vmem:[%s207 + $0x18] sm:$0xf]
      %v248 = vld [vmem:[%s207 + $0x1c] sm:$0xf]
      %v249 = vunpack.c.l.bf16 %v241
      %v250 = vunpack.c.l.bf16 %v242
      %v251 = vunpack.c.l.bf16 %v243
      %v252 = vunpack.c.l.bf16 %v244
      %v253 = vunpack.c.l.bf16 %v245
      %v254 = vunpack.c.l.bf16 %v246
      %v255 = vunpack.c.l.bf16 %v247
      %v256 = vunpack.c.l.bf16 %v248
      %s257 = scalar_lea.vmem [#allocation2], 16
      %258 = vst.msk [vmem:[%s257 + $0x1] sm:$0xff] %vm219, %v249
      %259 = vst.msk [vmem:[%s257 + $0x11] sm:$0xff] %vm219, %v250
      %260 = vst.msk [vmem:[%s257 + $0x21] sm:$0xff] %vm219, %v251
      %261 = vst.msk [vmem:[%s257 + $0x31] sm:$0xff] %vm219, %v252
      %262 = vst.msk [vmem:[%s257 + $0x41] sm:$0xff] %vm219, %v253
      %263 = vst.msk [vmem:[%s257 + $0x51] sm:$0xff] %vm219, %v254
      %264 = vst.msk [vmem:[%s257 + $0x61] sm:$0xff] %vm219, %v255
      %265 = vst.msk [vmem:[%s257 + $0x71] sm:$0xff] %vm219, %v256
      %v266 = vld [vmem:[#allocation2] sm:$0xff]
      %v267 = vld [vmem:[#allocation2 + $0x10] sm:$0xff]
      %v268 = vld [vmem:[#allocation2 + $0x20] sm:$0xff]
      %v269 = vld [vmem:[#allocation2 + $0x30] sm:$0xff]
      %v270 = vld [vmem:[#allocation2 + $0x40] sm:$0xff]
      %v271 = vld [vmem:[#allocation2 + $0x50] sm:$0xff]
      %v272 = vld [vmem:[#allocation2 + $0x60] sm:$0xff]
      %v273 = vld [vmem:[#allocation2 + $0x70] sm:$0xff]
      %v274 = vpack.c.bf16 %v266, %v266
      %v275 = vpack.c.bf16 %v267, %v267
      %v276 = vpack.c.bf16 %v268, %v268
      %v277 = vpack.c.bf16 %v269, %v269
      %v278 = vpack.c.bf16 %v270, %v270
      %v279 = vpack.c.bf16 %v271, %v271
      %v280 = vpack.c.bf16 %v272, %v272
      %v281 = vpack.c.bf16 %v273, %v273
      %v282 = vld [vmem:[#allocation2 + $0x1] sm:$0xff]
      %v283 = vld [vmem:[#allocation2 + $0x11] sm:$0xff]
      %v284 = vld [vmem:[#allocation2 + $0x21] sm:$0xff]
      %v285 = vld [vmem:[#allocation2 + $0x31] sm:$0xff]
      %v286 = vld [vmem:[#allocation2 + $0x41] sm:$0xff]
      %v287 = vld [vmem:[#allocation2 + $0x51] sm:$0xff]
      %v288 = vld [vmem:[#allocation2 + $0x61] sm:$0xff]
      %v289 = vld [vmem:[#allocation2 + $0x71] sm:$0xff]
      %v290 = vpack.c.bf16 %v282, %v282
      %v291 = vpack.c.bf16 %v283, %v283
      %v292 = vpack.c.bf16 %v284, %v284
      %v293 = vpack.c.bf16 %v285, %v285
      %v294 = vpack.c.bf16 %v286, %v286
      %v295 = vpack.c.bf16 %v287, %v287
      %v296 = vpack.c.bf16 %v288, %v288
      %v297 = vpack.c.bf16 %v289, %v289
      %v298 = vld [vmem:[#allocation2 + $0x2] sm:$0xff]
      %v299 = vld [vmem:[#allocation2 + $0x12] sm:$0xff]
      %v300 = vld [vmem:[#allocation2 + $0x22] sm:$0xff]
      %v301 = vld [vmem:[#allocation2 + $0x32] sm:$0xff]
      %v302 = vld [vmem:[#allocation2 + $0x42] sm:$0xff]
      %v303 = vld [vmem:[#allocation2 + $0x52] sm:$0xff]
      %v304 = vld [vmem:[#allocation2 + $0x62] sm:$0xff]
      %v305 = vld [vmem:[#allocation2 + $0x72] sm:$0xff]
      %v306 = vpack.c.bf16 %v298, %v298
      %v307 = vpack.c.bf16 %v299, %v299
      %v308 = vpack.c.bf16 %v300, %v300
      %v309 = vpack.c.bf16 %v301, %v301
      %v310 = vpack.c.bf16 %v302, %v302
      %v311 = vpack.c.bf16 %v303, %v303
      %v312 = vpack.c.bf16 %v304, %v304
      %v313 = vpack.c.bf16 %v305, %v305
      %v314 = vld [vmem:[%s257] sm:$0xff]
      %v315 = vld [vmem:[%s257 + $0x10] sm:$0xff]
      %v316 = vld [vmem:[%s257 + $0x20] sm:$0xff]
      %v317 = vld [vmem:[%s257 + $0x30] sm:$0xff]
      %v318 = vld [vmem:[%s257 + $0x40] sm:$0xff]
      %v319 = vld [vmem:[%s257 + $0x50] sm:$0xff]
      %v320 = vld [vmem:[%s257 + $0x60] sm:$0xff]
      %v321 = vld [vmem:[%s257 + $0x70] sm:$0xff]
      %v322 = vpack.c.bf16 %v314, %v314
      %v323 = vpack.c.bf16 %v315, %v315
      %v324 = vpack.c.bf16 %v316, %v316
      %v325 = vpack.c.bf16 %v317, %v317
      %v326 = vpack.c.bf16 %v318, %v318
      %v327 = vpack.c.bf16 %v319, %v319
      %v328 = vpack.c.bf16 %v320, %v320
      %v329 = vpack.c.bf16 %v321, %v321
      %v330 = vld [vmem:[%s257 + $0x1] sm:$0xff]
      %v331 = vld [vmem:[%s257 + $0x11] sm:$0xff]
      %v332 = vld [vmem:[%s257 + $0x21] sm:$0xff]
      %v333 = vld [vmem:[%s257 + $0x31] sm:$0xff]
      %v334 = vld [vmem:[%s257 + $0x41] sm:$0xff]
      %v335 = vld [vmem:[%s257 + $0x51] sm:$0xff]
      %v336 = vld [vmem:[%s257 + $0x61] sm:$0xff]
      %v337 = vld [vmem:[%s257 + $0x71] sm:$0xff]
      %v338 = vpack.c.bf16 %v330, %v330
      %v339 = vpack.c.bf16 %v331, %v331
      %v340 = vpack.c.bf16 %v332, %v332
      %v341 = vpack.c.bf16 %v333, %v333
      %v342 = vpack.c.bf16 %v334, %v334
      %v343 = vpack.c.bf16 %v335, %v335
      %v344 = vpack.c.bf16 %v336, %v336
      %v345 = vpack.c.bf16 %v337, %v337
      %v346 = vld [vmem:[%s257 + $0x2] sm:$0xff]
      %v347 = vld [vmem:[%s257 + $0x12] sm:$0xff]
      %v348 = vld [vmem:[%s257 + $0x22] sm:$0xff]
      %v349 = vld [vmem:[%s257 + $0x32] sm:$0xff]
      %v350 = vld [vmem:[%s257 + $0x42] sm:$0xff]
      %v351 = vld [vmem:[%s257 + $0x52] sm:$0xff]
      %v352 = vld [vmem:[%s257 + $0x62] sm:$0xff]
      %v353 = vld [vmem:[%s257 + $0x72] sm:$0xff]
      %v354 = vpack.c.bf16 %v346, %v346
      %v355 = vpack.c.bf16 %v347, %v347
      %v356 = vpack.c.bf16 %v348, %v348
      %v357 = vpack.c.bf16 %v349, %v349
      %v358 = vpack.c.bf16 %v350, %v350
      %v359 = vpack.c.bf16 %v351, %v351
      %v360 = vpack.c.bf16 %v352, %v352
      %v361 = vpack.c.bf16 %v353, %v353
      %s362 = scalar_lea.vmem [#allocation2], 32
      %v363 = vld [vmem:[%s362] sm:$0xff]
      %v364 = vld [vmem:[%s362 + $0x10] sm:$0xff]
      %v365 = vld [vmem:[%s362 + $0x20] sm:$0xff]
      %v366 = vld [vmem:[%s362 + $0x30] sm:$0xff]
      %v367 = vld [vmem:[%s362 + $0x40] sm:$0xff]
      %v368 = vld [vmem:[%s362 + $0x50] sm:$0xff]
      %v369 = vld [vmem:[%s362 + $0x60] sm:$0xff]
      %v370 = vld [vmem:[%s362 + $0x70] sm:$0xff]
      %v371 = vpack.c.bf16 %v363, %v363
      %v372 = vpack.c.bf16 %v364, %v364
      %v373 = vpack.c.bf16 %v365, %v365
      %v374 = vpack.c.bf16 %v366, %v366
      %v375 = vpack.c.bf16 %v367, %v367
      %v376 = vpack.c.bf16 %v368, %v368
      %v377 = vpack.c.bf16 %v369, %v369
      %v378 = vpack.c.bf16 %v370, %v370
      %v379 = vld [vmem:[%s362 + $0x1] sm:$0xff]
      %v380 = vld [vmem:[%s362 + $0x11] sm:$0xff]
      %v381 = vld [vmem:[%s362 + $0x21] sm:$0xff]
      %v382 = vld [vmem:[%s362 + $0x31] sm:$0xff]
      %v383 = vld [vmem:[%s362 + $0x41] sm:$0xff]
      %v384 = vld [vmem:[%s362 + $0x51] sm:$0xff]
      %v385 = vld [vmem:[%s362 + $0x61] sm:$0xff]
      %v386 = vld [vmem:[%s362 + $0x71] sm:$0xff]
      %v387 = vpack.c.bf16 %v379, %v379
      %v388 = vpack.c.bf16 %v380, %v380
      %v389 = vpack.c.bf16 %v381, %v381
      %v390 = vpack.c.bf16 %v382, %v382
      %v391 = vpack.c.bf16 %v383, %v383
      %v392 = vpack.c.bf16 %v384, %v384
      %v393 = vpack.c.bf16 %v385, %v385
      %v394 = vpack.c.bf16 %v386, %v386
      %v395 = vld [vmem:[%s362 + $0x2] sm:$0xff]
      %v396 = vld [vmem:[%s362 + $0x12] sm:$0xff]
      %v397 = vld [vmem:[%s362 + $0x22] sm:$0xff]
      %v398 = vld [vmem:[%s362 + $0x32] sm:$0xff]
      %v399 = vld [vmem:[%s362 + $0x42] sm:$0xff]
      %v400 = vld [vmem:[%s362 + $0x52] sm:$0xff]
      %v401 = vld [vmem:[%s362 + $0x62] sm:$0xff]
      %v402 = vld [vmem:[%s362 + $0x72] sm:$0xff]
      %v403 = vpack.c.bf16 %v395, %v395
      %v404 = vpack.c.bf16 %v396, %v396
      %v405 = vpack.c.bf16 %v397, %v397
      %v406 = vpack.c.bf16 %v398, %v398
      %v407 = vpack.c.bf16 %v399, %v399
      %v408 = vpack.c.bf16 %v400, %v400
      %v409 = vpack.c.bf16 %v401, %v401
      %v410 = vpack.c.bf16 %v402, %v402
      %v419 = vunpack.c.l.b16 %v274
      %v420 = vunpack.c.l.b16 %v275
      %v421 = vunpack.c.l.b16 %v276
      %v422 = vunpack.c.l.b16 %v277
      %v423 = vunpack.c.l.b16 %v278
      %v424 = vunpack.c.l.b16 %v279
      %v425 = vunpack.c.l.b16 %v280
      %v426 = vunpack.c.l.b16 %v281
      %v427 = vpack.c.b16 %v420, %v419
      %v428 = vpack.c.b16 %v422, %v421
      %v429 = vpack.c.b16 %v424, %v423
      %v430 = vpack.c.b16 %v426, %v425
      %v439 = vunpack.c.l.b16 %v290
      %v440 = vunpack.c.l.b16 %v291
      %v441 = vunpack.c.l.b16 %v292
      %v442 = vunpack.c.l.b16 %v293
      %v443 = vunpack.c.l.b16 %v294
      %v444 = vunpack.c.l.b16 %v295
      %v445 = vunpack.c.l.b16 %v296
      %v446 = vunpack.c.l.b16 %v297
      %v447 = vpack.c.b16 %v440, %v439
      %v448 = vpack.c.b16 %v442, %v441
      %v449 = vpack.c.b16 %v444, %v443
      %v450 = vpack.c.b16 %v446, %v445
      %451 = vrot.lane.b32.xlu0 %v447, 64
      %v452 = vpop.permute.xlu0 %451
      %453 = vrot.lane.b32.xlu0 %v448, 64
      %v454 = vpop.permute.xlu0 %453
      %455 = vrot.lane.b32.xlu0 %v449, 64
      %v456 = vpop.permute.xlu0 %455
      %457 = vrot.lane.b32.xlu0 %v450, 64
      %v458 = vpop.permute.xlu0 %457
      %v467 = vunpack.c.l.b16 %v306
      %v468 = vunpack.c.l.b16 %v307
      %v469 = vunpack.c.l.b16 %v308
      %v470 = vunpack.c.l.b16 %v309
      %v471 = vunpack.c.l.b16 %v310
      %v472 = vunpack.c.l.b16 %v311
      %v473 = vunpack.c.l.b16 %v312
      %v474 = vunpack.c.l.b16 %v313
      %v475 = vpack.c.b16 %v468, %v467
      %v476 = vpack.c.b16 %v470, %v469
      %v477 = vpack.c.b16 %v472, %v471
      %v478 = vpack.c.b16 %v474, %v473
      %v487 = vunpack.c.l.b16 %v322
      %v488 = vunpack.c.l.b16 %v323
      %v489 = vunpack.c.l.b16 %v324
      %v490 = vunpack.c.l.b16 %v325
      %v491 = vunpack.c.l.b16 %v326
      %v492 = vunpack.c.l.b16 %v327
      %v493 = vunpack.c.l.b16 %v328
      %v494 = vunpack.c.l.b16 %v329
      %v495 = vpack.c.b16 %v488, %v487
      %v496 = vpack.c.b16 %v490, %v489
      %v497 = vpack.c.b16 %v492, %v491
      %v498 = vpack.c.b16 %v494, %v493
      %499 = vrot.lane.b32.xlu0 %v495, 64
      %v500 = vpop.permute.xlu0 %499
      %501 = vrot.lane.b32.xlu0 %v496, 64
      %v502 = vpop.permute.xlu0 %501
      %503 = vrot.lane.b32.xlu0 %v497, 64
      %v504 = vpop.permute.xlu0 %503
      %505 = vrot.lane.b32.xlu0 %v498, 64
      %v506 = vpop.permute.xlu0 %505
      %v515 = vunpack.c.l.b16 %v338
      %v516 = vunpack.c.l.b16 %v339
      %v517 = vunpack.c.l.b16 %v340
      %v518 = vunpack.c.l.b16 %v341
      %v519 = vunpack.c.l.b16 %v342
      %v520 = vunpack.c.l.b16 %v343
      %v521 = vunpack.c.l.b16 %v344
      %v522 = vunpack.c.l.b16 %v345
      %v523 = vpack.c.b16 %v516, %v515
      %v524 = vpack.c.b16 %v518, %v517
      %v525 = vpack.c.b16 %v520, %v519
      %v526 = vpack.c.b16 %v522, %v521
      %v535 = vunpack.c.l.b16 %v354
      %v536 = vunpack.c.l.b16 %v355
      %v537 = vunpack.c.l.b16 %v356
      %v538 = vunpack.c.l.b16 %v357
      %v539 = vunpack.c.l.b16 %v358
      %v540 = vunpack.c.l.b16 %v359
      %v541 = vunpack.c.l.b16 %v360
      %v542 = vunpack.c.l.b16 %v361
      %v543 = vpack.c.b16 %v536, %v535
      %v544 = vpack.c.b16 %v538, %v537
      %v545 = vpack.c.b16 %v540, %v539
      %v546 = vpack.c.b16 %v542, %v541
      %547 = vrot.lane.b32.xlu0 %v543, 64
      %v548 = vpop.permute.xlu0 %547
      %549 = vrot.lane.b32.xlu0 %v544, 64
      %v550 = vpop.permute.xlu0 %549
      %551 = vrot.lane.b32.xlu0 %v545, 64
      %v552 = vpop.permute.xlu0 %551
      %553 = vrot.lane.b32.xlu0 %v546, 64
      %v554 = vpop.permute.xlu0 %553
      %v563 = vunpack.c.l.b16 %v371
      %v564 = vunpack.c.l.b16 %v372
      %v565 = vunpack.c.l.b16 %v373
      %v566 = vunpack.c.l.b16 %v374
      %v567 = vunpack.c.l.b16 %v375
      %v568 = vunpack.c.l.b16 %v376
      %v569 = vunpack.c.l.b16 %v377
      %v570 = vunpack.c.l.b16 %v378
      %v571 = vpack.c.b16 %v564, %v563
      %v572 = vpack.c.b16 %v566, %v565
      %v573 = vpack.c.b16 %v568, %v567
      %v574 = vpack.c.b16 %v570, %v569
      %v583 = vunpack.c.l.b16 %v387
      %v584 = vunpack.c.l.b16 %v388
      %v585 = vunpack.c.l.b16 %v389
      %v586 = vunpack.c.l.b16 %v390
      %v587 = vunpack.c.l.b16 %v391
      %v588 = vunpack.c.l.b16 %v392
      %v589 = vunpack.c.l.b16 %v393
      %v590 = vunpack.c.l.b16 %v394
      %v591 = vpack.c.b16 %v584, %v583
      %v592 = vpack.c.b16 %v586, %v585
      %v593 = vpack.c.b16 %v588, %v587
      %v594 = vpack.c.b16 %v590, %v589
      %595 = vrot.lane.b32.xlu0 %v591, 64
      %v596 = vpop.permute.xlu0 %595
      %597 = vrot.lane.b32.xlu0 %v592, 64
      %v598 = vpop.permute.xlu0 %597
      %599 = vrot.lane.b32.xlu0 %v593, 64
      %v600 = vpop.permute.xlu0 %599
      %601 = vrot.lane.b32.xlu0 %v594, 64
      %v602 = vpop.permute.xlu0 %601
      %v611 = vunpack.c.l.b16 %v403
      %v612 = vunpack.c.l.b16 %v404
      %v613 = vunpack.c.l.b16 %v405
      %v614 = vunpack.c.l.b16 %v406
      %v615 = vunpack.c.l.b16 %v407
      %v616 = vunpack.c.l.b16 %v408
      %v617 = vunpack.c.l.b16 %v409
      %v618 = vunpack.c.l.b16 %v410
      %v619 = vpack.c.b16 %v612, %v611
      %v620 = vpack.c.b16 %v614, %v613
      %v621 = vpack.c.b16 %v616, %v615
      %v622 = vpack.c.b16 %v618, %v617
      %v625 = vsel %vm219, %v427, %v452
      %v629 = vsel %vm219, %v428, %v454
      %v633 = vsel %vm219, %v429, %v456
      %v637 = vsel %vm219, %v430, %v458
      %v641 = vsel %vm219, %v475, %v500
      %v645 = vsel %vm219, %v476, %v502
      %v649 = vsel %vm219, %v477, %v504
      %v653 = vsel %vm219, %v478, %v506
      %v657 = vsel %vm219, %v523, %v548
      %v661 = vsel %vm219, %v524, %v550
      %v665 = vsel %vm219, %v525, %v552
      %v669 = vsel %vm219, %v526, %v554
      %v673 = vsel %vm219, %v571, %v596
      %v677 = vsel %vm219, %v572, %v598
      %v681 = vsel %vm219, %v573, %v600
      %v685 = vsel %vm219, %v574, %v602
      %v687 = vld [vmem:[%s2] sm:$0xf]
      %v688 = vld [vmem:[%s2 + $0x4] sm:$0xf]
      %v689 = vld [vmem:[%s2 + $0x8] sm:$0xf]
      %v690 = vld [vmem:[%s2 + $0xc] sm:$0xf]
      %v691 = vld [vmem:[%s2 + $0x10] sm:$0xf]
      %v692 = vld [vmem:[%s2 + $0x14] sm:$0xf]
      %v693 = vld [vmem:[%s2 + $0x18] sm:$0xf]
      %v694 = vld [vmem:[%s2 + $0x1c] sm:$0xf]
      %v695 = vld [vmem:[%s2 + $0x20] sm:$0xf]
      %v696 = vld [vmem:[%s2 + $0x24] sm:$0xf]
      %v697 = vld [vmem:[%s2 + $0x28] sm:$0xf]
      %v698 = vld [vmem:[%s2 + $0x2c] sm:$0xf]
      %v699 = vld [vmem:[%s2 + $0x30] sm:$0xf]
      %v700 = vld [vmem:[%s2 + $0x34] sm:$0xf]
      %v701 = vld [vmem:[%s2 + $0x38] sm:$0xf]
      %v702 = vld [vmem:[%s2 + $0x3c] sm:$0xf]
      %v703 = vld [vmem:[%s2 + $0x40] sm:$0xf]
      %v704 = vld [vmem:[%s2 + $0x44] sm:$0xf]
      %v705 = vld [vmem:[%s2 + $0x48] sm:$0xf]
      %v706 = vld [vmem:[%s2 + $0x4c] sm:$0xf]
      %v707 = vld [vmem:[%s2 + $0x50] sm:$0xf]
      %v708 = vld [vmem:[%s2 + $0x54] sm:$0xf]
      %v709 = vld [vmem:[%s2 + $0x58] sm:$0xf]
      %v710 = vld [vmem:[%s2 + $0x5c] sm:$0xf]
      %v711 = vld [vmem:[%s2 + $0x60] sm:$0xf]
      %v712 = vld [vmem:[%s2 + $0x64] sm:$0xf]
      %v713 = vld [vmem:[%s2 + $0x68] sm:$0xf]
      %v714 = vld [vmem:[%s2 + $0x6c] sm:$0xf]
      %v715 = vld [vmem:[%s2 + $0x70] sm:$0xf]
      %v716 = vld [vmem:[%s2 + $0x74] sm:$0xf]
      %v717 = vld [vmem:[%s2 + $0x78] sm:$0xf]
      %v718 = vld [vmem:[%s2 + $0x7c] sm:$0xf]
      %v719 = vld [vmem:[%s2 + $0x80] sm:$0xf]
      %v720 = vld [vmem:[%s2 + $0x84] sm:$0xf]
      %v721 = vld [vmem:[%s2 + $0x88] sm:$0xf]
      %v722 = vld [vmem:[%s2 + $0x8c] sm:$0xf]
      %v723 = vld [vmem:[%s2 + $0x90] sm:$0xf]
      %v724 = vld [vmem:[%s2 + $0x94] sm:$0xf]
      %v725 = vld [vmem:[%s2 + $0x98] sm:$0xf]
      %v726 = vld [vmem:[%s2 + $0x9c] sm:$0xf]
      %v727 = vld [vmem:[%s2 + $0xa0] sm:$0xf]
      %v728 = vld [vmem:[%s2 + $0xa4] sm:$0xf]
      %v729 = vld [vmem:[%s2 + $0xa8] sm:$0xf]
      %v730 = vld [vmem:[%s2 + $0xac] sm:$0xf]
      %v731 = vld [vmem:[%s2 + $0xb0] sm:$0xf]
      %v732 = vld [vmem:[%s2 + $0xb4] sm:$0xf]
      %v733 = vld [vmem:[%s2 + $0xb8] sm:$0xf]
      %v734 = vld [vmem:[%s2 + $0xbc] sm:$0xf]
      %v735 = vld [vmem:[%s2 + $0xc0] sm:$0xf]
      %v736 = vld [vmem:[%s2 + $0xc4] sm:$0xf]
      %v737 = vld [vmem:[%s2 + $0xc8] sm:$0xf]
      %v738 = vld [vmem:[%s2 + $0xcc] sm:$0xf]
      %v739 = vld [vmem:[%s2 + $0xd0] sm:$0xf]
      %v740 = vld [vmem:[%s2 + $0xd4] sm:$0xf]
      %v741 = vld [vmem:[%s2 + $0xd8] sm:$0xf]
      %v742 = vld [vmem:[%s2 + $0xdc] sm:$0xf]
      %v743 = vld [vmem:[%s2 + $0xe0] sm:$0xf]
      %v744 = vld [vmem:[%s2 + $0xe4] sm:$0xf]
      %v745 = vld [vmem:[%s2 + $0xe8] sm:$0xf]
      %v746 = vld [vmem:[%s2 + $0xec] sm:$0xf]
      %v747 = vld [vmem:[%s2 + $0xf0] sm:$0xf]
      %v748 = vld [vmem:[%s2 + $0xf4] sm:$0xf]
      %v749 = vld [vmem:[%s2 + $0xf8] sm:$0xf]
      %v750 = vld [vmem:[%s2 + $0xfc] sm:$0xf]
      %v751 = vld [vmem:[%s2 + $0x100] sm:$0xf]
      %v752 = vld [vmem:[%s2 + $0x104] sm:$0xf]
      %v753 = vld [vmem:[%s2 + $0x108] sm:$0xf]
      %v754 = vld [vmem:[%s2 + $0x10c] sm:$0xf]
      %v755 = vld [vmem:[%s2 + $0x110] sm:$0xf]
      %v756 = vld [vmem:[%s2 + $0x114] sm:$0xf]
      %v757 = vld [vmem:[%s2 + $0x118] sm:$0xf]
      %v758 = vld [vmem:[%s2 + $0x11c] sm:$0xf]
      %v759 = vld [vmem:[%s3] sm:$0x1]
      %v760 = vperm.slane %v759, 0
      %v833 = vunpack.c.l.b16 %v687
      %v834 = vunpack.c.l.b16 %v688
      %v835 = vunpack.c.l.b16 %v689
      %v836 = vunpack.c.l.b16 %v690
      %v837 = vunpack.c.l.b16 %v691
      %v838 = vunpack.c.l.b16 %v692
      %v839 = vunpack.c.l.b16 %v693
      %v840 = vunpack.c.l.b16 %v694
      %v841 = vunpack.c.l.b16 %v695
      %v842 = vunpack.c.l.b16 %v696
      %v843 = vunpack.c.l.b16 %v697
      %v844 = vunpack.c.l.b16 %v698
      %v845 = vunpack.c.l.b16 %v699
      %v846 = vunpack.c.l.b16 %v700
      %v847 = vunpack.c.l.b16 %v701
      %v848 = vunpack.c.l.b16 %v702
      %v849 = vunpack.c.l.b16 %v703
      %v850 = vunpack.c.l.b16 %v704
      %v851 = vunpack.c.l.b16 %v705
      %v852 = vunpack.c.l.b16 %v706
      %v853 = vunpack.c.l.b16 %v707
      %v854 = vunpack.c.l.b16 %v708
      %v855 = vunpack.c.l.b16 %v709
      %v856 = vunpack.c.l.b16 %v710
      %v857 = vunpack.c.l.b16 %v711
      %v858 = vunpack.c.l.b16 %v712
      %v859 = vunpack.c.l.b16 %v713
      %v860 = vunpack.c.l.b16 %v714
      %v861 = vunpack.c.l.b16 %v715
      %v862 = vunpack.c.l.b16 %v716
      %v863 = vunpack.c.l.b16 %v717
      %v864 = vunpack.c.l.b16 %v718
      %v865 = vunpack.c.l.b16 %v719
      %v866 = vunpack.c.l.b16 %v720
      %v867 = vunpack.c.l.b16 %v721
      %v868 = vunpack.c.l.b16 %v722
      %v869 = vunpack.c.l.b16 %v723
      %v870 = vunpack.c.l.b16 %v724
      %v871 = vunpack.c.l.b16 %v725
      %v872 = vunpack.c.l.b16 %v726
      %v873 = vunpack.c.l.b16 %v727
      %v874 = vunpack.c.l.b16 %v728
      %v875 = vunpack.c.l.b16 %v729
      %v876 = vunpack.c.l.b16 %v730
      %v877 = vunpack.c.l.b16 %v731
      %v878 = vunpack.c.l.b16 %v732
      %v879 = vunpack.c.l.b16 %v733
      %v880 = vunpack.c.l.b16 %v734
      %v881 = vunpack.c.l.b16 %v735
      %v882 = vunpack.c.l.b16 %v736
      %v883 = vunpack.c.l.b16 %v737
      %v884 = vunpack.c.l.b16 %v738
      %v885 = vunpack.c.l.b16 %v739
      %v886 = vunpack.c.l.b16 %v740
      %v887 = vunpack.c.l.b16 %v741
      %v888 = vunpack.c.l.b16 %v742
      %v889 = vunpack.c.l.b16 %v743
      %v890 = vunpack.c.l.b16 %v744
      %v891 = vunpack.c.l.b16 %v745
      %v892 = vunpack.c.l.b16 %v746
      %v893 = vunpack.c.l.b16 %v747
      %v894 = vunpack.c.l.b16 %v748
      %v895 = vunpack.c.l.b16 %v749
      %v896 = vunpack.c.l.b16 %v750
      %v897 = vunpack.c.l.b16 %v751
      %v898 = vunpack.c.l.b16 %v752
      %v899 = vunpack.c.l.b16 %v753
      %v900 = vunpack.c.l.b16 %v754
      %v901 = vunpack.c.l.b16 %v755
      %v902 = vunpack.c.l.b16 %v756
      %v903 = vunpack.c.l.b16 %v757
      %v904 = vunpack.c.l.b16 %v758
      %v905 = vpack.c.b16 %v834, %v833
      %v906 = vpack.c.b16 %v836, %v835
      %v907 = vpack.c.b16 %v838, %v837
      %v908 = vpack.c.b16 %v840, %v839
      %v909 = vpack.c.b16 %v842, %v841
      %v910 = vpack.c.b16 %v844, %v843
      %v911 = vpack.c.b16 %v846, %v845
      %v912 = vpack.c.b16 %v848, %v847
      %v913 = vpack.c.b16 %v850, %v849
      %v914 = vpack.c.b16 %v852, %v851
      %v915 = vpack.c.b16 %v854, %v853
      %v916 = vpack.c.b16 %v856, %v855
      %v917 = vpack.c.b16 %v858, %v857
      %v918 = vpack.c.b16 %v860, %v859
      %v919 = vpack.c.b16 %v862, %v861
      %v920 = vpack.c.b16 %v864, %v863
      %v921 = vpack.c.b16 %v866, %v865
      %v922 = vpack.c.b16 %v868, %v867
      %v923 = vpack.c.b16 %v870, %v869
      %v924 = vpack.c.b16 %v872, %v871
      %v925 = vpack.c.b16 %v874, %v873
      %v926 = vpack.c.b16 %v876, %v875
      %v927 = vpack.c.b16 %v878, %v877
      %v928 = vpack.c.b16 %v880, %v879
      %v929 = vpack.c.b16 %v882, %v881
      %v930 = vpack.c.b16 %v884, %v883
      %v931 = vpack.c.b16 %v886, %v885
      %v932 = vpack.c.b16 %v888, %v887
      %v933 = vpack.c.b16 %v890, %v889
      %v934 = vpack.c.b16 %v892, %v891
      %v935 = vpack.c.b16 %v894, %v893
      %v936 = vpack.c.b16 %v896, %v895
      %v937 = vpack.c.b16 %v898, %v897
      %v938 = vpack.c.b16 %v900, %v899
      %v939 = vpack.c.b16 %v902, %v901
      %v940 = vpack.c.b16 %v904, %v903
      %v978 = vsel %vm219, %v619, 0
      %v981 = vsel %vm219, %v620, 0
      %v984 = vsel %vm219, %v621, 0
      %v987 = vsel %vm219, %v622, 0
      %989 = vmatpush.bf16.msra.mxu0 %v912
      %990 = vmatpush.bf16.msra.mxu0 %v911
      %991 = vmatpush.bf16.msra.mxu0 %v910
      %992 = vmatpush.bf16.msra.mxu0 %v909
      %993 = vmatpush.bf16.msra.mxu0 %v908
      %994 = vmatpush.bf16.msra.mxu0 %v907
      %995 = vmatpush.bf16.msra.mxu0 %v906
      %996 = vmatpush.bf16.msra.mxu0 %v905
      %997 = vmatmul.bf16.gmra.mxu0 %v625
      %v998 = vpop.f32.mrf.mxu0
      %v999 = vadd.f32 %v760, %v998
      %v1000 = vpop.f32.mrf.mxu0
      %v1001 = vadd.f32 %v760, %v1000
      %1002 = vmatmul.bf16.gmra.mxu0 %v629
      %v1003 = vpop.f32.mrf.mxu0
      %v1004 = vadd.f32 %v760, %v1003
      %v1005 = vpop.f32.mrf.mxu0
      %v1006 = vadd.f32 %v760, %v1005
      %1007 = vmatmul.bf16.gmra.mxu0 %v633
      %v1008 = vpop.f32.mrf.mxu0
      %v1009 = vadd.f32 %v760, %v1008
      %v1010 = vpop.f32.mrf.mxu0
      %v1011 = vadd.f32 %v760, %v1010
      %1012 = vmatmul.bf16.gmra.mxu0 %v637
      %v1013 = vpop.f32.mrf.mxu0
      %v1014 = vadd.f32 %v760, %v1013
      %v1015 = vpop.f32.mrf.mxu0
      %v1016 = vadd.f32 %v760, %v1015
      %1017 = vdwg.mxu0
      %1018 = vmatpush.bf16.msra.mxu0 %v920
      %1019 = vmatpush.bf16.msra.mxu0 %v919
      %1020 = vmatpush.bf16.msra.mxu0 %v918
      %1021 = vmatpush.bf16.msra.mxu0 %v917
      %1022 = vmatpush.bf16.msra.mxu0 %v916
      %1023 = vmatpush.bf16.msra.mxu0 %v915
      %1024 = vmatpush.bf16.msra.mxu0 %v914
      %1025 = vmatpush.bf16.msra.mxu0 %v913
      %1026 = vmatmul.bf16.gmra.mxu0 %v641
      %v1027 = vpop.f32.mrf.mxu0
      %v1028 = vadd.f32 %v999, %v1027
      %v1029 = vpop.f32.mrf.mxu0
      %v1030 = vadd.f32 %v1001, %v1029
      %1031 = vmatmul.bf16.gmra.mxu0 %v645
      %v1032 = vpop.f32.mrf.mxu0
      %v1033 = vadd.f32 %v1004, %v1032
      %v1034 = vpop.f32.mrf.mxu0
      %v1035 = vadd.f32 %v1006, %v1034
      %1036 = vmatmul.bf16.gmra.mxu0 %v649
      %v1037 = vpop.f32.mrf.mxu0
      %v1038 = vadd.f32 %v1009, %v1037
      %v1039 = vpop.f32.mrf.mxu0
      %v1040 = vadd.f32 %v1011, %v1039
      %1041 = vmatmul.bf16.gmra.mxu0 %v653
      %v1042 = vpop.f32.mrf.mxu0
      %v1043 = vadd.f32 %v1014, %v1042
      %v1044 = vpop.f32.mrf.mxu0
      %v1045 = vadd.f32 %v1016, %v1044
      %1046 = vdwg.mxu0
      %1047 = vmatpush.bf16.msra.mxu0 %v928
      %1048 = vmatpush.bf16.msra.mxu0 %v927
      %1049 = vmatpush.bf16.msra.mxu0 %v926
      %1050 = vmatpush.bf16.msra.mxu0 %v925
      %1051 = vmatpush.bf16.msra.mxu0 %v924
      %1052 = vmatpush.bf16.msra.mxu0 %v923
      %1053 = vmatpush.bf16.msra.mxu0 %v922
      %1054 = vmatpush.bf16.msra.mxu0 %v921
      %1055 = vmatmul.bf16.gmra.mxu0 %v657
      %v1056 = vpop.f32.mrf.mxu0
      %v1057 = vadd.f32 %v1028, %v1056
      %v1058 = vpop.f32.mrf.mxu0
      %v1059 = vadd.f32 %v1030, %v1058
      %1060 = vmatmul.bf16.gmra.mxu0 %v661
      %v1061 = vpop.f32.mrf.mxu0
      %v1062 = vadd.f32 %v1033, %v1061
      %v1063 = vpop.f32.mrf.mxu0
      %v1064 = vadd.f32 %v1035, %v1063
      %1065 = vmatmul.bf16.gmra.mxu0 %v665
      %v1066 = vpop.f32.mrf.mxu0
      %v1067 = vadd.f32 %v1038, %v1066
      %v1068 = vpop.f32.mrf.mxu0
      %v1069 = vadd.f32 %v1040, %v1068
      %1070 = vmatmul.bf16.gmra.mxu0 %v669
      %v1071 = vpop.f32.mrf.mxu0
      %v1072 = vadd.f32 %v1043, %v1071
      %v1073 = vpop.f32.mrf.mxu0
      %v1074 = vadd.f32 %v1045, %v1073
      %1075 = vdwg.mxu0
      %1076 = vmatpush.bf16.msra.mxu0 %v936
      %1077 = vmatpush.bf16.msra.mxu0 %v935
      %1078 = vmatpush.bf16.msra.mxu0 %v934
      %1079 = vmatpush.bf16.msra.mxu0 %v933
      %1080 = vmatpush.bf16.msra.mxu0 %v932
      %1081 = vmatpush.bf16.msra.mxu0 %v931
      %1082 = vmatpush.bf16.msra.mxu0 %v930
      %1083 = vmatpush.bf16.msra.mxu0 %v929
      %1084 = vmatmul.bf16.gmra.mxu0 %v673
      %v1085 = vpop.f32.mrf.mxu0
      %v1086 = vadd.f32 %v1057, %v1085
      %v1087 = vpop.f32.mrf.mxu0
      %v1088 = vadd.f32 %v1059, %v1087
      %1089 = vmatmul.bf16.gmra.mxu0 %v677
      %v1090 = vpop.f32.mrf.mxu0
      %v1091 = vadd.f32 %v1062, %v1090
      %v1092 = vpop.f32.mrf.mxu0
      %v1093 = vadd.f32 %v1064, %v1092
      %1094 = vmatmul.bf16.gmra.mxu0 %v681
      %v1095 = vpop.f32.mrf.mxu0
      %v1096 = vadd.f32 %v1067, %v1095
      %v1097 = vpop.f32.mrf.mxu0
      %v1098 = vadd.f32 %v1069, %v1097
      %1099 = vmatmul.bf16.gmra.mxu0 %v685
      %v1100 = vpop.f32.mrf.mxu0
      %v1101 = vadd.f32 %v1072, %v1100
      %v1102 = vpop.f32.mrf.mxu0
      %v1103 = vadd.f32 %v1074, %v1102
      %1104 = vdwg.mxu0
      %1105 = vmatpush.bf16.msra.mxu0 0
      %1106 = vmatpush.bf16.msra.mxu0 0
      %1107 = vmatpush.bf16.msra.mxu0 0
      %1108 = vmatpush.bf16.msra.mxu0 0
      %1109 = vmatpush.bf16.msra.mxu0 %v940
      %1110 = vmatpush.bf16.msra.mxu0 %v939
      %1111 = vmatpush.bf16.msra.mxu0 %v938
      %1112 = vmatpush.bf16.msra.mxu0 %v937
      %1113 = vmatmul.bf16.gmra.mxu0 %v978
      %v1114 = vpop.f32.mrf.mxu0
      %v1115 = vadd.f32 %v1086, %v1114
      %v1116 = vpop.f32.mrf.mxu0
      %v1117 = vadd.f32 %v1088, %v1116
      %1118 = vmatmul.bf16.gmra.mxu0 %v981
      %v1119 = vpop.f32.mrf.mxu0
      %v1120 = vadd.f32 %v1091, %v1119
      %v1121 = vpop.f32.mrf.mxu0
      %v1122 = vadd.f32 %v1093, %v1121
      %1123 = vmatmul.bf16.gmra.mxu0 %v984
      %v1124 = vpop.f32.mrf.mxu0
      %v1125 = vadd.f32 %v1096, %v1124
      %v1126 = vpop.f32.mrf.mxu0
      %v1127 = vadd.f32 %v1098, %v1126
      %1128 = vmatmul.bf16.gmra.mxu0 %v987
      %v1129 = vpop.f32.mrf.mxu0
      %v1130 = vadd.f32 %v1101, %v1129
      %v1131 = vpop.f32.mrf.mxu0
      %v1132 = vadd.f32 %v1103, %v1131
      %1133 = vdwg.mxu0
      %vm1134 = vcmp.ge.f32.partialorder %v1115, 0.0
      %vm1135 = vcmp.ge.f32.partialorder %v1117, 0.0
      %vm1136 = vcmp.ge.f32.partialorder %v1120, 0.0
      %vm1137 = vcmp.ge.f32.partialorder %v1122, 0.0
      %vm1138 = vcmp.ge.f32.partialorder %v1125, 0.0
      %vm1139 = vcmp.ge.f32.partialorder %v1127, 0.0
      %vm1140 = vcmp.ge.f32.partialorder %v1130, 0.0
      %vm1141 = vcmp.ge.f32.partialorder %v1132, 0.0
      %v1142 = vmul.f32 %v1115, 0.01
      %v1143 = vmul.f32 %v1117, 0.01
      %v1144 = vmul.f32 %v1120, 0.01
      %v1145 = vmul.f32 %v1122, 0.01
      %v1146 = vmul.f32 %v1125, 0.01
      %v1147 = vmul.f32 %v1127, 0.01
      %v1148 = vmul.f32 %v1130, 0.01
      %v1149 = vmul.f32 %v1132, 0.01
      %v1150 = vsel %vm1134, %v1115, %v1142
      %v1151 = vsel %vm1135, %v1117, %v1143
      %v1152 = vsel %vm1136, %v1120, %v1144
      %v1153 = vsel %vm1137, %v1122, %v1145
      %v1154 = vsel %vm1138, %v1125, %v1146
      %v1155 = vsel %vm1139, %v1127, %v1147
      %v1156 = vsel %vm1140, %v1130, %v1148
      %v1157 = vsel %vm1141, %v1132, %v1149
      %1158 = vst.msk [vmem:[%s257 + $0x1] sm:$0xff] %vm219, %v1150
      %1159 = vst.msk [vmem:[%s257 + $0x11] sm:$0xff] %vm219, %v1151
      %1160 = vst.msk [vmem:[%s257 + $0x21] sm:$0xff] %vm219, %v1152
      %1161 = vst.msk [vmem:[%s257 + $0x31] sm:$0xff] %vm219, %v1153
      %1162 = vst.msk [vmem:[%s257 + $0x41] sm:$0xff] %vm219, %v1154
      %1163 = vst.msk [vmem:[%s257 + $0x51] sm:$0xff] %vm219, %v1155
      %1164 = vst.msk [vmem:[%s257 + $0x61] sm:$0xff] %vm219, %v1156
      %1165 = vst.msk [vmem:[%s257 + $0x71] sm:$0xff] %vm219, %v1157
      %v1166 = vld [vmem:[#allocation2] sm:$0xff]
      %v1167 = vld [vmem:[#allocation2 + $0x10] sm:$0xff]
      %v1168 = vld [vmem:[#allocation2 + $0x20] sm:$0xff]
      %v1169 = vld [vmem:[#allocation2 + $0x30] sm:$0xff]
      %v1170 = vld [vmem:[#allocation2 + $0x40] sm:$0xff]
      %v1171 = vld [vmem:[#allocation2 + $0x50] sm:$0xff]
      %v1172 = vld [vmem:[#allocation2 + $0x60] sm:$0xff]
      %v1173 = vld [vmem:[#allocation2 + $0x70] sm:$0xff]
      %v1174 = vpack.c.bf16 %v1166, %v1166
      %v1175 = vpack.c.bf16 %v1167, %v1167
      %v1176 = vpack.c.bf16 %v1168, %v1168
      %v1177 = vpack.c.bf16 %v1169, %v1169
      %v1178 = vpack.c.bf16 %v1170, %v1170
      %v1179 = vpack.c.bf16 %v1171, %v1171
      %v1180 = vpack.c.bf16 %v1172, %v1172
      %v1181 = vpack.c.bf16 %v1173, %v1173
      %v1182 = vld [vmem:[#allocation2 + $0x1] sm:$0xff]
      %v1183 = vld [vmem:[#allocation2 + $0x11] sm:$0xff]
      %v1184 = vld [vmem:[#allocation2 + $0x21] sm:$0xff]
      %v1185 = vld [vmem:[#allocation2 + $0x31] sm:$0xff]
      %v1186 = vld [vmem:[#allocation2 + $0x41] sm:$0xff]
      %v1187 = vld [vmem:[#allocation2 + $0x51] sm:$0xff]
      %v1188 = vld [vmem:[#allocation2 + $0x61] sm:$0xff]
      %v1189 = vld [vmem:[#allocation2 + $0x71] sm:$0xff]
      %v1190 = vpack.c.bf16 %v1182, %v1182
      %v1191 = vpack.c.bf16 %v1183, %v1183
      %v1192 = vpack.c.bf16 %v1184, %v1184
      %v1193 = vpack.c.bf16 %v1185, %v1185
      %v1194 = vpack.c.bf16 %v1186, %v1186
      %v1195 = vpack.c.bf16 %v1187, %v1187
      %v1196 = vpack.c.bf16 %v1188, %v1188
      %v1197 = vpack.c.bf16 %v1189, %v1189
      %v1198 = vld [vmem:[#allocation2 + $0x2] sm:$0xff]
      %v1199 = vld [vmem:[#allocation2 + $0x12] sm:$0xff]
      %v1200 = vld [vmem:[#allocation2 + $0x22] sm:$0xff]
      %v1201 = vld [vmem:[#allocation2 + $0x32] sm:$0xff]
      %v1202 = vld [vmem:[#allocation2 + $0x42] sm:$0xff]
      %v1203 = vld [vmem:[#allocation2 + $0x52] sm:$0xff]
      %v1204 = vld [vmem:[#allocation2 + $0x62] sm:$0xff]
      %v1205 = vld [vmem:[#allocation2 + $0x72] sm:$0xff]
      %v1206 = vpack.c.bf16 %v1198, %v1198
      %v1207 = vpack.c.bf16 %v1199, %v1199
      %v1208 = vpack.c.bf16 %v1200, %v1200
      %v1209 = vpack.c.bf16 %v1201, %v1201
      %v1210 = vpack.c.bf16 %v1202, %v1202
      %v1211 = vpack.c.bf16 %v1203, %v1203
      %v1212 = vpack.c.bf16 %v1204, %v1204
      %v1213 = vpack.c.bf16 %v1205, %v1205
      %v1214 = vld [vmem:[%s257] sm:$0xff]
      %v1215 = vld [vmem:[%s257 + $0x10] sm:$0xff]
      %v1216 = vld [vmem:[%s257 + $0x20] sm:$0xff]
      %v1217 = vld [vmem:[%s257 + $0x30] sm:$0xff]
      %v1218 = vld [vmem:[%s257 + $0x40] sm:$0xff]
      %v1219 = vld [vmem:[%s257 + $0x50] sm:$0xff]
      %v1220 = vld [vmem:[%s257 + $0x60] sm:$0xff]
      %v1221 = vld [vmem:[%s257 + $0x70] sm:$0xff]
      %v1222 = vpack.c.bf16 %v1214, %v1214
      %v1223 = vpack.c.bf16 %v1215, %v1215
      %v1224 = vpack.c.bf16 %v1216, %v1216
      %v1225 = vpack.c.bf16 %v1217, %v1217
      %v1226 = vpack.c.bf16 %v1218, %v1218
      %v1227 = vpack.c.bf16 %v1219, %v1219
      %v1228 = vpack.c.bf16 %v1220, %v1220
      %v1229 = vpack.c.bf16 %v1221, %v1221
      %v1230 = vld [vmem:[%s257 + $0x1] sm:$0xff]
      %v1231 = vld [vmem:[%s257 + $0x11] sm:$0xff]
      %v1232 = vld [vmem:[%s257 + $0x21] sm:$0xff]
      %v1233 = vld [vmem:[%s257 + $0x31] sm:$0xff]
      %v1234 = vld [vmem:[%s257 + $0x41] sm:$0xff]
      %v1235 = vld [vmem:[%s257 + $0x51] sm:$0xff]
      %v1236 = vld [vmem:[%s257 + $0x61] sm:$0xff]
      %v1237 = vld [vmem:[%s257 + $0x71] sm:$0xff]
      %v1238 = vpack.c.bf16 %v1230, %v1230
      %v1239 = vpack.c.bf16 %v1231, %v1231
      %v1240 = vpack.c.bf16 %v1232, %v1232
      %v1241 = vpack.c.bf16 %v1233, %v1233
      %v1242 = vpack.c.bf16 %v1234, %v1234
      %v1243 = vpack.c.bf16 %v1235, %v1235
      %v1244 = vpack.c.bf16 %v1236, %v1236
      %v1245 = vpack.c.bf16 %v1237, %v1237
      %v1246 = vld [vmem:[%s257 + $0x2] sm:$0xff]
      %v1247 = vld [vmem:[%s257 + $0x12] sm:$0xff]
      %v1248 = vld [vmem:[%s257 + $0x22] sm:$0xff]
      %v1249 = vld [vmem:[%s257 + $0x32] sm:$0xff]
      %v1250 = vld [vmem:[%s257 + $0x42] sm:$0xff]
      %v1251 = vld [vmem:[%s257 + $0x52] sm:$0xff]
      %v1252 = vld [vmem:[%s257 + $0x62] sm:$0xff]
      %v1253 = vld [vmem:[%s257 + $0x72] sm:$0xff]
      %v1254 = vpack.c.bf16 %v1246, %v1246
      %v1255 = vpack.c.bf16 %v1247, %v1247
      %v1256 = vpack.c.bf16 %v1248, %v1248
      %v1257 = vpack.c.bf16 %v1249, %v1249
      %v1258 = vpack.c.bf16 %v1250, %v1250
      %v1259 = vpack.c.bf16 %v1251, %v1251
      %v1260 = vpack.c.bf16 %v1252, %v1252
      %v1261 = vpack.c.bf16 %v1253, %v1253
      %v1262 = vld [vmem:[%s362] sm:$0xff]
      %v1263 = vld [vmem:[%s362 + $0x10] sm:$0xff]
      %v1264 = vld [vmem:[%s362 + $0x20] sm:$0xff]
      %v1265 = vld [vmem:[%s362 + $0x30] sm:$0xff]
      %v1266 = vld [vmem:[%s362 + $0x40] sm:$0xff]
      %v1267 = vld [vmem:[%s362 + $0x50] sm:$0xff]
      %v1268 = vld [vmem:[%s362 + $0x60] sm:$0xff]
      %v1269 = vld [vmem:[%s362 + $0x70] sm:$0xff]
      %v1270 = vpack.c.bf16 %v1262, %v1262
      %v1271 = vpack.c.bf16 %v1263, %v1263
      %v1272 = vpack.c.bf16 %v1264, %v1264
      %v1273 = vpack.c.bf16 %v1265, %v1265
      %v1274 = vpack.c.bf16 %v1266, %v1266
      %v1275 = vpack.c.bf16 %v1267, %v1267
      %v1276 = vpack.c.bf16 %v1268, %v1268
      %v1277 = vpack.c.bf16 %v1269, %v1269
      %v1278 = vld [vmem:[%s362 + $0x1] sm:$0xff]
      %v1279 = vld [vmem:[%s362 + $0x11] sm:$0xff]
      %v1280 = vld [vmem:[%s362 + $0x21] sm:$0xff]
      %v1281 = vld [vmem:[%s362 + $0x31] sm:$0xff]
      %v1282 = vld [vmem:[%s362 + $0x41] sm:$0xff]
      %v1283 = vld [vmem:[%s362 + $0x51] sm:$0xff]
      %v1284 = vld [vmem:[%s362 + $0x61] sm:$0xff]
      %v1285 = vld [vmem:[%s362 + $0x71] sm:$0xff]
      %v1286 = vpack.c.bf16 %v1278, %v1278
      %v1287 = vpack.c.bf16 %v1279, %v1279
      %v1288 = vpack.c.bf16 %v1280, %v1280
      %v1289 = vpack.c.bf16 %v1281, %v1281
      %v1290 = vpack.c.bf16 %v1282, %v1282
      %v1291 = vpack.c.bf16 %v1283, %v1283
      %v1292 = vpack.c.bf16 %v1284, %v1284
      %v1293 = vpack.c.bf16 %v1285, %v1285
      %v1294 = vld [vmem:[%s362 + $0x2] sm:$0xff]
      %v1295 = vld [vmem:[%s362 + $0x12] sm:$0xff]
      %v1296 = vld [vmem:[%s362 + $0x22] sm:$0xff]
      %v1297 = vld [vmem:[%s362 + $0x32] sm:$0xff]
      %v1298 = vld [vmem:[%s362 + $0x42] sm:$0xff]
      %v1299 = vld [vmem:[%s362 + $0x52] sm:$0xff]
      %v1300 = vld [vmem:[%s362 + $0x62] sm:$0xff]
      %v1301 = vld [vmem:[%s362 + $0x72] sm:$0xff]
      %v1302 = vpack.c.bf16 %v1294, %v1294
      %v1303 = vpack.c.bf16 %v1295, %v1295
      %v1304 = vpack.c.bf16 %v1296, %v1296
      %v1305 = vpack.c.bf16 %v1297, %v1297
      %v1306 = vpack.c.bf16 %v1298, %v1298
      %v1307 = vpack.c.bf16 %v1299, %v1299
      %v1308 = vpack.c.bf16 %v1300, %v1300
      %v1309 = vpack.c.bf16 %v1301, %v1301
      %v1318 = vunpack.c.l.b16 %v1174
      %v1319 = vunpack.c.l.b16 %v1175
      %v1320 = vunpack.c.l.b16 %v1176
      %v1321 = vunpack.c.l.b16 %v1177
      %v1322 = vunpack.c.l.b16 %v1178
      %v1323 = vunpack.c.l.b16 %v1179
      %v1324 = vunpack.c.l.b16 %v1180
      %v1325 = vunpack.c.l.b16 %v1181
      %v1326 = vpack.c.b16 %v1319, %v1318
      %v1327 = vpack.c.b16 %v1321, %v1320
      %v1328 = vpack.c.b16 %v1323, %v1322
      %v1329 = vpack.c.b16 %v1325, %v1324
      %v1338 = vunpack.c.l.b16 %v1190
      %v1339 = vunpack.c.l.b16 %v1191
      %v1340 = vunpack.c.l.b16 %v1192
      %v1341 = vunpack.c.l.b16 %v1193
      %v1342 = vunpack.c.l.b16 %v1194
      %v1343 = vunpack.c.l.b16 %v1195
      %v1344 = vunpack.c.l.b16 %v1196
      %v1345 = vunpack.c.l.b16 %v1197
      %v1346 = vpack.c.b16 %v1339, %v1338
      %v1347 = vpack.c.b16 %v1341, %v1340
      %v1348 = vpack.c.b16 %v1343, %v1342
      %v1349 = vpack.c.b16 %v1345, %v1344
      %1350 = vrot.lane.b32.xlu0 %v1346, 64
      %v1351 = vpop.permute.xlu0 %1350
      %1352 = vrot.lane.b32.xlu0 %v1347, 64
      %v1353 = vpop.permute.xlu0 %1352
      %1354 = vrot.lane.b32.xlu0 %v1348, 64
      %v1355 = vpop.permute.xlu0 %1354
      %1356 = vrot.lane.b32.xlu0 %v1349, 64
      %v1357 = vpop.permute.xlu0 %1356
      %v1366 = vunpack.c.l.b16 %v1206
      %v1367 = vunpack.c.l.b16 %v1207
      %v1368 = vunpack.c.l.b16 %v1208
      %v1369 = vunpack.c.l.b16 %v1209
      %v1370 = vunpack.c.l.b16 %v1210
      %v1371 = vunpack.c.l.b16 %v1211
      %v1372 = vunpack.c.l.b16 %v1212
      %v1373 = vunpack.c.l.b16 %v1213
      %v1374 = vpack.c.b16 %v1367, %v1366
      %v1375 = vpack.c.b16 %v1369, %v1368
      %v1376 = vpack.c.b16 %v1371, %v1370
      %v1377 = vpack.c.b16 %v1373, %v1372
      %v1386 = vunpack.c.l.b16 %v1222
      %v1387 = vunpack.c.l.b16 %v1223
      %v1388 = vunpack.c.l.b16 %v1224
      %v1389 = vunpack.c.l.b16 %v1225
      %v1390 = vunpack.c.l.b16 %v1226
      %v1391 = vunpack.c.l.b16 %v1227
      %v1392 = vunpack.c.l.b16 %v1228
      %v1393 = vunpack.c.l.b16 %v1229
      %v1394 = vpack.c.b16 %v1387, %v1386
      %v1395 = vpack.c.b16 %v1389, %v1388
      %v1396 = vpack.c.b16 %v1391, %v1390
      %v1397 = vpack.c.b16 %v1393, %v1392
      %1398 = vrot.lane.b32.xlu0 %v1394, 64
      %v1399 = vpop.permute.xlu0 %1398
      %1400 = vrot.lane.b32.xlu0 %v1395, 64
      %v1401 = vpop.permute.xlu0 %1400
      %1402 = vrot.lane.b32.xlu0 %v1396, 64
      %v1403 = vpop.permute.xlu0 %1402
      %1404 = vrot.lane.b32.xlu0 %v1397, 64
      %v1405 = vpop.permute.xlu0 %1404
      %v1414 = vunpack.c.l.b16 %v1238
      %v1415 = vunpack.c.l.b16 %v1239
      %v1416 = vunpack.c.l.b16 %v1240
      %v1417 = vunpack.c.l.b16 %v1241
      %v1418 = vunpack.c.l.b16 %v1242
      %v1419 = vunpack.c.l.b16 %v1243
      %v1420 = vunpack.c.l.b16 %v1244
      %v1421 = vunpack.c.l.b16 %v1245
      %v1422 = vpack.c.b16 %v1415, %v1414
      %v1423 = vpack.c.b16 %v1417, %v1416
      %v1424 = vpack.c.b16 %v1419, %v1418
      %v1425 = vpack.c.b16 %v1421, %v1420
      %v1434 = vunpack.c.l.b16 %v1254
      %v1435 = vunpack.c.l.b16 %v1255
      %v1436 = vunpack.c.l.b16 %v1256
      %v1437 = vunpack.c.l.b16 %v1257
      %v1438 = vunpack.c.l.b16 %v1258
      %v1439 = vunpack.c.l.b16 %v1259
      %v1440 = vunpack.c.l.b16 %v1260
      %v1441 = vunpack.c.l.b16 %v1261
      %v1442 = vpack.c.b16 %v1435, %v1434
      %v1443 = vpack.c.b16 %v1437, %v1436
      %v1444 = vpack.c.b16 %v1439, %v1438
      %v1445 = vpack.c.b16 %v1441, %v1440
      %1446 = vrot.lane.b32.xlu0 %v1442, 64
      %v1447 = vpop.permute.xlu0 %1446
      %1448 = vrot.lane.b32.xlu0 %v1443, 64
      %v1449 = vpop.permute.xlu0 %1448
      %1450 = vrot.lane.b32.xlu0 %v1444, 64
      %v1451 = vpop.permute.xlu0 %1450
      %1452 = vrot.lane.b32.xlu0 %v1445, 64
      %v1453 = vpop.permute.xlu0 %1452
      %v1462 = vunpack.c.l.b16 %v1270
      %v1463 = vunpack.c.l.b16 %v1271
      %v1464 = vunpack.c.l.b16 %v1272
      %v1465 = vunpack.c.l.b16 %v1273
      %v1466 = vunpack.c.l.b16 %v1274
      %v1467 = vunpack.c.l.b16 %v1275
      %v1468 = vunpack.c.l.b16 %v1276
      %v1469 = vunpack.c.l.b16 %v1277
      %v1470 = vpack.c.b16 %v1463, %v1462
      %v1471 = vpack.c.b16 %v1465, %v1464
      %v1472 = vpack.c.b16 %v1467, %v1466
      %v1473 = vpack.c.b16 %v1469, %v1468
      %v1482 = vunpack.c.l.b16 %v1286
      %v1483 = vunpack.c.l.b16 %v1287
      %v1484 = vunpack.c.l.b16 %v1288
      %v1485 = vunpack.c.l.b16 %v1289
      %v1486 = vunpack.c.l.b16 %v1290
      %v1487 = vunpack.c.l.b16 %v1291
      %v1488 = vunpack.c.l.b16 %v1292
      %v1489 = vunpack.c.l.b16 %v1293
      %v1490 = vpack.c.b16 %v1483, %v1482
      %v1491 = vpack.c.b16 %v1485, %v1484
      %v1492 = vpack.c.b16 %v1487, %v1486
      %v1493 = vpack.c.b16 %v1489, %v1488
      %1494 = vrot.lane.b32.xlu0 %v1490, 64
      %v1495 = vpop.permute.xlu0 %1494
      %1496 = vrot.lane.b32.xlu0 %v1491, 64
      %v1497 = vpop.permute.xlu0 %1496
      %1498 = vrot.lane.b32.xlu0 %v1492, 64
      %v1499 = vpop.permute.xlu0 %1498
      %1500 = vrot.lane.b32.xlu0 %v1493, 64
      %v1501 = vpop.permute.xlu0 %1500
      %v1510 = vunpack.c.l.b16 %v1302
      %v1511 = vunpack.c.l.b16 %v1303
      %v1512 = vunpack.c.l.b16 %v1304
      %v1513 = vunpack.c.l.b16 %v1305
      %v1514 = vunpack.c.l.b16 %v1306
      %v1515 = vunpack.c.l.b16 %v1307
      %v1516 = vunpack.c.l.b16 %v1308
      %v1517 = vunpack.c.l.b16 %v1309
      %v1518 = vpack.c.b16 %v1511, %v1510
      %v1519 = vpack.c.b16 %v1513, %v1512
      %v1520 = vpack.c.b16 %v1515, %v1514
      %v1521 = vpack.c.b16 %v1517, %v1516
      %v1524 = vsel %vm219, %v1326, %v1351
      %v1528 = vsel %vm219, %v1327, %v1353
      %v1532 = vsel %vm219, %v1328, %v1355
      %v1536 = vsel %vm219, %v1329, %v1357
      %v1540 = vsel %vm219, %v1374, %v1399
      %v1544 = vsel %vm219, %v1375, %v1401
      %v1548 = vsel %vm219, %v1376, %v1403
      %v1552 = vsel %vm219, %v1377, %v1405
      %v1556 = vsel %vm219, %v1422, %v1447
      %v1560 = vsel %vm219, %v1423, %v1449
      %v1564 = vsel %vm219, %v1424, %v1451
      %v1568 = vsel %vm219, %v1425, %v1453
      %v1572 = vsel %vm219, %v1470, %v1495
      %v1576 = vsel %vm219, %v1471, %v1497
      %v1580 = vsel %vm219, %v1472, %v1499
      %v1584 = vsel %vm219, %v1473, %v1501
      %v1586 = vld [vmem:[%s2 + $0x120] sm:$0xf]
      %v1587 = vld [vmem:[%s2 + $0x124] sm:$0xf]
      %v1588 = vld [vmem:[%s2 + $0x128] sm:$0xf]
      %v1589 = vld [vmem:[%s2 + $0x12c] sm:$0xf]
      %v1590 = vld [vmem:[%s2 + $0x130] sm:$0xf]
      %v1591 = vld [vmem:[%s2 + $0x134] sm:$0xf]
      %v1592 = vld [vmem:[%s2 + $0x138] sm:$0xf]
      %v1593 = vld [vmem:[%s2 + $0x13c] sm:$0xf]
      %v1594 = vld [vmem:[%s2 + $0x140] sm:$0xf]
      %v1595 = vld [vmem:[%s2 + $0x144] sm:$0xf]
      %v1596 = vld [vmem:[%s2 + $0x148] sm:$0xf]
      %v1597 = vld [vmem:[%s2 + $0x14c] sm:$0xf]
      %v1598 = vld [vmem:[%s2 + $0x150] sm:$0xf]
      %v1599 = vld [vmem:[%s2 + $0x154] sm:$0xf]
      %v1600 = vld [vmem:[%s2 + $0x158] sm:$0xf]
      %v1601 = vld [vmem:[%s2 + $0x15c] sm:$0xf]
      %v1602 = vld [vmem:[%s2 + $0x160] sm:$0xf]
      %v1603 = vld [vmem:[%s2 + $0x164] sm:$0xf]
      %v1604 = vld [vmem:[%s2 + $0x168] sm:$0xf]
      %v1605 = vld [vmem:[%s2 + $0x16c] sm:$0xf]
      %v1606 = vld [vmem:[%s2 + $0x170] sm:$0xf]
      %v1607 = vld [vmem:[%s2 + $0x174] sm:$0xf]
      %v1608 = vld [vmem:[%s2 + $0x178] sm:$0xf]
      %v1609 = vld [vmem:[%s2 + $0x17c] sm:$0xf]
      %v1610 = vld [vmem:[%s2 + $0x180] sm:$0xf]
      %v1611 = vld [vmem:[%s2 + $0x184] sm:$0xf]
      %v1612 = vld [vmem:[%s2 + $0x188] sm:$0xf]
      %v1613 = vld [vmem:[%s2 + $0x18c] sm:$0xf]
      %v1614 = vld [vmem:[%s2 + $0x190] sm:$0xf]
      %v1615 = vld [vmem:[%s2 + $0x194] sm:$0xf]
      %v1616 = vld [vmem:[%s2 + $0x198] sm:$0xf]
      %v1617 = vld [vmem:[%s2 + $0x19c] sm:$0xf]
      %v1618 = vld [vmem:[%s2 + $0x1a0] sm:$0xf]
      %v1619 = vld [vmem:[%s2 + $0x1a4] sm:$0xf]
      %v1620 = vld [vmem:[%s2 + $0x1a8] sm:$0xf]
      %v1621 = vld [vmem:[%s2 + $0x1ac] sm:$0xf]
      %v1622 = vld [vmem:[%s2 + $0x1b0] sm:$0xf]
      %v1623 = vld [vmem:[%s2 + $0x1b4] sm:$0xf]
      %v1624 = vld [vmem:[%s2 + $0x1b8] sm:$0xf]
      %v1625 = vld [vmem:[%s2 + $0x1bc] sm:$0xf]
      %v1626 = vld [vmem:[%s2 + $0x1c0] sm:$0xf]
      %v1627 = vld [vmem:[%s2 + $0x1c4] sm:$0xf]
      %v1628 = vld [vmem:[%s2 + $0x1c8] sm:$0xf]
      %v1629 = vld [vmem:[%s2 + $0x1cc] sm:$0xf]
      %v1630 = vld [vmem:[%s2 + $0x1d0] sm:$0xf]
      %v1631 = vld [vmem:[%s2 + $0x1d4] sm:$0xf]
      %v1632 = vld [vmem:[%s2 + $0x1d8] sm:$0xf]
      %v1633 = vld [vmem:[%s2 + $0x1dc] sm:$0xf]
      %v1634 = vld [vmem:[%s2 + $0x1e0] sm:$0xf]
      %v1635 = vld [vmem:[%s2 + $0x1e4] sm:$0xf]
      %v1636 = vld [vmem:[%s2 + $0x1e8] sm:$0xf]
      %v1637 = vld [vmem:[%s2 + $0x1ec] sm:$0xf]
      %v1638 = vld [vmem:[%s2 + $0x1f0] sm:$0xf]
      %v1639 = vld [vmem:[%s2 + $0x1f4] sm:$0xf]
      %v1640 = vld [vmem:[%s2 + $0x1f8] sm:$0xf]
      %v1641 = vld [vmem:[%s2 + $0x1fc] sm:$0xf]
      %v1642 = vld [vmem:[%s2 + $0x200] sm:$0xf]
      %v1643 = vld [vmem:[%s2 + $0x204] sm:$0xf]
      %v1644 = vld [vmem:[%s2 + $0x208] sm:$0xf]
      %v1645 = vld [vmem:[%s2 + $0x20c] sm:$0xf]
      %v1646 = vld [vmem:[%s2 + $0x210] sm:$0xf]
      %v1647 = vld [vmem:[%s2 + $0x214] sm:$0xf]
      %v1648 = vld [vmem:[%s2 + $0x218] sm:$0xf]
      %v1649 = vld [vmem:[%s2 + $0x21c] sm:$0xf]
      %v1650 = vld [vmem:[%s2 + $0x220] sm:$0xf]
      %v1651 = vld [vmem:[%s2 + $0x224] sm:$0xf]
      %v1652 = vld [vmem:[%s2 + $0x228] sm:$0xf]
      %v1653 = vld [vmem:[%s2 + $0x22c] sm:$0xf]
      %v1654 = vld [vmem:[%s2 + $0x230] sm:$0xf]
      %v1655 = vld [vmem:[%s2 + $0x234] sm:$0xf]
      %v1656 = vld [vmem:[%s2 + $0x238] sm:$0xf]
      %v1657 = vld [vmem:[%s2 + $0x23c] sm:$0xf]
      %v1658 = vld [vmem:[%s3 + $0x1] sm:$0x1]
      %v1659 = vperm.slane %v1658, 0
      %v1732 = vunpack.c.l.b16 %v1586
      %v1733 = vunpack.c.l.b16 %v1587
      %v1734 = vunpack.c.l.b16 %v1588
      %v1735 = vunpack.c.l.b16 %v1589
      %v1736 = vunpack.c.l.b16 %v1590
      %v1737 = vunpack.c.l.b16 %v1591
      %v1738 = vunpack.c.l.b16 %v1592
      %v1739 = vunpack.c.l.b16 %v1593
      %v1740 = vunpack.c.l.b16 %v1594
      %v1741 = vunpack.c.l.b16 %v1595
      %v1742 = vunpack.c.l.b16 %v1596
      %v1743 = vunpack.c.l.b16 %v1597
      %v1744 = vunpack.c.l.b16 %v1598
      %v1745 = vunpack.c.l.b16 %v1599
      %v1746 = vunpack.c.l.b16 %v1600
      %v1747 = vunpack.c.l.b16 %v1601
      %v1748 = vunpack.c.l.b16 %v1602
      %v1749 = vunpack.c.l.b16 %v1603
      %v1750 = vunpack.c.l.b16 %v1604
      %v1751 = vunpack.c.l.b16 %v1605
      %v1752 = vunpack.c.l.b16 %v1606
      %v1753 = vunpack.c.l.b16 %v1607
      %v1754 = vunpack.c.l.b16 %v1608
      %v1755 = vunpack.c.l.b16 %v1609
      %v1756 = vunpack.c.l.b16 %v1610
      %v1757 = vunpack.c.l.b16 %v1611
      %v1758 = vunpack.c.l.b16 %v1612
      %v1759 = vunpack.c.l.b16 %v1613
      %v1760 = vunpack.c.l.b16 %v1614
      %v1761 = vunpack.c.l.b16 %v1615
      %v1762 = vunpack.c.l.b16 %v1616
      %v1763 = vunpack.c.l.b16 %v1617
      %v1764 = vunpack.c.l.b16 %v1618
      %v1765 = vunpack.c.l.b16 %v1619
      %v1766 = vunpack.c.l.b16 %v1620
      %v1767 = vunpack.c.l.b16 %v1621
      %v1768 = vunpack.c.l.b16 %v1622
      %v1769 = vunpack.c.l.b16 %v1623
      %v1770 = vunpack.c.l.b16 %v1624
      %v1771 = vunpack.c.l.b16 %v1625
      %v1772 = vunpack.c.l.b16 %v1626
      %v1773 = vunpack.c.l.b16 %v1627
      %v1774 = vunpack.c.l.b16 %v1628
      %v1775 = vunpack.c.l.b16 %v1629
      %v1776 = vunpack.c.l.b16 %v1630
      %v1777 = vunpack.c.l.b16 %v1631
      %v1778 = vunpack.c.l.b16 %v1632
      %v1779 = vunpack.c.l.b16 %v1633
      %v1780 = vunpack.c.l.b16 %v1634
      %v1781 = vunpack.c.l.b16 %v1635
      %v1782 = vunpack.c.l.b16 %v1636
      %v1783 = vunpack.c.l.b16 %v1637
      %v1784 = vunpack.c.l.b16 %v1638
      %v1785 = vunpack.c.l.b16 %v1639
      %v1786 = vunpack.c.l.b16 %v1640
      %v1787 = vunpack.c.l.b16 %v1641
      %v1788 = vunpack.c.l.b16 %v1642
      %v1789 = vunpack.c.l.b16 %v1643
      %v1790 = vunpack.c.l.b16 %v1644
      %v1791 = vunpack.c.l.b16 %v1645
      %v1792 = vunpack.c.l.b16 %v1646
      %v1793 = vunpack.c.l.b16 %v1647
      %v1794 = vunpack.c.l.b16 %v1648
      %v1795 = vunpack.c.l.b16 %v1649
      %v1796 = vunpack.c.l.b16 %v1650
      %v1797 = vunpack.c.l.b16 %v1651
      %v1798 = vunpack.c.l.b16 %v1652
      %v1799 = vunpack.c.l.b16 %v1653
      %v1800 = vunpack.c.l.b16 %v1654
      %v1801 = vunpack.c.l.b16 %v1655
      %v1802 = vunpack.c.l.b16 %v1656
      %v1803 = vunpack.c.l.b16 %v1657
      %v1804 = vpack.c.b16 %v1733, %v1732
      %v1805 = vpack.c.b16 %v1735, %v1734
      %v1806 = vpack.c.b16 %v1737, %v1736
      %v1807 = vpack.c.b16 %v1739, %v1738
      %v1808 = vpack.c.b16 %v1741, %v1740
      %v1809 = vpack.c.b16 %v1743, %v1742
      %v1810 = vpack.c.b16 %v1745, %v1744
      %v1811 = vpack.c.b16 %v1747, %v1746
      %v1812 = vpack.c.b16 %v1749, %v1748
      %v1813 = vpack.c.b16 %v1751, %v1750
      %v1814 = vpack.c.b16 %v1753, %v1752
      %v1815 = vpack.c.b16 %v1755, %v1754
      %v1816 = vpack.c.b16 %v1757, %v1756
      %v1817 = vpack.c.b16 %v1759, %v1758
      %v1818 = vpack.c.b16 %v1761, %v1760
      %v1819 = vpack.c.b16 %v1763, %v1762
      %v1820 = vpack.c.b16 %v1765, %v1764
      %v1821 = vpack.c.b16 %v1767, %v1766
      %v1822 = vpack.c.b16 %v1769, %v1768
      %v1823 = vpack.c.b16 %v1771, %v1770
      %v1824 = vpack.c.b16 %v1773, %v1772
      %v1825 = vpack.c.b16 %v1775, %v1774
      %v1826 = vpack.c.b16 %v1777, %v1776
      %v1827 = vpack.c.b16 %v1779, %v1778
      %v1828 = vpack.c.b16 %v1781, %v1780
      %v1829 = vpack.c.b16 %v1783, %v1782
      %v1830 = vpack.c.b16 %v1785, %v1784
      %v1831 = vpack.c.b16 %v1787, %v1786
      %v1832 = vpack.c.b16 %v1789, %v1788
      %v1833 = vpack.c.b16 %v1791, %v1790
      %v1834 = vpack.c.b16 %v1793, %v1792
      %v1835 = vpack.c.b16 %v1795, %v1794
      %v1836 = vpack.c.b16 %v1797, %v1796
      %v1837 = vpack.c.b16 %v1799, %v1798
      %v1838 = vpack.c.b16 %v1801, %v1800
      %v1839 = vpack.c.b16 %v1803, %v1802
      %v1877 = vsel %vm219, %v1518, 0
      %v1880 = vsel %vm219, %v1519, 0
      %v1883 = vsel %vm219, %v1520, 0
      %v1886 = vsel %vm219, %v1521, 0
      %1888 = vmatpush.bf16.msra.mxu0 %v1811
      %1889 = vmatpush.bf16.msra.mxu0 %v1810
      %1890 = vmatpush.bf16.msra.mxu0 %v1809
      %1891 = vmatpush.bf16.msra.mxu0 %v1808
      %1892 = vmatpush.bf16.msra.mxu0 %v1807
      %1893 = vmatpush.bf16.msra.mxu0 %v1806
      %1894 = vmatpush.bf16.msra.mxu0 %v1805
      %1895 = vmatpush.bf16.msra.mxu0 %v1804
      %1896 = vmatmul.bf16.gmra.mxu0 %v1524
      %v1897 = vpop.f32.mrf.mxu0
      %v1898 = vadd.f32 %v1659, %v1897
      %v1899 = vpop.f32.mrf.mxu0
      %v1900 = vadd.f32 %v1659, %v1899
      %1901 = vmatmul.bf16.gmra.mxu0 %v1528
      %v1902 = vpop.f32.mrf.mxu0
      %v1903 = vadd.f32 %v1659, %v1902
      %v1904 = vpop.f32.mrf.mxu0
      %v1905 = vadd.f32 %v1659, %v1904
      %1906 = vmatmul.bf16.gmra.mxu0 %v1532
      %v1907 = vpop.f32.mrf.mxu0
      %v1908 = vadd.f32 %v1659, %v1907
      %v1909 = vpop.f32.mrf.mxu0
      %v1910 = vadd.f32 %v1659, %v1909
      %1911 = vmatmul.bf16.gmra.mxu0 %v1536
      %v1912 = vpop.f32.mrf.mxu0
      %v1913 = vadd.f32 %v1659, %v1912
      %v1914 = vpop.f32.mrf.mxu0
      %v1915 = vadd.f32 %v1659, %v1914
      %1916 = vdwg.mxu0
      %1917 = vmatpush.bf16.msra.mxu0 %v1819
      %1918 = vmatpush.bf16.msra.mxu0 %v1818
      %1919 = vmatpush.bf16.msra.mxu0 %v1817
      %1920 = vmatpush.bf16.msra.mxu0 %v1816
      %1921 = vmatpush.bf16.msra.mxu0 %v1815
      %1922 = vmatpush.bf16.msra.mxu0 %v1814
      %1923 = vmatpush.bf16.msra.mxu0 %v1813
      %1924 = vmatpush.bf16.msra.mxu0 %v1812
      %1925 = vmatmul.bf16.gmra.mxu0 %v1540
      %v1926 = vpop.f32.mrf.mxu0
      %v1927 = vadd.f32 %v1898, %v1926
      %v1928 = vpop.f32.mrf.mxu0
      %v1929 = vadd.f32 %v1900, %v1928
      %1930 = vmatmul.bf16.gmra.mxu0 %v1544
      %v1931 = vpop.f32.mrf.mxu0
      %v1932 = vadd.f32 %v1903, %v1931
      %v1933 = vpop.f32.mrf.mxu0
      %v1934 = vadd.f32 %v1905, %v1933
      %1935 = vmatmul.bf16.gmra.mxu0 %v1548
      %v1936 = vpop.f32.mrf.mxu0
      %v1937 = vadd.f32 %v1908, %v1936
      %v1938 = vpop.f32.mrf.mxu0
      %v1939 = vadd.f32 %v1910, %v1938
      %1940 = vmatmul.bf16.gmra.mxu0 %v1552
      %v1941 = vpop.f32.mrf.mxu0
      %v1942 = vadd.f32 %v1913, %v1941
      %v1943 = vpop.f32.mrf.mxu0
      %v1944 = vadd.f32 %v1915, %v1943
      %1945 = vdwg.mxu0
      %1946 = vmatpush.bf16.msra.mxu0 %v1827
      %1947 = vmatpush.bf16.msra.mxu0 %v1826
      %1948 = vmatpush.bf16.msra.mxu0 %v1825
      %1949 = vmatpush.bf16.msra.mxu0 %v1824
      %1950 = vmatpush.bf16.msra.mxu0 %v1823
      %1951 = vmatpush.bf16.msra.mxu0 %v1822
      %1952 = vmatpush.bf16.msra.mxu0 %v1821
      %1953 = vmatpush.bf16.msra.mxu0 %v1820
      %1954 = vmatmul.bf16.gmra.mxu0 %v1556
      %v1955 = vpop.f32.mrf.mxu0
      %v1956 = vadd.f32 %v1927, %v1955
      %v1957 = vpop.f32.mrf.mxu0
      %v1958 = vadd.f32 %v1929, %v1957
      %1959 = vmatmul.bf16.gmra.mxu0 %v1560
      %v1960 = vpop.f32.mrf.mxu0
      %v1961 = vadd.f32 %v1932, %v1960
      %v1962 = vpop.f32.mrf.mxu0
      %v1963 = vadd.f32 %v1934, %v1962
      %1964 = vmatmul.bf16.gmra.mxu0 %v1564
      %v1965 = vpop.f32.mrf.mxu0
      %v1966 = vadd.f32 %v1937, %v1965
      %v1967 = vpop.f32.mrf.mxu0
      %v1968 = vadd.f32 %v1939, %v1967
      %1969 = vmatmul.bf16.gmra.mxu0 %v1568
      %v1970 = vpop.f32.mrf.mxu0
      %v1971 = vadd.f32 %v1942, %v1970
      %v1972 = vpop.f32.mrf.mxu0
      %v1973 = vadd.f32 %v1944, %v1972
      %1974 = vdwg.mxu0
      %1975 = vmatpush.bf16.msra.mxu0 %v1835
      %1976 = vmatpush.bf16.msra.mxu0 %v1834
      %1977 = vmatpush.bf16.msra.mxu0 %v1833
      %1978 = vmatpush.bf16.msra.mxu0 %v1832
      %1979 = vmatpush.bf16.msra.mxu0 %v1831
      %1980 = vmatpush.bf16.msra.mxu0 %v1830
      %1981 = vmatpush.bf16.msra.mxu0 %v1829
      %1982 = vmatpush.bf16.msra.mxu0 %v1828
      %1983 = vmatmul.bf16.gmra.mxu0 %v1572
      %v1984 = vpop.f32.mrf.mxu0
      %v1985 = vadd.f32 %v1956, %v1984
      %v1986 = vpop.f32.mrf.mxu0
      %v1987 = vadd.f32 %v1958, %v1986
      %1988 = vmatmul.bf16.gmra.mxu0 %v1576
      %v1989 = vpop.f32.mrf.mxu0
      %v1990 = vadd.f32 %v1961, %v1989
      %v1991 = vpop.f32.mrf.mxu0
      %v1992 = vadd.f32 %v1963, %v1991
      %1993 = vmatmul.bf16.gmra.mxu0 %v1580
      %v1994 = vpop.f32.mrf.mxu0
      %v1995 = vadd.f32 %v1966, %v1994
      %v1996 = vpop.f32.mrf.mxu0
      %v1997 = vadd.f32 %v1968, %v1996
      %1998 = vmatmul.bf16.gmra.mxu0 %v1584
      %v1999 = vpop.f32.mrf.mxu0
      %v2000 = vadd.f32 %v1971, %v1999
      %v2001 = vpop.f32.mrf.mxu0
      %v2002 = vadd.f32 %v1973, %v2001
      %2003 = vdwg.mxu0
      %2004 = vmatpush.bf16.msra.mxu0 0
      %2005 = vmatpush.bf16.msra.mxu0 0
      %2006 = vmatpush.bf16.msra.mxu0 0
      %2007 = vmatpush.bf16.msra.mxu0 0
      %2008 = vmatpush.bf16.msra.mxu0 %v1839
      %2009 = vmatpush.bf16.msra.mxu0 %v1838
      %2010 = vmatpush.bf16.msra.mxu0 %v1837
      %2011 = vmatpush.bf16.msra.mxu0 %v1836
      %2012 = vmatmul.bf16.gmra.mxu0 %v1877
      %v2013 = vpop.f32.mrf.mxu0
      %v2014 = vadd.f32 %v1985, %v2013
      %v2015 = vpop.f32.mrf.mxu0
      %v2016 = vadd.f32 %v1987, %v2015
      %2017 = vmatmul.bf16.gmra.mxu0 %v1880
      %v2018 = vpop.f32.mrf.mxu0
      %v2019 = vadd.f32 %v1990, %v2018
      %v2020 = vpop.f32.mrf.mxu0
      %v2021 = vadd.f32 %v1992, %v2020
      %2022 = vmatmul.bf16.gmra.mxu0 %v1883
      %v2023 = vpop.f32.mrf.mxu0
      %v2024 = vadd.f32 %v1995, %v2023
      %v2025 = vpop.f32.mrf.mxu0
      %v2026 = vadd.f32 %v1997, %v2025
      %2027 = vmatmul.bf16.gmra.mxu0 %v1886
      %v2028 = vpop.f32.mrf.mxu0
      %v2029 = vadd.f32 %v2000, %v2028
      %v2030 = vpop.f32.mrf.mxu0
      %v2031 = vadd.f32 %v2002, %v2030
      %2032 = vdwg.mxu0
      %v2033 = vld [vmem:[%s212] sm:$0xf]
      %v2034 = vld [vmem:[%s212 + $0x4] sm:$0xf]
      %v2035 = vld [vmem:[%s212 + $0x8] sm:$0xf]
      %v2036 = vld [vmem:[%s212 + $0xc] sm:$0xf]
      %v2037 = vld [vmem:[%s212 + $0x10] sm:$0xf]
      %v2038 = vld [vmem:[%s212 + $0x14] sm:$0xf]
      %v2039 = vld [vmem:[%s212 + $0x18] sm:$0xf]
      %v2040 = vld [vmem:[%s212 + $0x1c] sm:$0xf]
      %v2041 = vunpack.c.l.bf16 %v2033
      %v2042 = vunpack.c.l.bf16 %v2034
      %v2043 = vunpack.c.l.bf16 %v2035
      %v2044 = vunpack.c.l.bf16 %v2036
      %v2045 = vunpack.c.l.bf16 %v2037
      %v2046 = vunpack.c.l.bf16 %v2038
      %v2047 = vunpack.c.l.bf16 %v2039
      %v2048 = vunpack.c.l.bf16 %v2040
      %v2049 = vadd.f32 %v2014, %v2041
      %v2050 = vadd.f32 %v2016, %v2042
      %v2051 = vadd.f32 %v2019, %v2043
      %v2052 = vadd.f32 %v2021, %v2044
      %v2053 = vadd.f32 %v2024, %v2045
      %v2054 = vadd.f32 %v2026, %v2046
      %v2055 = vadd.f32 %v2029, %v2047
      %v2056 = vadd.f32 %v2031, %v2048
      %v2057 = vpack.c.bf16 %v2049, %v2049
      %v2058 = vpack.c.bf16 %v2050, %v2050
      %v2059 = vpack.c.bf16 %v2051, %v2051
      %v2060 = vpack.c.bf16 %v2052, %v2052
      %v2061 = vpack.c.bf16 %v2053, %v2053
      %v2062 = vpack.c.bf16 %v2054, %v2054
      %v2063 = vpack.c.bf16 %v2055, %v2055
      %v2064 = vpack.c.bf16 %v2056, %v2056
      %vm2065 = vcmask 519168
      %2066 = vst.msk [vmem:[%s217] sm:$0xf] %vm2065, %v2057
      %2067 = vst.msk [vmem:[%s217 + $0x4] sm:$0xf] %vm2065, %v2058
      %2068 = vst.msk [vmem:[%s217 + $0x8] sm:$0xf] %vm2065, %v2059
      %2069 = vst.msk [vmem:[%s217 + $0xc] sm:$0xf] %vm2065, %v2060
      %2070 = vst.msk [vmem:[%s217 + $0x10] sm:$0xf] %vm2065, %v2061
      %2071 = vst.msk [vmem:[%s217 + $0x14] sm:$0xf] %vm2065, %v2062
      %2072 = vst.msk [vmem:[%s217 + $0x18] sm:$0xf] %vm2065, %v2063
      %2073 = vst.msk [vmem:[%s217 + $0x1c] sm:$0xf] %vm2065, %v2064
      %p2074 = scmp.lt.s32.totalorder %s15, 1
      %s2075 = scalar_select %p2074, %s15, 1
      %s2076 = smul.addr %s2075, 8
      %s2077 = smul.addr %s2076, 4
      %s2078 = scalar_lea.vmem %s4, %s2077
      // Predicated region
      $region37: #{net_forward.24} parent=35 // pred_check
        %p2079 = pneg %p127
      $region38: #{net_forward.24} parent=35 // pred_check_branch
        %2081 = sbr.rel (%p2079) target = $region40
      $region39: #{net_forward.24} parent=35 // pred_region
        _
      $region40: #{net_forward.24} parent=35 // pred_fallthru
        _
    $region36: #{net_forward.24} parent=5 // pred_fallthru
      _
    %p2082 = scmp.le.s32.totalorder 2, %s10
    // Predicated region
    $region41: #{net_forward.24} parent=5 // pred_check
      %p2083 = pneg %p2082
    $region42: #{net_forward.24} parent=5 // pred_check_branch
      %2085 = sbr.rel (%p2083) target = $region44
    $region43: #{net_forward.24} parent=5 // pred_region
      %s2086 = ssub.s32 %s10, 2
      // Predicated region
      $region45: #{net_forward.24} parent=43 // pred_check
        %p2087 = pneg %p133
      $region46: #{net_forward.24} parent=43 // pred_check_branch
        %2089 = sbr.rel (%p2087) target = $region48
      $region47: #{net_forward.24} parent=43 // pred_region
        %p2090 = scmp.lt.s32.totalorder %s16, 1
        %s2091 = scalar_select %p2090, %s16, 1
        %s2092 = smul.addr %s2091, 8
        %s2093 = smul.addr %s2092, 4
        %s2094 = scalar_lea.vmem %s4, %s2093
      $region48: #{net_forward.24} parent=43 // pred_fallthru
        _
    $region44: #{net_forward.24} parent=5 // pred_fallthru
      _
  $region6: #{net_forward.24} parent=0 // loop_footer
    %s14 = sadd.s32 1, %s10
  $region7: #{net_forward.24} parent=0 // loop_footer_branch
    %9 = sbr.rel target = $region3
  $region8: #{net_forward.24} parent=0 // loop_exit
    _

// kernel: net_forward.14
$region0: #{net_forward.14}
  #allocation0 [shape = 'u32[]', space=smem, size = 0x4, offset = 0x4, fixed_abs, tag = 'smem constant byte address 0x4 - core index']
  #allocation1 [shape = 'u32[72,128]{1,0:T(1,128)}', space=vmem, size = 0x9000, scoped, tag = 'internal scratch']
  #allocation2 [shape = 'f32[1,10,10,64]{3,2,1,0:T(8,128)}', space=vmem, size = 0x14000, scoped, tag = 'scratch operand']
  %s0 = inlined_call_operand.vmem [shape: bf16[2,8,8,64], index: 0, kind: input, shape index: {}]
  %s1 = inlined_call_operand.vmem [shape: bf16[576,48], index: 1, kind: input, shape index: {}]
  %s2 = inlined_call_operand.vmem [shape: f32[67,48], index: 2, kind: input, shape index: {}]
  %s3 = inlined_call_operand.vmem [shape: bf16[384,32], index: 3, kind: input, shape index: {}]
  %s4 = inlined_call_operand.vmem [shape: f32[50,32], index: 4, kind: input, shape index: {}]
  %s5 = inlined_call_operand.vmem [shape: bf16[192,16], index: 5, kind: input, shape index: {}]
  %s6 = inlined_call_operand.vmem [shape: f32[33,16], index: 6, kind: input, shape index: {}]
  %s7 = inlined_call_operand.vmem [shape: bf16[1152,64], index: 7, kind: input, shape index: {}]
  %s8 = inlined_call_operand.vmem [shape: f32[76,64], index: 8, kind: input, shape index: {}]
  %s9 = inlined_call_operand.vmem [shape: bf16[2,8,8,64], index: 9, kind: output, shape index: {}]
  %s10 = sld [smem:[#allocation0]]
  $region69: #{net_forward.14} parent=0
    _
  %s12 = ssub.s32 1, %s10
  %s13 = scalar_select 0, %s12, %s10
  loop: start=0, step=1, limit=4
  $region2: #{net_forward.14} parent=0 // loop_pre_header
    _
  $region3: #{net_forward.14} parent=0 // loop_header
    %s15 = sphi 0, %s19
    %p16 = scmp.ge.s32.totalorder %s15, 4
    %s25 = sphi 0, %s27
    %s28 = sphi 0, %s25
    %s29 = sphi 0, %s28
    %s45 = sphi 0, %s29
    %s49 = sphi 0, %s49
    %s51 = sphi 0, %s49
    %s52 = sphi 0, %s51
    %s66 = sphi 0, %s52
    %s70 = sphi 0, %s70
    %s72 = sphi 0, %s70
    %s73 = sphi 0, %s72
    %s87 = sphi 0, %s73
    %s91 = sphi 0, %s91
    %s93 = sphi 0, %s91
    %s94 = sphi 0, %s93
    %s108 = sphi 0, %s94
    %s112 = sphi 0, %s112
    %s114 = sphi 0, %s112
    %s115 = sphi 0, %s114
    %s129 = sphi 0, %s115
    %s133 = sphi 0, %s133
    %s135 = sphi 0, %s133
    %s136 = sphi 0, %s135
    %s150 = sphi 0, %s136
    %s154 = sphi 0, %s154
    %s156 = sphi 0, %s154
    %s157 = sphi 0, %s156
    %s171 = sphi 0, %s157
    %s175 = sphi 0, %s175
    %s177 = sphi 0, %s175
    %s178 = sphi 0, %s177
    %s192 = sphi 0, %s178
    %s196 = sphi 0, %s196
    %s198 = sphi 0, %s196
    %s199 = sphi 0, %s198
    %s213 = sphi 0, %s199
    %s219 = sphi 0, %s221
    %s222 = sphi 0, %s219
    %s223 = sphi 0, %s222
    %s239 = sphi 0, %s223
  $region4: #{net_forward.14} parent=0 // loop_header_branch
    %18 = sbr.rel (%p16) target = $region8
  $region5: #{net_forward.14} parent=0 // loop_body
    %s20 = ssub.s32 %s15, 1
    %s21 = ssub.s32 %s15, 2
    %s22 = sadd.s32 %s15, 1
    %s23 = ssub.s32 %s15, %s22
    %p24 = scmp.eq.s32.totalorder %s23, 0
    %s26 = sadd.s32 %s25, 1
    %s27 = scalar_select %p24, %s25, %s26
    %p30 = pneg %p24
    %p31 = scmp.eq.s32.totalorder %s15, 1
    %p32 = por %p30, %p31
    %p33 = scmp.ne.s32.totalorder %s25, %s28
    %p34 = scmp.eq.s32.totalorder %s15, 0
    %p35 = por %p33, %p34
    %p36 = scmp.ne.s32.totalorder %s25, %s28
    %p37 = scmp.eq.s32.totalorder %s20, 1
    %p38 = por %p36, %p37
    %p39 = scmp.ne.s32.totalorder %s28, %s29
    %p40 = scmp.eq.s32.totalorder %s20, 0
    %p41 = por %p39, %p40
    %p42 = scmp.ne.s32.totalorder %s28, %s29
    %p43 = scmp.eq.s32.totalorder %s21, 1
    %p44 = por %p42, %p43
    %p46 = scmp.ne.s32.totalorder %s29, %s45
    %p47 = scmp.eq.s32.totalorder %s21, 0
    %p48 = por %p46, %p47
    %s50 = sadd.s32 %s49, 1
    %p53 = scmp.eq.s32.totalorder %s15, 1
    %p54 = scmp.ne.s32.totalorder %s49, %s51
    %p55 = scmp.eq.s32.totalorder %s15, 0
    %p56 = por %p54, %p55
    %p57 = scmp.ne.s32.totalorder %s49, %s51
    %p58 = scmp.eq.s32.totalorder %s20, 1
    %p59 = por %p57, %p58
    %p60 = scmp.ne.s32.totalorder %s51, %s52
    %p61 = scmp.eq.s32.totalorder %s20, 0
    %p62 = por %p60, %p61
    %p63 = scmp.ne.s32.totalorder %s51, %s52
    %p64 = scmp.eq.s32.totalorder %s21, 1
    %p65 = por %p63, %p64
    %p67 = scmp.ne.s32.totalorder %s52, %s66
    %p68 = scmp.eq.s32.totalorder %s21, 0
    %p69 = por %p67, %p68
    %s71 = sadd.s32 %s70, 1
    %p74 = scmp.eq.s32.totalorder %s15, 1
    %p75 = scmp.ne.s32.totalorder %s70, %s72
    %p76 = scmp.eq.s32.totalorder %s15, 0
    %p77 = por %p75, %p76
    %p78 = scmp.ne.s32.totalorder %s70, %s72
    %p79 = scmp.eq.s32.totalorder %s20, 1
    %p80 = por %p78, %p79
    %p81 = scmp.ne.s32.totalorder %s72, %s73
    %p82 = scmp.eq.s32.totalorder %s20, 0
    %p83 = por %p81, %p82
    %p84 = scmp.ne.s32.totalorder %s72, %s73
    %p85 = scmp.eq.s32.totalorder %s21, 1
    %p86 = por %p84, %p85
    %p88 = scmp.ne.s32.totalorder %s73, %s87
    %p89 = scmp.eq.s32.totalorder %s21, 0
    %p90 = por %p88, %p89
    %s92 = sadd.s32 %s91, 1
    %p95 = scmp.eq.s32.totalorder %s15, 1
    %p96 = scmp.ne.s32.totalorder %s91, %s93
    %p97 = scmp.eq.s32.totalorder %s15, 0
    %p98 = por %p96, %p97
    %p99 = scmp.ne.s32.totalorder %s91, %s93
    %p100 = scmp.eq.s32.totalorder %s20, 1
    %p101 = por %p99, %p100
    %p102 = scmp.ne.s32.totalorder %s93, %s94
    %p103 = scmp.eq.s32.totalorder %s20, 0
    %p104 = por %p102, %p103
    %p105 = scmp.ne.s32.totalorder %s93, %s94
    %p106 = scmp.eq.s32.totalorder %s21, 1
    %p107 = por %p105, %p106
    %p109 = scmp.ne.s32.totalorder %s94, %s108
    %p110 = scmp.eq.s32.totalorder %s21, 0
    %p111 = por %p109, %p110
    %s113 = sadd.s32 %s112, 1
    %p116 = scmp.eq.s32.totalorder %s15, 1
    %p117 = scmp.ne.s32.totalorder %s112, %s114
    %p118 = scmp.eq.s32.totalorder %s15, 0
    %p119 = por %p117, %p118
    %p120 = scmp.ne.s32.totalorder %s112, %s114
    %p121 = scmp.eq.s32.totalorder %s20, 1
    %p122 = por %p120, %p121
    %p123 = scmp.ne.s32.totalorder %s114, %s115
    %p124 = scmp.eq.s32.totalorder %s20, 0
    %p125 = por %p123, %p124
    %p126 = scmp.ne.s32.totalorder %s114, %s115
    %p127 = scmp.eq.s32.totalorder %s21, 1
    %p128 = por %p126, %p127
    %p130 = scmp.ne.s32.totalorder %s115, %s129
    %p131 = scmp.eq.s32.totalorder %s21, 0
    %p132 = por %p130, %p131
    %s134 = sadd.s32 %s133, 1
    %p137 = scmp.eq.s32.totalorder %s15, 1
    %p138 = scmp.ne.s32.totalorder %s133, %s135
    %p139 = scmp.eq.s32.totalorder %s15, 0
    %p140 = por %p138, %p139
    %p141 = scmp.ne.s32.totalorder %s133, %s135
    %p142 = scmp.eq.s32.totalorder %s20, 1
    %p143 = por %p141, %p142
    %p144 = scmp.ne.s32.totalorder %s135, %s136
    %p145 = scmp.eq.s32.totalorder %s20, 0
    %p146 = por %p144, %p145
    %p147 = scmp.ne.s32.totalorder %s135, %s136
    %p148 = scmp.eq.s32.totalorder %s21, 1
    %p149 = por %p147, %p148
    %p151 = scmp.ne.s32.totalorder %s136, %s150
    %p152 = scmp.eq.s32.totalorder %s21, 0
    %p153 = por %p151, %p152
    %s155 = sadd.s32 %s154, 1
    %p158 = scmp.eq.s32.totalorder %s15, 1
    %p159 = scmp.ne.s32.totalorder %s154, %s156
    %p160 = scmp.eq.s32.totalorder %s15, 0
    %p161 = por %p159, %p160
    %p162 = scmp.ne.s32.totalorder %s154, %s156
    %p163 = scmp.eq.s32.totalorder %s20, 1
    %p164 = por %p162, %p163
    %p165 = scmp.ne.s32.totalorder %s156, %s157
    %p166 = scmp.eq.s32.totalorder %s20, 0
    %p167 = por %p165, %p166
    %p168 = scmp.ne.s32.totalorder %s156, %s157
    %p169 = scmp.eq.s32.totalorder %s21, 1
    %p170 = por %p168, %p169
    %p172 = scmp.ne.s32.totalorder %s157, %s171
    %p173 = scmp.eq.s32.totalorder %s21, 0
    %p174 = por %p172, %p173
    %s176 = sadd.s32 %s175, 1
    %p179 = scmp.eq.s32.totalorder %s15, 1
    %p180 = scmp.ne.s32.totalorder %s175, %s177
    %p181 = scmp.eq.s32.totalorder %s15, 0
    %p182 = por %p180, %p181
    %p183 = scmp.ne.s32.totalorder %s175, %s177
    %p184 = scmp.eq.s32.totalorder %s20, 1
    %p185 = por %p183, %p184
    %p186 = scmp.ne.s32.totalorder %s177, %s178
    %p187 = scmp.eq.s32.totalorder %s20, 0
    %p188 = por %p186, %p187
    %p189 = scmp.ne.s32.totalorder %s177, %s178
    %p190 = scmp.eq.s32.totalorder %s21, 1
    %p191 = por %p189, %p190
    %p193 = scmp.ne.s32.totalorder %s178, %s192
    %p194 = scmp.eq.s32.totalorder %s21, 0
    %p195 = por %p193, %p194
    %s197 = sadd.s32 %s196, 1
    %p200 = scmp.eq.s32.totalorder %s15, 1
    %p201 = scmp.ne.s32.totalorder %s196, %s198
    %p202 = scmp.eq.s32.totalorder %s15, 0
    %p203 = por %p201, %p202
    %p204 = scmp.ne.s32.totalorder %s196, %s198
    %p205 = scmp.eq.s32.totalorder %s20, 1
    %p206 = por %p204, %p205
    %p207 = scmp.ne.s32.totalorder %s198, %s199
    %p208 = scmp.eq.s32.totalorder %s20, 0
    %p209 = por %p207, %p208
    %p210 = scmp.ne.s32.totalorder %s198, %s199
    %p211 = scmp.eq.s32.totalorder %s21, 1
    %p212 = por %p210, %p211
    %p214 = scmp.ne.s32.totalorder %s199, %s213
    %p215 = scmp.eq.s32.totalorder %s21, 0
    %p216 = por %p214, %p215
    %s217 = ssub.s32 %s15, %s22
    %p218 = scmp.eq.s32.totalorder %s217, 0
    %s220 = sadd.s32 %s219, 1
    %s221 = scalar_select %p218, %s219, %s220
    %p224 = pneg %p218
    %p225 = scmp.eq.s32.totalorder %s15, 1
    %p226 = por %p224, %p225
    %p227 = scmp.ne.s32.totalorder %s219, %s222
    %p228 = scmp.eq.s32.totalorder %s15, 0
    %p229 = por %p227, %p228
    %p230 = scmp.ne.s32.totalorder %s219, %s222
    %p231 = scmp.eq.s32.totalorder %s20, 1
    %p232 = por %p230, %p231
    %p233 = scmp.ne.s32.totalorder %s222, %s223
    %p234 = scmp.eq.s32.totalorder %s20, 0
    %p235 = por %p233, %p234
    %p236 = scmp.ne.s32.totalorder %s222, %s223
    %p237 = scmp.eq.s32.totalorder %s21, 1
    %p238 = por %p236, %p237
    %p240 = scmp.ne.s32.totalorder %s223, %s239
    %p241 = scmp.eq.s32.totalorder %s21, 0
    %p242 = por %p240, %p241
    %p243 = scmp.le.s32.totalorder 1, %s15
    %p244 = scmp.lt.s32.totalorder %s15, 3
    %p245 = pnand %p243, %p244
    %p246 = pneg %p245
    // Predicated region
    $region9: #{net_forward.14} parent=5 // pred_check
      _
    $region10: #{net_forward.14} parent=5 // pred_check_branch
      %248 = sbr.rel (%p245) target = $region12
    $region11: #{net_forward.14} parent=5 // pred_region
      %s249 = ssub.s32 %s15, 1
      // Predicated region
      $region13: #{net_forward.14} parent=11 // pred_check
        %p250 = pneg %p62
      $region14: #{net_forward.14} parent=11 // pred_check_branch
        %252 = sbr.rel (%p250) target = $region16
      $region15: #{net_forward.14} parent=11 // pred_region
        _
      $region16: #{net_forward.14} parent=11 // pred_fallthru
        _
      // Predicated region
      $region17: #{net_forward.14} parent=11 // pred_check
        %p253 = pneg %p83
      $region18: #{net_forward.14} parent=11 // pred_check_branch
        %255 = sbr.rel (%p253) target = $region20
      $region19: #{net_forward.14} parent=11 // pred_region
        _
      $region20: #{net_forward.14} parent=11 // pred_fallthru
        _
      // Predicated region
      $region21: #{net_forward.14} parent=11 // pred_check
        %p256 = pneg %p104
      $region22: #{net_forward.14} parent=11 // pred_check_branch
        %258 = sbr.rel (%p256) target = $region24
      $region23: #{net_forward.14} parent=11 // pred_region
        _
      $region24: #{net_forward.14} parent=11 // pred_fallthru
        _
      // Predicated region
      $region25: #{net_forward.14} parent=11 // pred_check
        %p259 = pneg %p125
      $region26: #{net_forward.14} parent=11 // pred_check_branch
        %261 = sbr.rel (%p259) target = $region28
      $region27: #{net_forward.14} parent=11 // pred_region
        _
      $region28: #{net_forward.14} parent=11 // pred_fallthru
        _
      // Predicated region
      $region29: #{net_forward.14} parent=11 // pred_check
        %p262 = pneg %p146
      $region30: #{net_forward.14} parent=11 // pred_check_branch
        %264 = sbr.rel (%p262) target = $region32
      $region31: #{net_forward.14} parent=11 // pred_region
        _
      $region32: #{net_forward.14} parent=11 // pred_fallthru
        _
      // Predicated region
      $region33: #{net_forward.14} parent=11 // pred_check
        %p265 = pneg %p167
      $region34: #{net_forward.14} parent=11 // pred_check_branch
        %267 = sbr.rel (%p265) target = $region36
      $region35: #{net_forward.14} parent=11 // pred_region
        _
      $region36: #{net_forward.14} parent=11 // pred_fallthru
        _
      // Predicated region
      $region37: #{net_forward.14} parent=11 // pred_check
        %p268 = pneg %p188
      $region38: #{net_forward.14} parent=11 // pred_check_branch
        %270 = sbr.rel (%p268) target = $region40
      $region39: #{net_forward.14} parent=11 // pred_region
        _
      $region40: #{net_forward.14} parent=11 // pred_fallthru
        _
      // Predicated region
      $region41: #{net_forward.14} parent=11 // pred_check
        %p271 = pneg %p209
      $region42: #{net_forward.14} parent=11 // pred_check_branch
        %273 = sbr.rel (%p271) target = $region44
      $region43: #{net_forward.14} parent=11 // pred_region
        _
      $region44: #{net_forward.14} parent=11 // pred_fallthru
        _
    $region12: #{net_forward.14} parent=5 // pred_fallthru
      _
    %p274 = scmp.lt.s32.totalorder %s15, 2
    // Predicated region
    $region45: #{net_forward.14} parent=5 // pred_check
      %p275 = pneg %p274
    $region46: #{net_forward.14} parent=5 // pred_check_branch
      %277 = sbr.rel (%p275) target = $region48
    $region47: #{net_forward.14} parent=5 // pred_region
      // Predicated region
      $region49: #{net_forward.14} parent=47 // pred_check
        %p278 = pneg %p35
      $region50: #{net_forward.14} parent=47 // pred_check_branch
        %280 = sbr.rel (%p278) target = $region52
      $region51: #{net_forward.14} parent=47 // pred_region
        %p281 = scmp.lt.s32.totalorder %s15, 1
        %s282 = scalar_select %p281, %s15, 1
        %s283 = smul.addr %s282, 8
        %s284 = smul.addr %s283, 4
        %s285 = scalar_lea.vmem %s0, %s284
      $region52: #{net_forward.14} parent=47 // pred_fallthru
        _
    $region48: #{net_forward.14} parent=5 // pred_fallthru
      _
    %p286 = scmp.le.s32.totalorder 1, %s15
    %p287 = scmp.lt.s32.totalorder %s15, 3
    %p288 = pnand %p286, %p287
    %p289 = pneg %p288
    // Predicated region
    $region53: #{net_forward.14} parent=5 // pred_check
      _
    $region54: #{net_forward.14} parent=5 // pred_check_branch
      %291 = sbr.rel (%p288) target = $region56
    $region55: #{net_forward.14} parent=5 // pred_region
      %s292 = ssub.s32 %s15, 1
      %p293 = scmp.lt.s32.totalorder %s20, 1
      %s294 = scalar_select %p293, %s20, 1
      %s295 = smul.addr %s294, 8
      %s296 = smul.addr %s295, 4
      %s297 = scalar_lea.vmem %s0, %s296
      %p298 = pneg %p41
      %p299 = pneg %p38
      %p300 = pneg %p62
      %p301 = pneg %p59
      %p302 = pneg %p83
      %p303 = pneg %p80
      %p304 = pneg %p104
      %p305 = pneg %p101
      %p306 = pneg %p125
      %p307 = pneg %p122
      %p308 = pneg %p146
      %p309 = pneg %p143
      %p310 = pneg %p167
      %p311 = pneg %p164
      %p312 = pneg %p188
      %p313 = pneg %p185
      %p314 = pneg %p209
      %p315 = pneg %p206
      %p316 = pneg %p235
      %p317 = pneg %p232
      %p318 = scmp.lt.s32.totalorder %s20, 1
      %s319 = scalar_select %p318, %s20, 1
      %s320 = smul.addr %s319, 8
      %s321 = smul.addr %s320, 4
      %s322 = scalar_lea.vmem %s9, %s321
      %p323 = scmp.lt.s32.totalorder %s20, 1
      %s324 = scalar_select %p323, %s20, 1
      %s325 = smul.addr %s324, 8
      %s326 = smul.addr %s325, 4
      %s327 = scalar_lea.vmem %s0, %s326
      %p328 = scmp.lt.s32.totalorder %s20, 1
      %s329 = scalar_select %p328, %s20, 1
      %s330 = smul.addr %s329, 8
      %s331 = smul.addr %s330, 4
      %s332 = scalar_lea.vmem %s9, %s331
      %vm334 = vcmask 523264
      %335 = vst.msk [vmem:[#allocation2] sm:$0xff] %vm334, 0.0
      %vm336 = vcmask 517120
      %337 = vst.msk [vmem:[#allocation2 + $0x8] sm:$0x3] %vm336, 0.0
      %338 = vst.msk [vmem:[#allocation2 + $0x10] sm:$0xff] %vm334, 0.0
      %339 = vst.msk [vmem:[#allocation2 + $0x18] sm:$0x3] %vm336, 0.0
      %340 = vst.msk [vmem:[#allocation2 + $0x20] sm:$0xff] %vm334, 0.0
      %341 = vst.msk [vmem:[#allocation2 + $0x28] sm:$0x3] %vm336, 0.0
      %342 = vst.msk [vmem:[#allocation2 + $0x30] sm:$0xff] %vm334, 0.0
      %343 = vst.msk [vmem:[#allocation2 + $0x38] sm:$0x3] %vm336, 0.0
      %344 = vst.msk [vmem:[#allocation2 + $0x40] sm:$0xff] %vm334, 0.0
      %345 = vst.msk [vmem:[#allocation2 + $0x48] sm:$0x3] %vm336, 0.0
      %346 = vst.msk [vmem:[#allocation2 + $0x50] sm:$0xff] %vm334, 0.0
      %347 = vst.msk [vmem:[#allocation2 + $0x58] sm:$0x3] %vm336, 0.0
      %348 = vst.msk [vmem:[#allocation2 + $0x60] sm:$0xff] %vm334, 0.0
      %349 = vst.msk [vmem:[#allocation2 + $0x68] sm:$0x3] %vm336, 0.0
      %350 = vst.msk [vmem:[#allocation2 + $0x70] sm:$0xff] %vm334, 0.0
      %351 = vst.msk [vmem:[#allocation2 + $0x78] sm:$0x3] %vm336, 0.0
      %352 = vst.msk [vmem:[#allocation2 + $0x80] sm:$0xff] %vm334, 0.0
      %353 = vst.msk [vmem:[#allocation2 + $0x88] sm:$0x3] %vm336, 0.0
      %354 = vst.msk [vmem:[#allocation2 + $0x90] sm:$0xff] %vm334, 0.0
      %355 = vst.msk [vmem:[#allocation2 + $0x98] sm:$0x3] %vm336, 0.0
      %v356 = vld [vmem:[%s327] sm:$0xf]
      %v357 = vld [vmem:[%s327 + $0x4] sm:$0xf]
      %v358 = vld [vmem:[%s327 + $0x8] sm:$0xf]
      %v359 = vld [vmem:[%s327 + $0xc] sm:$0xf]
      %v360 = vld [vmem:[%s327 + $0x10] sm:$0xf]
      %v361 = vld [vmem:[%s327 + $0x14] sm:$0xf]
      %v362 = vld [vmem:[%s327 + $0x18] sm:$0xf]
      %v363 = vld [vmem:[%s327 + $0x1c] sm:$0xf]
      %v364 = vunpack.c.l.bf16 %v356
      %v365 = vunpack.c.l.bf16 %v357
      %v366 = vunpack.c.l.bf16 %v358
      %v367 = vunpack.c.l.bf16 %v359
      %v368 = vunpack.c.l.bf16 %v360
      %v369 = vunpack.c.l.bf16 %v361
      %v370 = vunpack.c.l.bf16 %v362
      %v371 = vunpack.c.l.bf16 %v363
      %380 = vrot.lane.b32.xlu0 %v364, 112
      %v381 = vpop.permute.xlu0 %380
      %382 = vrot.lane.b32.xlu0 %v365, 112
      %v383 = vpop.permute.xlu0 %382
      %384 = vrot.lane.b32.xlu0 %v366, 112
      %v385 = vpop.permute.xlu0 %384
      %386 = vrot.lane.b32.xlu0 %v367, 112
      %v387 = vpop.permute.xlu0 %386
      %388 = vrot.lane.b32.xlu0 %v368, 112
      %v389 = vpop.permute.xlu0 %388
      %390 = vrot.lane.b32.xlu0 %v369, 112
      %v391 = vpop.permute.xlu0 %390
      %392 = vrot.lane.b32.xlu0 %v370, 112
      %v393 = vpop.permute.xlu0 %392
      %394 = vrot.lane.b32.xlu0 %v371, 112
      %v395 = vpop.permute.xlu0 %394
      %s404 = scalar_lea.vmem [#allocation2], 16
      %vm405 = vcmask 392192
      %406 = vst.msk [vmem:[%s404 + $0x1] sm:$0xff] %vm405, %v381
      %407 = vst.msk [vmem:[%s404 + $0x11] sm:$0xff] %vm405, %v383
      %408 = vst.msk [vmem:[%s404 + $0x21] sm:$0xff] %vm405, %v385
      %409 = vst.msk [vmem:[%s404 + $0x31] sm:$0xff] %vm405, %v387
      %410 = vst.msk [vmem:[%s404 + $0x41] sm:$0xff] %vm405, %v389
      %411 = vst.msk [vmem:[%s404 + $0x51] sm:$0xff] %vm405, %v391
      %412 = vst.msk [vmem:[%s404 + $0x61] sm:$0xff] %vm405, %v393
      %413 = vst.msk [vmem:[%s404 + $0x71] sm:$0xff] %vm405, %v395
      %v414 = vld [vmem:[#allocation2 + $0x1] sm:$0xff]
      %v415 = vld [vmem:[#allocation2 + $0x11] sm:$0xff]
      %v416 = vld [vmem:[#allocation2 + $0x21] sm:$0xff]
      %v417 = vld [vmem:[#allocation2 + $0x31] sm:$0xff]
      %v418 = vld [vmem:[#allocation2 + $0x41] sm:$0xff]
      %v419 = vld [vmem:[#allocation2 + $0x51] sm:$0xff]
      %v420 = vld [vmem:[#allocation2 + $0x61] sm:$0xff]
      %v421 = vld [vmem:[#allocation2 + $0x71] sm:$0xff]
      %v422 = vpack.c.bf16 %v414, %v414
      %v423 = vpack.c.bf16 %v415, %v415
      %v424 = vpack.c.bf16 %v416, %v416
      %v425 = vpack.c.bf16 %v417, %v417
      %v426 = vpack.c.bf16 %v418, %v418
      %v427 = vpack.c.bf16 %v419, %v419
      %v428 = vpack.c.bf16 %v420, %v420
      %v429 = vpack.c.bf16 %v421, %v421
      %v430 = vld [vmem:[%s404 + $0x1] sm:$0xff]
      %v431 = vld [vmem:[%s404 + $0x11] sm:$0xff]
      %v432 = vld [vmem:[%s404 + $0x21] sm:$0xff]
      %v433 = vld [vmem:[%s404 + $0x31] sm:$0xff]
      %v434 = vld [vmem:[%s404 + $0x41] sm:$0xff]
      %v435 = vld [vmem:[%s404 + $0x51] sm:$0xff]
      %v436 = vld [vmem:[%s404 + $0x61] sm:$0xff]
      %v437 = vld [vmem:[%s404 + $0x71] sm:$0xff]
      %v438 = vpack.c.bf16 %v430, %v430
      %v439 = vpack.c.bf16 %v431, %v431
      %v440 = vpack.c.bf16 %v432, %v432
      %v441 = vpack.c.bf16 %v433, %v433
      %v442 = vpack.c.bf16 %v434, %v434
      %v443 = vpack.c.bf16 %v435, %v435
      %v444 = vpack.c.bf16 %v436, %v436
      %v445 = vpack.c.bf16 %v437, %v437
      %s446 = scalar_lea.vmem [#allocation2], 32
      %v447 = vld [vmem:[%s446 + $0x1] sm:$0xff]
      %v448 = vld [vmem:[%s446 + $0x11] sm:$0xff]
      %v449 = vld [vmem:[%s446 + $0x21] sm:$0xff]
      %v450 = vld [vmem:[%s446 + $0x31] sm:$0xff]
      %v451 = vld [vmem:[%s446 + $0x41] sm:$0xff]
      %v452 = vld [vmem:[%s446 + $0x51] sm:$0xff]
      %v453 = vld [vmem:[%s446 + $0x61] sm:$0xff]
      %v454 = vld [vmem:[%s446 + $0x71] sm:$0xff]
      %v455 = vpack.c.bf16 %v447, %v447
      %v456 = vpack.c.bf16 %v448, %v448
      %v457 = vpack.c.bf16 %v449, %v449
      %v458 = vpack.c.bf16 %v450, %v450
      %v459 = vpack.c.bf16 %v451, %v451
      %v460 = vpack.c.bf16 %v452, %v452
      %v461 = vpack.c.bf16 %v453, %v453
      %v462 = vpack.c.bf16 %v454, %v454
      %v463 = vld [vmem:[%s404] sm:$0xff]
      %v464 = vld [vmem:[%s404 + $0x10] sm:$0xff]
      %v465 = vld [vmem:[%s404 + $0x20] sm:$0xff]
      %v466 = vld [vmem:[%s404 + $0x30] sm:$0xff]
      %v467 = vld [vmem:[%s404 + $0x40] sm:$0xff]
      %v468 = vld [vmem:[%s404 + $0x50] sm:$0xff]
      %v469 = vld [vmem:[%s404 + $0x60] sm:$0xff]
      %v470 = vld [vmem:[%s404 + $0x70] sm:$0xff]
      %v471 = vpack.c.bf16 %v463, %v463
      %v472 = vpack.c.bf16 %v464, %v464
      %v473 = vpack.c.bf16 %v465, %v465
      %v474 = vpack.c.bf16 %v466, %v466
      %v475 = vpack.c.bf16 %v467, %v467
      %v476 = vpack.c.bf16 %v468, %v468
      %v477 = vpack.c.bf16 %v469, %v469
      %v478 = vpack.c.bf16 %v470, %v470
      %v479 = vld [vmem:[%s404 + $0x2] sm:$0xff]
      %v480 = vld [vmem:[%s404 + $0x12] sm:$0xff]
      %v481 = vld [vmem:[%s404 + $0x22] sm:$0xff]
      %v482 = vld [vmem:[%s404 + $0x32] sm:$0xff]
      %v483 = vld [vmem:[%s404 + $0x42] sm:$0xff]
      %v484 = vld [vmem:[%s404 + $0x52] sm:$0xff]
      %v485 = vld [vmem:[%s404 + $0x62] sm:$0xff]
      %v486 = vld [vmem:[%s404 + $0x72] sm:$0xff]
      %v487 = vpack.c.bf16 %v479, %v479
      %v488 = vpack.c.bf16 %v480, %v480
      %v489 = vpack.c.bf16 %v481, %v481
      %v490 = vpack.c.bf16 %v482, %v482
      %v491 = vpack.c.bf16 %v483, %v483
      %v492 = vpack.c.bf16 %v484, %v484
      %v493 = vpack.c.bf16 %v485, %v485
      %v494 = vpack.c.bf16 %v486, %v486
      %v503 = vunpack.c.l.b16 %v422
      %v504 = vunpack.c.l.b16 %v423
      %v505 = vunpack.c.l.b16 %v424
      %v506 = vunpack.c.l.b16 %v425
      %v507 = vunpack.c.l.b16 %v426
      %v508 = vunpack.c.l.b16 %v427
      %v509 = vunpack.c.l.b16 %v428
      %v510 = vunpack.c.l.b16 %v429
      %v511 = vpack.c.b16 %v504, %v503
      %v512 = vpack.c.b16 %v506, %v505
      %v513 = vpack.c.b16 %v508, %v507
      %v514 = vpack.c.b16 %v510, %v509
      %v523 = vunpack.c.l.b16 %v438
      %v524 = vunpack.c.l.b16 %v439
      %v525 = vunpack.c.l.b16 %v440
      %v526 = vunpack.c.l.b16 %v441
      %v527 = vunpack.c.l.b16 %v442
      %v528 = vunpack.c.l.b16 %v443
      %v529 = vunpack.c.l.b16 %v444
      %v530 = vunpack.c.l.b16 %v445
      %v531 = vpack.c.b16 %v524, %v523
      %v532 = vpack.c.b16 %v526, %v525
      %v533 = vpack.c.b16 %v528, %v527
      %v534 = vpack.c.b16 %v530, %v529
      %535 = vrot.lane.b32.xlu0 %v531, 48
      %v536 = vpop.permute.xlu0 %535
      %537 = vrot.lane.b32.xlu0 %v532, 48
      %v538 = vpop.permute.xlu0 %537
      %539 = vrot.lane.b32.xlu0 %v533, 48
      %v540 = vpop.permute.xlu0 %539
      %541 = vrot.lane.b32.xlu0 %v534, 48
      %v542 = vpop.permute.xlu0 %541
      %v551 = vunpack.c.l.b16 %v455
      %v552 = vunpack.c.l.b16 %v456
      %v553 = vunpack.c.l.b16 %v457
      %v554 = vunpack.c.l.b16 %v458
      %v555 = vunpack.c.l.b16 %v459
      %v556 = vunpack.c.l.b16 %v460
      %v557 = vunpack.c.l.b16 %v461
      %v558 = vunpack.c.l.b16 %v462
      %v559 = vpack.c.b16 %v552, %v551
      %v560 = vpack.c.b16 %v554, %v553
      %v561 = vpack.c.b16 %v556, %v555
      %v562 = vpack.c.b16 %v558, %v557
      %563 = vrot.lane.b32.xlu0 %v559, 96
      %v564 = vpop.permute.xlu0 %563
      %565 = vrot.lane.b32.xlu0 %v560, 96
      %v566 = vpop.permute.xlu0 %565
      %567 = vrot.lane.b32.xlu0 %v561, 96
      %v568 = vpop.permute.xlu0 %567
      %569 = vrot.lane.b32.xlu0 %v562, 96
      %v570 = vpop.permute.xlu0 %569
      %v579 = vunpack.c.l.b16 %v471
      %v580 = vunpack.c.l.b16 %v472
      %v581 = vunpack.c.l.b16 %v473
      %v582 = vunpack.c.l.b16 %v474
      %v583 = vunpack.c.l.b16 %v475
      %v584 = vunpack.c.l.b16 %v476
      %v585 = vunpack.c.l.b16 %v477
      %v586 = vunpack.c.l.b16 %v478
      %v587 = vpack.c.b16 %v580, %v579
      %v588 = vpack.c.b16 %v582, %v581
      %v589 = vpack.c.b16 %v584, %v583
      %v590 = vpack.c.b16 %v586, %v585
      %591 = vrot.lane.b32.xlu0 %v587, 16
      %v592 = vpop.permute.xlu0 %591
      %593 = vrot.lane.b32.xlu0 %v588, 16
      %v594 = vpop.permute.xlu0 %593
      %595 = vrot.lane.b32.xlu0 %v589, 16
      %v596 = vpop.permute.xlu0 %595
      %597 = vrot.lane.b32.xlu0 %v590, 16
      %v598 = vpop.permute.xlu0 %597
      %599 = vrot.lane.b32.xlu0 %v531, 64
      %v600 = vpop.permute.xlu0 %599
      %601 = vrot.lane.b32.xlu0 %v532, 64
      %v602 = vpop.permute.xlu0 %601
      %603 = vrot.lane.b32.xlu0 %v533, 64
      %v604 = vpop.permute.xlu0 %603
      %605 = vrot.lane.b32.xlu0 %v534, 64
      %v606 = vpop.permute.xlu0 %605
      %v615 = vunpack.c.l.b16 %v487
      %v616 = vunpack.c.l.b16 %v488
      %v617 = vunpack.c.l.b16 %v489
      %v618 = vunpack.c.l.b16 %v490
      %v619 = vunpack.c.l.b16 %v491
      %v620 = vunpack.c.l.b16 %v492
      %v621 = vunpack.c.l.b16 %v493
      %v622 = vunpack.c.l.b16 %v494
      %v623 = vpack.c.b16 %v616, %v615
      %v624 = vpack.c.b16 %v618, %v617
      %v625 = vpack.c.b16 %v620, %v619
      %v626 = vpack.c.b16 %v622, %v621
      %627 = vrot.lane.b32.xlu0 %v623, 112
      %v628 = vpop.permute.xlu0 %627
      %629 = vrot.lane.b32.xlu0 %v624, 112
      %v630 = vpop.permute.xlu0 %629
      %631 = vrot.lane.b32.xlu0 %v625, 112
      %v632 = vpop.permute.xlu0 %631
      %633 = vrot.lane.b32.xlu0 %v626, 112
      %v634 = vpop.permute.xlu0 %633
      %v637 = vsel %vm405, %v511, %v536
      %v640 = vsel %vm405, %v512, %v538
      %v643 = vsel %vm405, %v513, %v540
      %v646 = vsel %vm405, %v514, %v542
      %vm647 = vcmask 785408
      %v649 = vsel %vm647, %v637, %v564
      %v652 = vsel %vm647, %v640, %v566
      %v655 = vsel %vm647, %v643, %v568
      %v658 = vsel %vm647, %v646, %v570
      %vm660 = vcmask 130048
      %v662 = vsel %vm660, %v564, %v592
      %v664 = vsel %vm660, %v566, %v594
      %v666 = vsel %vm660, %v568, %v596
      %v668 = vsel %vm660, %v570, %v598
      %v670 = vsel %vm334, %v662, %v600
      %v672 = vsel %vm334, %v664, %v602
      %v674 = vsel %vm334, %v666, %v604
      %v676 = vsel %vm334, %v668, %v606
      %vm677 = vcmask 916480
      %v679 = vsel %vm677, %v670, %v628
      %v682 = vsel %vm677, %v672, %v630
      %v685 = vsel %vm677, %v674, %v632
      %v688 = vsel %vm677, %v676, %v634
      %v690 = vld [vmem:[%s1] sm:$0xf]
      %v691 = vld [vmem:[%s1 + $0x4] sm:$0xf]
      %v692 = vld [vmem:[%s1 + $0x8] sm:$0xf]
      %v693 = vld [vmem:[%s1 + $0xc] sm:$0xf]
      %v694 = vld [vmem:[%s1 + $0x10] sm:$0xf]
      %v695 = vld [vmem:[%s1 + $0x14] sm:$0xf]
      %v696 = vld [vmem:[%s1 + $0x18] sm:$0xf]
      %v697 = vld [vmem:[%s1 + $0x1c] sm:$0xf]
      %v698 = vld [vmem:[%s1 + $0x20] sm:$0xf]
      %v699 = vld [vmem:[%s1 + $0x24] sm:$0xf]
      %v700 = vld [vmem:[%s1 + $0x28] sm:$0xf]
      %v701 = vld [vmem:[%s1 + $0x2c] sm:$0xf]
      %v702 = vld [vmem:[%s1 + $0x30] sm:$0xf]
      %v703 = vld [vmem:[%s1 + $0x34] sm:$0xf]
      %v704 = vld [vmem:[%s1 + $0x38] sm:$0xf]
      %v705 = vld [vmem:[%s1 + $0x3c] sm:$0xf]
      %v706 = vld [vmem:[%s1 + $0x40] sm:$0xf]
      %v707 = vld [vmem:[%s1 + $0x44] sm:$0xf]
      %v708 = vld [vmem:[%s1 + $0x48] sm:$0xf]
      %v709 = vld [vmem:[%s1 + $0x4c] sm:$0xf]
      %v710 = vld [vmem:[%s1 + $0x50] sm:$0xf]
      %v711 = vld [vmem:[%s1 + $0x54] sm:$0xf]
      %v712 = vld [vmem:[%s1 + $0x58] sm:$0xf]
      %v713 = vld [vmem:[%s1 + $0x5c] sm:$0xf]
      %v714 = vld [vmem:[%s1 + $0x60] sm:$0xf]
      %v715 = vld [vmem:[%s1 + $0x64] sm:$0xf]
      %v716 = vld [vmem:[%s1 + $0x68] sm:$0xf]
      %v717 = vld [vmem:[%s1 + $0x6c] sm:$0xf]
      %v718 = vld [vmem:[%s1 + $0x70] sm:$0xf]
      %v719 = vld [vmem:[%s1 + $0x74] sm:$0xf]
      %v720 = vld [vmem:[%s1 + $0x78] sm:$0xf]
      %v721 = vld [vmem:[%s1 + $0x7c] sm:$0xf]
      %v722 = vld [vmem:[%s1 + $0x80] sm:$0xf]
      %v723 = vld [vmem:[%s1 + $0x84] sm:$0xf]
      %v724 = vld [vmem:[%s1 + $0x88] sm:$0xf]
      %v725 = vld [vmem:[%s1 + $0x8c] sm:$0xf]
      %v726 = vld [vmem:[%s2] sm:$0x1]
      %v727 = vperm.slane %v726, 0
      %v764 = vunpack.c.l.b16 %v690
      %v765 = vunpack.c.l.b16 %v691
      %v766 = vunpack.c.l.b16 %v692
      %v767 = vunpack.c.l.b16 %v693
      %v768 = vunpack.c.l.b16 %v694
      %v769 = vunpack.c.l.b16 %v695
      %v770 = vunpack.c.l.b16 %v696
      %v771 = vunpack.c.l.b16 %v697
      %v772 = vunpack.c.l.b16 %v698
      %v773 = vunpack.c.l.b16 %v699
      %v774 = vunpack.c.l.b16 %v700
      %v775 = vunpack.c.l.b16 %v701
      %v776 = vunpack.c.l.b16 %v702
      %v777 = vunpack.c.l.b16 %v703
      %v778 = vunpack.c.l.b16 %v704
      %v779 = vunpack.c.l.b16 %v705
      %v780 = vunpack.c.l.b16 %v706
      %v781 = vunpack.c.l.b16 %v707
      %v782 = vunpack.c.l.b16 %v708
      %v783 = vunpack.c.l.b16 %v709
      %v784 = vunpack.c.l.b16 %v710
      %v785 = vunpack.c.l.b16 %v711
      %v786 = vunpack.c.l.b16 %v712
      %v787 = vunpack.c.l.b16 %v713
      %v788 = vunpack.c.l.b16 %v714
      %v789 = vunpack.c.l.b16 %v715
      %v790 = vunpack.c.l.b16 %v716
      %v791 = vunpack.c.l.b16 %v717
      %v792 = vunpack.c.l.b16 %v718
      %v793 = vunpack.c.l.b16 %v719
      %v794 = vunpack.c.l.b16 %v720
      %v795 = vunpack.c.l.b16 %v721
      %v796 = vunpack.c.l.b16 %v722
      %v797 = vunpack.c.l.b16 %v723
      %v798 = vunpack.c.l.b16 %v724
      %v799 = vunpack.c.l.b16 %v725
      %v800 = vpack.c.b16 %v765, %v764
      %v801 = vpack.c.b16 %v767, %v766
      %v802 = vpack.c.b16 %v769, %v768
      %v803 = vpack.c.b16 %v771, %v770
      %v804 = vpack.c.b16 %v773, %v772
      %v805 = vpack.c.b16 %v775, %v774
      %v806 = vpack.c.b16 %v777, %v776
      %v807 = vpack.c.b16 %v779, %v778
      %v808 = vpack.c.b16 %v781, %v780
      %v809 = vpack.c.b16 %v783, %v782
      %v810 = vpack.c.b16 %v785, %v784
      %v811 = vpack.c.b16 %v787, %v786
      %v812 = vpack.c.b16 %v789, %v788
      %v813 = vpack.c.b16 %v791, %v790
      %v814 = vpack.c.b16 %v793, %v792
      %v815 = vpack.c.b16 %v795, %v794
      %v816 = vpack.c.b16 %v797, %v796
      %v817 = vpack.c.b16 %v799, %v798
      %vm836 = vcmask 261120
      %v837 = vsel %vm836, %v628, 0
      %v839 = vsel %vm836, %v630, 0
      %v841 = vsel %vm836, %v632, 0
      %v843 = vsel %vm836, %v634, 0
      %845 = vmatpush.bf16.msra.mxu0 %v807
      %846 = vmatpush.bf16.msra.mxu0 %v806
      %847 = vmatpush.bf16.msra.mxu0 %v805
      %848 = vmatpush.bf16.msra.mxu0 %v804
      %849 = vmatpush.bf16.msra.mxu0 %v803
      %850 = vmatpush.bf16.msra.mxu0 %v802
      %851 = vmatpush.bf16.msra.mxu0 %v801
      %852 = vmatpush.bf16.msra.mxu0 %v800
      %853 = vmatmul.bf16.gmra.mxu0 %v649
      %v854 = vpop.f32.mrf.mxu0
      %v855 = vadd.f32 %v727, %v854
      %v856 = vpop.f32.mrf.mxu0
      %v857 = vadd.f32 %v727, %v856
      %858 = vmatmul.bf16.gmra.mxu0 %v652
      %v859 = vpop.f32.mrf.mxu0
      %v860 = vadd.f32 %v727, %v859
      %v861 = vpop.f32.mrf.mxu0
      %v862 = vadd.f32 %v727, %v861
      %863 = vmatmul.bf16.gmra.mxu0 %v655
      %v864 = vpop.f32.mrf.mxu0
      %v865 = vadd.f32 %v727, %v864
      %v866 = vpop.f32.mrf.mxu0
      %v867 = vadd.f32 %v727, %v866
      %868 = vmatmul.bf16.gmra.mxu0 %v658
      %v869 = vpop.f32.mrf.mxu0
      %v870 = vadd.f32 %v727, %v869
      %v871 = vpop.f32.mrf.mxu0
      %v872 = vadd.f32 %v727, %v871
      %873 = vdwg.mxu0
      %874 = vmatpush.bf16.msra.mxu0 %v815
      %875 = vmatpush.bf16.msra.mxu0 %v814
      %876 = vmatpush.bf16.msra.mxu0 %v813
      %877 = vmatpush.bf16.msra.mxu0 %v812
      %878 = vmatpush.bf16.msra.mxu0 %v811
      %879 = vmatpush.bf16.msra.mxu0 %v810
      %880 = vmatpush.bf16.msra.mxu0 %v809
      %881 = vmatpush.bf16.msra.mxu0 %v808
      %882 = vmatmul.bf16.gmra.mxu0 %v679
      %v883 = vpop.f32.mrf.mxu0
      %v884 = vadd.f32 %v855, %v883
      %v885 = vpop.f32.mrf.mxu0
      %v886 = vadd.f32 %v857, %v885
      %887 = vmatmul.bf16.gmra.mxu0 %v682
      %v888 = vpop.f32.mrf.mxu0
      %v889 = vadd.f32 %v860, %v888
      %v890 = vpop.f32.mrf.mxu0
      %v891 = vadd.f32 %v862, %v890
      %892 = vmatmul.bf16.gmra.mxu0 %v685
      %v893 = vpop.f32.mrf.mxu0
      %v894 = vadd.f32 %v865, %v893
      %v895 = vpop.f32.mrf.mxu0
      %v896 = vadd.f32 %v867, %v895
      %897 = vmatmul.bf16.gmra.mxu0 %v688
      %v898 = vpop.f32.mrf.mxu0
      %v899 = vadd.f32 %v870, %v898
      %v900 = vpop.f32.mrf.mxu0
      %v901 = vadd.f32 %v872, %v900
      %902 = vdwg.mxu0
      %903 = vmatpush.bf16.msra.mxu0 0
      %904 = vmatpush.bf16.msra.mxu0 0
      %905 = vmatpush.bf16.msra.mxu0 0
      %906 = vmatpush.bf16.msra.mxu0 0
      %907 = vmatpush.bf16.msra.mxu0 0
      %908 = vmatpush.bf16.msra.mxu0 0
      %909 = vmatpush.bf16.msra.mxu0 %v817
      %910 = vmatpush.bf16.msra.mxu0 %v816
      %911 = vmatmul.bf16.gmra.mxu0 %v837
      %v912 = vpop.f32.mrf.mxu0
      %v913 = vadd.f32 %v884, %v912
      %v914 = vpop.f32.mrf.mxu0
      %v915 = vadd.f32 %v886, %v914
      %916 = vmatmul.bf16.gmra.mxu0 %v839
      %v917 = vpop.f32.mrf.mxu0
      %v918 = vadd.f32 %v889, %v917
      %v919 = vpop.f32.mrf.mxu0
      %v920 = vadd.f32 %v891, %v919
      %921 = vmatmul.bf16.gmra.mxu0 %v841
      %v922 = vpop.f32.mrf.mxu0
      %v923 = vadd.f32 %v894, %v922
      %v924 = vpop.f32.mrf.mxu0
      %v925 = vadd.f32 %v896, %v924
      %926 = vmatmul.bf16.gmra.mxu0 %v843
      %v927 = vpop.f32.mrf.mxu0
      %v928 = vadd.f32 %v899, %v927
      %v929 = vpop.f32.mrf.mxu0
      %v930 = vadd.f32 %v901, %v929
      %931 = vdwg.mxu0
      %vm932 = vcmp.ge.f32.partialorder %v913, 0.0
      %vm933 = vcmp.ge.f32.partialorder %v915, 0.0
      %vm934 = vcmp.ge.f32.partialorder %v918, 0.0
      %vm935 = vcmp.ge.f32.partialorder %v920, 0.0
      %vm936 = vcmp.ge.f32.partialorder %v923, 0.0
      %vm937 = vcmp.ge.f32.partialorder %v925, 0.0
      %vm938 = vcmp.ge.f32.partialorder %v928, 0.0
      %vm939 = vcmp.ge.f32.partialorder %v930, 0.0
      %v940 = vmul.f32 %v913, 0.01
      %v941 = vmul.f32 %v915, 0.01
      %v942 = vmul.f32 %v918, 0.01
      %v943 = vmul.f32 %v920, 0.01
      %v944 = vmul.f32 %v923, 0.01
      %v945 = vmul.f32 %v925, 0.01
      %v946 = vmul.f32 %v928, 0.01
      %v947 = vmul.f32 %v930, 0.01
      %v948 = vsel %vm932, %v913, %v940
      %v949 = vsel %vm933, %v915, %v941
      %v950 = vsel %vm934, %v918, %v942
      %v951 = vsel %vm935, %v920, %v943
      %v952 = vsel %vm936, %v923, %v944
      %v953 = vsel %vm937, %v925, %v945
      %v954 = vsel %vm938, %v928, %v946
      %v955 = vsel %vm939, %v930, %v947
      %956 = vst.msk [vmem:[%s404 + $0x1] sm:$0xff] %vm405, %v948
      %957 = vst.msk [vmem:[%s404 + $0x11] sm:$0xff] %vm405, %v949
      %958 = vst.msk [vmem:[%s404 + $0x21] sm:$0xff] %vm405, %v950
      %959 = vst.msk [vmem:[%s404 + $0x31] sm:$0xff] %vm405, %v951
      %960 = vst.msk [vmem:[%s404 + $0x41] sm:$0xff] %vm405, %v952
      %961 = vst.msk [vmem:[%s404 + $0x51] sm:$0xff] %vm405, %v953
      %962 = vst.msk [vmem:[%s404 + $0x61] sm:$0xff] %vm405, %v954
      %963 = vst.msk [vmem:[%s404 + $0x71] sm:$0xff] %vm405, %v955
      %v964 = vld [vmem:[#allocation2 + $0x1] sm:$0xff]
      %v965 = vld [vmem:[#allocation2 + $0x11] sm:$0xff]
      %v966 = vld [vmem:[#allocation2 + $0x21] sm:$0xff]
      %v967 = vld [vmem:[#allocation2 + $0x31] sm:$0xff]
      %v968 = vld [vmem:[#allocation2 + $0x41] sm:$0xff]
      %v969 = vld [vmem:[#allocation2 + $0x51] sm:$0xff]
      %v970 = vld [vmem:[#allocation2 + $0x61] sm:$0xff]
      %v971 = vld [vmem:[#allocation2 + $0x71] sm:$0xff]
      %v972 = vpack.c.bf16 %v964, %v964
      %v973 = vpack.c.bf16 %v965, %v965
      %v974 = vpack.c.bf16 %v966, %v966
      %v975 = vpack.c.bf16 %v967, %v967
      %v976 = vpack.c.bf16 %v968, %v968
      %v977 = vpack.c.bf16 %v969, %v969
      %v978 = vpack.c.bf16 %v970, %v970
      %v979 = vpack.c.bf16 %v971, %v971
      %v980 = vld [vmem:[%s404 + $0x1] sm:$0xff]
      %v981 = vld [vmem:[%s404 + $0x11] sm:$0xff]
      %v982 = vld [vmem:[%s404 + $0x21] sm:$0xff]
      %v983 = vld [vmem:[%s404 + $0x31] sm:$0xff]
      %v984 = vld [vmem:[%s404 + $0x41] sm:$0xff]
      %v985 = vld [vmem:[%s404 + $0x51] sm:$0xff]
      %v986 = vld [vmem:[%s404 + $0x61] sm:$0xff]
      %v987 = vld [vmem:[%s404 + $0x71] sm:$0xff]
      %v988 = vpack.c.bf16 %v980, %v980
      %v989 = vpack.c.bf16 %v981, %v981
      %v990 = vpack.c.bf16 %v982, %v982
      %v991 = vpack.c.bf16 %v983, %v983
      %v992 = vpack.c.bf16 %v984, %v984
      %v993 = vpack.c.bf16 %v985, %v985
      %v994 = vpack.c.bf16 %v986, %v986
      %v995 = vpack.c.bf16 %v987, %v987
      %v996 = vld [vmem:[%s446 + $0x1] sm:$0xff]
      %v997 = vld [vmem:[%s446 + $0x11] sm:$0xff]
      %v998 = vld [vmem:[%s446 + $0x21] sm:$0xff]
      %v999 = vld [vmem:[%s446 + $0x31] sm:$0xff]
      %v1000 = vld [vmem:[%s446 + $0x41] sm:$0xff]
      %v1001 = vld [vmem:[%s446 + $0x51] sm:$0xff]
      %v1002 = vld [vmem:[%s446 + $0x61] sm:$0xff]
      %v1003 = vld [vmem:[%s446 + $0x71] sm:$0xff]
      %v1004 = vpack.c.bf16 %v996, %v996
      %v1005 = vpack.c.bf16 %v997, %v997
      %v1006 = vpack.c.bf16 %v998, %v998
      %v1007 = vpack.c.bf16 %v999, %v999
      %v1008 = vpack.c.bf16 %v1000, %v1000
      %v1009 = vpack.c.bf16 %v1001, %v1001
      %v1010 = vpack.c.bf16 %v1002, %v1002
      %v1011 = vpack.c.bf16 %v1003, %v1003
      %v1012 = vld [vmem:[%s404] sm:$0xff]
      %v1013 = vld [vmem:[%s404 + $0x10] sm:$0xff]
      %v1014 = vld [vmem:[%s404 + $0x20] sm:$0xff]
      %v1015 = vld [vmem:[%s404 + $0x30] sm:$0xff]
      %v1016 = vld [vmem:[%s404 + $0x40] sm:$0xff]
      %v1017 = vld [vmem:[%s404 + $0x50] sm:$0xff]
      %v1018 = vld [vmem:[%s404 + $0x60] sm:$0xff]
      %v1019 = vld [vmem:[%s404 + $0x70] sm:$0xff]
      %v1020 = vpack.c.bf16 %v1012, %v1012
      %v1021 = vpack.c.bf16 %v1013, %v1013
      %v1022 = vpack.c.bf16 %v1014, %v1014
      %v1023 = vpack.c.bf16 %v1015, %v1015
      %v1024 = vpack.c.bf16 %v1016, %v1016
      %v1025 = vpack.c.bf16 %v1017, %v1017
      %v1026 = vpack.c.bf16 %v1018, %v1018
      %v1027 = vpack.c.bf16 %v1019, %v1019
      %v1028 = vld [vmem:[%s404 + $0x2] sm:$0xff]
      %v1029 = vld [vmem:[%s404 + $0x12] sm:$0xff]
      %v1030 = vld [vmem:[%s404 + $0x22] sm:$0xff]
      %v1031 = vld [vmem:[%s404 + $0x32] sm:$0xff]
      %v1032 = vld [vmem:[%s404 + $0x42] sm:$0xff]
      %v1033 = vld [vmem:[%s404 + $0x52] sm:$0xff]
      %v1034 = vld [vmem:[%s404 + $0x62] sm:$0xff]
      %v1035 = vld [vmem:[%s404 + $0x72] sm:$0xff]
      %v1036 = vpack.c.bf16 %v1028, %v1028
      %v1037 = vpack.c.bf16 %v1029, %v1029
      %v1038 = vpack.c.bf16 %v1030, %v1030
      %v1039 = vpack.c.bf16 %v1031, %v1031
      %v1040 = vpack.c.bf16 %v1032, %v1032
      %v1041 = vpack.c.bf16 %v1033, %v1033
      %v1042 = vpack.c.bf16 %v1034, %v1034
      %v1043 = vpack.c.bf16 %v1035, %v1035
      %v1052 = vunpack.c.l.b16 %v972
      %v1053 = vunpack.c.l.b16 %v973
      %v1054 = vunpack.c.l.b16 %v974
      %v1055 = vunpack.c.l.b16 %v975
      %v1056 = vunpack.c.l.b16 %v976
      %v1057 = vunpack.c.l.b16 %v977
      %v1058 = vunpack.c.l.b16 %v978
      %v1059 = vunpack.c.l.b16 %v979
      %v1060 = vpack.c.b16 %v1053, %v1052
      %v1061 = vpack.c.b16 %v1055, %v1054
      %v1062 = vpack.c.b16 %v1057, %v1056
      %v1063 = vpack.c.b16 %v1059, %v1058
      %v1072 = vunpack.c.l.b16 %v988
      %v1073 = vunpack.c.l.b16 %v989
      %v1074 = vunpack.c.l.b16 %v990
      %v1075 = vunpack.c.l.b16 %v991
      %v1076 = vunpack.c.l.b16 %v992
      %v1077 = vunpack.c.l.b16 %v993
      %v1078 = vunpack.c.l.b16 %v994
      %v1079 = vunpack.c.l.b16 %v995
      %v1080 = vpack.c.b16 %v1073, %v1072
      %v1081 = vpack.c.b16 %v1075, %v1074
      %v1082 = vpack.c.b16 %v1077, %v1076
      %v1083 = vpack.c.b16 %v1079, %v1078
      %1084 = vrot.lane.b32.xlu0 %v1080, 48
      %v1085 = vpop.permute.xlu0 %1084
      %1086 = vrot.lane.b32.xlu0 %v1081, 48
      %v1087 = vpop.permute.xlu0 %1086
      %1088 = vrot.lane.b32.xlu0 %v1082, 48
      %v1089 = vpop.permute.xlu0 %1088
      %1090 = vrot.lane.b32.xlu0 %v1083, 48
      %v1091 = vpop.permute.xlu0 %1090
      %v1100 = vunpack.c.l.b16 %v1004
      %v1101 = vunpack.c.l.b16 %v1005
      %v1102 = vunpack.c.l.b16 %v1006
      %v1103 = vunpack.c.l.b16 %v1007
      %v1104 = vunpack.c.l.b16 %v1008
      %v1105 = vunpack.c.l.b16 %v1009
      %v1106 = vunpack.c.l.b16 %v1010
      %v1107 = vunpack.c.l.b16 %v1011
      %v1108 = vpack.c.b16 %v1101, %v1100
      %v1109 = vpack.c.b16 %v1103, %v1102
      %v1110 = vpack.c.b16 %v1105, %v1104
      %v1111 = vpack.c.b16 %v1107, %v1106
      %1112 = vrot.lane.b32.xlu0 %v1108, 96
      %v1113 = vpop.permute.xlu0 %1112
      %1114 = vrot.lane.b32.xlu0 %v1109, 96
      %v1115 = vpop.permute.xlu0 %1114
      %1116 = vrot.lane.b32.xlu0 %v1110, 96
      %v1117 = vpop.permute.xlu0 %1116
      %1118 = vrot.lane.b32.xlu0 %v1111, 96
      %v1119 = vpop.permute.xlu0 %1118
      %v1128 = vunpack.c.l.b16 %v1020
      %v1129 = vunpack.c.l.b16 %v1021
      %v1130 = vunpack.c.l.b16 %v1022
      %v1131 = vunpack.c.l.b16 %v1023
      %v1132 = vunpack.c.l.b16 %v1024
      %v1133 = vunpack.c.l.b16 %v1025
      %v1134 = vunpack.c.l.b16 %v1026
      %v1135 = vunpack.c.l.b16 %v1027
      %v1136 = vpack.c.b16 %v1129, %v1128
      %v1137 = vpack.c.b16 %v1131, %v1130
      %v1138 = vpack.c.b16 %v1133, %v1132
      %v1139 = vpack.c.b16 %v1135, %v1134
      %1140 = vrot.lane.b32.xlu0 %v1136, 16
      %v1141 = vpop.permute.xlu0 %1140
      %1142 = vrot.lane.b32.xlu0 %v1137, 16
      %v1143 = vpop.permute.xlu0 %1142
      %1144 = vrot.lane.b32.xlu0 %v1138, 16
      %v1145 = vpop.permute.xlu0 %1144
      %1146 = vrot.lane.b32.xlu0 %v1139, 16
      %v1147 = vpop.permute.xlu0 %1146
      %1148 = vrot.lane.b32.xlu0 %v1080, 64
      %v1149 = vpop.permute.xlu0 %1148
      %1150 = vrot.lane.b32.xlu0 %v1081, 64
      %v1151 = vpop.permute.xlu0 %1150
      %1152 = vrot.lane.b32.xlu0 %v1082, 64
      %v1153 = vpop.permute.xlu0 %1152
      %1154 = vrot.lane.b32.xlu0 %v1083, 64
      %v1155 = vpop.permute.xlu0 %1154
      %v1164 = vunpack.c.l.b16 %v1036
      %v1165 = vunpack.c.l.b16 %v1037
      %v1166 = vunpack.c.l.b16 %v1038
      %v1167 = vunpack.c.l.b16 %v1039
      %v1168 = vunpack.c.l.b16 %v1040
      %v1169 = vunpack.c.l.b16 %v1041
      %v1170 = vunpack.c.l.b16 %v1042
      %v1171 = vunpack.c.l.b16 %v1043
      %v1172 = vpack.c.b16 %v1165, %v1164
      %v1173 = vpack.c.b16 %v1167, %v1166
      %v1174 = vpack.c.b16 %v1169, %v1168
      %v1175 = vpack.c.b16 %v1171, %v1170
      %1176 = vrot.lane.b32.xlu0 %v1172, 112
      %v1177 = vpop.permute.xlu0 %1176
      %1178 = vrot.lane.b32.xlu0 %v1173, 112
      %v1179 = vpop.permute.xlu0 %1178
      %1180 = vrot.lane.b32.xlu0 %v1174, 112
      %v1181 = vpop.permute.xlu0 %1180
      %1182 = vrot.lane.b32.xlu0 %v1175, 112
      %v1183 = vpop.permute.xlu0 %1182
      %v1186 = vsel %vm405, %v1060, %v1085
      %v1189 = vsel %vm405, %v1061, %v1087
      %v1192 = vsel %vm405, %v1062, %v1089
      %v1195 = vsel %vm405, %v1063, %v1091
      %v1197 = vsel %vm647, %v1186, %v1113
      %v1200 = vsel %vm647, %v1189, %v1115
      %v1203 = vsel %vm647, %v1192, %v1117
      %v1206 = vsel %vm647, %v1195, %v1119
      %v1209 = vsel %vm660, %v1113, %v1141
      %v1211 = vsel %vm660, %v1115, %v1143
      %v1213 = vsel %vm660, %v1117, %v1145
      %v1215 = vsel %vm660, %v1119, %v1147
      %v1217 = vsel %vm334, %v1209, %v1149
      %v1219 = vsel %vm334, %v1211, %v1151
      %v1221 = vsel %vm334, %v1213, %v1153
      %v1223 = vsel %vm334, %v1215, %v1155
      %v1225 = vsel %vm677, %v1217, %v1177
      %v1228 = vsel %vm677, %v1219, %v1179
      %v1231 = vsel %vm677, %v1221, %v1181
      %v1234 = vsel %vm677, %v1223, %v1183
      %v1236 = vld [vmem:[%s1 + $0x90] sm:$0xf]
      %v1237 = vld [vmem:[%s1 + $0x94] sm:$0xf]
      %v1238 = vld [vmem:[%s1 + $0x98] sm:$0xf]
      %v1239 = vld [vmem:[%s1 + $0x9c] sm:$0xf]
      %v1240 = vld [vmem:[%s1 + $0xa0] sm:$0xf]
      %v1241 = vld [vmem:[%s1 + $0xa4] sm:$0xf]
      %v1242 = vld [vmem:[%s1 + $0xa8] sm:$0xf]
      %v1243 = vld [vmem:[%s1 + $0xac] sm:$0xf]
      %v1244 = vld [vmem:[%s1 + $0xb0] sm:$0xf]
      %v1245 = vld [vmem:[%s1 + $0xb4] sm:$0xf]
      %v1246 = vld [vmem:[%s1 + $0xb8] sm:$0xf]
      %v1247 = vld [vmem:[%s1 + $0xbc] sm:$0xf]
      %v1248 = vld [vmem:[%s1 + $0xc0] sm:$0xf]
      %v1249 = vld [vmem:[%s1 + $0xc4] sm:$0xf]
      %v1250 = vld [vmem:[%s1 + $0xc8] sm:$0xf]
      %v1251 = vld [vmem:[%s1 + $0xcc] sm:$0xf]
      %v1252 = vld [vmem:[%s1 + $0xd0] sm:$0xf]
      %v1253 = vld [vmem:[%s1 + $0xd4] sm:$0xf]
      %v1254 = vld [vmem:[%s1 + $0xd8] sm:$0xf]
      %v1255 = vld [vmem:[%s1 + $0xdc] sm:$0xf]
      %v1256 = vld [vmem:[%s1 + $0xe0] sm:$0xf]
      %v1257 = vld [vmem:[%s1 + $0xe4] sm:$0xf]
      %v1258 = vld [vmem:[%s1 + $0xe8] sm:$0xf]
      %v1259 = vld [vmem:[%s1 + $0xec] sm:$0xf]
      %v1260 = vld [vmem:[%s1 + $0xf0] sm:$0xf]
      %v1261 = vld [vmem:[%s1 + $0xf4] sm:$0xf]
      %v1262 = vld [vmem:[%s1 + $0xf8] sm:$0xf]
      %v1263 = vld [vmem:[%s1 + $0xfc] sm:$0xf]
      %v1264 = vld [vmem:[%s1 + $0x100] sm:$0xf]
      %v1265 = vld [vmem:[%s1 + $0x104] sm:$0xf]
      %v1266 = vld [vmem:[%s1 + $0x108] sm:$0xf]
      %v1267 = vld [vmem:[%s1 + $0x10c] sm:$0xf]
      %v1268 = vld [vmem:[%s1 + $0x110] sm:$0xf]
      %v1269 = vld [vmem:[%s1 + $0x114] sm:$0xf]
      %v1270 = vld [vmem:[%s1 + $0x118] sm:$0xf]
      %v1271 = vld [vmem:[%s1 + $0x11c] sm:$0xf]
      %v1272 = vld [vmem:[%s2 + $0x1] sm:$0x1]
      %v1273 = vperm.slane %v1272, 0
      %v1310 = vunpack.c.l.b16 %v1236
      %v1311 = vunpack.c.l.b16 %v1237
      %v1312 = vunpack.c.l.b16 %v1238
      %v1313 = vunpack.c.l.b16 %v1239
      %v1314 = vunpack.c.l.b16 %v1240
      %v1315 = vunpack.c.l.b16 %v1241
      %v1316 = vunpack.c.l.b16 %v1242
      %v1317 = vunpack.c.l.b16 %v1243
      %v1318 = vunpack.c.l.b16 %v1244
      %v1319 = vunpack.c.l.b16 %v1245
      %v1320 = vunpack.c.l.b16 %v1246
      %v1321 = vunpack.c.l.b16 %v1247
      %v1322 = vunpack.c.l.b16 %v1248
      %v1323 = vunpack.c.l.b16 %v1249
      %v1324 = vunpack.c.l.b16 %v1250
      %v1325 = vunpack.c.l.b16 %v1251
      %v1326 = vunpack.c.l.b16 %v1252
      %v1327 = vunpack.c.l.b16 %v1253
      %v1328 = vunpack.c.l.b16 %v1254
      %v1329 = vunpack.c.l.b16 %v1255
      %v1330 = vunpack.c.l.b16 %v1256
      %v1331 = vunpack.c.l.b16 %v1257
      %v1332 = vunpack.c.l.b16 %v1258
      %v1333 = vunpack.c.l.b16 %v1259
      %v1334 = vunpack.c.l.b16 %v1260
      %v1335 = vunpack.c.l.b16 %v1261
      %v1336 = vunpack.c.l.b16 %v1262
      %v1337 = vunpack.c.l.b16 %v1263
      %v1338 = vunpack.c.l.b16 %v1264
      %v1339 = vunpack.c.l.b16 %v1265
      %v1340 = vunpack.c.l.b16 %v1266
      %v1341 = vunpack.c.l.b16 %v1267
      %v1342 = vunpack.c.l.b16 %v1268
      %v1343 = vunpack.c.l.b16 %v1269
      %v1344 = vunpack.c.l.b16 %v1270
      %v1345 = vunpack.c.l.b16 %v1271
      %v1346 = vpack.c.b16 %v1311, %v1310
      %v1347 = vpack.c.b16 %v1313, %v1312
      %v1348 = vpack.c.b16 %v1315, %v1314
      %v1349 = vpack.c.b16 %v1317, %v1316
      %v1350 = vpack.c.b16 %v1319, %v1318
      %v1351 = vpack.c.b16 %v1321, %v1320
      %v1352 = vpack.c.b16 %v1323, %v1322
      %v1353 = vpack.c.b16 %v1325, %v1324
      %v1354 = vpack.c.b16 %v1327, %v1326
      %v1355 = vpack.c.b16 %v1329, %v1328
      %v1356 = vpack.c.b16 %v1331, %v1330
      %v1357 = vpack.c.b16 %v1333, %v1332
      %v1358 = vpack.c.b16 %v1335, %v1334
      %v1359 = vpack.c.b16 %v1337, %v1336
      %v1360 = vpack.c.b16 %v1339, %v1338
      %v1361 = vpack.c.b16 %v1341, %v1340
      %v1362 = vpack.c.b16 %v1343, %v1342
      %v1363 = vpack.c.b16 %v1345, %v1344
      %v1382 = vsel %vm836, %v1177, 0
      %v1384 = vsel %vm836, %v1179, 0
      %v1386 = vsel %vm836, %v1181, 0
      %v1388 = vsel %vm836, %v1183, 0
      %1390 = vmatpush.bf16.msra.mxu0 %v1353
      %1391 = vmatpush.bf16.msra.mxu0 %v1352
      %1392 = vmatpush.bf16.msra.mxu0 %v1351
      %1393 = vmatpush.bf16.msra.mxu0 %v1350
      %1394 = vmatpush.bf16.msra.mxu0 %v1349
      %1395 = vmatpush.bf16.msra.mxu0 %v1348
      %1396 = vmatpush.bf16.msra.mxu0 %v1347
      %1397 = vmatpush.bf16.msra.mxu0 %v1346
      %1398 = vmatmul.bf16.gmra.mxu0 %v1197
      %v1399 = vpop.f32.mrf.mxu0
      %v1400 = vadd.f32 %v1273, %v1399
      %v1401 = vpop.f32.mrf.mxu0
      %v1402 = vadd.f32 %v1273, %v1401
      %1403 = vmatmul.bf16.gmra.mxu0 %v1200
      %v1404 = vpop.f32.mrf.mxu0
      %v1405 = vadd.f32 %v1273, %v1404
      %v1406 = vpop.f32.mrf.mxu0
      %v1407 = vadd.f32 %v1273, %v1406
      %1408 = vmatmul.bf16.gmra.mxu0 %v1203
      %v1409 = vpop.f32.mrf.mxu0
      %v1410 = vadd.f32 %v1273, %v1409
      %v1411 = vpop.f32.mrf.mxu0
      %v1412 = vadd.f32 %v1273, %v1411
      %1413 = vmatmul.bf16.gmra.mxu0 %v1206
      %v1414 = vpop.f32.mrf.mxu0
      %v1415 = vadd.f32 %v1273, %v1414
      %v1416 = vpop.f32.mrf.mxu0
      %v1417 = vadd.f32 %v1273, %v1416
      %1418 = vdwg.mxu0
      %1419 = vmatpush.bf16.msra.mxu0 %v1361
      %1420 = vmatpush.bf16.msra.mxu0 %v1360
      %1421 = vmatpush.bf16.msra.mxu0 %v1359
      %1422 = vmatpush.bf16.msra.mxu0 %v1358
      %1423 = vmatpush.bf16.msra.mxu0 %v1357
      %1424 = vmatpush.bf16.msra.mxu0 %v1356
      %1425 = vmatpush.bf16.msra.mxu0 %v1355
      %1426 = vmatpush.bf16.msra.mxu0 %v1354
      %1427 = vmatmul.bf16.gmra.mxu0 %v1225
      %v1428 = vpop.f32.mrf.mxu0
      %v1429 = vadd.f32 %v1400, %v1428
      %v1430 = vpop.f32.mrf.mxu0
      %v1431 = vadd.f32 %v1402, %v1430
      %1432 = vmatmul.bf16.gmra.mxu0 %v1228
      %v1433 = vpop.f32.mrf.mxu0
      %v1434 = vadd.f32 %v1405, %v1433
      %v1435 = vpop.f32.mrf.mxu0
      %v1436 = vadd.f32 %v1407, %v1435
      %1437 = vmatmul.bf16.gmra.mxu0 %v1231
      %v1438 = vpop.f32.mrf.mxu0
      %v1439 = vadd.f32 %v1410, %v1438
      %v1440 = vpop.f32.mrf.mxu0
      %v1441 = vadd.f32 %v1412, %v1440
      %1442 = vmatmul.bf16.gmra.mxu0 %v1234
      %v1443 = vpop.f32.mrf.mxu0
      %v1444 = vadd.f32 %v1415, %v1443
      %v1445 = vpop.f32.mrf.mxu0
      %v1446 = vadd.f32 %v1417, %v1445
      %1447 = vdwg.mxu0
      %1448 = vmatpush.bf16.msra.mxu0 0
      %1449 = vmatpush.bf16.msra.mxu0 0
      %1450 = vmatpush.bf16.msra.mxu0 0
      %1451 = vmatpush.bf16.msra.mxu0 0
      %1452 = vmatpush.bf16.msra.mxu0 0
      %1453 = vmatpush.bf16.msra.mxu0 0
      %1454 = vmatpush.bf16.msra.mxu0 %v1363
      %1455 = vmatpush.bf16.msra.mxu0 %v1362
      %1456 = vmatmul.bf16.gmra.mxu0 %v1382
      %v1457 = vpop.f32.mrf.mxu0
      %v1458 = vadd.f32 %v1429, %v1457
      %v1459 = vpop.f32.mrf.mxu0
      %v1460 = vadd.f32 %v1431, %v1459
      %1461 = vmatmul.bf16.gmra.mxu0 %v1384
      %v1462 = vpop.f32.mrf.mxu0
      %v1463 = vadd.f32 %v1434, %v1462
      %v1464 = vpop.f32.mrf.mxu0
      %v1465 = vadd.f32 %v1436, %v1464
      %1466 = vmatmul.bf16.gmra.mxu0 %v1386
      %v1467 = vpop.f32.mrf.mxu0
      %v1468 = vadd.f32 %v1439, %v1467
      %v1469 = vpop.f32.mrf.mxu0
      %v1470 = vadd.f32 %v1441, %v1469
      %1471 = vmatmul.bf16.gmra.mxu0 %v1388
      %v1472 = vpop.f32.mrf.mxu0
      %v1473 = vadd.f32 %v1444, %v1472
      %v1474 = vpop.f32.mrf.mxu0
      %v1475 = vadd.f32 %v1446, %v1474
      %1476 = vdwg.mxu0
      %1477 = vst.msk [vmem:[%s404 + $0x1] sm:$0xff] %vm405, %v1458
      %1478 = vst.msk [vmem:[%s404 + $0x11] sm:$0xff] %vm405, %v1460
      %1479 = vst.msk [vmem:[%s404 + $0x21] sm:$0xff] %vm405, %v1463
      %1480 = vst.msk [vmem:[%s404 + $0x31] sm:$0xff] %vm405, %v1465
      %1481 = vst.msk [vmem:[%s404 + $0x41] sm:$0xff] %vm405, %v1468
      %1482 = vst.msk [vmem:[%s404 + $0x51] sm:$0xff] %vm405, %v1470
      %1483 = vst.msk [vmem:[%s404 + $0x61] sm:$0xff] %vm405, %v1473
      %1484 = vst.msk [vmem:[%s404 + $0x71] sm:$0xff] %vm405, %v1475
      %v1485 = vld [vmem:[#allocation2] sm:$0xff]
      %v1486 = vld [vmem:[#allocation2 + $0x10] sm:$0xff]
      %v1487 = vld [vmem:[#allocation2 + $0x20] sm:$0xff]
      %v1488 = vld [vmem:[#allocation2 + $0x30] sm:$0xff]
      %v1489 = vld [vmem:[#allocation2 + $0x40] sm:$0xff]
      %v1490 = vld [vmem:[#allocation2 + $0x50] sm:$0xff]
      %v1491 = vld [vmem:[#allocation2 + $0x60] sm:$0xff]
      %v1492 = vld [vmem:[#allocation2 + $0x70] sm:$0xff]
      %v1493 = vld [vmem:[%s2 + $0x3] sm:$0x1]
      %v1494 = vperm.slane %v1493, 0
      %v1495 = vmul.f32 %v1485, %v1494
      %v1496 = vmul.f32 %v1486, %v1494
      %v1497 = vmul.f32 %v1487, %v1494
      %v1498 = vmul.f32 %v1488, %v1494
      %v1499 = vmul.f32 %v1489, %v1494
      %v1500 = vmul.f32 %v1490, %v1494
      %v1501 = vmul.f32 %v1491, %v1494
      %v1502 = vmul.f32 %v1492, %v1494
      %v1503 = vld [vmem:[#allocation2 + $0x1] sm:$0xff]
      %v1504 = vld [vmem:[#allocation2 + $0x11] sm:$0xff]
      %v1505 = vld [vmem:[#allocation2 + $0x21] sm:$0xff]
      %v1506 = vld [vmem:[#allocation2 + $0x31] sm:$0xff]
      %v1507 = vld [vmem:[#allocation2 + $0x41] sm:$0xff]
      %v1508 = vld [vmem:[#allocation2 + $0x51] sm:$0xff]
      %v1509 = vld [vmem:[#allocation2 + $0x61] sm:$0xff]
      %v1510 = vld [vmem:[#allocation2 + $0x71] sm:$0xff]
      %v1511 = vld [vmem:[%s2 + $0x4] sm:$0x1]
      %v1512 = vperm.slane %v1511, 0
      %v1513 = vmul.f32 %v1503, %v1512
      %v1514 = vmul.f32 %v1504, %v1512
      %v1515 = vmul.f32 %v1505, %v1512
      %v1516 = vmul.f32 %v1506, %v1512
      %v1517 = vmul.f32 %v1507, %v1512
      %v1518 = vmul.f32 %v1508, %v1512
      %v1519 = vmul.f32 %v1509, %v1512
      %v1520 = vmul.f32 %v1510, %v1512
      %v1521 = vadd.f32 %v1495, %v1513
      %v1522 = vadd.f32 %v1496, %v1514
      %v1523 = vadd.f32 %v1497, %v1515
      %v1524 = vadd.f32 %v1498, %v1516
      %v1525 = vadd.f32 %v1499, %v1517
      %v1526 = vadd.f32 %v1500, %v1518
      %v1527 = vadd.f32 %v1501, %v1519
      %v1528 = vadd.f32 %v1502, %v1520
      %v1529 = vld [vmem:[#allocation2 + $0x2] sm:$0xff]
      %v1530 = vld [vmem:[#allocation2 + $0x12] sm:$0xff]
      %v1531 = vld [vmem:[#allocation2 + $0x22] sm:$0xff]
      %v1532 = vld [vmem:[#allocation2 + $0x32] sm:$0xff]
      %v1533 = vld [vmem:[#allocation2 + $0x42] sm:$0xff]
      %v1534 = vld [vmem:[#allocation2 + $0x52] sm:$0xff]
      %v1535 = vld [vmem:[#allocation2 + $0x62] sm:$0xff]
      %v1536 = vld [vmem:[#allocation2 + $0x72] sm:$0xff]
      %v1537 = vld [vmem:[%s2 + $0x5] sm:$0x1]
      %v1538 = vperm.slane %v1537, 0
      %v1539 = vmul.f32 %v1529, %v1538
      %v1540 = vmul.f32 %v1530, %v1538
      %v1541 = vmul.f32 %v1531, %v1538
      %v1542 = vmul.f32 %v1532, %v1538
      %v1543 = vmul.f32 %v1533, %v1538
      %v1544 = vmul.f32 %v1534, %v1538
      %v1545 = vmul.f32 %v1535, %v1538
      %v1546 = vmul.f32 %v1536, %v1538
      %v1547 = vadd.f32 %v1521, %v1539
      %v1548 = vadd.f32 %v1522, %v1540
      %v1549 = vadd.f32 %v1523, %v1541
      %v1550 = vadd.f32 %v1524, %v1542
      %v1551 = vadd.f32 %v1525, %v1543
      %v1552 = vadd.f32 %v1526, %v1544
      %v1553 = vadd.f32 %v1527, %v1545
      %v1554 = vadd.f32 %v1528, %v1546
      %v1555 = vld [vmem:[%s404] sm:$0xff]
      %v1556 = vld [vmem:[%s404 + $0x10] sm:$0xff]
      %v1557 = vld [vmem:[%s404 + $0x20] sm:$0xff]
      %v1558 = vld [vmem:[%s404 + $0x30] sm:$0xff]
      %v1559 = vld [vmem:[%s404 + $0x40] sm:$0xff]
      %v1560 = vld [vmem:[%s404 + $0x50] sm:$0xff]
      %v1561 = vld [vmem:[%s404 + $0x60] sm:$0xff]
      %v1562 = vld [vmem:[%s404 + $0x70] sm:$0xff]
      %v1563 = vld [vmem:[%s2 + $0x6] sm:$0x1]
      %v1564 = vperm.slane %v1563, 0
      %v1565 = vmul.f32 %v1555, %v1564
      %v1566 = vmul.f32 %v1556, %v1564
      %v1567 = vmul.f32 %v1557, %v1564
      %v1568 = vmul.f32 %v1558, %v1564
      %v1569 = vmul.f32 %v1559, %v1564
      %v1570 = vmul.f32 %v1560, %v1564
      %v1571 = vmul.f32 %v1561, %v1564
      %v1572 = vmul.f32 %v1562, %v1564
      %v1573 = vadd.f32 %v1547, %v1565
      %v1574 = vadd.f32 %v1548, %v1566
      %v1575 = vadd.f32 %v1549, %v1567
      %v1576 = vadd.f32 %v1550, %v1568
      %v1577 = vadd.f32 %v1551, %v1569
      %v1578 = vadd.f32 %v1552, %v1570
      %v1579 = vadd.f32 %v1553, %v1571
      %v1580 = vadd.f32 %v1554, %v1572
      %v1581 = vld [vmem:[%s404 + $0x1] sm:$0xff]
      %v1582 = vld [vmem:[%s404 + $0x11] sm:$0xff]
      %v1583 = vld [vmem:[%s404 + $0x21] sm:$0xff]
      %v1584 = vld [vmem:[%s404 + $0x31] sm:$0xff]
      %v1585 = vld [vmem:[%s404 + $0x41] sm:$0xff]
      %v1586 = vld [vmem:[%s404 + $0x51] sm:$0xff]
      %v1587 = vld [vmem:[%s404 + $0x61] sm:$0xff]
      %v1588 = vld [vmem:[%s404 + $0x71] sm:$0xff]
      %v1589 = vld [vmem:[%s2 + $0x7] sm:$0x1]
      %v1590 = vperm.slane %v1589, 0
      %v1591 = vmul.f32 %v1581, %v1590
      %v1592 = vmul.f32 %v1582, %v1590
      %v1593 = vmul.f32 %v1583, %v1590
      %v1594 = vmul.f32 %v1584, %v1590
      %v1595 = vmul.f32 %v1585, %v1590
      %v1596 = vmul.f32 %v1586, %v1590
      %v1597 = vmul.f32 %v1587, %v1590
      %v1598 = vmul.f32 %v1588, %v1590
      %v1599 = vadd.f32 %v1573, %v1591
      %v1600 = vadd.f32 %v1574, %v1592
      %v1601 = vadd.f32 %v1575, %v1593
      %v1602 = vadd.f32 %v1576, %v1594
      %v1603 = vadd.f32 %v1577, %v1595
      %v1604 = vadd.f32 %v1578, %v1596
      %v1605 = vadd.f32 %v1579, %v1597
      %v1606 = vadd.f32 %v1580, %v1598
      %v1607 = vld [vmem:[%s404 + $0x2] sm:$0xff]
      %v1608 = vld [vmem:[%s404 + $0x12] sm:$0xff]
      %v1609 = vld [vmem:[%s404 + $0x22] sm:$0xff]
      %v1610 = vld [vmem:[%s404 + $0x32] sm:$0xff]
      %v1611 = vld [vmem:[%s404 + $0x42] sm:$0xff]
      %v1612 = vld [vmem:[%s404 + $0x52] sm:$0xff]
      %v1613 = vld [vmem:[%s404 + $0x62] sm:$0xff]
      %v1614 = vld [vmem:[%s404 + $0x72] sm:$0xff]
      %v1615 = vld [vmem:[%s2 + $0x8] sm:$0x1]
      %v1616 = vperm.slane %v1615, 0
      %v1617 = vmul.f32 %v1607, %v1616
      %v1618 = vmul.f32 %v1608, %v1616
      %v1619 = vmul.f32 %v1609, %v1616
      %v1620 = vmul.f32 %v1610, %v1616
      %v1621 = vmul.f32 %v1611, %v1616
      %v1622 = vmul.f32 %v1612, %v1616
      %v1623 = vmul.f32 %v1613, %v1616
      %v1624 = vmul.f32 %v1614, %v1616
      %v1625 = vadd.f32 %v1599, %v1617
      %v1626 = vadd.f32 %v1600, %v1618
      %v1627 = vadd.f32 %v1601, %v1619
      %v1628 = vadd.f32 %v1602, %v1620
      %v1629 = vadd.f32 %v1603, %v1621
      %v1630 = vadd.f32 %v1604, %v1622
      %v1631 = vadd.f32 %v1605, %v1623
      %v1632 = vadd.f32 %v1606, %v1624
      %v1633 = vld [vmem:[%s446] sm:$0xff]
      %v1634 = vld [vmem:[%s446 + $0x10] sm:$0xff]
      %v1635 = vld [vmem:[%s446 + $0x20] sm:$0xff]
      %v1636 = vld [vmem:[%s446 + $0x30] sm:$0xff]
      %v1637 = vld [vmem:[%s446 + $0x40] sm:$0xff]
      %v1638 = vld [vmem:[%s446 + $0x50] sm:$0xff]
      %v1639 = vld [vmem:[%s446 + $0x60] sm:$0xff]
      %v1640 = vld [vmem:[%s446 + $0x70] sm:$0xff]
      %v1641 = vld [vmem:[%s2 + $0x9] sm:$0x1]
      %v1642 = vperm.slane %v1641, 0
      %v1643 = vmul.f32 %v1633, %v1642
      %v1644 = vmul.f32 %v1634, %v1642
      %v1645 = vmul.f32 %v1635, %v1642
      %v1646 = vmul.f32 %v1636, %v1642
      %v1647 = vmul.f32 %v1637, %v1642
      %v1648 = vmul.f32 %v1638, %v1642
      %v1649 = vmul.f32 %v1639, %v1642
      %v1650 = vmul.f32 %v1640, %v1642
      %v1651 = vadd.f32 %v1625, %v1643
      %v1652 = vadd.f32 %v1626, %v1644
      %v1653 = vadd.f32 %v1627, %v1645
      %v1654 = vadd.f32 %v1628, %v1646
      %v1655 = vadd.f32 %v1629, %v1647
      %v1656 = vadd.f32 %v1630, %v1648
      %v1657 = vadd.f32 %v1631, %v1649
      %v1658 = vadd.f32 %v1632, %v1650
      %v1659 = vld [vmem:[%s446 + $0x1] sm:$0xff]
      %v1660 = vld [vmem:[%s446 + $0x11] sm:$0xff]
      %v1661 = vld [vmem:[%s446 + $0x21] sm:$0xff]
      %v1662 = vld [vmem:[%s446 + $0x31] sm:$0xff]
      %v1663 = vld [vmem:[%s446 + $0x41] sm:$0xff]
      %v1664 = vld [vmem:[%s446 + $0x51] sm:$0xff]
      %v1665 = vld [vmem:[%s446 + $0x61] sm:$0xff]
      %v1666 = vld [vmem:[%s446 + $0x71] sm:$0xff]
      %v1667 = vld [vmem:[%s2 + $0xa] sm:$0x1]
      %v1668 = vperm.slane %v1667, 0
      %v1669 = vmul.f32 %v1659, %v1668
      %v1670 = vmul.f32 %v1660, %v1668
      %v1671 = vmul.f32 %v1661, %v1668
      %v1672 = vmul.f32 %v1662, %v1668
      %v1673 = vmul.f32 %v1663, %v1668
      %v1674 = vmul.f32 %v1664, %v1668
      %v1675 = vmul.f32 %v1665, %v1668
      %v1676 = vmul.f32 %v1666, %v1668
      %v1677 = vadd.f32 %v1651, %v1669
      %v1678 = vadd.f32 %v1652, %v1670
      %v1679 = vadd.f32 %v1653, %v1671
      %v1680 = vadd.f32 %v1654, %v1672
      %v1681 = vadd.f32 %v1655, %v1673
      %v1682 = vadd.f32 %v1656, %v1674
      %v1683 = vadd.f32 %v1657, %v1675
      %v1684 = vadd.f32 %v1658, %v1676
      %v1685 = vld [vmem:[%s446 + $0x2] sm:$0xff]
      %v1686 = vld [vmem:[%s446 + $0x12] sm:$0xff]
      %v1687 = vld [vmem:[%s446 + $0x22] sm:$0xff]
      %v1688 = vld [vmem:[%s446 + $0x32] sm:$0xff]
      %v1689 = vld [vmem:[%s446 + $0x42] sm:$0xff]
      %v1690 = vld [vmem:[%s446 + $0x52] sm:$0xff]
      %v1691 = vld [vmem:[%s446 + $0x62] sm:$0xff]
      %v1692 = vld [vmem:[%s446 + $0x72] sm:$0xff]
      %v1693 = vld [vmem:[%s2 + $0xb] sm:$0x1]
      %v1694 = vperm.slane %v1693, 0
      %v1695 = vmul.f32 %v1685, %v1694
      %v1696 = vmul.f32 %v1686, %v1694
      %v1697 = vmul.f32 %v1687, %v1694
      %v1698 = vmul.f32 %v1688, %v1694
      %v1699 = vmul.f32 %v1689, %v1694
      %v1700 = vmul.f32 %v1690, %v1694
      %v1701 = vmul.f32 %v1691, %v1694
      %v1702 = vmul.f32 %v1692, %v1694
      %v1703 = vadd.f32 %v1677, %v1695
      %v1704 = vadd.f32 %v1678, %v1696
      %v1705 = vadd.f32 %v1679, %v1697
      %v1706 = vadd.f32 %v1680, %v1698
      %v1707 = vadd.f32 %v1681, %v1699
      %v1708 = vadd.f32 %v1682, %v1700
      %v1709 = vadd.f32 %v1683, %v1701
      %v1710 = vadd.f32 %v1684, %v1702
      %v1711 = vld [vmem:[%s2 + $0x2] sm:$0x1]
      %v1712 = vperm.slane %v1711, 0
      %v1713 = vadd.f32 %v1703, %v1712
      %v1714 = vadd.f32 %v1704, %v1712
      %v1715 = vadd.f32 %v1705, %v1712
      %v1716 = vadd.f32 %v1706, %v1712
      %v1717 = vadd.f32 %v1707, %v1712
      %v1718 = vadd.f32 %v1708, %v1712
      %v1719 = vadd.f32 %v1709, %v1712
      %v1720 = vadd.f32 %v1710, %v1712
      %v1721 = vadd.f32 %v1713, %v1458
      %v1722 = vadd.f32 %v1714, %v1460
      %v1723 = vadd.f32 %v1715, %v1463
      %v1724 = vadd.f32 %v1716, %v1465
      %v1725 = vadd.f32 %v1717, %v1468
      %v1726 = vadd.f32 %v1718, %v1470
      %v1727 = vadd.f32 %v1719, %v1473
      %v1728 = vadd.f32 %v1720, %v1475
      %v1729 = vsel %vm405, %v1721, 0.0
      %v1730 = vsel %vm405, %v1722, 0.0
      %v1731 = vadd.f32 %v1729, %v1730
      %v1732 = vsel %vm405, %v1723, 0.0
      %v1733 = vadd.f32 %v1731, %v1732
      %v1734 = vsel %vm405, %v1724, 0.0
      %v1735 = vadd.f32 %v1733, %v1734
      %v1736 = vsel %vm405, %v1725, 0.0
      %v1737 = vadd.f32 %v1735, %v1736
      %v1738 = vsel %vm405, %v1726, 0.0
      %v1739 = vadd.f32 %v1737, %v1738
      %v1740 = vsel %vm405, %v1727, 0.0
      %v1741 = vadd.f32 %v1739, %v1740
      %v1742 = vsel %vm405, %v1728, 0.0
      %v1743 = vadd.f32 %v1741, %v1742
      %v1744 = vrot.slane %v1743, 4
      %v1745 = vadd.f32 %v1743, %v1744
      %v1746 = vrot.slane %v1745, 2
      %v1747 = vadd.f32 %v1745, %v1746
      %v1748 = vrot.slane %v1747, 1
      %v1749 = vadd.f32 %v1747, %v1748
      %v1750 = vrcp.pop 64.0
      %v1751 = vmul.f32 64.0, %v1750
      %v1752 = vsub.f32 1.0, %v1751
      %v1753 = vmul.f32 %v1750, %v1752
      %v1754 = vadd.f32 %v1750, %v1753
      %vm1755 = vweird.f32 %v1750
      %v1756 = vsel %vm1755, %v1750, %v1754
      %v1757 = vmul.f32 %v1749, %v1756
      %v1758 = vld [vmem:[%s2 + $0x10] sm:$0xff]
      %v1759 = vld [vmem:[%s2 + $0x18] sm:$0xff]
      %v1760 = vld [vmem:[%s2 + $0x20] sm:$0xff]
      %v1761 = vld [vmem:[%s2 + $0x28] sm:$0xff]
      %v1762 = vld [vmem:[%s2 + $0x30] sm:$0xff]
      %v1763 = vld [vmem:[%s2 + $0x38] sm:$0xff]
      %v1764 = vld [vmem:[%s2 + $0xc] sm:$0x1]
      %v1766 = vsel %vm405, %v1757, 0
      %1768 = vmatpush.msra.mxu0 0.0
      %1769 = vmatpush.msra.mxu0 0.0
      %1770 = vmatpush.msra.mxu0 0.0
      %1771 = vmatpush.msra.mxu0 0.0
      %1772 = vmatpush.msra.mxu0 0.0
      %1773 = vmatpush.msra.mxu0 0.0
      %1774 = vmatpush.msra.mxu0 0.0
      %1775 = vmatpush.msra.mxu0 0.0
      %1776 = vmatpush.msra.mxu0 0.0
      %1777 = vmatpush.msra.mxu0 0.0
      %1778 = vmatpush.msra.mxu0 %v1763
      %1779 = vmatpush.msra.mxu0 %v1762
      %1780 = vmatpush.msra.mxu0 %v1761
      %1781 = vmatpush.msra.mxu0 %v1760
      %1782 = vmatpush.msra.mxu0 %v1759
      %1783 = vmatpush.msra.mxu0 %v1758
      %1784 = vmatmul.f32.gmra.mxu0 %v1766
      %v1785 = vpop.f32.mrf.mxu0
      %v1786 = vadd.f32 %v1764, %v1785
      %1787 = vdwg.mxu0
      %vm1788 = vcmp.ge.f32.partialorder %v1786, 0.0
      %v1789 = vmul.f32 %v1786, 0.01
      %v1790 = vsel %vm1788, %v1786, %v1789
      %v1791 = vld [vmem:[%s2 + $0x40] sm:$0x7]
      %v1792 = vld [vmem:[%s2 + $0xd] sm:$0x1]
      %vm1793 = vcmask 23552
      %v1795 = vsel %vm1793, %v1790, 0
      %vm1797 = vcmask 1042432
      %v1799 = vsel %vm1797, %v1791, 0
      %1801 = vmatpush.msra.mxu0 0.0
      %1802 = vmatpush.msra.mxu0 0.0
      %1803 = vmatpush.msra.mxu0 0.0
      %1804 = vmatpush.msra.mxu0 0.0
      %1805 = vmatpush.msra.mxu0 0.0
      %1806 = vmatpush.msra.mxu0 0.0
      %1807 = vmatpush.msra.mxu0 0.0
      %1808 = vmatpush.msra.mxu0 0.0
      %1809 = vmatpush.msra.mxu0 0.0
      %1810 = vmatpush.msra.mxu0 0.0
      %1811 = vmatpush.msra.mxu0 0.0
      %1812 = vmatpush.msra.mxu0 0.0
      %1813 = vmatpush.msra.mxu0 0.0
      %1814 = vmatpush.msra.mxu0 0.0
      %1815 = vmatpush.msra.mxu0 0.0
      %1816 = vmatpush.msra.mxu0 %v1799
      %1817 = vmatmul.f32.gmra.mxu0 %v1795
      %v1818 = vpop.f32.mrf.mxu0
      %v1819 = vadd.f32 %v1792, %v1818
      %1820 = vdwg.mxu0
      %v1821 = vmul.f32 %v1819, 0.5
      %v1822 = vtanh.pop %v1821
      %v1823 = vadd.f32 %v1822, 1.0
      %v1824 = vmul.f32 %v1823, 0.5
      %v1825 = vperm.slane %v1824, 0
      %v1826 = vmul.f32 %v1721, %v1825
      %v1827 = vmul.f32 %v1722, %v1825
      %v1828 = vmul.f32 %v1723, %v1825
      %v1829 = vmul.f32 %v1724, %v1825
      %v1830 = vmul.f32 %v1725, %v1825
      %v1831 = vmul.f32 %v1726, %v1825
      %v1832 = vmul.f32 %v1727, %v1825
      %v1833 = vmul.f32 %v1728, %v1825
      %1842 = vrot.lane.b32.xlu0 %v1826, 16
      %v1843 = vpop.permute.xlu0 %1842
      %1844 = vrot.lane.b32.xlu0 %v1827, 16
      %v1845 = vpop.permute.xlu0 %1844
      %1846 = vrot.lane.b32.xlu0 %v1828, 16
      %v1847 = vpop.permute.xlu0 %1846
      %1848 = vrot.lane.b32.xlu0 %v1829, 16
      %v1849 = vpop.permute.xlu0 %1848
      %1850 = vrot.lane.b32.xlu0 %v1830, 16
      %v1851 = vpop.permute.xlu0 %1850
      %1852 = vrot.lane.b32.xlu0 %v1831, 16
      %v1853 = vpop.permute.xlu0 %1852
      %1854 = vrot.lane.b32.xlu0 %v1832, 16
      %v1855 = vpop.permute.xlu0 %1854
      %1856 = vrot.lane.b32.xlu0 %v1833, 16
      %v1857 = vpop.permute.xlu0 %1856
      %v1866 = vadd.f32 %v364, %v1843
      %v1867 = vadd.f32 %v365, %v1845
      %v1868 = vadd.f32 %v366, %v1847
      %v1869 = vadd.f32 %v367, %v1849
      %v1870 = vadd.f32 %v368, %v1851
      %v1871 = vadd.f32 %v369, %v1853
      %v1872 = vadd.f32 %v370, %v1855
      %v1873 = vadd.f32 %v371, %v1857
      %1882 = vrot.lane.b32.xlu0 %v1866, 96
      %v1883 = vpop.permute.xlu0 %1882
      %1884 = vrot.lane.b32.xlu0 %v1867, 96
      %v1885 = vpop.permute.xlu0 %1884
      %1886 = vrot.lane.b32.xlu0 %v1868, 96
      %v1887 = vpop.permute.xlu0 %1886
      %1888 = vrot.lane.b32.xlu0 %v1869, 96
      %v1889 = vpop.permute.xlu0 %1888
      %1890 = vrot.lane.b32.xlu0 %v1870, 96
      %v1891 = vpop.permute.xlu0 %1890
      %1892 = vrot.lane.b32.xlu0 %v1871, 96
      %v1893 = vpop.permute.xlu0 %1892
      %1894 = vrot.lane.b32.xlu0 %v1872, 96
      %v1895 = vpop.permute.xlu0 %1894
      %1896 = vrot.lane.b32.xlu0 %v1873, 96
      %v1897 = vpop.permute.xlu0 %1896
      %1906 = vst.msk [vmem:[%s404 + $0x1] sm:$0xff] %vm836, %v1883
      %1907 = vst.msk [vmem:[%s404 + $0x11] sm:$0xff] %vm836, %v1885
      %1908 = vst.msk [vmem:[%s404 + $0x21] sm:$0xff] %vm836, %v1887
      %1909 = vst.msk [vmem:[%s404 + $0x31] sm:$0xff] %vm836, %v1889
      %1910 = vst.msk [vmem:[%s404 + $0x41] sm:$0xff] %vm836, %v1891
      %1911 = vst.msk [vmem:[%s404 + $0x51] sm:$0xff] %vm836, %v1893
      %1912 = vst.msk [vmem:[%s404 + $0x61] sm:$0xff] %vm836, %v1895
      %1913 = vst.msk [vmem:[%s404 + $0x71] sm:$0xff] %vm836, %v1897
      %v1914 = vld [vmem:[#allocation2 + $0x1] sm:$0xff]
      %v1915 = vld [vmem:[#allocation2 + $0x11] sm:$0xff]
      %v1916 = vld [vmem:[#allocation2 + $0x21] sm:$0xff]
      %v1917 = vld [vmem:[#allocation2 + $0x31] sm:$0xff]
      %v1918 = vld [vmem:[#allocation2 + $0x41] sm:$0xff]
      %v1919 = vld [vmem:[#allocation2 + $0x51] sm:$0xff]
      %v1920 = vld [vmem:[#allocation2 + $0x61] sm:$0xff]
      %v1921 = vld [vmem:[#allocation2 + $0x71] sm:$0xff]
      %v1922 = vpack.c.bf16 %v1914, %v1914
      %v1923 = vpack.c.bf16 %v1915, %v1915
      %v1924 = vpack.c.bf16 %v1916, %v1916
      %v1925 = vpack.c.bf16 %v1917, %v1917
      %v1926 = vpack.c.bf16 %v1918, %v1918
      %v1927 = vpack.c.bf16 %v1919, %v1919
      %v1928 = vpack.c.bf16 %v1920, %v1920
      %v1929 = vpack.c.bf16 %v1921, %v1921
      %v1930 = vld [vmem:[%s404 + $0x1] sm:$0xff]
      %v1931 = vld [vmem:[%s404 + $0x11] sm:$0xff]
      %v1932 = vld [vmem:[%s404 + $0x21] sm:$0xff]
      %v1933 = vld [vmem:[%s404 + $0x31] sm:$0xff]
      %v1934 = vld [vmem:[%s404 + $0x41] sm:$0xff]
      %v1935 = vld [vmem:[%s404 + $0x51] sm:$0xff]
      %v1936 = vld [vmem:[%s404 + $0x61] sm:$0xff]
      %v1937 = vld [vmem:[%s404 + $0x71] sm:$0xff]
      %v1938 = vpack.c.bf16 %v1930, %v1930
      %v1939 = vpack.c.bf16 %v1931, %v1931
      %v1940 = vpack.c.bf16 %v1932, %v1932
      %v1941 = vpack.c.bf16 %v1933, %v1933
      %v1942 = vpack.c.bf16 %v1934, %v1934
      %v1943 = vpack.c.bf16 %v1935, %v1935
      %v1944 = vpack.c.bf16 %v1936, %v1936
      %v1945 = vpack.c.bf16 %v1937, %v1937
      %v1946 = vld [vmem:[%s446 + $0x1] sm:$0xff]
      %v1947 = vld [vmem:[%s446 + $0x11] sm:$0xff]
      %v1948 = vld [vmem:[%s446 + $0x21] sm:$0xff]
      %v1949 = vld [vmem:[%s446 + $0x31] sm:$0xff]
      %v1950 = vld [vmem:[%s446 + $0x41] sm:$0xff]
      %v1951 = vld [vmem:[%s446 + $0x51] sm:$0xff]
      %v1952 = vld [vmem:[%s446 + $0x61] sm:$0xff]
      %v1953 = vld [vmem:[%s446 + $0x71] sm:$0xff]
      %v1954 = vpack.c.bf16 %v1946, %v1946
      %v1955 = vpack.c.bf16 %v1947, %v1947
      %v1956 = vpack.c.bf16 %v1948, %v1948
      %v1957 = vpack.c.bf16 %v1949, %v1949
      %v1958 = vpack.c.bf16 %v1950, %v1950
      %v1959 = vpack.c.bf16 %v1951, %v1951
      %v1960 = vpack.c.bf16 %v1952, %v1952
      %v1961 = vpack.c.bf16 %v1953, %v1953
      %v1962 = vld [vmem:[%s404] sm:$0xff]
      %v1963 = vld [vmem:[%s404 + $0x10] sm:$0xff]
      %v1964 = vld [vmem:[%s404 + $0x20] sm:$0xff]
      %v1965 = vld [vmem:[%s404 + $0x30] sm:$0xff]
      %v1966 = vld [vmem:[%s404 + $0x40] sm:$0xff]
      %v1967 = vld [vmem:[%s404 + $0x50] sm:$0xff]
      %v1968 = vld [vmem:[%s404 + $0x60] sm:$0xff]
      %v1969 = vld [vmem:[%s404 + $0x70] sm:$0xff]
      %v1970 = vpack.c.bf16 %v1962, %v1962
      %v1971 = vpack.c.bf16 %v1963, %v1963
      %v1972 = vpack.c.bf16 %v1964, %v1964
      %v1973 = vpack.c.bf16 %v1965, %v1965
      %v1974 = vpack.c.bf16 %v1966, %v1966
      %v1975 = vpack.c.bf16 %v1967, %v1967
      %v1976 = vpack.c.bf16 %v1968, %v1968
      %v1977 = vpack.c.bf16 %v1969, %v1969
      %v1978 = vld [vmem:[%s404 + $0x2] sm:$0xff]
      %v1979 = vld [vmem:[%s404 + $0x12] sm:$0xff]
      %v1980 = vld [vmem:[%s404 + $0x22] sm:$0xff]
      %v1981 = vld [vmem:[%s404 + $0x32] sm:$0xff]
      %v1982 = vld [vmem:[%s404 + $0x42] sm:$0xff]
      %v1983 = vld [vmem:[%s404 + $0x52] sm:$0xff]
      %v1984 = vld [vmem:[%s404 + $0x62] sm:$0xff]
      %v1985 = vld [vmem:[%s404 + $0x72] sm:$0xff]
      %v1986 = vpack.c.bf16 %v1978, %v1978
      %v1987 = vpack.c.bf16 %v1979, %v1979
      %v1988 = vpack.c.bf16 %v1980, %v1980
      %v1989 = vpack.c.bf16 %v1981, %v1981
      %v1990 = vpack.c.bf16 %v1982, %v1982
      %v1991 = vpack.c.bf16 %v1983, %v1983
      %v1992 = vpack.c.bf16 %v1984, %v1984
      %v1993 = vpack.c.bf16 %v1985, %v1985
      %v2002 = vunpack.c.l.b16 %v1922
      %v2003 = vunpack.c.l.b16 %v1923
      %v2004 = vunpack.c.l.b16 %v1924
      %v2005 = vunpack.c.l.b16 %v1925
      %v2006 = vunpack.c.l.b16 %v1926
      %v2007 = vunpack.c.l.b16 %v1927
      %v2008 = vunpack.c.l.b16 %v1928
      %v2009 = vunpack.c.l.b16 %v1929
      %v2010 = vpack.c.b16 %v2003, %v2002
      %v2011 = vpack.c.b16 %v2005, %v2004
      %v2012 = vpack.c.b16 %v2007, %v2006
      %v2013 = vpack.c.b16 %v2009, %v2008
      %v2022 = vunpack.c.l.b16 %v1938
      %v2023 = vunpack.c.l.b16 %v1939
      %v2024 = vunpack.c.l.b16 %v1940
      %v2025 = vunpack.c.l.b16 %v1941
      %v2026 = vunpack.c.l.b16 %v1942
      %v2027 = vunpack.c.l.b16 %v1943
      %v2028 = vunpack.c.l.b16 %v1944
      %v2029 = vunpack.c.l.b16 %v1945
      %v2030 = vpack.c.b16 %v2023, %v2022
      %v2031 = vpack.c.b16 %v2025, %v2024
      %v2032 = vpack.c.b16 %v2027, %v2026
      %v2033 = vpack.c.b16 %v2029, %v2028
      %2034 = vrot.lane.b32.xlu0 %v2030, 32
      %v2035 = vpop.permute.xlu0 %2034
      %2036 = vrot.lane.b32.xlu0 %v2031, 32
      %v2037 = vpop.permute.xlu0 %2036
      %2038 = vrot.lane.b32.xlu0 %v2032, 32
      %v2039 = vpop.permute.xlu0 %2038
      %2040 = vrot.lane.b32.xlu0 %v2033, 32
      %v2041 = vpop.permute.xlu0 %2040
      %v2050 = vunpack.c.l.b16 %v1954
      %v2051 = vunpack.c.l.b16 %v1955
      %v2052 = vunpack.c.l.b16 %v1956
      %v2053 = vunpack.c.l.b16 %v1957
      %v2054 = vunpack.c.l.b16 %v1958
      %v2055 = vunpack.c.l.b16 %v1959
      %v2056 = vunpack.c.l.b16 %v1960
      %v2057 = vunpack.c.l.b16 %v1961
      %v2058 = vpack.c.b16 %v2051, %v2050
      %v2059 = vpack.c.b16 %v2053, %v2052
      %v2060 = vpack.c.b16 %v2055, %v2054
      %v2061 = vpack.c.b16 %v2057, %v2056
      %2062 = vrot.lane.b32.xlu0 %v2058, 64
      %v2063 = vpop.permute.xlu0 %2062
      %2064 = vrot.lane.b32.xlu0 %v2059, 64
      %v2065 = vpop.permute.xlu0 %2064
      %2066 = vrot.lane.b32.xlu0 %v2060, 64
      %v2067 = vpop.permute.xlu0 %2066
      %2068 = vrot.lane.b32.xlu0 %v2061, 64
      %v2069 = vpop.permute.xlu0 %2068
      %v2078 = vunpack.c.l.b16 %v1970
      %v2079 = vunpack.c.l.b16 %v1971
      %v2080 = vunpack.c.l.b16 %v1972
      %v2081 = vunpack.c.l.b16 %v1973
      %v2082 = vunpack.c.l.b16 %v1974
      %v2083 = vunpack.c.l.b16 %v1975
      %v2084 = vunpack.c.l.b16 %v1976
      %v2085 = vunpack.c.l.b16 %v1977
      %v2086 = vpack.c.b16 %v2079, %v2078
      %v2087 = vpack.c.b16 %v2081, %v2080
      %v2088 = vpack.c.b16 %v2083, %v2082
      %v2089 = vpack.c.b16 %v2085, %v2084
      %2090 = vrot.lane.b32.xlu0 %v2086, 96
      %v2091 = vpop.permute.xlu0 %2090
      %2092 = vrot.lane.b32.xlu0 %v2087, 96
      %v2093 = vpop.permute.xlu0 %2092
      %2094 = vrot.lane.b32.xlu0 %v2088, 96
      %v2095 = vpop.permute.xlu0 %2094
      %2096 = vrot.lane.b32.xlu0 %v2089, 96
      %v2097 = vpop.permute.xlu0 %2096
      %v2106 = vunpack.c.l.b16 %v1986
      %v2107 = vunpack.c.l.b16 %v1987
      %v2108 = vunpack.c.l.b16 %v1988
      %v2109 = vunpack.c.l.b16 %v1989
      %v2110 = vunpack.c.l.b16 %v1990
      %v2111 = vunpack.c.l.b16 %v1991
      %v2112 = vunpack.c.l.b16 %v1992
      %v2113 = vunpack.c.l.b16 %v1993
      %v2114 = vpack.c.b16 %v2107, %v2106
      %v2115 = vpack.c.b16 %v2109, %v2108
      %v2116 = vpack.c.b16 %v2111, %v2110
      %v2117 = vpack.c.b16 %v2113, %v2112
      %2118 = vrot.lane.b32.xlu0 %v2114, 32
      %v2119 = vpop.permute.xlu0 %2118
      %2120 = vrot.lane.b32.xlu0 %v2115, 32
      %v2121 = vpop.permute.xlu0 %2120
      %2122 = vrot.lane.b32.xlu0 %v2116, 32
      %v2123 = vpop.permute.xlu0 %2122
      %2124 = vrot.lane.b32.xlu0 %v2117, 32
      %v2125 = vpop.permute.xlu0 %2124
      %v2128 = vsel %vm836, %v2010, %v2035
      %v2131 = vsel %vm836, %v2011, %v2037
      %v2134 = vsel %vm836, %v2012, %v2039
      %v2137 = vsel %vm836, %v2013, %v2041
      %v2139 = vsel %vm334, %v2128, %v2063
      %v2141 = vsel %vm334, %v2131, %v2065
      %v2143 = vsel %vm334, %v2134, %v2067
      %v2145 = vsel %vm334, %v2137, %v2069
      %v2147 = vsel %vm647, %v2139, %v2091
      %v2150 = vsel %vm647, %v2141, %v2093
      %v2153 = vsel %vm647, %v2143, %v2095
      %v2156 = vsel %vm647, %v2145, %v2097
      %v2160 = vsel %vm836, %v2030, %v2119
      %v2163 = vsel %vm836, %v2031, %v2121
      %v2166 = vsel %vm836, %v2032, %v2123
      %v2169 = vsel %vm836, %v2033, %v2125
      %v2170 = vld [vmem:[%s3] sm:$0xf]
      %v2171 = vld [vmem:[%s3 + $0x4] sm:$0xf]
      %v2172 = vld [vmem:[%s3 + $0x8] sm:$0xf]
      %v2173 = vld [vmem:[%s3 + $0xc] sm:$0xf]
      %v2174 = vld [vmem:[%s3 + $0x10] sm:$0xf]
      %v2175 = vld [vmem:[%s3 + $0x14] sm:$0xf]
      %v2176 = vld [vmem:[%s3 + $0x18] sm:$0xf]
      %v2177 = vld [vmem:[%s3 + $0x1c] sm:$0xf]
      %v2178 = vld [vmem:[%s3 + $0x20] sm:$0xf]
      %v2179 = vld [vmem:[%s3 + $0x24] sm:$0xf]
      %v2180 = vld [vmem:[%s3 + $0x28] sm:$0xf]
      %v2181 = vld [vmem:[%s3 + $0x2c] sm:$0xf]
      %v2182 = vld [vmem:[%s3 + $0x30] sm:$0xf]
      %v2183 = vld [vmem:[%s3 + $0x34] sm:$0xf]
      %v2184 = vld [vmem:[%s3 + $0x38] sm:$0xf]
      %v2185 = vld [vmem:[%s3 + $0x3c] sm:$0xf]
      %v2186 = vld [vmem:[%s3 + $0x40] sm:$0xf]
      %v2187 = vld [vmem:[%s3 + $0x44] sm:$0xf]
      %v2188 = vld [vmem:[%s3 + $0x48] sm:$0xf]
      %v2189 = vld [vmem:[%s3 + $0x4c] sm:$0xf]
      %v2190 = vld [vmem:[%s3 + $0x50] sm:$0xf]
      %v2191 = vld [vmem:[%s3 + $0x54] sm:$0xf]
      %v2192 = vld [vmem:[%s3 + $0x58] sm:$0xf]
      %v2193 = vld [vmem:[%s3 + $0x5c] sm:$0xf]
      %v2194 = vld [vmem:[%s4] sm:$0x1]
      %v2195 = vperm.slane %v2194, 0
      %v2220 = vunpack.c.l.b16 %v2170
      %v2221 = vunpack.c.l.b16 %v2171
      %v2222 = vunpack.c.l.b16 %v2172
      %v2223 = vunpack.c.l.b16 %v2173
      %v2224 = vunpack.c.l.b16 %v2174
      %v2225 = vunpack.c.l.b16 %v2175
      %v2226 = vunpack.c.l.b16 %v2176
      %v2227 = vunpack.c.l.b16 %v2177
      %v2228 = vunpack.c.l.b16 %v2178
      %v2229 = vunpack.c.l.b16 %v2179
      %v2230 = vunpack.c.l.b16 %v2180
      %v2231 = vunpack.c.l.b16 %v2181
      %v2232 = vunpack.c.l.b16 %v2182
      %v2233 = vunpack.c.l.b16 %v2183
      %v2234 = vunpack.c.l.b16 %v2184
      %v2235 = vunpack.c.l.b16 %v2185
      %v2236 = vunpack.c.l.b16 %v2186
      %v2237 = vunpack.c.l.b16 %v2187
      %v2238 = vunpack.c.l.b16 %v2188
      %v2239 = vunpack.c.l.b16 %v2189
      %v2240 = vunpack.c.l.b16 %v2190
      %v2241 = vunpack.c.l.b16 %v2191
      %v2242 = vunpack.c.l.b16 %v2192
      %v2243 = vunpack.c.l.b16 %v2193
      %v2244 = vpack.c.b16 %v2221, %v2220
      %v2245 = vpack.c.b16 %v2223, %v2222
      %v2246 = vpack.c.b16 %v2225, %v2224
      %v2247 = vpack.c.b16 %v2227, %v2226
      %v2248 = vpack.c.b16 %v2229, %v2228
      %v2249 = vpack.c.b16 %v2231, %v2230
      %v2250 = vpack.c.b16 %v2233, %v2232
      %v2251 = vpack.c.b16 %v2235, %v2234
      %v2252 = vpack.c.b16 %v2237, %v2236
      %v2253 = vpack.c.b16 %v2239, %v2238
      %v2254 = vpack.c.b16 %v2241, %v2240
      %v2255 = vpack.c.b16 %v2243, %v2242
      %v2268 = vsel %vm334, %v2160, 0
      %v2270 = vsel %vm334, %v2163, 0
      %v2272 = vsel %vm334, %v2166, 0
      %v2274 = vsel %vm334, %v2169, 0
      %2276 = vmatpush.bf16.msra.mxu0 %v2251
      %2277 = vmatpush.bf16.msra.mxu0 %v2250
      %2278 = vmatpush.bf16.msra.mxu0 %v2249
      %2279 = vmatpush.bf16.msra.mxu0 %v2248
      %2280 = vmatpush.bf16.msra.mxu0 %v2247
      %2281 = vmatpush.bf16.msra.mxu0 %v2246
      %2282 = vmatpush.bf16.msra.mxu0 %v2245
      %2283 = vmatpush.bf16.msra.mxu0 %v2244
      %2284 = vmatmul.bf16.gmra.mxu0 %v2147
      %v2285 = vpop.f32.mrf.mxu0
      %v2286 = vadd.f32 %v2195, %v2285
      %v2287 = vpop.f32.mrf.mxu0
      %v2288 = vadd.f32 %v2195, %v2287
      %2289 = vmatmul.bf16.gmra.mxu0 %v2150
      %v2290 = vpop.f32.mrf.mxu0
      %v2291 = vadd.f32 %v2195, %v2290
      %v2292 = vpop.f32.mrf.mxu0
      %v2293 = vadd.f32 %v2195, %v2292
      %2294 = vmatmul.bf16.gmra.mxu0 %v2153
      %v2295 = vpop.f32.mrf.mxu0
      %v2296 = vadd.f32 %v2195, %v2295
      %v2297 = vpop.f32.mrf.mxu0
      %v2298 = vadd.f32 %v2195, %v2297
      %2299 = vmatmul.bf16.gmra.mxu0 %v2156
      %v2300 = vpop.f32.mrf.mxu0
      %v2301 = vadd.f32 %v2195, %v2300
      %v2302 = vpop.f32.mrf.mxu0
      %v2303 = vadd.f32 %v2195, %v2302
      %2304 = vdwg.mxu0
      %2305 = vmatpush.bf16.msra.mxu0 0
      %2306 = vmatpush.bf16.msra.mxu0 0
      %2307 = vmatpush.bf16.msra.mxu0 0
      %2308 = vmatpush.bf16.msra.mxu0 0
      %2309 = vmatpush.bf16.msra.mxu0 %v2255
      %2310 = vmatpush.bf16.msra.mxu0 %v2254
      %2311 = vmatpush.bf16.msra.mxu0 %v2253
      %2312 = vmatpush.bf16.msra.mxu0 %v2252
      %2313 = vmatmul.bf16.gmra.mxu0 %v2268
      %v2314 = vpop.f32.mrf.mxu0
      %v2315 = vadd.f32 %v2286, %v2314
      %v2316 = vpop.f32.mrf.mxu0
      %v2317 = vadd.f32 %v2288, %v2316
      %2318 = vmatmul.bf16.gmra.mxu0 %v2270
      %v2319 = vpop.f32.mrf.mxu0
      %v2320 = vadd.f32 %v2291, %v2319
      %v2321 = vpop.f32.mrf.mxu0
      %v2322 = vadd.f32 %v2293, %v2321
      %2323 = vmatmul.bf16.gmra.mxu0 %v2272
      %v2324 = vpop.f32.mrf.mxu0
      %v2325 = vadd.f32 %v2296, %v2324
      %v2326 = vpop.f32.mrf.mxu0
      %v2327 = vadd.f32 %v2298, %v2326
      %2328 = vmatmul.bf16.gmra.mxu0 %v2274
      %v2329 = vpop.f32.mrf.mxu0
      %v2330 = vadd.f32 %v2301, %v2329
      %v2331 = vpop.f32.mrf.mxu0
      %v2332 = vadd.f32 %v2303, %v2331
      %2333 = vdwg.mxu0
      %vm2334 = vcmp.ge.f32.partialorder %v2315, 0.0
      %vm2335 = vcmp.ge.f32.partialorder %v2317, 0.0
      %vm2336 = vcmp.ge.f32.partialorder %v2320, 0.0
      %vm2337 = vcmp.ge.f32.partialorder %v2322, 0.0
      %vm2338 = vcmp.ge.f32.partialorder %v2325, 0.0
      %vm2339 = vcmp.ge.f32.partialorder %v2327, 0.0
      %vm2340 = vcmp.ge.f32.partialorder %v2330, 0.0
      %vm2341 = vcmp.ge.f32.partialorder %v2332, 0.0
      %v2342 = vmul.f32 %v2315, 0.01
      %v2343 = vmul.f32 %v2317, 0.01
      %v2344 = vmul.f32 %v2320, 0.01
      %v2345 = vmul.f32 %v2322, 0.01
      %v2346 = vmul.f32 %v2325, 0.01
      %v2347 = vmul.f32 %v2327, 0.01
      %v2348 = vmul.f32 %v2330, 0.01
      %v2349 = vmul.f32 %v2332, 0.01
      %v2350 = vsel %vm2334, %v2315, %v2342
      %v2351 = vsel %vm2335, %v2317, %v2343
      %v2352 = vsel %vm2336, %v2320, %v2344
      %v2353 = vsel %vm2337, %v2322, %v2345
      %v2354 = vsel %vm2338, %v2325, %v2346
      %v2355 = vsel %vm2339, %v2327, %v2347
      %v2356 = vsel %vm2340, %v2330, %v2348
      %v2357 = vsel %vm2341, %v2332, %v2349
      %2358 = vst.msk [vmem:[%s404 + $0x1] sm:$0xff] %vm836, %v2350
      %2359 = vst.msk [vmem:[%s404 + $0x11] sm:$0xff] %vm836, %v2351
      %2360 = vst.msk [vmem:[%s404 + $0x21] sm:$0xff] %vm836, %v2352
      %2361 = vst.msk [vmem:[%s404 + $0x31] sm:$0xff] %vm836, %v2353
      %2362 = vst.msk [vmem:[%s404 + $0x41] sm:$0xff] %vm836, %v2354
      %2363 = vst.msk [vmem:[%s404 + $0x51] sm:$0xff] %vm836, %v2355
      %2364 = vst.msk [vmem:[%s404 + $0x61] sm:$0xff] %vm836, %v2356
      %2365 = vst.msk [vmem:[%s404 + $0x71] sm:$0xff] %vm836, %v2357
      %v2366 = vld [vmem:[#allocation2 + $0x1] sm:$0xff]
      %v2367 = vld [vmem:[#allocation2 + $0x11] sm:$0xff]
      %v2368 = vld [vmem:[#allocation2 + $0x21] sm:$0xff]
      %v2369 = vld [vmem:[#allocation2 + $0x31] sm:$0xff]
      %v2370 = vld [vmem:[#allocation2 + $0x41] sm:$0xff]
      %v2371 = vld [vmem:[#allocation2 + $0x51] sm:$0xff]
      %v2372 = vld [vmem:[#allocation2 + $0x61] sm:$0xff]
      %v2373 = vld [vmem:[#allocation2 + $0x71] sm:$0xff]
      %v2374 = vpack.c.bf16 %v2366, %v2366
      %v2375 = vpack.c.bf16 %v2367, %v2367
      %v2376 = vpack.c.bf16 %v2368, %v2368
      %v2377 = vpack.c.bf16 %v2369, %v2369
      %v2378 = vpack.c.bf16 %v2370, %v2370
      %v2379 = vpack.c.bf16 %v2371, %v2371
      %v2380 = vpack.c.bf16 %v2372, %v2372
      %v2381 = vpack.c.bf16 %v2373, %v2373
      %v2382 = vld [vmem:[%s404 + $0x1] sm:$0xff]
      %v2383 = vld [vmem:[%s404 + $0x11] sm:$0xff]
      %v2384 = vld [vmem:[%s404 + $0x21] sm:$0xff]
      %v2385 = vld [vmem:[%s404 + $0x31] sm:$0xff]
      %v2386 = vld [vmem:[%s404 + $0x41] sm:$0xff]
      %v2387 = vld [vmem:[%s404 + $0x51] sm:$0xff]
      %v2388 = vld [vmem:[%s404 + $0x61] sm:$0xff]
      %v2389 = vld [vmem:[%s404 + $0x71] sm:$0xff]
      %v2390 = vpack.c.bf16 %v2382, %v2382
      %v2391 = vpack.c.bf16 %v2383, %v2383
      %v2392 = vpack.c.bf16 %v2384, %v2384
      %v2393 = vpack.c.bf16 %v2385, %v2385
      %v2394 = vpack.c.bf16 %v2386, %v2386
      %v2395 = vpack.c.bf16 %v2387, %v2387
      %v2396 = vpack.c.bf16 %v2388, %v2388
      %v2397 = vpack.c.bf16 %v2389, %v2389
      %v2398 = vld [vmem:[%s446 + $0x1] sm:$0xff]
      %v2399 = vld [vmem:[%s446 + $0x11] sm:$0xff]
      %v2400 = vld [vmem:[%s446 + $0x21] sm:$0xff]
      %v2401 = vld [vmem:[%s446 + $0x31] sm:$0xff]
      %v2402 = vld [vmem:[%s446 + $0x41] sm:$0xff]
      %v2403 = vld [vmem:[%s446 + $0x51] sm:$0xff]
      %v2404 = vld [vmem:[%s446 + $0x61] sm:$0xff]
      %v2405 = vld [vmem:[%s446 + $0x71] sm:$0xff]
      %v2406 = vpack.c.bf16 %v2398, %v2398
      %v2407 = vpack.c.bf16 %v2399, %v2399
      %v2408 = vpack.c.bf16 %v2400, %v2400
      %v2409 = vpack.c.bf16 %v2401, %v2401
      %v2410 = vpack.c.bf16 %v2402, %v2402
      %v2411 = vpack.c.bf16 %v2403, %v2403
      %v2412 = vpack.c.bf16 %v2404, %v2404
      %v2413 = vpack.c.bf16 %v2405, %v2405
      %v2414 = vld [vmem:[%s404] sm:$0xff]
      %v2415 = vld [vmem:[%s404 + $0x10] sm:$0xff]
      %v2416 = vld [vmem:[%s404 + $0x20] sm:$0xff]
      %v2417 = vld [vmem:[%s404 + $0x30] sm:$0xff]
      %v2418 = vld [vmem:[%s404 + $0x40] sm:$0xff]
      %v2419 = vld [vmem:[%s404 + $0x50] sm:$0xff]
      %v2420 = vld [vmem:[%s404 + $0x60] sm:$0xff]
      %v2421 = vld [vmem:[%s404 + $0x70] sm:$0xff]
      %v2422 = vpack.c.bf16 %v2414, %v2414
      %v2423 = vpack.c.bf16 %v2415, %v2415
      %v2424 = vpack.c.bf16 %v2416, %v2416
      %v2425 = vpack.c.bf16 %v2417, %v2417
      %v2426 = vpack.c.bf16 %v2418, %v2418
      %v2427 = vpack.c.bf16 %v2419, %v2419
      %v2428 = vpack.c.bf16 %v2420, %v2420
      %v2429 = vpack.c.bf16 %v2421, %v2421
      %v2430 = vld [vmem:[%s404 + $0x2] sm:$0xff]
      %v2431 = vld [vmem:[%s404 + $0x12] sm:$0xff]
      %v2432 = vld [vmem:[%s404 + $0x22] sm:$0xff]
      %v2433 = vld [vmem:[%s404 + $0x32] sm:$0xff]
      %v2434 = vld [vmem:[%s404 + $0x42] sm:$0xff]
      %v2435 = vld [vmem:[%s404 + $0x52] sm:$0xff]
      %v2436 = vld [vmem:[%s404 + $0x62] sm:$0xff]
      %v2437 = vld [vmem:[%s404 + $0x72] sm:$0xff]
      %v2438 = vpack.c.bf16 %v2430, %v2430
      %v2439 = vpack.c.bf16 %v2431, %v2431
      %v2440 = vpack.c.bf16 %v2432, %v2432
      %v2441 = vpack.c.bf16 %v2433, %v2433
      %v2442 = vpack.c.bf16 %v2434, %v2434
      %v2443 = vpack.c.bf16 %v2435, %v2435
      %v2444 = vpack.c.bf16 %v2436, %v2436
      %v2445 = vpack.c.bf16 %v2437, %v2437
      %v2454 = vunpack.c.l.b16 %v2374
      %v2455 = vunpack.c.l.b16 %v2375
      %v2456 = vunpack.c.l.b16 %v2376
      %v2457 = vunpack.c.l.b16 %v2377
      %v2458 = vunpack.c.l.b16 %v2378
      %v2459 = vunpack.c.l.b16 %v2379
      %v2460 = vunpack.c.l.b16 %v2380
      %v2461 = vunpack.c.l.b16 %v2381
      %v2462 = vpack.c.b16 %v2455, %v2454
      %v2463 = vpack.c.b16 %v2457, %v2456
      %v2464 = vpack.c.b16 %v2459, %v2458
      %v2465 = vpack.c.b16 %v2461, %v2460
      %v2474 = vunpack.c.l.b16 %v2390
      %v2475 = vunpack.c.l.b16 %v2391
      %v2476 = vunpack.c.l.b16 %v2392
      %v2477 = vunpack.c.l.b16 %v2393
      %v2478 = vunpack.c.l.b16 %v2394
      %v2479 = vunpack.c.l.b16 %v2395
      %v2480 = vunpack.c.l.b16 %v2396
      %v2481 = vunpack.c.l.b16 %v2397
      %v2482 = vpack.c.b16 %v2475, %v2474
      %v2483 = vpack.c.b16 %v2477, %v2476
      %v2484 = vpack.c.b16 %v2479, %v2478
      %v2485 = vpack.c.b16 %v2481, %v2480
      %2486 = vrot.lane.b32.xlu0 %v2482, 32
      %v2487 = vpop.permute.xlu0 %2486
      %2488 = vrot.lane.b32.xlu0 %v2483, 32
      %v2489 = vpop.permute.xlu0 %2488
      %2490 = vrot.lane.b32.xlu0 %v2484, 32
      %v2491 = vpop.permute.xlu0 %2490
      %2492 = vrot.lane.b32.xlu0 %v2485, 32
      %v2493 = vpop.permute.xlu0 %2492
      %v2502 = vunpack.c.l.b16 %v2406
      %v2503 = vunpack.c.l.b16 %v2407
      %v2504 = vunpack.c.l.b16 %v2408
      %v2505 = vunpack.c.l.b16 %v2409
      %v2506 = vunpack.c.l.b16 %v2410
      %v2507 = vunpack.c.l.b16 %v2411
      %v2508 = vunpack.c.l.b16 %v2412
      %v2509 = vunpack.c.l.b16 %v2413
      %v2510 = vpack.c.b16 %v2503, %v2502
      %v2511 = vpack.c.b16 %v2505, %v2504
      %v2512 = vpack.c.b16 %v2507, %v2506
      %v2513 = vpack.c.b16 %v2509, %v2508
      %2514 = vrot.lane.b32.xlu0 %v2510, 64
      %v2515 = vpop.permute.xlu0 %2514
      %2516 = vrot.lane.b32.xlu0 %v2511, 64
      %v2517 = vpop.permute.xlu0 %2516
      %2518 = vrot.lane.b32.xlu0 %v2512, 64
      %v2519 = vpop.permute.xlu0 %2518
      %2520 = vrot.lane.b32.xlu0 %v2513, 64
      %v2521 = vpop.permute.xlu0 %2520
      %v2530 = vunpack.c.l.b16 %v2422
      %v2531 = vunpack.c.l.b16 %v2423
      %v2532 = vunpack.c.l.b16 %v2424
      %v2533 = vunpack.c.l.b16 %v2425
      %v2534 = vunpack.c.l.b16 %v2426
      %v2535 = vunpack.c.l.b16 %v2427
      %v2536 = vunpack.c.l.b16 %v2428
      %v2537 = vunpack.c.l.b16 %v2429
      %v2538 = vpack.c.b16 %v2531, %v2530
      %v2539 = vpack.c.b16 %v2533, %v2532
      %v2540 = vpack.c.b16 %v2535, %v2534
      %v2541 = vpack.c.b16 %v2537, %v2536
      %2542 = vrot.lane.b32.xlu0 %v2538, 96
      %v2543 = vpop.permute.xlu0 %2542
      %2544 = vrot.lane.b32.xlu0 %v2539, 96
      %v2545 = vpop.permute.xlu0 %2544
      %2546 = vrot.lane.b32.xlu0 %v2540, 96
      %v2547 = vpop.permute.xlu0 %2546
      %2548 = vrot.lane.b32.xlu0 %v2541, 96
      %v2549 = vpop.permute.xlu0 %2548
      %v2558 = vunpack.c.l.b16 %v2438
      %v2559 = vunpack.c.l.b16 %v2439
      %v2560 = vunpack.c.l.b16 %v2440
      %v2561 = vunpack.c.l.b16 %v2441
      %v2562 = vunpack.c.l.b16 %v2442
      %v2563 = vunpack.c.l.b16 %v2443
      %v2564 = vunpack.c.l.b16 %v2444
      %v2565 = vunpack.c.l.b16 %v2445
      %v2566 = vpack.c.b16 %v2559, %v2558
      %v2567 = vpack.c.b16 %v2561, %v2560
      %v2568 = vpack.c.b16 %v2563, %v2562
      %v2569 = vpack.c.b16 %v2565, %v2564
      %2570 = vrot.lane.b32.xlu0 %v2566, 32
      %v2571 = vpop.permute.xlu0 %2570
      %2572 = vrot.lane.b32.xlu0 %v2567, 32
      %v2573 = vpop.permute.xlu0 %2572
      %2574 = vrot.lane.b32.xlu0 %v2568, 32
      %v2575 = vpop.permute.xlu0 %2574
      %2576 = vrot.lane.b32.xlu0 %v2569, 32
      %v2577 = vpop.permute.xlu0 %2576
      %v2580 = vsel %vm836, %v2462, %v2487
      %v2583 = vsel %vm836, %v2463, %v2489
      %v2586 = vsel %vm836, %v2464, %v2491
      %v2589 = vsel %vm836, %v2465, %v2493
      %v2591 = vsel %vm334, %v2580, %v2515
      %v2593 = vsel %vm334, %v2583, %v2517
      %v2595 = vsel %vm334, %v2586, %v2519
      %v2597 = vsel %vm334, %v2589, %v2521
      %v2599 = vsel %vm647, %v2591, %v2543
      %v2602 = vsel %vm647, %v2593, %v2545
      %v2605 = vsel %vm647, %v2595, %v2547
      %v2608 = vsel %vm647, %v2597, %v2549
      %v2612 = vsel %vm836, %v2482, %v2571
      %v2615 = vsel %vm836, %v2483, %v2573
      %v2618 = vsel %vm836, %v2484, %v2575
      %v2621 = vsel %vm836, %v2485, %v2577
      %v2622 = vld [vmem:[%s3 + $0x60] sm:$0xf]
      %v2623 = vld [vmem:[%s3 + $0x64] sm:$0xf]
      %v2624 = vld [vmem:[%s3 + $0x68] sm:$0xf]
      %v2625 = vld [vmem:[%s3 + $0x6c] sm:$0xf]
      %v2626 = vld [vmem:[%s3 + $0x70] sm:$0xf]
      %v2627 = vld [vmem:[%s3 + $0x74] sm:$0xf]
      %v2628 = vld [vmem:[%s3 + $0x78] sm:$0xf]
      %v2629 = vld [vmem:[%s3 + $0x7c] sm:$0xf]
      %v2630 = vld [vmem:[%s3 + $0x80] sm:$0xf]
      %v2631 = vld [vmem:[%s3 + $0x84] sm:$0xf]
      %v2632 = vld [vmem:[%s3 + $0x88] sm:$0xf]
      %v2633 = vld [vmem:[%s3 + $0x8c] sm:$0xf]
      %v2634 = vld [vmem:[%s3 + $0x90] sm:$0xf]
      %v2635 = vld [vmem:[%s3 + $0x94] sm:$0xf]
      %v2636 = vld [vmem:[%s3 + $0x98] sm:$0xf]
      %v2637 = vld [vmem:[%s3 + $0x9c] sm:$0xf]
      %v2638 = vld [vmem:[%s3 + $0xa0] sm:$0xf]
      %v2639 = vld [vmem:[%s3 + $0xa4] sm:$0xf]
      %v2640 = vld [vmem:[%s3 + $0xa8] sm:$0xf]
      %v2641 = vld [vmem:[%s3 + $0xac] sm:$0xf]
      %v2642 = vld [vmem:[%s3 + $0xb0] sm:$0xf]
      %v2643 = vld [vmem:[%s3 + $0xb4] sm:$0xf]
      %v2644 = vld [vmem:[%s3 + $0xb8] sm:$0xf]
      %v2645 = vld [vmem:[%s3 + $0xbc] sm:$0xf]
      %v2646 = vld [vmem:[%s4 + $0x1] sm:$0x1]
      %v2647 = vperm.slane %v2646, 0
      %v2672 = vunpack.c.l.b16 %v2622
      %v2673 = vunpack.c.l.b16 %v2623
      %v2674 = vunpack.c.l.b16 %v2624
      %v2675 = vunpack.c.l.b16 %v2625
      %v2676 = vunpack.c.l.b16 %v2626
      %v2677 = vunpack.c.l.b16 %v2627
      %v2678 = vunpack.c.l.b16 %v2628
      %v2679 = vunpack.c.l.b16 %v2629
      %v2680 = vunpack.c.l.b16 %v2630
      %v2681 = vunpack.c.l.b16 %v2631
      %v2682 = vunpack.c.l.b16 %v2632
      %v2683 = vunpack.c.l.b16 %v2633
      %v2684 = vunpack.c.l.b16 %v2634
      %v2685 = vunpack.c.l.b16 %v2635
      %v2686 = vunpack.c.l.b16 %v2636
      %v2687 = vunpack.c.l.b16 %v2637
      %v2688 = vunpack.c.l.b16 %v2638
      %v2689 = vunpack.c.l.b16 %v2639
      %v2690 = vunpack.c.l.b16 %v2640
      %v2691 = vunpack.c.l.b16 %v2641
      %v2692 = vunpack.c.l.b16 %v2642
      %v2693 = vunpack.c.l.b16 %v2643
      %v2694 = vunpack.c.l.b16 %v2644
      %v2695 = vunpack.c.l.b16 %v2645
      %v2696 = vpack.c.b16 %v2673, %v2672
      %v2697 = vpack.c.b16 %v2675, %v2674
      %v2698 = vpack.c.b16 %v2677, %v2676
      %v2699 = vpack.c.b16 %v2679, %v2678
      %v2700 = vpack.c.b16 %v2681, %v2680
      %v2701 = vpack.c.b16 %v2683, %v2682
      %v2702 = vpack.c.b16 %v2685, %v2684
      %v2703 = vpack.c.b16 %v2687, %v2686
      %v2704 = vpack.c.b16 %v2689, %v2688
      %v2705 = vpack.c.b16 %v2691, %v2690
      %v2706 = vpack.c.b16 %v2693, %v2692
      %v2707 = vpack.c.b16 %v2695, %v2694
      %v2720 = vsel %vm334, %v2612, 0
      %v2722 = vsel %vm334, %v2615, 0
      %v2724 = vsel %vm334, %v2618, 0
      %v2726 = vsel %vm334, %v2621, 0
      %2728 = vmatpush.bf16.msra.mxu0 %v2703
      %2729 = vmatpush.bf16.msra.mxu0 %v2702
      %2730 = vmatpush.bf16.msra.mxu0 %v2701
      %2731 = vmatpush.bf16.msra.mxu0 %v2700
      %2732 = vmatpush.bf16.msra.mxu0 %v2699
      %2733 = vmatpush.bf16.msra.mxu0 %v2698
      %2734 = vmatpush.bf16.msra.mxu0 %v2697
      %2735 = vmatpush.bf16.msra.mxu0 %v2696
      %2736 = vmatmul.bf16.gmra.mxu0 %v2599
      %v2737 = vpop.f32.mrf.mxu0
      %v2738 = vadd.f32 %v2647, %v2737
      %v2739 = vpop.f32.mrf.mxu0
      %v2740 = vadd.f32 %v2647, %v2739
      %2741 = vmatmul.bf16.gmra.mxu0 %v2602
      %v2742 = vpop.f32.mrf.mxu0
      %v2743 = vadd.f32 %v2647, %v2742
      %v2744 = vpop.f32.mrf.mxu0
      %v2745 = vadd.f32 %v2647, %v2744
      %2746 = vmatmul.bf16.gmra.mxu0 %v2605
      %v2747 = vpop.f32.mrf.mxu0
      %v2748 = vadd.f32 %v2647, %v2747
      %v2749 = vpop.f32.mrf.mxu0
      %v2750 = vadd.f32 %v2647, %v2749
      %2751 = vmatmul.bf16.gmra.mxu0 %v2608
      %v2752 = vpop.f32.mrf.mxu0
      %v2753 = vadd.f32 %v2647, %v2752
      %v2754 = vpop.f32.mrf.mxu0
      %v2755 = vadd.f32 %v2647, %v2754
      %2756 = vdwg.mxu0
      %2757 = vmatpush.bf16.msra.mxu0 0
      %2758 = vmatpush.bf16.msra.mxu0 0
      %2759 = vmatpush.bf16.msra.mxu0 0
      %2760 = vmatpush.bf16.msra.mxu0 0
      %2761 = vmatpush.bf16.msra.mxu0 %v2707
      %2762 = vmatpush.bf16.msra.mxu0 %v2706
      %2763 = vmatpush.bf16.msra.mxu0 %v2705
      %2764 = vmatpush.bf16.msra.mxu0 %v2704
      %2765 = vmatmul.bf16.gmra.mxu0 %v2720
      %v2766 = vpop.f32.mrf.mxu0
      %v2767 = vadd.f32 %v2738, %v2766
      %v2768 = vpop.f32.mrf.mxu0
      %v2769 = vadd.f32 %v2740, %v2768
      %2770 = vmatmul.bf16.gmra.mxu0 %v2722
      %v2771 = vpop.f32.mrf.mxu0
      %v2772 = vadd.f32 %v2743, %v2771
      %v2773 = vpop.f32.mrf.mxu0
      %v2774 = vadd.f32 %v2745, %v2773
      %2775 = vmatmul.bf16.gmra.mxu0 %v2724
      %v2776 = vpop.f32.mrf.mxu0
      %v2777 = vadd.f32 %v2748, %v2776
      %v2778 = vpop.f32.mrf.mxu0
      %v2779 = vadd.f32 %v2750, %v2778
      %2780 = vmatmul.bf16.gmra.mxu0 %v2726
      %v2781 = vpop.f32.mrf.mxu0
      %v2782 = vadd.f32 %v2753, %v2781
      %v2783 = vpop.f32.mrf.mxu0
      %v2784 = vadd.f32 %v2755, %v2783
      %2785 = vdwg.mxu0
      %2786 = vst.msk [vmem:[%s404 + $0x1] sm:$0xff] %vm836, %v2767
      %2787 = vst.msk [vmem:[%s404 + $0x11] sm:$0xff] %vm836, %v2769
      %2788 = vst.msk [vmem:[%s404 + $0x21] sm:$0xff] %vm836, %v2772
      %2789 = vst.msk [vmem:[%s404 + $0x31] sm:$0xff] %vm836, %v2774
      %2790 = vst.msk [vmem:[%s404 + $0x41] sm:$0xff] %vm836, %v2777
      %2791 = vst.msk [vmem:[%s404 + $0x51] sm:$0xff] %vm836, %v2779
      %2792 = vst.msk [vmem:[%s404 + $0x61] sm:$0xff] %vm836, %v2782
      %2793 = vst.msk [vmem:[%s404 + $0x71] sm:$0xff] %vm836, %v2784
      %v2794 = vld [vmem:[#allocation2] sm:$0xff]
      %v2795 = vld [vmem:[#allocation2 + $0x10] sm:$0xff]
      %v2796 = vld [vmem:[#allocation2 + $0x20] sm:$0xff]
      %v2797 = vld [vmem:[#allocation2 + $0x30] sm:$0xff]
      %v2798 = vld [vmem:[#allocation2 + $0x40] sm:$0xff]
      %v2799 = vld [vmem:[#allocation2 + $0x50] sm:$0xff]
      %v2800 = vld [vmem:[#allocation2 + $0x60] sm:$0xff]
      %v2801 = vld [vmem:[#allocation2 + $0x70] sm:$0xff]
      %v2802 = vld [vmem:[%s4 + $0x3] sm:$0x1]
      %v2803 = vperm.slane %v2802, 0
      %v2804 = vmul.f32 %v2794, %v2803
      %v2805 = vmul.f32 %v2795, %v2803
      %v2806 = vmul.f32 %v2796, %v2803
      %v2807 = vmul.f32 %v2797, %v2803
      %v2808 = vmul.f32 %v2798, %v2803
      %v2809 = vmul.f32 %v2799, %v2803
      %v2810 = vmul.f32 %v2800, %v2803
      %v2811 = vmul.f32 %v2801, %v2803
      %v2812 = vld [vmem:[#allocation2 + $0x1] sm:$0xff]
      %v2813 = vld [vmem:[#allocation2 + $0x11] sm:$0xff]
      %v2814 = vld [vmem:[#allocation2 + $0x21] sm:$0xff]
      %v2815 = vld [vmem:[#allocation2 + $0x31] sm:$0xff]
      %v2816 = vld [vmem:[#allocation2 + $0x41] sm:$0xff]
      %v2817 = vld [vmem:[#allocation2 + $0x51] sm:$0xff]
      %v2818 = vld [vmem:[#allocation2 + $0x61] sm:$0xff]
      %v2819 = vld [vmem:[#allocation2 + $0x71] sm:$0xff]
      %v2820 = vld [vmem:[%s4 + $0x4] sm:$0x1]
      %v2821 = vperm.slane %v2820, 0
      %v2822 = vmul.f32 %v2812, %v2821
      %v2823 = vmul.f32 %v2813, %v2821
      %v2824 = vmul.f32 %v2814, %v2821
      %v2825 = vmul.f32 %v2815, %v2821
      %v2826 = vmul.f32 %v2816, %v2821
      %v2827 = vmul.f32 %v2817, %v2821
      %v2828 = vmul.f32 %v2818, %v2821
      %v2829 = vmul.f32 %v2819, %v2821
      %v2830 = vadd.f32 %v2804, %v2822
      %v2831 = vadd.f32 %v2805, %v2823
      %v2832 = vadd.f32 %v2806, %v2824
      %v2833 = vadd.f32 %v2807, %v2825
      %v2834 = vadd.f32 %v2808, %v2826
      %v2835 = vadd.f32 %v2809, %v2827
      %v2836 = vadd.f32 %v2810, %v2828
      %v2837 = vadd.f32 %v2811, %v2829
      %v2838 = vld [vmem:[#allocation2 + $0x2] sm:$0xff]
      %v2839 = vld [vmem:[#allocation2 + $0x12] sm:$0xff]
      %v2840 = vld [vmem:[#allocation2 + $0x22] sm:$0xff]
      %v2841 = vld [vmem:[#allocation2 + $0x32] sm:$0xff]
      %v2842 = vld [vmem:[#allocation2 + $0x42] sm:$0xff]
      %v2843 = vld [vmem:[#allocation2 + $0x52] sm:$0xff]
      %v2844 = vld [vmem:[#allocation2 + $0x62] sm:$0xff]
      %v2845 = vld [vmem:[#allocation2 + $0x72] sm:$0xff]
      %v2846 = vld [vmem:[%s4 + $0x5] sm:$0x1]
      %v2847 = vperm.slane %v2846, 0
      %v2848 = vmul.f32 %v2838, %v2847
      %v2849 = vmul.f32 %v2839, %v2847
      %v2850 = vmul.f32 %v2840, %v2847
      %v2851 = vmul.f32 %v2841, %v2847
      %v2852 = vmul.f32 %v2842, %v2847
      %v2853 = vmul.f32 %v2843, %v2847
      %v2854 = vmul.f32 %v2844, %v2847
      %v2855 = vmul.f32 %v2845, %v2847
      %v2856 = vadd.f32 %v2830, %v2848
      %v2857 = vadd.f32 %v2831, %v2849
      %v2858 = vadd.f32 %v2832, %v2850
      %v2859 = vadd.f32 %v2833, %v2851
      %v2860 = vadd.f32 %v2834, %v2852
      %v2861 = vadd.f32 %v2835, %v2853
      %v2862 = vadd.f32 %v2836, %v2854
      %v2863 = vadd.f32 %v2837, %v2855
      %v2864 = vld [vmem:[%s404] sm:$0xff]
      %v2865 = vld [vmem:[%s404 + $0x10] sm:$0xff]
      %v2866 = vld [vmem:[%s404 + $0x20] sm:$0xff]
      %v2867 = vld [vmem:[%s404 + $0x30] sm:$0xff]
      %v2868 = vld [vmem:[%s404 + $0x40] sm:$0xff]
      %v2869 = vld [vmem:[%s404 + $0x50] sm:$0xff]
      %v2870 = vld [vmem:[%s404 + $0x60] sm:$0xff]
      %v2871 = vld [vmem:[%s404 + $0x70] sm:$0xff]
      %v2872 = vld [vmem:[%s4 + $0x6] sm:$0x1]
      %v2873 = vperm.slane %v2872, 0
      %v2874 = vmul.f32 %v2864, %v2873
      %v2875 = vmul.f32 %v2865, %v2873
      %v2876 = vmul.f32 %v2866, %v2873
      %v2877 = vmul.f32 %v2867, %v2873
      %v2878 = vmul.f32 %v2868, %v2873
      %v2879 = vmul.f32 %v2869, %v2873
      %v2880 = vmul.f32 %v2870, %v2873
      %v2881 = vmul.f32 %v2871, %v2873
      %v2882 = vadd.f32 %v2856, %v2874
      %v2883 = vadd.f32 %v2857, %v2875
      %v2884 = vadd.f32 %v2858, %v2876
      %v2885 = vadd.f32 %v2859, %v2877
      %v2886 = vadd.f32 %v2860, %v2878
      %v2887 = vadd.f32 %v2861, %v2879
      %v2888 = vadd.f32 %v2862, %v2880
      %v2889 = vadd.f32 %v2863, %v2881
      %v2890 = vld [vmem:[%s404 + $0x1] sm:$0xff]
      %v2891 = vld [vmem:[%s404 + $0x11] sm:$0xff]
      %v2892 = vld [vmem:[%s404 + $0x21] sm:$0xff]
      %v2893 = vld [vmem:[%s404 + $0x31] sm:$0xff]
      %v2894 = vld [vmem:[%s404 + $0x41] sm:$0xff]
      %v2895 = vld [vmem:[%s404 + $0x51] sm:$0xff]
      %v2896 = vld [vmem:[%s404 + $0x61] sm:$0xff]
      %v2897 = vld [vmem:[%s404 + $0x71] sm:$0xff]
      %v2898 = vld [vmem:[%s4 + $0x7] sm:$0x1]
      %v2899 = vperm.slane %v2898, 0
      %v2900 = vmul.f32 %v2890, %v2899
      %v2901 = vmul.f32 %v2891, %v2899
      %v2902 = vmul.f32 %v2892, %v2899
      %v2903 = vmul.f32 %v2893, %v2899
      %v2904 = vmul.f32 %v2894, %v2899
      %v2905 = vmul.f32 %v2895, %v2899
      %v2906 = vmul.f32 %v2896, %v2899
      %v2907 = vmul.f32 %v2897, %v2899
      %v2908 = vadd.f32 %v2882, %v2900
      %v2909 = vadd.f32 %v2883, %v2901
      %v2910 = vadd.f32 %v2884, %v2902
      %v2911 = vadd.f32 %v2885, %v2903
      %v2912 = vadd.f32 %v2886, %v2904
      %v2913 = vadd.f32 %v2887, %v2905
      %v2914 = vadd.f32 %v2888, %v2906
      %v2915 = vadd.f32 %v2889, %v2907
      %v2916 = vld [vmem:[%s404 + $0x2] sm:$0xff]
      %v2917 = vld [vmem:[%s404 + $0x12] sm:$0xff]
      %v2918 = vld [vmem:[%s404 + $0x22] sm:$0xff]
      %v2919 = vld [vmem:[%s404 + $0x32] sm:$0xff]
      %v2920 = vld [vmem:[%s404 + $0x42] sm:$0xff]
      %v2921 = vld [vmem:[%s404 + $0x52] sm:$0xff]
      %v2922 = vld [vmem:[%s404 + $0x62] sm:$0xff]
      %v2923 = vld [vmem:[%s404 + $0x72] sm:$0xff]
      %v2924 = vld [vmem:[%s4 + $0x8] sm:$0x1]
      %v2925 = vperm.slane %v2924, 0
      %v2926 = vmul.f32 %v2916, %v2925
      %v2927 = vmul.f32 %v2917, %v2925
      %v2928 = vmul.f32 %v2918, %v2925
      %v2929 = vmul.f32 %v2919, %v2925
      %v2930 = vmul.f32 %v2920, %v2925
      %v2931 = vmul.f32 %v2921, %v2925
      %v2932 = vmul.f32 %v2922, %v2925
      %v2933 = vmul.f32 %v2923, %v2925
      %v2934 = vadd.f32 %v2908, %v2926
      %v2935 = vadd.f32 %v2909, %v2927
      %v2936 = vadd.f32 %v2910, %v2928
      %v2937 = vadd.f32 %v2911, %v2929
      %v2938 = vadd.f32 %v2912, %v2930
      %v2939 = vadd.f32 %v2913, %v2931
      %v2940 = vadd.f32 %v2914, %v2932
      %v2941 = vadd.f32 %v2915, %v2933
      %v2942 = vld [vmem:[%s446] sm:$0xff]
      %v2943 = vld [vmem:[%s446 + $0x10] sm:$0xff]
      %v2944 = vld [vmem:[%s446 + $0x20] sm:$0xff]
      %v2945 = vld [vmem:[%s446 + $0x30] sm:$0xff]
      %v2946 = vld [vmem:[%s446 + $0x40] sm:$0xff]
      %v2947 = vld [vmem:[%s446 + $0x50] sm:$0xff]
      %v2948 = vld [vmem:[%s446 + $0x60] sm:$0xff]
      %v2949 = vld [vmem:[%s446 + $0x70] sm:$0xff]
      %v2950 = vld [vmem:[%s4 + $0x9] sm:$0x1]
      %v2951 = vperm.slane %v2950, 0
      %v2952 = vmul.f32 %v2942, %v2951
      %v2953 = vmul.f32 %v2943, %v2951
      %v2954 = vmul.f32 %v2944, %v2951
      %v2955 = vmul.f32 %v2945, %v2951
      %v2956 = vmul.f32 %v2946, %v2951
      %v2957 = vmul.f32 %v2947, %v2951
      %v2958 = vmul.f32 %v2948, %v2951
      %v2959 = vmul.f32 %v2949, %v2951
      %v2960 = vadd.f32 %v2934, %v2952
      %v2961 = vadd.f32 %v2935, %v2953
      %v2962 = vadd.f32 %v2936, %v2954
      %v2963 = vadd.f32 %v2937, %v2955
      %v2964 = vadd.f32 %v2938, %v2956
      %v2965 = vadd.f32 %v2939, %v2957
      %v2966 = vadd.f32 %v2940, %v2958
      %v2967 = vadd.f32 %v2941, %v2959
      %v2968 = vld [vmem:[%s446 + $0x1] sm:$0xff]
      %v2969 = vld [vmem:[%s446 + $0x11] sm:$0xff]
      %v2970 = vld [vmem:[%s446 + $0x21] sm:$0xff]
      %v2971 = vld [vmem:[%s446 + $0x31] sm:$0xff]
      %v2972 = vld [vmem:[%s446 + $0x41] sm:$0xff]
      %v2973 = vld [vmem:[%s446 + $0x51] sm:$0xff]
      %v2974 = vld [vmem:[%s446 + $0x61] sm:$0xff]
      %v2975 = vld [vmem:[%s446 + $0x71] sm:$0xff]
      %v2976 = vld [vmem:[%s4 + $0xa] sm:$0x1]
      %v2977 = vperm.slane %v2976, 0
      %v2978 = vmul.f32 %v2968, %v2977
      %v2979 = vmul.f32 %v2969, %v2977
      %v2980 = vmul.f32 %v2970, %v2977
      %v2981 = vmul.f32 %v2971, %v2977
      %v2982 = vmul.f32 %v2972, %v2977
      %v2983 = vmul.f32 %v2973, %v2977
      %v2984 = vmul.f32 %v2974, %v2977
      %v2985 = vmul.f32 %v2975, %v2977
      %v2986 = vadd.f32 %v2960, %v2978
      %v2987 = vadd.f32 %v2961, %v2979
      %v2988 = vadd.f32 %v2962, %v2980
      %v2989 = vadd.f32 %v2963, %v2981
      %v2990 = vadd.f32 %v2964, %v2982
      %v2991 = vadd.f32 %v2965, %v2983
      %v2992 = vadd.f32 %v2966, %v2984
      %v2993 = vadd.f32 %v2967, %v2985
      %v2994 = vld [vmem:[%s446 + $0x2] sm:$0xff]
      %v2995 = vld [vmem:[%s446 + $0x12] sm:$0xff]
      %v2996 = vld [vmem:[%s446 + $0x22] sm:$0xff]
      %v2997 = vld [vmem:[%s446 + $0x32] sm:$0xff]
      %v2998 = vld [vmem:[%s446 + $0x42] sm:$0xff]
      %v2999 = vld [vmem:[%s446 + $0x52] sm:$0xff]
      %v3000 = vld [vmem:[%s446 + $0x62] sm:$0xff]
      %v3001 = vld [vmem:[%s446 + $0x72] sm:$0xff]
      %v3002 = vld [vmem:[%s4 + $0xb] sm:$0x1]
      %v3003 = vperm.slane %v3002, 0
      %v3004 = vmul.f32 %v2994, %v3003
      %v3005 = vmul.f32 %v2995, %v3003
      %v3006 = vmul.f32 %v2996, %v3003
      %v3007 = vmul.f32 %v2997, %v3003
      %v3008 = vmul.f32 %v2998, %v3003
      %v3009 = vmul.f32 %v2999, %v3003
      %v3010 = vmul.f32 %v3000, %v3003
      %v3011 = vmul.f32 %v3001, %v3003
      %v3012 = vadd.f32 %v2986, %v3004
      %v3013 = vadd.f32 %v2987, %v3005
      %v3014 = vadd.f32 %v2988, %v3006
      %v3015 = vadd.f32 %v2989, %v3007
      %v3016 = vadd.f32 %v2990, %v3008
      %v3017 = vadd.f32 %v2991, %v3009
      %v3018 = vadd.f32 %v2992, %v3010
      %v3019 = vadd.f32 %v2993, %v3011
      %v3020 = vld [vmem:[%s4 + $0x2] sm:$0x1]
      %v3021 = vperm.slane %v3020, 0
      %v3022 = vadd.f32 %v3012, %v3021
      %v3023 = vadd.f32 %v3013, %v3021
      %v3024 = vadd.f32 %v3014, %v3021
      %v3025 = vadd.f32 %v3015, %v3021
      %v3026 = vadd.f32 %v3016, %v3021
      %v3027 = vadd.f32 %v3017, %v3021
      %v3028 = vadd.f32 %v3018, %v3021
      %v3029 = vadd.f32 %v3019, %v3021
      %v3030 = vadd.f32 %v3022, %v2767
      %v3031 = vadd.f32 %v3023, %v2769
      %v3032 = vadd.f32 %v3024, %v2772
      %v3033 = vadd.f32 %v3025, %v2774
      %v3034 = vadd.f32 %v3026, %v2777
      %v3035 = vadd.f32 %v3027, %v2779
      %v3036 = vadd.f32 %v3028, %v2782
      %v3037 = vadd.f32 %v3029, %v2784
      %v3038 = vsel %vm836, %v3030, 0.0
      %v3039 = vsel %vm836, %v3031, 0.0
      %v3040 = vadd.f32 %v3038, %v3039
      %v3041 = vsel %vm836, %v3032, 0.0
      %v3042 = vadd.f32 %v3040, %v3041
      %v3043 = vsel %vm836, %v3033, 0.0
      %v3044 = vadd.f32 %v3042, %v3043
      %v3045 = vsel %vm836, %v3034, 0.0
      %v3046 = vadd.f32 %v3044, %v3045
      %v3047 = vsel %vm836, %v3035, 0.0
      %v3048 = vadd.f32 %v3046, %v3047
      %v3049 = vsel %vm836, %v3036, 0.0
      %v3050 = vadd.f32 %v3048, %v3049
      %v3051 = vsel %vm836, %v3037, 0.0
      %v3052 = vadd.f32 %v3050, %v3051
      %v3053 = vrot.slane %v3052, 4
      %v3054 = vadd.f32 %v3052, %v3053
      %v3055 = vrot.slane %v3054, 2
      %v3056 = vadd.f32 %v3054, %v3055
      %v3057 = vrot.slane %v3056, 1
      %v3058 = vadd.f32 %v3056, %v3057
      %v3059 = vmul.f32 %v3058, %v1756
      %v3060 = vld [vmem:[%s4 + $0x10] sm:$0xff]
      %v3061 = vld [vmem:[%s4 + $0x18] sm:$0xff]
      %v3062 = vld [vmem:[%s4 + $0x20] sm:$0xff]
      %v3063 = vld [vmem:[%s4 + $0x28] sm:$0xff]
      %v3064 = vld [vmem:[%s4 + $0xc] sm:$0x1]
      %v3066 = vsel %vm836, %v3059, 0
      %3068 = vmatpush.msra.mxu0 0.0
      %3069 = vmatpush.msra.mxu0 0.0
      %3070 = vmatpush.msra.mxu0 0.0
      %3071 = vmatpush.msra.mxu0 0.0
      %3072 = vmatpush.msra.mxu0 0.0
      %3073 = vmatpush.msra.mxu0 0.0
      %3074 = vmatpush.msra.mxu0 0.0
      %3075 = vmatpush.msra.mxu0 0.0
      %3076 = vmatpush.msra.mxu0 0.0
      %3077 = vmatpush.msra.mxu0 0.0
      %3078 = vmatpush.msra.mxu0 0.0
      %3079 = vmatpush.msra.mxu0 0.0
      %3080 = vmatpush.msra.mxu0 %v3063
      %3081 = vmatpush.msra.mxu0 %v3062
      %3082 = vmatpush.msra.mxu0 %v3061
      %3083 = vmatpush.msra.mxu0 %v3060
      %3084 = vmatmul.f32.gmra.mxu0 %v3066
      %v3085 = vpop.f32.mrf.mxu0
      %v3086 = vadd.f32 %v3064, %v3085
      %3087 = vdwg.mxu0
      %vm3088 = vcmp.ge.f32.partialorder %v3086, 0.0
      %v3089 = vmul.f32 %v3086, 0.01
      %v3090 = vsel %vm3088, %v3086, %v3089
      %v3091 = vld [vmem:[%s4 + $0x30] sm:$0x3]
      %v3092 = vld [vmem:[%s4 + $0xd] sm:$0x1]
      %vm3093 = vcmask 15360
      %v3095 = vsel %vm3093, %v3090, 0
      %vm3097 = vcmask 1041408
      %v3099 = vsel %vm3097, %v3091, 0
      %3101 = vmatpush.msra.mxu0 0.0
      %3102 = vmatpush.msra.mxu0 0.0
      %3103 = vmatpush.msra.mxu0 0.0
      %3104 = vmatpush.msra.mxu0 0.0
      %3105 = vmatpush.msra.mxu0 0.0
      %3106 = vmatpush.msra.mxu0 0.0
      %3107 = vmatpush.msra.mxu0 0.0
      %3108 = vmatpush.msra.mxu0 0.0
      %3109 = vmatpush.msra.mxu0 0.0
      %3110 = vmatpush.msra.mxu0 0.0
      %3111 = vmatpush.msra.mxu0 0.0
      %3112 = vmatpush.msra.mxu0 0.0
      %3113 = vmatpush.msra.mxu0 0.0
      %3114 = vmatpush.msra.mxu0 0.0
      %3115 = vmatpush.msra.mxu0 0.0
      %3116 = vmatpush.msra.mxu0 %v3099
      %3117 = vmatmul.f32.gmra.mxu0 %v3095
      %v3118 = vpop.f32.mrf.mxu0
      %v3119 = vadd.f32 %v3092, %v3118
      %3120 = vdwg.mxu0
      %v3121 = vmul.f32 %v3119, 0.5
      %v3122 = vtanh.pop %v3121
      %v3123 = vadd.f32 %v3122, 1.0
      %v3124 = vmul.f32 %v3123, 0.5
      %v3125 = vperm.slane %v3124, 0
      %v3126 = vmul.f32 %v3030, %v3125
      %v3127 = vmul.f32 %v3031, %v3125
      %v3128 = vmul.f32 %v3032, %v3125
      %v3129 = vmul.f32 %v3033, %v3125
      %v3130 = vmul.f32 %v3034, %v3125
      %v3131 = vmul.f32 %v3035, %v3125
      %v3132 = vmul.f32 %v3036, %v3125
      %v3133 = vmul.f32 %v3037, %v3125
      %3142 = vrot.lane.b32.xlu0 %v3126, 32
      %v3143 = vpop.permute.xlu0 %3142
      %3144 = vrot.lane.b32.xlu0 %v3127, 32
      %v3145 = vpop.permute.xlu0 %3144
      %3146 = vrot.lane.b32.xlu0 %v3128, 32
      %v3147 = vpop.permute.xlu0 %3146
      %3148 = vrot.lane.b32.xlu0 %v3129, 32
      %v3149 = vpop.permute.xlu0 %3148
      %3150 = vrot.lane.b32.xlu0 %v3130, 32
      %v3151 = vpop.permute.xlu0 %3150
      %3152 = vrot.lane.b32.xlu0 %v3131, 32
      %v3153 = vpop.permute.xlu0 %3152
      %3154 = vrot.lane.b32.xlu0 %v3132, 32
      %v3155 = vpop.permute.xlu0 %3154
      %3156 = vrot.lane.b32.xlu0 %v3133, 32
      %v3157 = vpop.permute.xlu0 %3156
      %v3166 = vadd.f32 %v1866, %v3143
      %v3167 = vadd.f32 %v1867, %v3145
      %v3168 = vadd.f32 %v1868, %v3147
      %v3169 = vadd.f32 %v1869, %v3149
      %v3170 = vadd.f32 %v1870, %v3151
      %v3171 = vadd.f32 %v1871, %v3153
      %v3172 = vadd.f32 %v1872, %v3155
      %v3173 = vadd.f32 %v1873, %v3157
      %3182 = vrot.lane.b32.xlu0 %v3166, 80
      %v3183 = vpop.permute.xlu0 %3182
      %3184 = vrot.lane.b32.xlu0 %v3167, 80
      %v3185 = vpop.permute.xlu0 %3184
      %3186 = vrot.lane.b32.xlu0 %v3168, 80
      %v3187 = vpop.permute.xlu0 %3186
      %3188 = vrot.lane.b32.xlu0 %v3169, 80
      %v3189 = vpop.permute.xlu0 %3188
      %3190 = vrot.lane.b32.xlu0 %v3170, 80
      %v3191 = vpop.permute.xlu0 %3190
      %3192 = vrot.lane.b32.xlu0 %v3171, 80
      %v3193 = vpop.permute.xlu0 %3192
      %3194 = vrot.lane.b32.xlu0 %v3172, 80
      %v3195 = vpop.permute.xlu0 %3194
      %3196 = vrot.lane.b32.xlu0 %v3173, 80
      %v3197 = vpop.permute.xlu0 %3196
      %3206 = vst.msk [vmem:[%s404 + $0x1] sm:$0xff] %vm660, %v3183
      %3207 = vst.msk [vmem:[%s404 + $0x11] sm:$0xff] %vm660, %v3185
      %3208 = vst.msk [vmem:[%s404 + $0x21] sm:$0xff] %vm660, %v3187
      %3209 = vst.msk [vmem:[%s404 + $0x31] sm:$0xff] %vm660, %v3189
      %3210 = vst.msk [vmem:[%s404 + $0x41] sm:$0xff] %vm660, %v3191
      %3211 = vst.msk [vmem:[%s404 + $0x51] sm:$0xff] %vm660, %v3193
      %3212 = vst.msk [vmem:[%s404 + $0x61] sm:$0xff] %vm660, %v3195
      %3213 = vst.msk [vmem:[%s404 + $0x71] sm:$0xff] %vm660, %v3197
      %v3214 = vld [vmem:[#allocation2 + $0x1] sm:$0xff]
      %v3215 = vld [vmem:[#allocation2 + $0x11] sm:$0xff]
      %v3216 = vld [vmem:[#allocation2 + $0x21] sm:$0xff]
      %v3217 = vld [vmem:[#allocation2 + $0x31] sm:$0xff]
      %v3218 = vld [vmem:[#allocation2 + $0x41] sm:$0xff]
      %v3219 = vld [vmem:[#allocation2 + $0x51] sm:$0xff]
      %v3220 = vld [vmem:[#allocation2 + $0x61] sm:$0xff]
      %v3221 = vld [vmem:[#allocation2 + $0x71] sm:$0xff]
      %v3222 = vpack.c.bf16 %v3214, %v3214
      %v3223 = vpack.c.bf16 %v3215, %v3215
      %v3224 = vpack.c.bf16 %v3216, %v3216
      %v3225 = vpack.c.bf16 %v3217, %v3217
      %v3226 = vpack.c.bf16 %v3218, %v3218
      %v3227 = vpack.c.bf16 %v3219, %v3219
      %v3228 = vpack.c.bf16 %v3220, %v3220
      %v3229 = vpack.c.bf16 %v3221, %v3221
      %v3230 = vld [vmem:[%s404 + $0x1] sm:$0xff]
      %v3231 = vld [vmem:[%s404 + $0x11] sm:$0xff]
      %v3232 = vld [vmem:[%s404 + $0x21] sm:$0xff]
      %v3233 = vld [vmem:[%s404 + $0x31] sm:$0xff]
      %v3234 = vld [vmem:[%s404 + $0x41] sm:$0xff]
      %v3235 = vld [vmem:[%s404 + $0x51] sm:$0xff]
      %v3236 = vld [vmem:[%s404 + $0x61] sm:$0xff]
      %v3237 = vld [vmem:[%s404 + $0x71] sm:$0xff]
      %v3238 = vpack.c.bf16 %v3230, %v3230
      %v3239 = vpack.c.bf16 %v3231, %v3231
      %v3240 = vpack.c.bf16 %v3232, %v3232
      %v3241 = vpack.c.bf16 %v3233, %v3233
      %v3242 = vpack.c.bf16 %v3234, %v3234
      %v3243 = vpack.c.bf16 %v3235, %v3235
      %v3244 = vpack.c.bf16 %v3236, %v3236
      %v3245 = vpack.c.bf16 %v3237, %v3237
      %v3246 = vld [vmem:[%s446 + $0x1] sm:$0xff]
      %v3247 = vld [vmem:[%s446 + $0x11] sm:$0xff]
      %v3248 = vld [vmem:[%s446 + $0x21] sm:$0xff]
      %v3249 = vld [vmem:[%s446 + $0x31] sm:$0xff]
      %v3250 = vld [vmem:[%s446 + $0x41] sm:$0xff]
      %v3251 = vld [vmem:[%s446 + $0x51] sm:$0xff]
      %v3252 = vld [vmem:[%s446 + $0x61] sm:$0xff]
      %v3253 = vld [vmem:[%s446 + $0x71] sm:$0xff]
      %v3254 = vpack.c.bf16 %v3246, %v3246
      %v3255 = vpack.c.bf16 %v3247, %v3247
      %v3256 = vpack.c.bf16 %v3248, %v3248
      %v3257 = vpack.c.bf16 %v3249, %v3249
      %v3258 = vpack.c.bf16 %v3250, %v3250
      %v3259 = vpack.c.bf16 %v3251, %v3251
      %v3260 = vpack.c.bf16 %v3252, %v3252
      %v3261 = vpack.c.bf16 %v3253, %v3253
      %v3262 = vld [vmem:[%s404] sm:$0xff]
      %v3263 = vld [vmem:[%s404 + $0x10] sm:$0xff]
      %v3264 = vld [vmem:[%s404 + $0x20] sm:$0xff]
      %v3265 = vld [vmem:[%s404 + $0x30] sm:$0xff]
      %v3266 = vld [vmem:[%s404 + $0x40] sm:$0xff]
      %v3267 = vld [vmem:[%s404 + $0x50] sm:$0xff]
      %v3268 = vld [vmem:[%s404 + $0x60] sm:$0xff]
      %v3269 = vld [vmem:[%s404 + $0x70] sm:$0xff]
      %v3270 = vpack.c.bf16 %v3262, %v3262
      %v3271 = vpack.c.bf16 %v3263, %v3263
      %v3272 = vpack.c.bf16 %v3264, %v3264
      %v3273 = vpack.c.bf16 %v3265, %v3265
      %v3274 = vpack.c.bf16 %v3266, %v3266
      %v3275 = vpack.c.bf16 %v3267, %v3267
      %v3276 = vpack.c.bf16 %v3268, %v3268
      %v3277 = vpack.c.bf16 %v3269, %v3269
      %v3278 = vld [vmem:[%s404 + $0x2] sm:$0xff]
      %v3279 = vld [vmem:[%s404 + $0x12] sm:$0xff]
      %v3280 = vld [vmem:[%s404 + $0x22] sm:$0xff]
      %v3281 = vld [vmem:[%s404 + $0x32] sm:$0xff]
      %v3282 = vld [vmem:[%s404 + $0x42] sm:$0xff]
      %v3283 = vld [vmem:[%s404 + $0x52] sm:$0xff]
      %v3284 = vld [vmem:[%s404 + $0x62] sm:$0xff]
      %v3285 = vld [vmem:[%s404 + $0x72] sm:$0xff]
      %v3286 = vpack.c.bf16 %v3278, %v3278
      %v3287 = vpack.c.bf16 %v3279, %v3279
      %v3288 = vpack.c.bf16 %v3280, %v3280
      %v3289 = vpack.c.bf16 %v3281, %v3281
      %v3290 = vpack.c.bf16 %v3282, %v3282
      %v3291 = vpack.c.bf16 %v3283, %v3283
      %v3292 = vpack.c.bf16 %v3284, %v3284
      %v3293 = vpack.c.bf16 %v3285, %v3285
      %v3302 = vunpack.c.l.b16 %v3222
      %v3303 = vunpack.c.l.b16 %v3223
      %v3304 = vunpack.c.l.b16 %v3224
      %v3305 = vunpack.c.l.b16 %v3225
      %v3306 = vunpack.c.l.b16 %v3226
      %v3307 = vunpack.c.l.b16 %v3227
      %v3308 = vunpack.c.l.b16 %v3228
      %v3309 = vunpack.c.l.b16 %v3229
      %v3310 = vpack.c.b16 %v3303, %v3302
      %v3311 = vpack.c.b16 %v3305, %v3304
      %v3312 = vpack.c.b16 %v3307, %v3306
      %v3313 = vpack.c.b16 %v3309, %v3308
      %v3322 = vunpack.c.l.b16 %v3238
      %v3323 = vunpack.c.l.b16 %v3239
      %v3324 = vunpack.c.l.b16 %v3240
      %v3325 = vunpack.c.l.b16 %v3241
      %v3326 = vunpack.c.l.b16 %v3242
      %v3327 = vunpack.c.l.b16 %v3243
      %v3328 = vunpack.c.l.b16 %v3244
      %v3329 = vunpack.c.l.b16 %v3245
      %v3330 = vpack.c.b16 %v3323, %v3322
      %v3331 = vpack.c.b16 %v3325, %v3324
      %v3332 = vpack.c.b16 %v3327, %v3326
      %v3333 = vpack.c.b16 %v3329, %v3328
      %3334 = vrot.lane.b32.xlu0 %v3330, 16
      %v3335 = vpop.permute.xlu0 %3334
      %3336 = vrot.lane.b32.xlu0 %v3331, 16
      %v3337 = vpop.permute.xlu0 %3336
      %3338 = vrot.lane.b32.xlu0 %v3332, 16
      %v3339 = vpop.permute.xlu0 %3338
      %3340 = vrot.lane.b32.xlu0 %v3333, 16
      %v3341 = vpop.permute.xlu0 %3340
      %v3350 = vunpack.c.l.b16 %v3254
      %v3351 = vunpack.c.l.b16 %v3255
      %v3352 = vunpack.c.l.b16 %v3256
      %v3353 = vunpack.c.l.b16 %v3257
      %v3354 = vunpack.c.l.b16 %v3258
      %v3355 = vunpack.c.l.b16 %v3259
      %v3356 = vunpack.c.l.b16 %v3260
      %v3357 = vunpack.c.l.b16 %v3261
      %v3358 = vpack.c.b16 %v3351, %v3350
      %v3359 = vpack.c.b16 %v3353, %v3352
      %v3360 = vpack.c.b16 %v3355, %v3354
      %v3361 = vpack.c.b16 %v3357, %v3356
      %3362 = vrot.lane.b32.xlu0 %v3358, 32
      %v3363 = vpop.permute.xlu0 %3362
      %3364 = vrot.lane.b32.xlu0 %v3359, 32
      %v3365 = vpop.permute.xlu0 %3364
      %3366 = vrot.lane.b32.xlu0 %v3360, 32
      %v3367 = vpop.permute.xlu0 %3366
      %3368 = vrot.lane.b32.xlu0 %v3361, 32
      %v3369 = vpop.permute.xlu0 %3368
      %v3378 = vunpack.c.l.b16 %v3270
      %v3379 = vunpack.c.l.b16 %v3271
      %v3380 = vunpack.c.l.b16 %v3272
      %v3381 = vunpack.c.l.b16 %v3273
      %v3382 = vunpack.c.l.b16 %v3274
      %v3383 = vunpack.c.l.b16 %v3275
      %v3384 = vunpack.c.l.b16 %v3276
      %v3385 = vunpack.c.l.b16 %v3277
      %v3386 = vpack.c.b16 %v3379, %v3378
      %v3387 = vpack.c.b16 %v3381, %v3380
      %v3388 = vpack.c.b16 %v3383, %v3382
      %v3389 = vpack.c.b16 %v3385, %v3384
      %3390 = vrot.lane.b32.xlu0 %v3386, 48
      %v3391 = vpop.permute.xlu0 %3390
      %3392 = vrot.lane.b32.xlu0 %v3387, 48
      %v3393 = vpop.permute.xlu0 %3392
      %3394 = vrot.lane.b32.xlu0 %v3388, 48
      %v3395 = vpop.permute.xlu0 %3394
      %3396 = vrot.lane.b32.xlu0 %v3389, 48
      %v3397 = vpop.permute.xlu0 %3396
      %3398 = vrot.lane.b32.xlu0 %v3330, 64
      %v3399 = vpop.permute.xlu0 %3398
      %3400 = vrot.lane.b32.xlu0 %v3331, 64
      %v3401 = vpop.permute.xlu0 %3400
      %3402 = vrot.lane.b32.xlu0 %v3332, 64
      %v3403 = vpop.permute.xlu0 %3402
      %3404 = vrot.lane.b32.xlu0 %v3333, 64
      %v3405 = vpop.permute.xlu0 %3404
      %v3414 = vunpack.c.l.b16 %v3286
      %v3415 = vunpack.c.l.b16 %v3287
      %v3416 = vunpack.c.l.b16 %v3288
      %v3417 = vunpack.c.l.b16 %v3289
      %v3418 = vunpack.c.l.b16 %v3290
      %v3419 = vunpack.c.l.b16 %v3291
      %v3420 = vunpack.c.l.b16 %v3292
      %v3421 = vunpack.c.l.b16 %v3293
      %v3422 = vpack.c.b16 %v3415, %v3414
      %v3423 = vpack.c.b16 %v3417, %v3416
      %v3424 = vpack.c.b16 %v3419, %v3418
      %v3425 = vpack.c.b16 %v3421, %v3420
      %3426 = vrot.lane.b32.xlu0 %v3422, 80
      %v3427 = vpop.permute.xlu0 %3426
      %3428 = vrot.lane.b32.xlu0 %v3423, 80
      %v3429 = vpop.permute.xlu0 %3428
      %3430 = vrot.lane.b32.xlu0 %v3424, 80
      %v3431 = vpop.permute.xlu0 %3430
      %3432 = vrot.lane.b32.xlu0 %v3425, 80
      %v3433 = vpop.permute.xlu0 %3432
      %v3436 = vsel %vm660, %v3310, %v3335
      %v3439 = vsel %vm660, %v3311, %v3337
      %v3442 = vsel %vm660, %v3312, %v3339
      %v3445 = vsel %vm660, %v3313, %v3341
      %v3447 = vsel %vm836, %v3436, %v3363
      %v3449 = vsel %vm836, %v3439, %v3365
      %v3451 = vsel %vm836, %v3442, %v3367
      %v3453 = vsel %vm836, %v3445, %v3369
      %v3455 = vsel %vm405, %v3447, %v3391
      %v3457 = vsel %vm405, %v3449, %v3393
      %v3459 = vsel %vm405, %v3451, %v3395
      %v3461 = vsel %vm405, %v3453, %v3397
      %v3463 = vsel %vm334, %v3455, %v3399
      %v3465 = vsel %vm334, %v3457, %v3401
      %v3467 = vsel %vm334, %v3459, %v3403
      %v3469 = vsel %vm334, %v3461, %v3405
      %vm3470 = vcmask 654336
      %v3472 = vsel %vm3470, %v3463, %v3427
      %v3474 = vsel %vm3470, %v3465, %v3429
      %v3476 = vsel %vm3470, %v3467, %v3431
      %v3478 = vsel %vm3470, %v3469, %v3433
      %v3479 = vld [vmem:[%s5] sm:$0xf]
      %v3480 = vld [vmem:[%s5 + $0x4] sm:$0xf]
      %v3481 = vld [vmem:[%s5 + $0x8] sm:$0xf]
      %v3482 = vld [vmem:[%s5 + $0xc] sm:$0xf]
      %v3483 = vld [vmem:[%s5 + $0x10] sm:$0xf]
      %v3484 = vld [vmem:[%s5 + $0x14] sm:$0xf]
      %v3485 = vld [vmem:[%s5 + $0x18] sm:$0xf]
      %v3486 = vld [vmem:[%s5 + $0x1c] sm:$0xf]
      %v3487 = vld [vmem:[%s5 + $0x20] sm:$0xf]
      %v3488 = vld [vmem:[%s5 + $0x24] sm:$0xf]
      %v3489 = vld [vmem:[%s5 + $0x28] sm:$0xf]
      %v3490 = vld [vmem:[%s5 + $0x2c] sm:$0xf]
      %v3491 = vld [vmem:[%s6] sm:$0x1]
      %v3492 = vperm.slane %v3491, 0
      %v3505 = vunpack.c.l.b16 %v3479
      %v3506 = vunpack.c.l.b16 %v3480
      %v3507 = vunpack.c.l.b16 %v3481
      %v3508 = vunpack.c.l.b16 %v3482
      %v3509 = vunpack.c.l.b16 %v3483
      %v3510 = vunpack.c.l.b16 %v3484
      %v3511 = vunpack.c.l.b16 %v3485
      %v3512 = vunpack.c.l.b16 %v3486
      %v3513 = vunpack.c.l.b16 %v3487
      %v3514 = vunpack.c.l.b16 %v3488
      %v3515 = vunpack.c.l.b16 %v3489
      %v3516 = vunpack.c.l.b16 %v3490
      %v3517 = vpack.c.b16 %v3506, %v3505
      %v3518 = vpack.c.b16 %v3508, %v3507
      %v3519 = vpack.c.b16 %v3510, %v3509
      %v3520 = vpack.c.b16 %v3512, %v3511
      %v3521 = vpack.c.b16 %v3514, %v3513
      %v3522 = vpack.c.b16 %v3516, %v3515
      %v3529 = vsel %vm647, %v3472, 0
      %v3531 = vsel %vm647, %v3474, 0
      %v3533 = vsel %vm647, %v3476, 0
      %v3535 = vsel %vm647, %v3478, 0
      %3537 = vmatpush.bf16.msra.mxu0 0
      %3538 = vmatpush.bf16.msra.mxu0 0
      %3539 = vmatpush.bf16.msra.mxu0 %v3522
      %3540 = vmatpush.bf16.msra.mxu0 %v3521
      %3541 = vmatpush.bf16.msra.mxu0 %v3520
      %3542 = vmatpush.bf16.msra.mxu0 %v3519
      %3543 = vmatpush.bf16.msra.mxu0 %v3518
      %3544 = vmatpush.bf16.msra.mxu0 %v3517
      %3545 = vmatmul.bf16.gmra.mxu0 %v3529
      %v3546 = vpop.f32.mrf.mxu0
      %v3547 = vadd.f32 %v3492, %v3546
      %v3548 = vpop.f32.mrf.mxu0
      %v3549 = vadd.f32 %v3492, %v3548
      %3550 = vmatmul.bf16.gmra.mxu0 %v3531
      %v3551 = vpop.f32.mrf.mxu0
      %v3552 = vadd.f32 %v3492, %v3551
      %v3553 = vpop.f32.mrf.mxu0
      %v3554 = vadd.f32 %v3492, %v3553
      %3555 = vmatmul.bf16.gmra.mxu0 %v3533
      %v3556 = vpop.f32.mrf.mxu0
      %v3557 = vadd.f32 %v3492, %v3556
      %v3558 = vpop.f32.mrf.mxu0
      %v3559 = vadd.f32 %v3492, %v3558
      %3560 = vmatmul.bf16.gmra.mxu0 %v3535
      %v3561 = vpop.f32.mrf.mxu0
      %v3562 = vadd.f32 %v3492, %v3561
      %v3563 = vpop.f32.mrf.mxu0
      %v3564 = vadd.f32 %v3492, %v3563
      %3565 = vdwg.mxu0
      %vm3566 = vcmp.ge.f32.partialorder %v3547, 0.0
      %vm3567 = vcmp.ge.f32.partialorder %v3549, 0.0
      %vm3568 = vcmp.ge.f32.partialorder %v3552, 0.0
      %vm3569 = vcmp.ge.f32.partialorder %v3554, 0.0
      %vm3570 = vcmp.ge.f32.partialorder %v3557, 0.0
      %vm3571 = vcmp.ge.f32.partialorder %v3559, 0.0
      %vm3572 = vcmp.ge.f32.partialorder %v3562, 0.0
      %vm3573 = vcmp.ge.f32.partialorder %v3564, 0.0
      %v3574 = vmul.f32 %v3547, 0.01
      %v3575 = vmul.f32 %v3549, 0.01
      %v3576 = vmul.f32 %v3552, 0.01
      %v3577 = vmul.f32 %v3554, 0.01
      %v3578 = vmul.f32 %v3557, 0.01
      %v3579 = vmul.f32 %v3559, 0.01
      %v3580 = vmul.f32 %v3562, 0.01
      %v3581 = vmul.f32 %v3564, 0.01
      %v3582 = vsel %vm3566, %v3547, %v3574
      %v3583 = vsel %vm3567, %v3549, %v3575
      %v3584 = vsel %vm3568, %v3552, %v3576
      %v3585 = vsel %vm3569, %v3554, %v3577
      %v3586 = vsel %vm3570, %v3557, %v3578
      %v3587 = vsel %vm3571, %v3559, %v3579
      %v3588 = vsel %vm3572, %v3562, %v3580
      %v3589 = vsel %vm3573, %v3564, %v3581
      %3590 = vst.msk [vmem:[%s404 + $0x1] sm:$0xff] %vm660, %v3582
      %3591 = vst.msk [vmem:[%s404 + $0x11] sm:$0xff] %vm660, %v3583
      %3592 = vst.msk [vmem:[%s404 + $0x21] sm:$0xff] %vm660, %v3584
      %3593 = vst.msk [vmem:[%s404 + $0x31] sm:$0xff] %vm660, %v3585
      %3594 = vst.msk [vmem:[%s404 + $0x41] sm:$0xff] %vm660, %v3586
      %3595 = vst.msk [vmem:[%s404 + $0x51] sm:$0xff] %vm660, %v3587
      %3596 = vst.msk [vmem:[%s404 + $0x61] sm:$0xff] %vm660, %v3588
      %3597 = vst.msk [vmem:[%s404 + $0x71] sm:$0xff] %vm660, %v3589
      %v3598 = vld [vmem:[#allocation2 + $0x1] sm:$0xff]
      %v3599 = vld [vmem:[#allocation2 + $0x11] sm:$0xff]
      %v3600 = vld [vmem:[#allocation2 + $0x21] sm:$0xff]
      %v3601 = vld [vmem:[#allocation2 + $0x31] sm:$0xff]
      %v3602 = vld [vmem:[#allocation2 + $0x41] sm:$0xff]
      %v3603 = vld [vmem:[#allocation2 + $0x51] sm:$0xff]
      %v3604 = vld [vmem:[#allocation2 + $0x61] sm:$0xff]
      %v3605 = vld [vmem:[#allocation2 + $0x71] sm:$0xff]
      %v3606 = vpack.c.bf16 %v3598, %v3598
      %v3607 = vpack.c.bf16 %v3599, %v3599
      %v3608 = vpack.c.bf16 %v3600, %v3600
      %v3609 = vpack.c.bf16 %v3601, %v3601
      %v3610 = vpack.c.bf16 %v3602, %v3602
      %v3611 = vpack.c.bf16 %v3603, %v3603
      %v3612 = vpack.c.bf16 %v3604, %v3604
      %v3613 = vpack.c.bf16 %v3605, %v3605
      %v3614 = vld [vmem:[%s404 + $0x1] sm:$0xff]
      %v3615 = vld [vmem:[%s404 + $0x11] sm:$0xff]
      %v3616 = vld [vmem:[%s404 + $0x21] sm:$0xff]
      %v3617 = vld [vmem:[%s404 + $0x31] sm:$0xff]
      %v3618 = vld [vmem:[%s404 + $0x41] sm:$0xff]
      %v3619 = vld [vmem:[%s404 + $0x51] sm:$0xff]
      %v3620 = vld [vmem:[%s404 + $0x61] sm:$0xff]
      %v3621 = vld [vmem:[%s404 + $0x71] sm:$0xff]
      %v3622 = vpack.c.bf16 %v3614, %v3614
      %v3623 = vpack.c.bf16 %v3615, %v3615
      %v3624 = vpack.c.bf16 %v3616, %v3616
      %v3625 = vpack.c.bf16 %v3617, %v3617
      %v3626 = vpack.c.bf16 %v3618, %v3618
      %v3627 = vpack.c.bf16 %v3619, %v3619
      %v3628 = vpack.c.bf16 %v3620, %v3620
      %v3629 = vpack.c.bf16 %v3621, %v3621
      %v3630 = vld [vmem:[%s446 + $0x1] sm:$0xff]
      %v3631 = vld [vmem:[%s446 + $0x11] sm:$0xff]
      %v3632 = vld [vmem:[%s446 + $0x21] sm:$0xff]
      %v3633 = vld [vmem:[%s446 + $0x31] sm:$0xff]
      %v3634 = vld [vmem:[%s446 + $0x41] sm:$0xff]
      %v3635 = vld [vmem:[%s446 + $0x51] sm:$0xff]
      %v3636 = vld [vmem:[%s446 + $0x61] sm:$0xff]
      %v3637 = vld [vmem:[%s446 + $0x71] sm:$0xff]
      %v3638 = vpack.c.bf16 %v3630, %v3630
      %v3639 = vpack.c.bf16 %v3631, %v3631
      %v3640 = vpack.c.bf16 %v3632, %v3632
      %v3641 = vpack.c.bf16 %v3633, %v3633
      %v3642 = vpack.c.bf16 %v3634, %v3634
      %v3643 = vpack.c.bf16 %v3635, %v3635
      %v3644 = vpack.c.bf16 %v3636, %v3636
      %v3645 = vpack.c.bf16 %v3637, %v3637
      %v3646 = vld [vmem:[%s404] sm:$0xff]
      %v3647 = vld [vmem:[%s404 + $0x10] sm:$0xff]
      %v3648 = vld [vmem:[%s404 + $0x20] sm:$0xff]
      %v3649 = vld [vmem:[%s404 + $0x30] sm:$0xff]
      %v3650 = vld [vmem:[%s404 + $0x40] sm:$0xff]
      %v3651 = vld [vmem:[%s404 + $0x50] sm:$0xff]
      %v3652 = vld [vmem:[%s404 + $0x60] sm:$0xff]
      %v3653 = vld [vmem:[%s404 + $0x70] sm:$0xff]
      %v3654 = vpack.c.bf16 %v3646, %v3646
      %v3655 = vpack.c.bf16 %v3647, %v3647
      %v3656 = vpack.c.bf16 %v3648, %v3648
      %v3657 = vpack.c.bf16 %v3649, %v3649
      %v3658 = vpack.c.bf16 %v3650, %v3650
      %v3659 = vpack.c.bf16 %v3651, %v3651
      %v3660 = vpack.c.bf16 %v3652, %v3652
      %v3661 = vpack.c.bf16 %v3653, %v3653
      %v3662 = vld [vmem:[%s404 + $0x2] sm:$0xff]
      %v3663 = vld [vmem:[%s404 + $0x12] sm:$0xff]
      %v3664 = vld [vmem:[%s404 + $0x22] sm:$0xff]
      %v3665 = vld [vmem:[%s404 + $0x32] sm:$0xff]
      %v3666 = vld [vmem:[%s404 + $0x42] sm:$0xff]
      %v3667 = vld [vmem:[%s404 + $0x52] sm:$0xff]
      %v3668 = vld [vmem:[%s404 + $0x62] sm:$0xff]
      %v3669 = vld [vmem:[%s404 + $0x72] sm:$0xff]
      %v3670 = vpack.c.bf16 %v3662, %v3662
      %v3671 = vpack.c.bf16 %v3663, %v3663
      %v3672 = vpack.c.bf16 %v3664, %v3664
      %v3673 = vpack.c.bf16 %v3665, %v3665
      %v3674 = vpack.c.bf16 %v3666, %v3666
      %v3675 = vpack.c.bf16 %v3667, %v3667
      %v3676 = vpack.c.bf16 %v3668, %v3668
      %v3677 = vpack.c.bf16 %v3669, %v3669
      %v3686 = vunpack.c.l.b16 %v3606
      %v3687 = vunpack.c.l.b16 %v3607
      %v3688 = vunpack.c.l.b16 %v3608
      %v3689 = vunpack.c.l.b16 %v3609
      %v3690 = vunpack.c.l.b16 %v3610
      %v3691 = vunpack.c.l.b16 %v3611
      %v3692 = vunpack.c.l.b16 %v3612
      %v3693 = vunpack.c.l.b16 %v3613
      %v3694 = vpack.c.b16 %v3687, %v3686
      %v3695 = vpack.c.b16 %v3689, %v3688
      %v3696 = vpack.c.b16 %v3691, %v3690
      %v3697 = vpack.c.b16 %v3693, %v3692
      %v3706 = vunpack.c.l.b16 %v3622
      %v3707 = vunpack.c.l.b16 %v3623
      %v3708 = vunpack.c.l.b16 %v3624
      %v3709 = vunpack.c.l.b16 %v3625
      %v3710 = vunpack.c.l.b16 %v3626
      %v3711 = vunpack.c.l.b16 %v3627
      %v3712 = vunpack.c.l.b16 %v3628
      %v3713 = vunpack.c.l.b16 %v3629
      %v3714 = vpack.c.b16 %v3707, %v3706
      %v3715 = vpack.c.b16 %v3709, %v3708
      %v3716 = vpack.c.b16 %v3711, %v3710
      %v3717 = vpack.c.b16 %v3713, %v3712
      %3718 = vrot.lane.b32.xlu0 %v3714, 16
      %v3719 = vpop.permute.xlu0 %3718
      %3720 = vrot.lane.b32.xlu0 %v3715, 16
      %v3721 = vpop.permute.xlu0 %3720
      %3722 = vrot.lane.b32.xlu0 %v3716, 16
      %v3723 = vpop.permute.xlu0 %3722
      %3724 = vrot.lane.b32.xlu0 %v3717, 16
      %v3725 = vpop.permute.xlu0 %3724
      %v3734 = vunpack.c.l.b16 %v3638
      %v3735 = vunpack.c.l.b16 %v3639
      %v3736 = vunpack.c.l.b16 %v3640
      %v3737 = vunpack.c.l.b16 %v3641
      %v3738 = vunpack.c.l.b16 %v3642
      %v3739 = vunpack.c.l.b16 %v3643
      %v3740 = vunpack.c.l.b16 %v3644
      %v3741 = vunpack.c.l.b16 %v3645
      %v3742 = vpack.c.b16 %v3735, %v3734
      %v3743 = vpack.c.b16 %v3737, %v3736
      %v3744 = vpack.c.b16 %v3739, %v3738
      %v3745 = vpack.c.b16 %v3741, %v3740
      %3746 = vrot.lane.b32.xlu0 %v3742, 32
      %v3747 = vpop.permute.xlu0 %3746
      %3748 = vrot.lane.b32.xlu0 %v3743, 32
      %v3749 = vpop.permute.xlu0 %3748
      %3750 = vrot.lane.b32.xlu0 %v3744, 32
      %v3751 = vpop.permute.xlu0 %3750
      %3752 = vrot.lane.b32.xlu0 %v3745, 32
      %v3753 = vpop.permute.xlu0 %3752
      %v3762 = vunpack.c.l.b16 %v3654
      %v3763 = vunpack.c.l.b16 %v3655
      %v3764 = vunpack.c.l.b16 %v3656
      %v3765 = vunpack.c.l.b16 %v3657
      %v3766 = vunpack.c.l.b16 %v3658
      %v3767 = vunpack.c.l.b16 %v3659
      %v3768 = vunpack.c.l.b16 %v3660
      %v3769 = vunpack.c.l.b16 %v3661
      %v3770 = vpack.c.b16 %v3763, %v3762
      %v3771 = vpack.c.b16 %v3765, %v3764
      %v3772 = vpack.c.b16 %v3767, %v3766
      %v3773 = vpack.c.b16 %v3769, %v3768
      %3774 = vrot.lane.b32.xlu0 %v3770, 48
      %v3775 = vpop.permute.xlu0 %3774
      %3776 = vrot.lane.b32.xlu0 %v3771, 48
      %v3777 = vpop.permute.xlu0 %3776
      %3778 = vrot.lane.b32.xlu0 %v3772, 48
      %v3779 = vpop.permute.xlu0 %3778
      %3780 = vrot.lane.b32.xlu0 %v3773, 48
      %v3781 = vpop.permute.xlu0 %3780
      %3782 = vrot.lane.b32.xlu0 %v3714, 64
      %v3783 = vpop.permute.xlu0 %3782
      %3784 = vrot.lane.b32.xlu0 %v3715, 64
      %v3785 = vpop.permute.xlu0 %3784
      %3786 = vrot.lane.b32.xlu0 %v3716, 64
      %v3787 = vpop.permute.xlu0 %3786
      %3788 = vrot.lane.b32.xlu0 %v3717, 64
      %v3789 = vpop.permute.xlu0 %3788
      %v3798 = vunpack.c.l.b16 %v3670
      %v3799 = vunpack.c.l.b16 %v3671
      %v3800 = vunpack.c.l.b16 %v3672
      %v3801 = vunpack.c.l.b16 %v3673
      %v3802 = vunpack.c.l.b16 %v3674
      %v3803 = vunpack.c.l.b16 %v3675
      %v3804 = vunpack.c.l.b16 %v3676
      %v3805 = vunpack.c.l.b16 %v3677
      %v3806 = vpack.c.b16 %v3799, %v3798
      %v3807 = vpack.c.b16 %v3801, %v3800
      %v3808 = vpack.c.b16 %v3803, %v3802
      %v3809 = vpack.c.b16 %v3805, %v3804
      %3810 = vrot.lane.b32.xlu0 %v3806, 80
      %v3811 = vpop.permute.xlu0 %3810
      %3812 = vrot.lane.b32.xlu0 %v3807, 80
      %v3813 = vpop.permute.xlu0 %3812
      %3814 = vrot.lane.b32.xlu0 %v3808, 80
      %v3815 = vpop.permute.xlu0 %3814
      %3816 = vrot.lane.b32.xlu0 %v3809, 80
      %v3817 = vpop.permute.xlu0 %3816
      %v3820 = vsel %vm660, %v3694, %v3719
      %v3823 = vsel %vm660, %v3695, %v3721
      %v3826 = vsel %vm660, %v3696, %v3723
      %v3829 = vsel %vm660, %v3697, %v3725
      %v3831 = vsel %vm836, %v3820, %v3747
      %v3833 = vsel %vm836, %v3823, %v3749
      %v3835 = vsel %vm836, %v3826, %v3751
      %v3837 = vsel %vm836, %v3829, %v3753
      %v3839 = vsel %vm405, %v3831, %v3775
      %v3841 = vsel %vm405, %v3833, %v3777
      %v3843 = vsel %vm405, %v3835, %v3779
      %v3845 = vsel %vm405, %v3837, %v3781
      %v3847 = vsel %vm334, %v3839, %v3783
      %v3849 = vsel %vm334, %v3841, %v3785
      %v3851 = vsel %vm334, %v3843, %v3787
      %v3853 = vsel %vm334, %v3845, %v3789
      %v3855 = vsel %vm3470, %v3847, %v3811
      %v3857 = vsel %vm3470, %v3849, %v3813
      %v3859 = vsel %vm3470, %v3851, %v3815
      %v3861 = vsel %vm3470, %v3853, %v3817
      %v3862 = vld [vmem:[%s5 + $0x30] sm:$0xf]
      %v3863 = vld [vmem:[%s5 + $0x34] sm:$0xf]
      %v3864 = vld [vmem:[%s5 + $0x38] sm:$0xf]
      %v3865 = vld [vmem:[%s5 + $0x3c] sm:$0xf]
      %v3866 = vld [vmem:[%s5 + $0x40] sm:$0xf]
      %v3867 = vld [vmem:[%s5 + $0x44] sm:$0xf]
      %v3868 = vld [vmem:[%s5 + $0x48] sm:$0xf]
      %v3869 = vld [vmem:[%s5 + $0x4c] sm:$0xf]
      %v3870 = vld [vmem:[%s5 + $0x50] sm:$0xf]
      %v3871 = vld [vmem:[%s5 + $0x54] sm:$0xf]
      %v3872 = vld [vmem:[%s5 + $0x58] sm:$0xf]
      %v3873 = vld [vmem:[%s5 + $0x5c] sm:$0xf]
      %v3874 = vld [vmem:[%s6 + $0x1] sm:$0x1]
      %v3875 = vperm.slane %v3874, 0
      %v3888 = vunpack.c.l.b16 %v3862
      %v3889 = vunpack.c.l.b16 %v3863
      %v3890 = vunpack.c.l.b16 %v3864
      %v3891 = vunpack.c.l.b16 %v3865
      %v3892 = vunpack.c.l.b16 %v3866
      %v3893 = vunpack.c.l.b16 %v3867
      %v3894 = vunpack.c.l.b16 %v3868
      %v3895 = vunpack.c.l.b16 %v3869
      %v3896 = vunpack.c.l.b16 %v3870
      %v3897 = vunpack.c.l.b16 %v3871
      %v3898 = vunpack.c.l.b16 %v3872
      %v3899 = vunpack.c.l.b16 %v3873
      %v3900 = vpack.c.b16 %v3889, %v3888
      %v3901 = vpack.c.b16 %v3891, %v3890
      %v3902 = vpack.c.b16 %v3893, %v3892
      %v3903 = vpack.c.b16 %v3895, %v3894
      %v3904 = vpack.c.b16 %v3897, %v3896
      %v3905 = vpack.c.b16 %v3899, %v3898
      %v3912 = vsel %vm647, %v3855, 0
      %v3914 = vsel %vm647, %v3857, 0
      %v3916 = vsel %vm647, %v3859, 0
      %v3918 = vsel %vm647, %v3861, 0
      %3920 = vmatpush.bf16.msra.mxu0 0
      %3921 = vmatpush.bf16.msra.mxu0 0
      %3922 = vmatpush.bf16.msra.mxu0 %v3905
      %3923 = vmatpush.bf16.msra.mxu0 %v3904
      %3924 = vmatpush.bf16.msra.mxu0 %v3903
      %3925 = vmatpush.bf16.msra.mxu0 %v3902
      %3926 = vmatpush.bf16.msra.mxu0 %v3901
      %3927 = vmatpush.bf16.msra.mxu0 %v3900
      %3928 = vmatmul.bf16.gmra.mxu0 %v3912
      %v3929 = vpop.f32.mrf.mxu0
      %v3930 = vadd.f32 %v3875, %v3929
      %v3931 = vpop.f32.mrf.mxu0
      %v3932 = vadd.f32 %v3875, %v3931
      %3933 = vmatmul.bf16.gmra.mxu0 %v3914
      %v3934 = vpop.f32.mrf.mxu0
      %v3935 = vadd.f32 %v3875, %v3934
      %v3936 = vpop.f32.mrf.mxu0
      %v3937 = vadd.f32 %v3875, %v3936
      %3938 = vmatmul.bf16.gmra.mxu0 %v3916
      %v3939 = vpop.f32.mrf.mxu0
      %v3940 = vadd.f32 %v3875, %v3939
      %v3941 = vpop.f32.mrf.mxu0
      %v3942 = vadd.f32 %v3875, %v3941
      %3943 = vmatmul.bf16.gmra.mxu0 %v3918
      %v3944 = vpop.f32.mrf.mxu0
      %v3945 = vadd.f32 %v3875, %v3944
      %v3946 = vpop.f32.mrf.mxu0
      %v3947 = vadd.f32 %v3875, %v3946
      %3948 = vdwg.mxu0
      %3949 = vst.msk [vmem:[%s404 + $0x1] sm:$0xff] %vm660, %v3930
      %3950 = vst.msk [vmem:[%s404 + $0x11] sm:$0xff] %vm660, %v3932
      %3951 = vst.msk [vmem:[%s404 + $0x21] sm:$0xff] %vm660, %v3935
      %3952 = vst.msk [vmem:[%s404 + $0x31] sm:$0xff] %vm660, %v3937
      %3953 = vst.msk [vmem:[%s404 + $0x41] sm:$0xff] %vm660, %v3940
      %3954 = vst.msk [vmem:[%s404 + $0x51] sm:$0xff] %vm660, %v3942
      %3955 = vst.msk [vmem:[%s404 + $0x61] sm:$0xff] %vm660, %v3945
      %3956 = vst.msk [vmem:[%s404 + $0x71] sm:$0xff] %vm660, %v3947
      %v3957 = vld [vmem:[#allocation2] sm:$0xff]
      %v3958 = vld [vmem:[#allocation2 + $0x10] sm:$0xff]
      %v3959 = vld [vmem:[#allocation2 + $0x20] sm:$0xff]
      %v3960 = vld [vmem:[#allocation2 + $0x30] sm:$0xff]
      %v3961 = vld [vmem:[#allocation2 + $0x40] sm:$0xff]
      %v3962 = vld [vmem:[#allocation2 + $0x50] sm:$0xff]
      %v3963 = vld [vmem:[#allocation2 + $0x60] sm:$0xff]
      %v3964 = vld [vmem:[#allocation2 + $0x70] sm:$0xff]
      %v3965 = vld [vmem:[%s6 + $0x3] sm:$0x1]
      %v3966 = vperm.slane %v3965, 0
      %v3967 = vmul.f32 %v3957, %v3966
      %v3968 = vmul.f32 %v3958, %v3966
      %v3969 = vmul.f32 %v3959, %v3966
      %v3970 = vmul.f32 %v3960, %v3966
      %v3971 = vmul.f32 %v3961, %v3966
      %v3972 = vmul.f32 %v3962, %v3966
      %v3973 = vmul.f32 %v3963, %v3966
      %v3974 = vmul.f32 %v3964, %v3966
      %v3975 = vld [vmem:[#allocation2 + $0x1] sm:$0xff]
      %v3976 = vld [vmem:[#allocation2 + $0x11] sm:$0xff]
      %v3977 = vld [vmem:[#allocation2 + $0x21] sm:$0xff]
      %v3978 = vld [vmem:[#allocation2 + $0x31] sm:$0xff]
      %v3979 = vld [vmem:[#allocation2 + $0x41] sm:$0xff]
      %v3980 = vld [vmem:[#allocation2 + $0x51] sm:$0xff]
      %v3981 = vld [vmem:[#allocation2 + $0x61] sm:$0xff]
      %v3982 = vld [vmem:[#allocation2 + $0x71] sm:$0xff]
      %v3983 = vld [vmem:[%s6 + $0x4] sm:$0x1]
      %v3984 = vperm.slane %v3983, 0
      %v3985 = vmul.f32 %v3975, %v3984
      %v3986 = vmul.f32 %v3976, %v3984
      %v3987 = vmul.f32 %v3977, %v3984
      %v3988 = vmul.f32 %v3978, %v3984
      %v3989 = vmul.f32 %v3979, %v3984
      %v3990 = vmul.f32 %v3980, %v3984
      %v3991 = vmul.f32 %v3981, %v3984
      %v3992 = vmul.f32 %v3982, %v3984
      %v3993 = vadd.f32 %v3967, %v3985
      %v3994 = vadd.f32 %v3968, %v3986
      %v3995 = vadd.f32 %v3969, %v3987
      %v3996 = vadd.f32 %v3970, %v3988
      %v3997 = vadd.f32 %v3971, %v3989
      %v3998 = vadd.f32 %v3972, %v3990
      %v3999 = vadd.f32 %v3973, %v3991
      %v4000 = vadd.f32 %v3974, %v3992
      %v4001 = vld [vmem:[#allocation2 + $0x2] sm:$0xff]
      %v4002 = vld [vmem:[#allocation2 + $0x12] sm:$0xff]
      %v4003 = vld [vmem:[#allocation2 + $0x22] sm:$0xff]
      %v4004 = vld [vmem:[#allocation2 + $0x32] sm:$0xff]
      %v4005 = vld [vmem:[#allocation2 + $0x42] sm:$0xff]
      %v4006 = vld [vmem:[#allocation2 + $0x52] sm:$0xff]
      %v4007 = vld [vmem:[#allocation2 + $0x62] sm:$0xff]
      %v4008 = vld [vmem:[#allocation2 + $0x72] sm:$0xff]
      %v4009 = vld [vmem:[%s6 + $0x5] sm:$0x1]
      %v4010 = vperm.slane %v4009, 0
      %v4011 = vmul.f32 %v4001, %v4010
      %v4012 = vmul.f32 %v4002, %v4010
      %v4013 = vmul.f32 %v4003, %v4010
      %v4014 = vmul.f32 %v4004, %v4010
      %v4015 = vmul.f32 %v4005, %v4010
      %v4016 = vmul.f32 %v4006, %v4010
      %v4017 = vmul.f32 %v4007, %v4010
      %v4018 = vmul.f32 %v4008, %v4010
      %v4019 = vadd.f32 %v3993, %v4011
      %v4020 = vadd.f32 %v3994, %v4012
      %v4021 = vadd.f32 %v3995, %v4013
      %v4022 = vadd.f32 %v3996, %v4014
      %v4023 = vadd.f32 %v3997, %v4015
      %v4024 = vadd.f32 %v3998, %v4016
      %v4025 = vadd.f32 %v3999, %v4017
      %v4026 = vadd.f32 %v4000, %v4018
      %v4027 = vld [vmem:[%s404] sm:$0xff]
      %v4028 = vld [vmem:[%s404 + $0x10] sm:$0xff]
      %v4029 = vld [vmem:[%s404 + $0x20] sm:$0xff]
      %v4030 = vld [vmem:[%s404 + $0x30] sm:$0xff]
      %v4031 = vld [vmem:[%s404 + $0x40] sm:$0xff]
      %v4032 = vld [vmem:[%s404 + $0x50] sm:$0xff]
      %v4033 = vld [vmem:[%s404 + $0x60] sm:$0xff]
      %v4034 = vld [vmem:[%s404 + $0x70] sm:$0xff]
      %v4035 = vld [vmem:[%s6 + $0x6] sm:$0x1]
      %v4036 = vperm.slane %v4035, 0
      %v4037 = vmul.f32 %v4027, %v4036
      %v4038 = vmul.f32 %v4028, %v4036
      %v4039 = vmul.f32 %v4029, %v4036
      %v4040 = vmul.f32 %v4030, %v4036
      %v4041 = vmul.f32 %v4031, %v4036
      %v4042 = vmul.f32 %v4032, %v4036
      %v4043 = vmul.f32 %v4033, %v4036
      %v4044 = vmul.f32 %v4034, %v4036
      %v4045 = vadd.f32 %v4019, %v4037
      %v4046 = vadd.f32 %v4020, %v4038
      %v4047 = vadd.f32 %v4021, %v4039
      %v4048 = vadd.f32 %v4022, %v4040
      %v4049 = vadd.f32 %v4023, %v4041
      %v4050 = vadd.f32 %v4024, %v4042
      %v4051 = vadd.f32 %v4025, %v4043
      %v4052 = vadd.f32 %v4026, %v4044
      %v4053 = vld [vmem:[%s404 + $0x1] sm:$0xff]
      %v4054 = vld [vmem:[%s404 + $0x11] sm:$0xff]
      %v4055 = vld [vmem:[%s404 + $0x21] sm:$0xff]
      %v4056 = vld [vmem:[%s404 + $0x31] sm:$0xff]
      %v4057 = vld [vmem:[%s404 + $0x41] sm:$0xff]
      %v4058 = vld [vmem:[%s404 + $0x51] sm:$0xff]
      %v4059 = vld [vmem:[%s404 + $0x61] sm:$0xff]
      %v4060 = vld [vmem:[%s404 + $0x71] sm:$0xff]
      %v4061 = vld [vmem:[%s6 + $0x7] sm:$0x1]
      %v4062 = vperm.slane %v4061, 0
      %v4063 = vmul.f32 %v4053, %v4062
      %v4064 = vmul.f32 %v4054, %v4062
      %v4065 = vmul.f32 %v4055, %v4062
      %v4066 = vmul.f32 %v4056, %v4062
      %v4067 = vmul.f32 %v4057, %v4062
      %v4068 = vmul.f32 %v4058, %v4062
      %v4069 = vmul.f32 %v4059, %v4062
      %v4070 = vmul.f32 %v4060, %v4062
      %v4071 = vadd.f32 %v4045, %v4063
      %v4072 = vadd.f32 %v4046, %v4064
      %v4073 = vadd.f32 %v4047, %v4065
      %v4074 = vadd.f32 %v4048, %v4066
      %v4075 = vadd.f32 %v4049, %v4067
      %v4076 = vadd.f32 %v4050, %v4068
      %v4077 = vadd.f32 %v4051, %v4069
      %v4078 = vadd.f32 %v4052, %v4070
      %v4079 = vld [vmem:[%s404 + $0x2] sm:$0xff]
      %v4080 = vld [vmem:[%s404 + $0x12] sm:$0xff]
      %v4081 = vld [vmem:[%s404 + $0x22] sm:$0xff]
      %v4082 = vld [vmem:[%s404 + $0x32] sm:$0xff]
      %v4083 = vld [vmem:[%s404 + $0x42] sm:$0xff]
      %v4084 = vld [vmem:[%s404 + $0x52] sm:$0xff]
      %v4085 = vld [vmem:[%s404 + $0x62] sm:$0xff]
      %v4086 = vld [vmem:[%s404 + $0x72] sm:$0xff]
      %v4087 = vld [vmem:[%s6 + $0x8] sm:$0x1]
      %v4088 = vperm.slane %v4087, 0
      %v4089 = vmul.f32 %v4079, %v4088
      %v4090 = vmul.f32 %v4080, %v4088
      %v4091 = vmul.f32 %v4081, %v4088
      %v4092 = vmul.f32 %v4082, %v4088
      %v4093 = vmul.f32 %v4083, %v4088
      %v4094 = vmul.f32 %v4084, %v4088
      %v4095 = vmul.f32 %v4085, %v4088
      %v4096 = vmul.f32 %v4086, %v4088
      %v4097 = vadd.f32 %v4071, %v4089
      %v4098 = vadd.f32 %v4072, %v4090
      %v4099 = vadd.f32 %v4073, %v4091
      %v4100 = vadd.f32 %v4074, %v4092
      %v4101 = vadd.f32 %v4075, %v4093
      %v4102 = vadd.f32 %v4076, %v4094
      %v4103 = vadd.f32 %v4077, %v4095
      %v4104 = vadd.f32 %v4078, %v4096
      %v4105 = vld [vmem:[%s446] sm:$0xff]
      %v4106 = vld [vmem:[%s446 + $0x10] sm:$0xff]
      %v4107 = vld [vmem:[%s446 + $0x20] sm:$0xff]
      %v4108 = vld [vmem:[%s446 + $0x30] sm:$0xff]
      %v4109 = vld [vmem:[%s446 + $0x40] sm:$0xff]
      %v4110 = vld [vmem:[%s446 + $0x50] sm:$0xff]
      %v4111 = vld [vmem:[%s446 + $0x60] sm:$0xff]
      %v4112 = vld [vmem:[%s446 + $0x70] sm:$0xff]
      %v4113 = vld [vmem:[%s6 + $0x9] sm:$0x1]
      %v4114 = vperm.slane %v4113, 0
      %v4115 = vmul.f32 %v4105, %v4114
      %v4116 = vmul.f32 %v4106, %v4114
      %v4117 = vmul.f32 %v4107, %v4114
      %v4118 = vmul.f32 %v4108, %v4114
      %v4119 = vmul.f32 %v4109, %v4114
      %v4120 = vmul.f32 %v4110, %v4114
      %v4121 = vmul.f32 %v4111, %v4114
      %v4122 = vmul.f32 %v4112, %v4114
      %v4123 = vadd.f32 %v4097, %v4115
      %v4124 = vadd.f32 %v4098, %v4116
      %v4125 = vadd.f32 %v4099, %v4117
      %v4126 = vadd.f32 %v4100, %v4118
      %v4127 = vadd.f32 %v4101, %v4119
      %v4128 = vadd.f32 %v4102, %v4120
      %v4129 = vadd.f32 %v4103, %v4121
      %v4130 = vadd.f32 %v4104, %v4122
      %v4131 = vld [vmem:[%s446 + $0x1] sm:$0xff]
      %v4132 = vld [vmem:[%s446 + $0x11] sm:$0xff]
      %v4133 = vld [vmem:[%s446 + $0x21] sm:$0xff]
      %v4134 = vld [vmem:[%s446 + $0x31] sm:$0xff]
      %v4135 = vld [vmem:[%s446 + $0x41] sm:$0xff]
      %v4136 = vld [vmem:[%s446 + $0x51] sm:$0xff]
      %v4137 = vld [vmem:[%s446 + $0x61] sm:$0xff]
      %v4138 = vld [vmem:[%s446 + $0x71] sm:$0xff]
      %v4139 = vld [vmem:[%s6 + $0xa] sm:$0x1]
      %v4140 = vperm.slane %v4139, 0
      %v4141 = vmul.f32 %v4131, %v4140
      %v4142 = vmul.f32 %v4132, %v4140
      %v4143 = vmul.f32 %v4133, %v4140
      %v4144 = vmul.f32 %v4134, %v4140
      %v4145 = vmul.f32 %v4135, %v4140
      %v4146 = vmul.f32 %v4136, %v4140
      %v4147 = vmul.f32 %v4137, %v4140
      %v4148 = vmul.f32 %v4138, %v4140
      %v4149 = vadd.f32 %v4123, %v4141
      %v4150 = vadd.f32 %v4124, %v4142
      %v4151 = vadd.f32 %v4125, %v4143
      %v4152 = vadd.f32 %v4126, %v4144
      %v4153 = vadd.f32 %v4127, %v4145
      %v4154 = vadd.f32 %v4128, %v4146
      %v4155 = vadd.f32 %v4129, %v4147
      %v4156 = vadd.f32 %v4130, %v4148
      %v4157 = vld [vmem:[%s446 + $0x2] sm:$0xff]
      %v4158 = vld [vmem:[%s446 + $0x12] sm:$0xff]
      %v4159 = vld [vmem:[%s446 + $0x22] sm:$0xff]
      %v4160 = vld [vmem:[%s446 + $0x32] sm:$0xff]
      %v4161 = vld [vmem:[%s446 + $0x42] sm:$0xff]
      %v4162 = vld [vmem:[%s446 + $0x52] sm:$0xff]
      %v4163 = vld [vmem:[%s446 + $0x62] sm:$0xff]
      %v4164 = vld [vmem:[%s446 + $0x72] sm:$0xff]
      %v4165 = vld [vmem:[%s6 + $0xb] sm:$0x1]
      %v4166 = vperm.slane %v4165, 0
      %v4167 = vmul.f32 %v4157, %v4166
      %v4168 = vmul.f32 %v4158, %v4166
      %v4169 = vmul.f32 %v4159, %v4166
      %v4170 = vmul.f32 %v4160, %v4166
      %v4171 = vmul.f32 %v4161, %v4166
      %v4172 = vmul.f32 %v4162, %v4166
      %v4173 = vmul.f32 %v4163, %v4166
      %v4174 = vmul.f32 %v4164, %v4166
      %v4175 = vadd.f32 %v4149, %v4167
      %v4176 = vadd.f32 %v4150, %v4168
      %v4177 = vadd.f32 %v4151, %v4169
      %v4178 = vadd.f32 %v4152, %v4170
      %v4179 = vadd.f32 %v4153, %v4171
      %v4180 = vadd.f32 %v4154, %v4172
      %v4181 = vadd.f32 %v4155, %v4173
      %v4182 = vadd.f32 %v4156, %v4174
      %v4183 = vld [vmem:[%s6 + $0x2] sm:$0x1]
      %v4184 = vperm.slane %v4183, 0
      %v4185 = vadd.f32 %v4175, %v4184
      %v4186 = vadd.f32 %v4176, %v4184
      %v4187 = vadd.f32 %v4177, %v4184
      %v4188 = vadd.f32 %v4178, %v4184
      %v4189 = vadd.f32 %v4179, %v4184
      %v4190 = vadd.f32 %v4180, %v4184
      %v4191 = vadd.f32 %v4181, %v4184
      %v4192 = vadd.f32 %v4182, %v4184
      %v4193 = vadd.f32 %v4185, %v3930
      %v4194 = vadd.f32 %v4186, %v3932
      %v4195 = vadd.f32 %v4187, %v3935
      %v4196 = vadd.f32 %v4188, %v3937
      %v4197 = vadd.f32 %v4189, %v3940
      %v4198 = vadd.f32 %v4190, %v3942
      %v4199 = vadd.f32 %v4191, %v3945
      %v4200 = vadd.f32 %v4192, %v3947
      %v4201 = vsel %vm660, %v4193, 0.0
      %v4202 = vsel %vm660, %v4194, 0.0
      %v4203 = vadd.f32 %v4201, %v4202
      %v4204 = vsel %vm660, %v4195, 0.0
      %v4205 = vadd.f32 %v4203, %v4204
      %v4206 = vsel %vm660, %v4196, 0.0
      %v4207 = vadd.f32 %v4205, %v4206
      %v4208 = vsel %vm660, %v4197, 0.0
      %v4209 = vadd.f32 %v4207, %v4208
      %v4210 = vsel %vm660, %v4198, 0.0
      %v4211 = vadd.f32 %v4209, %v4210
      %v4212 = vsel %vm660, %v4199, 0.0
      %v4213 = vadd.f32 %v4211, %v4212
      %v4214 = vsel %vm660, %v4200, 0.0
      %v4215 = vadd.f32 %v4213, %v4214
      %v4216 = vrot.slane %v4215, 4
      %v4217 = vadd.f32 %v4215, %v4216
      %v4218 = vrot.slane %v4217, 2
      %v4219 = vadd.f32 %v4217, %v4218
      %v4220 = vrot.slane %v4219, 1
      %v4221 = vadd.f32 %v4219, %v4220
      %v4222 = vmul.f32 %v4221, %v1756
      %v4223 = vld [vmem:[%s6 + $0x10] sm:$0xff]
      %v4224 = vld [vmem:[%s6 + $0x18] sm:$0xff]
      %v4225 = vld [vmem:[%s6 + $0xc] sm:$0x1]
      %v4227 = vsel %vm660, %v4222, 0
      %4229 = vmatpush.msra.mxu0 0.0
      %4230 = vmatpush.msra.mxu0 0.0
      %4231 = vmatpush.msra.mxu0 0.0
      %4232 = vmatpush.msra.mxu0 0.0
      %4233 = vmatpush.msra.mxu0 0.0
      %4234 = vmatpush.msra.mxu0 0.0
      %4235 = vmatpush.msra.mxu0 0.0
      %4236 = vmatpush.msra.mxu0 0.0
      %4237 = vmatpush.msra.mxu0 0.0
      %4238 = vmatpush.msra.mxu0 0.0
      %4239 = vmatpush.msra.mxu0 0.0
      %4240 = vmatpush.msra.mxu0 0.0
      %4241 = vmatpush.msra.mxu0 0.0
      %4242 = vmatpush.msra.mxu0 0.0
      %4243 = vmatpush.msra.mxu0 %v4224
      %4244 = vmatpush.msra.mxu0 %v4223
      %4245 = vmatmul.f32.gmra.mxu0 %v4227
      %v4246 = vpop.f32.mrf.mxu0
      %v4247 = vadd.f32 %v4225, %v4246
      %4248 = vdwg.mxu0
      %vm4249 = vcmp.ge.f32.partialorder %v4247, 0.0
      %v4250 = vmul.f32 %v4247, 0.01
      %v4251 = vsel %vm4249, %v4247, %v4250
      %v4252 = vld [vmem:[%s6 + $0x20] sm:$0x1]
      %v4253 = vld [vmem:[%s6 + $0xd] sm:$0x1]
      %vm4254 = vcmask 7168
      %v4256 = vsel %vm4254, %v4251, 0
      %vm4258 = vcmask 1040384
      %v4260 = vsel %vm4258, %v4252, 0
      %4262 = vmatpush.msra.mxu0 0.0
      %4263 = vmatpush.msra.mxu0 0.0
      %4264 = vmatpush.msra.mxu0 0.0
      %4265 = vmatpush.msra.mxu0 0.0
      %4266 = vmatpush.msra.mxu0 0.0
      %4267 = vmatpush.msra.mxu0 0.0
      %4268 = vmatpush.msra.mxu0 0.0
      %4269 = vmatpush.msra.mxu0 0.0
      %4270 = vmatpush.msra.mxu0 0.0
      %4271 = vmatpush.msra.mxu0 0.0
      %4272 = vmatpush.msra.mxu0 0.0
      %4273 = vmatpush.msra.mxu0 0.0
      %4274 = vmatpush.msra.mxu0 0.0
      %4275 = vmatpush.msra.mxu0 0.0
      %4276 = vmatpush.msra.mxu0 0.0
      %4277 = vmatpush.msra.mxu0 %v4260
      %4278 = vmatmul.f32.gmra.mxu0 %v4256
      %v4279 = vpop.f32.mrf.mxu0
      %v4280 = vadd.f32 %v4253, %v4279
      %4281 = vdwg.mxu0
      %v4282 = vmul.f32 %v4280, 0.5
      %v4283 = vtanh.pop %v4282
      %v4284 = vadd.f32 %v4283, 1.0
      %v4285 = vmul.f32 %v4284, 0.5
      %v4286 = vperm.slane %v4285, 0
      %v4287 = vmul.f32 %v4193, %v4286
      %v4288 = vmul.f32 %v4194, %v4286
      %v4289 = vmul.f32 %v4195, %v4286
      %v4290 = vmul.f32 %v4196, %v4286
      %v4291 = vmul.f32 %v4197, %v4286
      %v4292 = vmul.f32 %v4198, %v4286
      %v4293 = vmul.f32 %v4199, %v4286
      %v4294 = vmul.f32 %v4200, %v4286
      %4303 = vrot.lane.b32.xlu0 %v4287, 48
      %v4304 = vpop.permute.xlu0 %4303
      %4305 = vrot.lane.b32.xlu0 %v4288, 48
      %v4306 = vpop.permute.xlu0 %4305
      %4307 = vrot.lane.b32.xlu0 %v4289, 48
      %v4308 = vpop.permute.xlu0 %4307
      %4309 = vrot.lane.b32.xlu0 %v4290, 48
      %v4310 = vpop.permute.xlu0 %4309
      %4311 = vrot.lane.b32.xlu0 %v4291, 48
      %v4312 = vpop.permute.xlu0 %4311
      %4313 = vrot.lane.b32.xlu0 %v4292, 48
      %v4314 = vpop.permute.xlu0 %4313
      %4315 = vrot.lane.b32.xlu0 %v4293, 48
      %v4316 = vpop.permute.xlu0 %4315
      %4317 = vrot.lane.b32.xlu0 %v4294, 48
      %v4318 = vpop.permute.xlu0 %4317
      %v4327 = vadd.f32 %v3166, %v4304
      %v4328 = vadd.f32 %v3167, %v4306
      %v4329 = vadd.f32 %v3168, %v4308
      %v4330 = vadd.f32 %v3169, %v4310
      %v4331 = vadd.f32 %v3170, %v4312
      %v4332 = vadd.f32 %v3171, %v4314
      %v4333 = vadd.f32 %v3172, %v4316
      %v4334 = vadd.f32 %v3173, %v4318
      %v4335 = vsel %vm660, %v364, %v1866
      %v4336 = vsel %vm660, %v365, %v1867
      %v4337 = vsel %vm660, %v366, %v1868
      %v4338 = vsel %vm660, %v367, %v1869
      %v4339 = vsel %vm660, %v368, %v1870
      %v4340 = vsel %vm660, %v369, %v1871
      %v4341 = vsel %vm660, %v370, %v1872
      %v4342 = vsel %vm660, %v371, %v1873
      %v4343 = vsel %vm836, %v4335, %v3166
      %v4344 = vsel %vm836, %v4336, %v3167
      %v4345 = vsel %vm836, %v4337, %v3168
      %v4346 = vsel %vm836, %v4338, %v3169
      %v4347 = vsel %vm836, %v4339, %v3170
      %v4348 = vsel %vm836, %v4340, %v3171
      %v4349 = vsel %vm836, %v4341, %v3172
      %v4350 = vsel %vm836, %v4342, %v3173
      %v4351 = vsel %vm405, %v4343, %v4327
      %v4352 = vsel %vm405, %v4344, %v4328
      %v4353 = vsel %vm405, %v4345, %v4329
      %v4354 = vsel %vm405, %v4346, %v4330
      %v4355 = vsel %vm405, %v4347, %v4331
      %v4356 = vsel %vm405, %v4348, %v4332
      %v4357 = vsel %vm405, %v4349, %v4333
      %v4358 = vsel %vm405, %v4350, %v4334
      %v4359 = vsel %vm334, %v4351, 0.0
      %v4360 = vsel %vm334, %v4352, 0.0
      %v4361 = vadd.f32 %v4359, %v4360
      %v4362 = vsel %vm334, %v4353, 0.0
      %v4363 = vadd.f32 %v4361, %v4362
      %v4364 = vsel %vm334, %v4354, 0.0
      %v4365 = vadd.f32 %v4363, %v4364
      %v4366 = vsel %vm334, %v4355, 0.0
      %v4367 = vadd.f32 %v4365, %v4366
      %v4368 = vsel %vm334, %v4356, 0.0
      %v4369 = vadd.f32 %v4367, %v4368
      %v4370 = vsel %vm334, %v4357, 0.0
      %v4371 = vadd.f32 %v4369, %v4370
      %v4372 = vsel %vm334, %v4358, 0.0
      %v4373 = vadd.f32 %v4371, %v4372
      %v4374 = vrot.slane %v4373, 4
      %v4375 = vadd.f32 %v4373, %v4374
      %v4376 = vrot.slane %v4375, 2
      %v4377 = vadd.f32 %v4375, %v4376
      %v4378 = vrot.slane %v4377, 1
      %v4379 = vadd.f32 %v4377, %v4378
      %v4380 = vmul.f32 %v4379, %v1756
      %v4381 = vld [vmem:[%s8 + $0x8] sm:$0xff]
      %v4382 = vld [vmem:[%s8 + $0x10] sm:$0xff]
      %v4383 = vld [vmem:[%s8 + $0x18] sm:$0xff]
      %v4384 = vld [vmem:[%s8 + $0x20] sm:$0xff]
      %v4385 = vld [vmem:[%s8 + $0x28] sm:$0xff]
      %v4386 = vld [vmem:[%s8 + $0x30] sm:$0xff]
      %v4387 = vld [vmem:[%s8 + $0x38] sm:$0xff]
      %v4388 = vld [vmem:[%s8 + $0x40] sm:$0xff]
      %v4389 = vld [vmem:[%s8 + $0x2] sm:$0x1]
      %v4391 = vsel %vm334, %v4380, 0
      %4393 = vmatpush.msra.mxu0 0.0
      %4394 = vmatpush.msra.mxu0 0.0
      %4395 = vmatpush.msra.mxu0 0.0
      %4396 = vmatpush.msra.mxu0 0.0
      %4397 = vmatpush.msra.mxu0 0.0
      %4398 = vmatpush.msra.mxu0 0.0
      %4399 = vmatpush.msra.mxu0 0.0
      %4400 = vmatpush.msra.mxu0 0.0
      %4401 = vmatpush.msra.mxu0 %v4388
      %4402 = vmatpush.msra.mxu0 %v4387
      %4403 = vmatpush.msra.mxu0 %v4386
      %4404 = vmatpush.msra.mxu0 %v4385
      %4405 = vmatpush.msra.mxu0 %v4384
      %4406 = vmatpush.msra.mxu0 %v4383
      %4407 = vmatpush.msra.mxu0 %v4382
      %4408 = vmatpush.msra.mxu0 %v4381
      %4409 = vmatmul.f32.gmra.mxu0 %v4391
      %v4410 = vpop.f32.mrf.mxu0
      %v4411 = vadd.f32 %v4389, %v4410
      %4412 = vdwg.mxu0
      %vm4413 = vcmp.ge.f32.partialorder %v4411, 0.0
      %v4414 = vmul.f32 %v4411, 0.01
      %v4415 = vsel %vm4413, %v4411, %v4414
      %v4416 = vld [vmem:[%s8 + $0x48] sm:$0xf]
      %v4417 = vld [vmem:[%s8 + $0x3] sm:$0x1]
      %vm4418 = vcmask 31744
      %v4420 = vsel %vm4418, %v4415, 0
      %vm4422 = vcmask 1043456
      %v4424 = vsel %vm4422, %v4416, 0
      %4426 = vmatpush.msra.mxu0 0.0
      %4427 = vmatpush.msra.mxu0 0.0
      %4428 = vmatpush.msra.mxu0 0.0
      %4429 = vmatpush.msra.mxu0 0.0
      %4430 = vmatpush.msra.mxu0 0.0
      %4431 = vmatpush.msra.mxu0 0.0
      %4432 = vmatpush.msra.mxu0 0.0
      %4433 = vmatpush.msra.mxu0 0.0
      %4434 = vmatpush.msra.mxu0 0.0
      %4435 = vmatpush.msra.mxu0 0.0
      %4436 = vmatpush.msra.mxu0 0.0
      %4437 = vmatpush.msra.mxu0 0.0
      %4438 = vmatpush.msra.mxu0 0.0
      %4439 = vmatpush.msra.mxu0 0.0
      %4440 = vmatpush.msra.mxu0 0.0
      %4441 = vmatpush.msra.mxu0 %v4424
      %4442 = vmatmul.f32.gmra.mxu0 %v4420
      %v4443 = vpop.f32.mrf.mxu0
      %v4444 = vadd.f32 %v4417, %v4443
      %4445 = vdwg.mxu0
      %v4446 = vmul.f32 %v4444, 0.5
      %v4447 = vtanh.pop %v4446
      %v4448 = vadd.f32 %v4447, 1.0
      %v4449 = vmul.f32 %v4448, 0.5
      %v4450 = vperm.slane %v4449, 0
      %v4451 = vmul.f32 %v4351, %v4450
      %v4452 = vmul.f32 %v4352, %v4450
      %v4453 = vmul.f32 %v4353, %v4450
      %v4454 = vmul.f32 %v4354, %v4450
      %v4455 = vmul.f32 %v4355, %v4450
      %v4456 = vmul.f32 %v4356, %v4450
      %v4457 = vmul.f32 %v4357, %v4450
      %v4458 = vmul.f32 %v4358, %v4450
      %4459 = vst.msk [vmem:[%s404 + $0x1] sm:$0xff] %vm334, %v4451
      %4460 = vst.msk [vmem:[%s404 + $0x11] sm:$0xff] %vm334, %v4452
      %4461 = vst.msk [vmem:[%s404 + $0x21] sm:$0xff] %vm334, %v4453
      %4462 = vst.msk [vmem:[%s404 + $0x31] sm:$0xff] %vm334, %v4454
      %4463 = vst.msk [vmem:[%s404 + $0x41] sm:$0xff] %vm334, %v4455
      %4464 = vst.msk [vmem:[%s404 + $0x51] sm:$0xff] %vm334, %v4456
      %4465 = vst.msk [vmem:[%s404 + $0x61] sm:$0xff] %vm334, %v4457
      %4466 = vst.msk [vmem:[%s404 + $0x71] sm:$0xff] %vm334, %v4458
      %v4467 = vld [vmem:[#allocation2] sm:$0xff]
      %v4468 = vld [vmem:[#allocation2 + $0x10] sm:$0xff]
      %v4469 = vld [vmem:[#allocation2 + $0x20] sm:$0xff]
      %v4470 = vld [vmem:[#allocation2 + $0x30] sm:$0xff]
      %v4471 = vld [vmem:[#allocation2 + $0x40] sm:$0xff]
      %v4472 = vld [vmem:[#allocation2 + $0x50] sm:$0xff]
      %v4473 = vld [vmem:[#allocation2 + $0x60] sm:$0xff]
      %v4474 = vld [vmem:[#allocation2 + $0x70] sm:$0xff]
      %v4475 = vpack.c.bf16 %v4467, %v4467
      %v4476 = vpack.c.bf16 %v4468, %v4468
      %v4477 = vpack.c.bf16 %v4469, %v4469
      %v4478 = vpack.c.bf16 %v4470, %v4470
      %v4479 = vpack.c.bf16 %v4471, %v4471
      %v4480 = vpack.c.bf16 %v4472, %v4472
      %v4481 = vpack.c.bf16 %v4473, %v4473
      %v4482 = vpack.c.bf16 %v4474, %v4474
      %v4483 = vld [vmem:[#allocation2 + $0x1] sm:$0xff]
      %v4484 = vld [vmem:[#allocation2 + $0x11] sm:$0xff]
      %v4485 = vld [vmem:[#allocation2 + $0x21] sm:$0xff]
      %v4486 = vld [vmem:[#allocation2 + $0x31] sm:$0xff]
      %v4487 = vld [vmem:[#allocation2 + $0x41] sm:$0xff]
      %v4488 = vld [vmem:[#allocation2 + $0x51] sm:$0xff]
      %v4489 = vld [vmem:[#allocation2 + $0x61] sm:$0xff]
      %v4490 = vld [vmem:[#allocation2 + $0x71] sm:$0xff]
      %v4491 = vpack.c.bf16 %v4483, %v4483
      %v4492 = vpack.c.bf16 %v4484, %v4484
      %v4493 = vpack.c.bf16 %v4485, %v4485
      %v4494 = vpack.c.bf16 %v4486, %v4486
      %v4495 = vpack.c.bf16 %v4487, %v4487
      %v4496 = vpack.c.bf16 %v4488, %v4488
      %v4497 = vpack.c.bf16 %v4489, %v4489
      %v4498 = vpack.c.bf16 %v4490, %v4490
      %v4499 = vld [vmem:[#allocation2 + $0x2] sm:$0xff]
      %v4500 = vld [vmem:[#allocation2 + $0x12] sm:$0xff]
      %v4501 = vld [vmem:[#allocation2 + $0x22] sm:$0xff]
      %v4502 = vld [vmem:[#allocation2 + $0x32] sm:$0xff]
      %v4503 = vld [vmem:[#allocation2 + $0x42] sm:$0xff]
      %v4504 = vld [vmem:[#allocation2 + $0x52] sm:$0xff]
      %v4505 = vld [vmem:[#allocation2 + $0x62] sm:$0xff]
      %v4506 = vld [vmem:[#allocation2 + $0x72] sm:$0xff]
      %v4507 = vpack.c.bf16 %v4499, %v4499
      %v4508 = vpack.c.bf16 %v4500, %v4500
      %v4509 = vpack.c.bf16 %v4501, %v4501
      %v4510 = vpack.c.bf16 %v4502, %v4502
      %v4511 = vpack.c.bf16 %v4503, %v4503
      %v4512 = vpack.c.bf16 %v4504, %v4504
      %v4513 = vpack.c.bf16 %v4505, %v4505
      %v4514 = vpack.c.bf16 %v4506, %v4506
      %v4515 = vld [vmem:[%s404] sm:$0xff]
      %v4516 = vld [vmem:[%s404 + $0x10] sm:$0xff]
      %v4517 = vld [vmem:[%s404 + $0x20] sm:$0xff]
      %v4518 = vld [vmem:[%s404 + $0x30] sm:$0xff]
      %v4519 = vld [vmem:[%s404 + $0x40] sm:$0xff]
      %v4520 = vld [vmem:[%s404 + $0x50] sm:$0xff]
      %v4521 = vld [vmem:[%s404 + $0x60] sm:$0xff]
      %v4522 = vld [vmem:[%s404 + $0x70] sm:$0xff]
      %v4523 = vpack.c.bf16 %v4515, %v4515
      %v4524 = vpack.c.bf16 %v4516, %v4516
      %v4525 = vpack.c.bf16 %v4517, %v4517
      %v4526 = vpack.c.bf16 %v4518, %v4518
      %v4527 = vpack.c.bf16 %v4519, %v4519
      %v4528 = vpack.c.bf16 %v4520, %v4520
      %v4529 = vpack.c.bf16 %v4521, %v4521
      %v4530 = vpack.c.bf16 %v4522, %v4522
      %v4531 = vld [vmem:[%s404 + $0x1] sm:$0xff]
      %v4532 = vld [vmem:[%s404 + $0x11] sm:$0xff]
      %v4533 = vld [vmem:[%s404 + $0x21] sm:$0xff]
      %v4534 = vld [vmem:[%s404 + $0x31] sm:$0xff]
      %v4535 = vld [vmem:[%s404 + $0x41] sm:$0xff]
      %v4536 = vld [vmem:[%s404 + $0x51] sm:$0xff]
      %v4537 = vld [vmem:[%s404 + $0x61] sm:$0xff]
      %v4538 = vld [vmem:[%s404 + $0x71] sm:$0xff]
      %v4539 = vpack.c.bf16 %v4531, %v4531
      %v4540 = vpack.c.bf16 %v4532, %v4532
      %v4541 = vpack.c.bf16 %v4533, %v4533
      %v4542 = vpack.c.bf16 %v4534, %v4534
      %v4543 = vpack.c.bf16 %v4535, %v4535
      %v4544 = vpack.c.bf16 %v4536, %v4536
      %v4545 = vpack.c.bf16 %v4537, %v4537
      %v4546 = vpack.c.bf16 %v4538, %v4538
      %v4547 = vld [vmem:[%s404 + $0x2] sm:$0xff]
      %v4548 = vld [vmem:[%s404 + $0x12] sm:$0xff]
      %v4549 = vld [vmem:[%s404 + $0x22] sm:$0xff]
      %v4550 = vld [vmem:[%s404 + $0x32] sm:$0xff]
      %v4551 = vld [vmem:[%s404 + $0x42] sm:$0xff]
      %v4552 = vld [vmem:[%s404 + $0x52] sm:$0xff]
      %v4553 = vld [vmem:[%s404 + $0x62] sm:$0xff]
      %v4554 = vld [vmem:[%s404 + $0x72] sm:$0xff]
      %v4555 = vpack.c.bf16 %v4547, %v4547
      %v4556 = vpack.c.bf16 %v4548, %v4548
      %v4557 = vpack.c.bf16 %v4549, %v4549
      %v4558 = vpack.c.bf16 %v4550, %v4550
      %v4559 = vpack.c.bf16 %v4551, %v4551
      %v4560 = vpack.c.bf16 %v4552, %v4552
      %v4561 = vpack.c.bf16 %v4553, %v4553
      %v4562 = vpack.c.bf16 %v4554, %v4554
      %v4563 = vld [vmem:[%s446] sm:$0xff]
      %v4564 = vld [vmem:[%s446 + $0x10] sm:$0xff]
      %v4565 = vld [vmem:[%s446 + $0x20] sm:$0xff]
      %v4566 = vld [vmem:[%s446 + $0x30] sm:$0xff]
      %v4567 = vld [vmem:[%s446 + $0x40] sm:$0xff]
      %v4568 = vld [vmem:[%s446 + $0x50] sm:$0xff]
      %v4569 = vld [vmem:[%s446 + $0x60] sm:$0xff]
      %v4570 = vld [vmem:[%s446 + $0x70] sm:$0xff]
      %v4571 = vpack.c.bf16 %v4563, %v4563
      %v4572 = vpack.c.bf16 %v4564, %v4564
      %v4573 = vpack.c.bf16 %v4565, %v4565
      %v4574 = vpack.c.bf16 %v4566, %v4566
      %v4575 = vpack.c.bf16 %v4567, %v4567
      %v4576 = vpack.c.bf16 %v4568, %v4568
      %v4577 = vpack.c.bf16 %v4569, %v4569
      %v4578 = vpack.c.bf16 %v4570, %v4570
      %v4579 = vld [vmem:[%s446 + $0x1] sm:$0xff]
      %v4580 = vld [vmem:[%s446 + $0x11] sm:$0xff]
      %v4581 = vld [vmem:[%s446 + $0x21] sm:$0xff]
      %v4582 = vld [vmem:[%s446 + $0x31] sm:$0xff]
      %v4583 = vld [vmem:[%s446 + $0x41] sm:$0xff]
      %v4584 = vld [vmem:[%s446 + $0x51] sm:$0xff]
      %v4585 = vld [vmem:[%s446 + $0x61] sm:$0xff]
      %v4586 = vld [vmem:[%s446 + $0x71] sm:$0xff]
      %v4587 = vpack.c.bf16 %v4579, %v4579
      %v4588 = vpack.c.bf16 %v4580, %v4580
      %v4589 = vpack.c.bf16 %v4581, %v4581
      %v4590 = vpack.c.bf16 %v4582, %v4582
      %v4591 = vpack.c.bf16 %v4583, %v4583
      %v4592 = vpack.c.bf16 %v4584, %v4584
      %v4593 = vpack.c.bf16 %v4585, %v4585
      %v4594 = vpack.c.bf16 %v4586, %v4586
      %v4595 = vld [vmem:[%s446 + $0x2] sm:$0xff]
      %v4596 = vld [vmem:[%s446 + $0x12] sm:$0xff]
      %v4597 = vld [vmem:[%s446 + $0x22] sm:$0xff]
      %v4598 = vld [vmem:[%s446 + $0x32] sm:$0xff]
      %v4599 = vld [vmem:[%s446 + $0x42] sm:$0xff]
      %v4600 = vld [vmem:[%s446 + $0x52] sm:$0xff]
      %v4601 = vld [vmem:[%s446 + $0x62] sm:$0xff]
      %v4602 = vld [vmem:[%s446 + $0x72] sm:$0xff]
      %v4603 = vpack.c.bf16 %v4595, %v4595
      %v4604 = vpack.c.bf16 %v4596, %v4596
      %v4605 = vpack.c.bf16 %v4597, %v4597
      %v4606 = vpack.c.bf16 %v4598, %v4598
      %v4607 = vpack.c.bf16 %v4599, %v4599
      %v4608 = vpack.c.bf16 %v4600, %v4600
      %v4609 = vpack.c.bf16 %v4601, %v4601
      %v4610 = vpack.c.bf16 %v4602, %v4602
      %v4619 = vunpack.c.l.b16 %v4475
      %v4620 = vunpack.c.l.b16 %v4476
      %v4621 = vunpack.c.l.b16 %v4477
      %v4622 = vunpack.c.l.b16 %v4478
      %v4623 = vunpack.c.l.b16 %v4479
      %v4624 = vunpack.c.l.b16 %v4480
      %v4625 = vunpack.c.l.b16 %v4481
      %v4626 = vunpack.c.l.b16 %v4482
      %v4627 = vpack.c.b16 %v4620, %v4619
      %v4628 = vpack.c.b16 %v4622, %v4621
      %v4629 = vpack.c.b16 %v4624, %v4623
      %v4630 = vpack.c.b16 %v4626, %v4625
      %v4639 = vunpack.c.l.b16 %v4491
      %v4640 = vunpack.c.l.b16 %v4492
      %v4641 = vunpack.c.l.b16 %v4493
      %v4642 = vunpack.c.l.b16 %v4494
      %v4643 = vunpack.c.l.b16 %v4495
      %v4644 = vunpack.c.l.b16 %v4496
      %v4645 = vunpack.c.l.b16 %v4497
      %v4646 = vunpack.c.l.b16 %v4498
      %v4647 = vpack.c.b16 %v4640, %v4639
      %v4648 = vpack.c.b16 %v4642, %v4641
      %v4649 = vpack.c.b16 %v4644, %v4643
      %v4650 = vpack.c.b16 %v4646, %v4645
      %4651 = vrot.lane.b32.xlu0 %v4647, 64
      %v4652 = vpop.permute.xlu0 %4651
      %4653 = vrot.lane.b32.xlu0 %v4648, 64
      %v4654 = vpop.permute.xlu0 %4653
      %4655 = vrot.lane.b32.xlu0 %v4649, 64
      %v4656 = vpop.permute.xlu0 %4655
      %4657 = vrot.lane.b32.xlu0 %v4650, 64
      %v4658 = vpop.permute.xlu0 %4657
      %v4667 = vunpack.c.l.b16 %v4507
      %v4668 = vunpack.c.l.b16 %v4508
      %v4669 = vunpack.c.l.b16 %v4509
      %v4670 = vunpack.c.l.b16 %v4510
      %v4671 = vunpack.c.l.b16 %v4511
      %v4672 = vunpack.c.l.b16 %v4512
      %v4673 = vunpack.c.l.b16 %v4513
      %v4674 = vunpack.c.l.b16 %v4514
      %v4675 = vpack.c.b16 %v4668, %v4667
      %v4676 = vpack.c.b16 %v4670, %v4669
      %v4677 = vpack.c.b16 %v4672, %v4671
      %v4678 = vpack.c.b16 %v4674, %v4673
      %v4687 = vunpack.c.l.b16 %v4523
      %v4688 = vunpack.c.l.b16 %v4524
      %v4689 = vunpack.c.l.b16 %v4525
      %v4690 = vunpack.c.l.b16 %v4526
      %v4691 = vunpack.c.l.b16 %v4527
      %v4692 = vunpack.c.l.b16 %v4528
      %v4693 = vunpack.c.l.b16 %v4529
      %v4694 = vunpack.c.l.b16 %v4530
      %v4695 = vpack.c.b16 %v4688, %v4687
      %v4696 = vpack.c.b16 %v4690, %v4689
      %v4697 = vpack.c.b16 %v4692, %v4691
      %v4698 = vpack.c.b16 %v4694, %v4693
      %4699 = vrot.lane.b32.xlu0 %v4695, 64
      %v4700 = vpop.permute.xlu0 %4699
      %4701 = vrot.lane.b32.xlu0 %v4696, 64
      %v4702 = vpop.permute.xlu0 %4701
      %4703 = vrot.lane.b32.xlu0 %v4697, 64
      %v4704 = vpop.permute.xlu0 %4703
      %4705 = vrot.lane.b32.xlu0 %v4698, 64
      %v4706 = vpop.permute.xlu0 %4705
      %v4715 = vunpack.c.l.b16 %v4539
      %v4716 = vunpack.c.l.b16 %v4540
      %v4717 = vunpack.c.l.b16 %v4541
      %v4718 = vunpack.c.l.b16 %v4542
      %v4719 = vunpack.c.l.b16 %v4543
      %v4720 = vunpack.c.l.b16 %v4544
      %v4721 = vunpack.c.l.b16 %v4545
      %v4722 = vunpack.c.l.b16 %v4546
      %v4723 = vpack.c.b16 %v4716, %v4715
      %v4724 = vpack.c.b16 %v4718, %v4717
      %v4725 = vpack.c.b16 %v4720, %v4719
      %v4726 = vpack.c.b16 %v4722, %v4721
      %v4735 = vunpack.c.l.b16 %v4555
      %v4736 = vunpack.c.l.b16 %v4556
      %v4737 = vunpack.c.l.b16 %v4557
      %v4738 = vunpack.c.l.b16 %v4558
      %v4739 = vunpack.c.l.b16 %v4559
      %v4740 = vunpack.c.l.b16 %v4560
      %v4741 = vunpack.c.l.b16 %v4561
      %v4742 = vunpack.c.l.b16 %v4562
      %v4743 = vpack.c.b16 %v4736, %v4735
      %v4744 = vpack.c.b16 %v4738, %v4737
      %v4745 = vpack.c.b16 %v4740, %v4739
      %v4746 = vpack.c.b16 %v4742, %v4741
      %4747 = vrot.lane.b32.xlu0 %v4743, 64
      %v4748 = vpop.permute.xlu0 %4747
      %4749 = vrot.lane.b32.xlu0 %v4744, 64
      %v4750 = vpop.permute.xlu0 %4749
      %4751 = vrot.lane.b32.xlu0 %v4745, 64
      %v4752 = vpop.permute.xlu0 %4751
      %4753 = vrot.lane.b32.xlu0 %v4746, 64
      %v4754 = vpop.permute.xlu0 %4753
      %v4763 = vunpack.c.l.b16 %v4571
      %v4764 = vunpack.c.l.b16 %v4572
      %v4765 = vunpack.c.l.b16 %v4573
      %v4766 = vunpack.c.l.b16 %v4574
      %v4767 = vunpack.c.l.b16 %v4575
      %v4768 = vunpack.c.l.b16 %v4576
      %v4769 = vunpack.c.l.b16 %v4577
      %v4770 = vunpack.c.l.b16 %v4578
      %v4771 = vpack.c.b16 %v4764, %v4763
      %v4772 = vpack.c.b16 %v4766, %v4765
      %v4773 = vpack.c.b16 %v4768, %v4767
      %v4774 = vpack.c.b16 %v4770, %v4769
      %v4783 = vunpack.c.l.b16 %v4587
      %v4784 = vunpack.c.l.b16 %v4588
      %v4785 = vunpack.c.l.b16 %v4589
      %v4786 = vunpack.c.l.b16 %v4590
      %v4787 = vunpack.c.l.b16 %v4591
      %v4788 = vunpack.c.l.b16 %v4592
      %v4789 = vunpack.c.l.b16 %v4593
      %v4790 = vunpack.c.l.b16 %v4594
      %v4791 = vpack.c.b16 %v4784, %v4783
      %v4792 = vpack.c.b16 %v4786, %v4785
      %v4793 = vpack.c.b16 %v4788, %v4787
      %v4794 = vpack.c.b16 %v4790, %v4789
      %4795 = vrot.lane.b32.xlu0 %v4791, 64
      %v4796 = vpop.permute.xlu0 %4795
      %4797 = vrot.lane.b32.xlu0 %v4792, 64
      %v4798 = vpop.permute.xlu0 %4797
      %4799 = vrot.lane.b32.xlu0 %v4793, 64
      %v4800 = vpop.permute.xlu0 %4799
      %4801 = vrot.lane.b32.xlu0 %v4794, 64
      %v4802 = vpop.permute.xlu0 %4801
      %v4811 = vunpack.c.l.b16 %v4603
      %v4812 = vunpack.c.l.b16 %v4604
      %v4813 = vunpack.c.l.b16 %v4605
      %v4814 = vunpack.c.l.b16 %v4606
      %v4815 = vunpack.c.l.b16 %v4607
      %v4816 = vunpack.c.l.b16 %v4608
      %v4817 = vunpack.c.l.b16 %v4609
      %v4818 = vunpack.c.l.b16 %v4610
      %v4819 = vpack.c.b16 %v4812, %v4811
      %v4820 = vpack.c.b16 %v4814, %v4813
      %v4821 = vpack.c.b16 %v4816, %v4815
      %v4822 = vpack.c.b16 %v4818, %v4817
      %v4825 = vsel %vm334, %v4627, %v4652
      %v4829 = vsel %vm334, %v4628, %v4654
      %v4833 = vsel %vm334, %v4629, %v4656
      %v4837 = vsel %vm334, %v4630, %v4658
      %v4841 = vsel %vm334, %v4675, %v4700
      %v4845 = vsel %vm334, %v4676, %v4702
      %v4849 = vsel %vm334, %v4677, %v4704
      %v4853 = vsel %vm334, %v4678, %v4706
      %v4857 = vsel %vm334, %v4723, %v4748
      %v4861 = vsel %vm334, %v4724, %v4750
      %v4865 = vsel %vm334, %v4725, %v4752
      %v4869 = vsel %vm334, %v4726, %v4754
      %v4873 = vsel %vm334, %v4771, %v4796
      %v4877 = vsel %vm334, %v4772, %v4798
      %v4881 = vsel %vm334, %v4773, %v4800
      %v4885 = vsel %vm334, %v4774, %v4802
      %v4887 = vld [vmem:[%s7] sm:$0xf]
      %v4888 = vld [vmem:[%s7 + $0x4] sm:$0xf]
      %v4889 = vld [vmem:[%s7 + $0x8] sm:$0xf]
      %v4890 = vld [vmem:[%s7 + $0xc] sm:$0xf]
      %v4891 = vld [vmem:[%s7 + $0x10] sm:$0xf]
      %v4892 = vld [vmem:[%s7 + $0x14] sm:$0xf]
      %v4893 = vld [vmem:[%s7 + $0x18] sm:$0xf]
      %v4894 = vld [vmem:[%s7 + $0x1c] sm:$0xf]
      %v4895 = vld [vmem:[%s7 + $0x20] sm:$0xf]
      %v4896 = vld [vmem:[%s7 + $0x24] sm:$0xf]
      %v4897 = vld [vmem:[%s7 + $0x28] sm:$0xf]
      %v4898 = vld [vmem:[%s7 + $0x2c] sm:$0xf]
      %v4899 = vld [vmem:[%s7 + $0x30] sm:$0xf]
      %v4900 = vld [vmem:[%s7 + $0x34] sm:$0xf]
      %v4901 = vld [vmem:[%s7 + $0x38] sm:$0xf]
      %v4902 = vld [vmem:[%s7 + $0x3c] sm:$0xf]
      %v4903 = vld [vmem:[%s7 + $0x40] sm:$0xf]
      %v4904 = vld [vmem:[%s7 + $0x44] sm:$0xf]
      %v4905 = vld [vmem:[%s7 + $0x48] sm:$0xf]
      %v4906 = vld [vmem:[%s7 + $0x4c] sm:$0xf]
      %v4907 = vld [vmem:[%s7 + $0x50] sm:$0xf]
      %v4908 = vld [vmem:[%s7 + $0x54] sm:$0xf]
      %v4909 = vld [vmem:[%s7 + $0x58] sm:$0xf]
      %v4910 = vld [vmem:[%s7 + $0x5c] sm:$0xf]
      %v4911 = vld [vmem:[%s7 + $0x60] sm:$0xf]
      %v4912 = vld [vmem:[%s7 + $0x64] sm:$0xf]
      %v4913 = vld [vmem:[%s7 + $0x68] sm:$0xf]
      %v4914 = vld [vmem:[%s7 + $0x6c] sm:$0xf]
      %v4915 = vld [vmem:[%s7 + $0x70] sm:$0xf]
      %v4916 = vld [vmem:[%s7 + $0x74] sm:$0xf]
      %v4917 = vld [vmem:[%s7 + $0x78] sm:$0xf]
      %v4918 = vld [vmem:[%s7 + $0x7c] sm:$0xf]
      %v4919 = vld [vmem:[%s7 + $0x80] sm:$0xf]
      %v4920 = vld [vmem:[%s7 + $0x84] sm:$0xf]
      %v4921 = vld [vmem:[%s7 + $0x88] sm:$0xf]
      %v4922 = vld [vmem:[%s7 + $0x8c] sm:$0xf]
      %v4923 = vld [vmem:[%s7 + $0x90] sm:$0xf]
      %v4924 = vld [vmem:[%s7 + $0x94] sm:$0xf]
      %v4925 = vld [vmem:[%s7 + $0x98] sm:$0xf]
      %v4926 = vld [vmem:[%s7 + $0x9c] sm:$0xf]
      %v4927 = vld [vmem:[%s7 + $0xa0] sm:$0xf]
      %v4928 = vld [vmem:[%s7 + $0xa4] sm:$0xf]
      %v4929 = vld [vmem:[%s7 + $0xa8] sm:$0xf]
      %v4930 = vld [vmem:[%s7 + $0xac] sm:$0xf]
      %v4931 = vld [vmem:[%s7 + $0xb0] sm:$0xf]
      %v4932 = vld [vmem:[%s7 + $0xb4] sm:$0xf]
      %v4933 = vld [vmem:[%s7 + $0xb8] sm:$0xf]
      %v4934 = vld [vmem:[%s7 + $0xbc] sm:$0xf]
      %v4935 = vld [vmem:[%s7 + $0xc0] sm:$0xf]
      %v4936 = vld [vmem:[%s7 + $0xc4] sm:$0xf]
      %v4937 = vld [vmem:[%s7 + $0xc8] sm:$0xf]
      %v4938 = vld [vmem:[%s7 + $0xcc] sm:$0xf]
      %v4939 = vld [vmem:[%s7 + $0xd0] sm:$0xf]
      %v4940 = vld [vmem:[%s7 + $0xd4] sm:$0xf]
      %v4941 = vld [vmem:[%s7 + $0xd8] sm:$0xf]
      %v4942 = vld [vmem:[%s7 + $0xdc] sm:$0xf]
      %v4943 = vld [vmem:[%s7 + $0xe0] sm:$0xf]
      %v4944 = vld [vmem:[%s7 + $0xe4] sm:$0xf]
      %v4945 = vld [vmem:[%s7 + $0xe8] sm:$0xf]
      %v4946 = vld [vmem:[%s7 + $0xec] sm:$0xf]
      %v4947 = vld [vmem:[%s7 + $0xf0] sm:$0xf]
      %v4948 = vld [vmem:[%s7 + $0xf4] sm:$0xf]
      %v4949 = vld [vmem:[%s7 + $0xf8] sm:$0xf]
      %v4950 = vld [vmem:[%s7 + $0xfc] sm:$0xf]
      %v4951 = vld [vmem:[%s7 + $0x100] sm:$0xf]
      %v4952 = vld [vmem:[%s7 + $0x104] sm:$0xf]
      %v4953 = vld [vmem:[%s7 + $0x108] sm:$0xf]
      %v4954 = vld [vmem:[%s7 + $0x10c] sm:$0xf]
      %v4955 = vld [vmem:[%s7 + $0x110] sm:$0xf]
      %v4956 = vld [vmem:[%s7 + $0x114] sm:$0xf]
      %v4957 = vld [vmem:[%s7 + $0x118] sm:$0xf]
      %v4958 = vld [vmem:[%s7 + $0x11c] sm:$0xf]
      %v4959 = vld [vmem:[%s8] sm:$0x1]
      %v4960 = vperm.slane %v4959, 0
      %v5033 = vunpack.c.l.b16 %v4887
      %v5034 = vunpack.c.l.b16 %v4888
      %v5035 = vunpack.c.l.b16 %v4889
      %v5036 = vunpack.c.l.b16 %v4890
      %v5037 = vunpack.c.l.b16 %v4891
      %v5038 = vunpack.c.l.b16 %v4892
      %v5039 = vunpack.c.l.b16 %v4893
      %v5040 = vunpack.c.l.b16 %v4894
      %v5041 = vunpack.c.l.b16 %v4895
      %v5042 = vunpack.c.l.b16 %v4896
      %v5043 = vunpack.c.l.b16 %v4897
      %v5044 = vunpack.c.l.b16 %v4898
      %v5045 = vunpack.c.l.b16 %v4899
      %v5046 = vunpack.c.l.b16 %v4900
      %v5047 = vunpack.c.l.b16 %v4901
      %v5048 = vunpack.c.l.b16 %v4902
      %v5049 = vunpack.c.l.b16 %v4903
      %v5050 = vunpack.c.l.b16 %v4904
      %v5051 = vunpack.c.l.b16 %v4905
      %v5052 = vunpack.c.l.b16 %v4906
      %v5053 = vunpack.c.l.b16 %v4907
      %v5054 = vunpack.c.l.b16 %v4908
      %v5055 = vunpack.c.l.b16 %v4909
      %v5056 = vunpack.c.l.b16 %v4910
      %v5057 = vunpack.c.l.b16 %v4911
      %v5058 = vunpack.c.l.b16 %v4912
      %v5059 = vunpack.c.l.b16 %v4913
      %v5060 = vunpack.c.l.b16 %v4914
      %v5061 = vunpack.c.l.b16 %v4915
      %v5062 = vunpack.c.l.b16 %v4916
      %v5063 = vunpack.c.l.b16 %v4917
      %v5064 = vunpack.c.l.b16 %v4918
      %v5065 = vunpack.c.l.b16 %v4919
      %v5066 = vunpack.c.l.b16 %v4920
      %v5067 = vunpack.c.l.b16 %v4921
      %v5068 = vunpack.c.l.b16 %v4922
      %v5069 = vunpack.c.l.b16 %v4923
      %v5070 = vunpack.c.l.b16 %v4924
      %v5071 = vunpack.c.l.b16 %v4925
      %v5072 = vunpack.c.l.b16 %v4926
      %v5073 = vunpack.c.l.b16 %v4927
      %v5074 = vunpack.c.l.b16 %v4928
      %v5075 = vunpack.c.l.b16 %v4929
      %v5076 = vunpack.c.l.b16 %v4930
      %v5077 = vunpack.c.l.b16 %v4931
      %v5078 = vunpack.c.l.b16 %v4932
      %v5079 = vunpack.c.l.b16 %v4933
      %v5080 = vunpack.c.l.b16 %v4934
      %v5081 = vunpack.c.l.b16 %v4935
      %v5082 = vunpack.c.l.b16 %v4936
      %v5083 = vunpack.c.l.b16 %v4937
      %v5084 = vunpack.c.l.b16 %v4938
      %v5085 = vunpack.c.l.b16 %v4939
      %v5086 = vunpack.c.l.b16 %v4940
      %v5087 = vunpack.c.l.b16 %v4941
      %v5088 = vunpack.c.l.b16 %v4942
      %v5089 = vunpack.c.l.b16 %v4943
      %v5090 = vunpack.c.l.b16 %v4944
      %v5091 = vunpack.c.l.b16 %v4945
      %v5092 = vunpack.c.l.b16 %v4946
      %v5093 = vunpack.c.l.b16 %v4947
      %v5094 = vunpack.c.l.b16 %v4948
      %v5095 = vunpack.c.l.b16 %v4949
      %v5096 = vunpack.c.l.b16 %v4950
      %v5097 = vunpack.c.l.b16 %v4951
      %v5098 = vunpack.c.l.b16 %v4952
      %v5099 = vunpack.c.l.b16 %v4953
      %v5100 = vunpack.c.l.b16 %v4954
      %v5101 = vunpack.c.l.b16 %v4955
      %v5102 = vunpack.c.l.b16 %v4956
      %v5103 = vunpack.c.l.b16 %v4957
      %v5104 = vunpack.c.l.b16 %v4958
      %v5105 = vpack.c.b16 %v5034, %v5033
      %v5106 = vpack.c.b16 %v5036, %v5035
      %v5107 = vpack.c.b16 %v5038, %v5037
      %v5108 = vpack.c.b16 %v5040, %v5039
      %v5109 = vpack.c.b16 %v5042, %v5041
      %v5110 = vpack.c.b16 %v5044, %v5043
      %v5111 = vpack.c.b16 %v5046, %v5045
      %v5112 = vpack.c.b16 %v5048, %v5047
      %v5113 = vpack.c.b16 %v5050, %v5049
      %v5114 = vpack.c.b16 %v5052, %v5051
      %v5115 = vpack.c.b16 %v5054, %v5053
      %v5116 = vpack.c.b16 %v5056, %v5055
      %v5117 = vpack.c.b16 %v5058, %v5057
      %v5118 = vpack.c.b16 %v5060, %v5059
      %v5119 = vpack.c.b16 %v5062, %v5061
      %v5120 = vpack.c.b16 %v5064, %v5063
      %v5121 = vpack.c.b16 %v5066, %v5065
      %v5122 = vpack.c.b16 %v5068, %v5067
      %v5123 = vpack.c.b16 %v5070, %v5069
      %v5124 = vpack.c.b16 %v5072, %v5071
      %v5125 = vpack.c.b16 %v5074, %v5073
      %v5126 = vpack.c.b16 %v5076, %v5075
      %v5127 = vpack.c.b16 %v5078, %v5077
      %v5128 = vpack.c.b16 %v5080, %v5079
      %v5129 = vpack.c.b16 %v5082, %v5081
      %v5130 = vpack.c.b16 %v5084, %v5083
      %v5131 = vpack.c.b16 %v5086, %v5085
      %v5132 = vpack.c.b16 %v5088, %v5087
      %v5133 = vpack.c.b16 %v5090, %v5089
      %v5134 = vpack.c.b16 %v5092, %v5091
      %v5135 = vpack.c.b16 %v5094, %v5093
      %v5136 = vpack.c.b16 %v5096, %v5095
      %v5137 = vpack.c.b16 %v5098, %v5097
      %v5138 = vpack.c.b16 %v5100, %v5099
      %v5139 = vpack.c.b16 %v5102, %v5101
      %v5140 = vpack.c.b16 %v5104, %v5103
      %v5178 = vsel %vm334, %v4819, 0
      %v5181 = vsel %vm334, %v4820, 0
      %v5184 = vsel %vm334, %v4821, 0
      %v5187 = vsel %vm334, %v4822, 0
      %5189 = vmatpush.bf16.msra.mxu0 %v5112
      %5190 = vmatpush.bf16.msra.mxu0 %v5111
      %5191 = vmatpush.bf16.msra.mxu0 %v5110
      %5192 = vmatpush.bf16.msra.mxu0 %v5109
      %5193 = vmatpush.bf16.msra.mxu0 %v5108
      %5194 = vmatpush.bf16.msra.mxu0 %v5107
      %5195 = vmatpush.bf16.msra.mxu0 %v5106
      %5196 = vmatpush.bf16.msra.mxu0 %v5105
      %5197 = vmatmul.bf16.gmra.mxu0 %v4825
      %v5198 = vpop.f32.mrf.mxu0
      %v5199 = vadd.f32 %v4960, %v5198
      %v5200 = vpop.f32.mrf.mxu0
      %v5201 = vadd.f32 %v4960, %v5200
      %5202 = vmatmul.bf16.gmra.mxu0 %v4829
      %v5203 = vpop.f32.mrf.mxu0
      %v5204 = vadd.f32 %v4960, %v5203
      %v5205 = vpop.f32.mrf.mxu0
      %v5206 = vadd.f32 %v4960, %v5205
      %5207 = vmatmul.bf16.gmra.mxu0 %v4833
      %v5208 = vpop.f32.mrf.mxu0
      %v5209 = vadd.f32 %v4960, %v5208
      %v5210 = vpop.f32.mrf.mxu0
      %v5211 = vadd.f32 %v4960, %v5210
      %5212 = vmatmul.bf16.gmra.mxu0 %v4837
      %v5213 = vpop.f32.mrf.mxu0
      %v5214 = vadd.f32 %v4960, %v5213
      %v5215 = vpop.f32.mrf.mxu0
      %v5216 = vadd.f32 %v4960, %v5215
      %5217 = vdwg.mxu0
      %5218 = vmatpush.bf16.msra.mxu0 %v5120
      %5219 = vmatpush.bf16.msra.mxu0 %v5119
      %5220 = vmatpush.bf16.msra.mxu0 %v5118
      %5221 = vmatpush.bf16.msra.mxu0 %v5117
      %5222 = vmatpush.bf16.msra.mxu0 %v5116
      %5223 = vmatpush.bf16.msra.mxu0 %v5115
      %5224 = vmatpush.bf16.msra.mxu0 %v5114
      %5225 = vmatpush.bf16.msra.mxu0 %v5113
      %5226 = vmatmul.bf16.gmra.mxu0 %v4841
      %v5227 = vpop.f32.mrf.mxu0
      %v5228 = vadd.f32 %v5199, %v5227
      %v5229 = vpop.f32.mrf.mxu0
      %v5230 = vadd.f32 %v5201, %v5229
      %5231 = vmatmul.bf16.gmra.mxu0 %v4845
      %v5232 = vpop.f32.mrf.mxu0
      %v5233 = vadd.f32 %v5204, %v5232
      %v5234 = vpop.f32.mrf.mxu0
      %v5235 = vadd.f32 %v5206, %v5234
      %5236 = vmatmul.bf16.gmra.mxu0 %v4849
      %v5237 = vpop.f32.mrf.mxu0
      %v5238 = vadd.f32 %v5209, %v5237
      %v5239 = vpop.f32.mrf.mxu0
      %v5240 = vadd.f32 %v5211, %v5239
      %5241 = vmatmul.bf16.gmra.mxu0 %v4853
      %v5242 = vpop.f32.mrf.mxu0
      %v5243 = vadd.f32 %v5214, %v5242
      %v5244 = vpop.f32.mrf.mxu0
      %v5245 = vadd.f32 %v5216, %v5244
      %5246 = vdwg.mxu0
      %5247 = vmatpush.bf16.msra.mxu0 %v5128
      %5248 = vmatpush.bf16.msra.mxu0 %v5127
      %5249 = vmatpush.bf16.msra.mxu0 %v5126
      %5250 = vmatpush.bf16.msra.mxu0 %v5125
      %5251 = vmatpush.bf16.msra.mxu0 %v5124
      %5252 = vmatpush.bf16.msra.mxu0 %v5123
      %5253 = vmatpush.bf16.msra.mxu0 %v5122
      %5254 = vmatpush.bf16.msra.mxu0 %v5121
      %5255 = vmatmul.bf16.gmra.mxu0 %v4857
      %v5256 = vpop.f32.mrf.mxu0
      %v5257 = vadd.f32 %v5228, %v5256
      %v5258 = vpop.f32.mrf.mxu0
      %v5259 = vadd.f32 %v5230, %v5258
      %5260 = vmatmul.bf16.gmra.mxu0 %v4861
      %v5261 = vpop.f32.mrf.mxu0
      %v5262 = vadd.f32 %v5233, %v5261
      %v5263 = vpop.f32.mrf.mxu0
      %v5264 = vadd.f32 %v5235, %v5263
      %5265 = vmatmul.bf16.gmra.mxu0 %v4865
      %v5266 = vpop.f32.mrf.mxu0
      %v5267 = vadd.f32 %v5238, %v5266
      %v5268 = vpop.f32.mrf.mxu0
      %v5269 = vadd.f32 %v5240, %v5268
      %5270 = vmatmul.bf16.gmra.mxu0 %v4869
      %v5271 = vpop.f32.mrf.mxu0
      %v5272 = vadd.f32 %v5243, %v5271
      %v5273 = vpop.f32.mrf.mxu0
      %v5274 = vadd.f32 %v5245, %v5273
      %5275 = vdwg.mxu0
      %5276 = vmatpush.bf16.msra.mxu0 %v5136
      %5277 = vmatpush.bf16.msra.mxu0 %v5135
      %5278 = vmatpush.bf16.msra.mxu0 %v5134
      %5279 = vmatpush.bf16.msra.mxu0 %v5133
      %5280 = vmatpush.bf16.msra.mxu0 %v5132
      %5281 = vmatpush.bf16.msra.mxu0 %v5131
      %5282 = vmatpush.bf16.msra.mxu0 %v5130
      %5283 = vmatpush.bf16.msra.mxu0 %v5129
      %5284 = vmatmul.bf16.gmra.mxu0 %v4873
      %v5285 = vpop.f32.mrf.mxu0
      %v5286 = vadd.f32 %v5257, %v5285
      %v5287 = vpop.f32.mrf.mxu0
      %v5288 = vadd.f32 %v5259, %v5287
      %5289 = vmatmul.bf16.gmra.mxu0 %v4877
      %v5290 = vpop.f32.mrf.mxu0
      %v5291 = vadd.f32 %v5262, %v5290
      %v5292 = vpop.f32.mrf.mxu0
      %v5293 = vadd.f32 %v5264, %v5292
      %5294 = vmatmul.bf16.gmra.mxu0 %v4881
      %v5295 = vpop.f32.mrf.mxu0
      %v5296 = vadd.f32 %v5267, %v5295
      %v5297 = vpop.f32.mrf.mxu0
      %v5298 = vadd.f32 %v5269, %v5297
      %5299 = vmatmul.bf16.gmra.mxu0 %v4885
      %v5300 = vpop.f32.mrf.mxu0
      %v5301 = vadd.f32 %v5272, %v5300
      %v5302 = vpop.f32.mrf.mxu0
      %v5303 = vadd.f32 %v5274, %v5302
      %5304 = vdwg.mxu0
      %5305 = vmatpush.bf16.msra.mxu0 0
      %5306 = vmatpush.bf16.msra.mxu0 0
      %5307 = vmatpush.bf16.msra.mxu0 0
      %5308 = vmatpush.bf16.msra.mxu0 0
      %5309 = vmatpush.bf16.msra.mxu0 %v5140
      %5310 = vmatpush.bf16.msra.mxu0 %v5139
      %5311 = vmatpush.bf16.msra.mxu0 %v5138
      %5312 = vmatpush.bf16.msra.mxu0 %v5137
      %5313 = vmatmul.bf16.gmra.mxu0 %v5178
      %v5314 = vpop.f32.mrf.mxu0
      %v5315 = vadd.f32 %v5286, %v5314
      %v5316 = vpop.f32.mrf.mxu0
      %v5317 = vadd.f32 %v5288, %v5316
      %5318 = vmatmul.bf16.gmra.mxu0 %v5181
      %v5319 = vpop.f32.mrf.mxu0
      %v5320 = vadd.f32 %v5291, %v5319
      %v5321 = vpop.f32.mrf.mxu0
      %v5322 = vadd.f32 %v5293, %v5321
      %5323 = vmatmul.bf16.gmra.mxu0 %v5184
      %v5324 = vpop.f32.mrf.mxu0
      %v5325 = vadd.f32 %v5296, %v5324
      %v5326 = vpop.f32.mrf.mxu0
      %v5327 = vadd.f32 %v5298, %v5326
      %5328 = vmatmul.bf16.gmra.mxu0 %v5187
      %v5329 = vpop.f32.mrf.mxu0
      %v5330 = vadd.f32 %v5301, %v5329
      %v5331 = vpop.f32.mrf.mxu0
      %v5332 = vadd.f32 %v5303, %v5331
      %5333 = vdwg.mxu0
      %vm5334 = vcmp.ge.f32.partialorder %v5315, 0.0
      %vm5335 = vcmp.ge.f32.partialorder %v5317, 0.0
      %vm5336 = vcmp.ge.f32.partialorder %v5320, 0.0
      %vm5337 = vcmp.ge.f32.partialorder %v5322, 0.0
      %vm5338 = vcmp.ge.f32.partialorder %v5325, 0.0
      %vm5339 = vcmp.ge.f32.partialorder %v5327, 0.0
      %vm5340 = vcmp.ge.f32.partialorder %v5330, 0.0
      %vm5341 = vcmp.ge.f32.partialorder %v5332, 0.0
      %v5342 = vmul.f32 %v5315, 0.01
      %v5343 = vmul.f32 %v5317, 0.01
      %v5344 = vmul.f32 %v5320, 0.01
      %v5345 = vmul.f32 %v5322, 0.01
      %v5346 = vmul.f32 %v5325, 0.01
      %v5347 = vmul.f32 %v5327, 0.01
      %v5348 = vmul.f32 %v5330, 0.01
      %v5349 = vmul.f32 %v5332, 0.01
      %v5350 = vsel %vm5334, %v5315, %v5342
      %v5351 = vsel %vm5335, %v5317, %v5343
      %v5352 = vsel %vm5336, %v5320, %v5344
      %v5353 = vsel %vm5337, %v5322, %v5345
      %v5354 = vsel %vm5338, %v5325, %v5346
      %v5355 = vsel %vm5339, %v5327, %v5347
      %v5356 = vsel %vm5340, %v5330, %v5348
      %v5357 = vsel %vm5341, %v5332, %v5349
      %5358 = vst.msk [vmem:[%s404 + $0x1] sm:$0xff] %vm334, %v5350
      %5359 = vst.msk [vmem:[%s404 + $0x11] sm:$0xff] %vm334, %v5351
      %5360 = vst.msk [vmem:[%s404 + $0x21] sm:$0xff] %vm334, %v5352
      %5361 = vst.msk [vmem:[%s404 + $0x31] sm:$0xff] %vm334, %v5353
      %5362 = vst.msk [vmem:[%s404 + $0x41] sm:$0xff] %vm334, %v5354
      %5363 = vst.msk [vmem:[%s404 + $0x51] sm:$0xff] %vm334, %v5355
      %5364 = vst.msk [vmem:[%s404 + $0x61] sm:$0xff] %vm334, %v5356
      %5365 = vst.msk [vmem:[%s404 + $0x71] sm:$0xff] %vm334, %v5357
      %v5366 = vld [vmem:[#allocation2] sm:$0xff]
      %v5367 = vld [vmem:[#allocation2 + $0x10] sm:$0xff]
      %v5368 = vld [vmem:[#allocation2 + $0x20] sm:$0xff]
      %v5369 = vld [vmem:[#allocation2 + $0x30] sm:$0xff]
      %v5370 = vld [vmem:[#allocation2 + $0x40] sm:$0xff]
      %v5371 = vld [vmem:[#allocation2 + $0x50] sm:$0xff]
      %v5372 = vld [vmem:[#allocation2 + $0x60] sm:$0xff]
      %v5373 = vld [vmem:[#allocation2 + $0x70] sm:$0xff]
      %v5374 = vpack.c.bf16 %v5366, %v5366
      %v5375 = vpack.c.bf16 %v5367, %v5367
      %v5376 = vpack.c.bf16 %v5368, %v5368
      %v5377 = vpack.c.bf16 %v5369, %v5369
      %v5378 = vpack.c.bf16 %v5370, %v5370
      %v5379 = vpack.c.bf16 %v5371, %v5371
      %v5380 = vpack.c.bf16 %v5372, %v5372
      %v5381 = vpack.c.bf16 %v5373, %v5373
      %v5382 = vld [vmem:[#allocation2 + $0x1] sm:$0xff]
      %v5383 = vld [vmem:[#allocation2 + $0x11] sm:$0xff]
      %v5384 = vld [vmem:[#allocation2 + $0x21] sm:$0xff]
      %v5385 = vld [vmem:[#allocation2 + $0x31] sm:$0xff]
      %v5386 = vld [vmem:[#allocation2 + $0x41] sm:$0xff]
      %v5387 = vld [vmem:[#allocation2 + $0x51] sm:$0xff]
      %v5388 = vld [vmem:[#allocation2 + $0x61] sm:$0xff]
      %v5389 = vld [vmem:[#allocation2 + $0x71] sm:$0xff]
      %v5390 = vpack.c.bf16 %v5382, %v5382
      %v5391 = vpack.c.bf16 %v5383, %v5383
      %v5392 = vpack.c.bf16 %v5384, %v5384
      %v5393 = vpack.c.bf16 %v5385, %v5385
      %v5394 = vpack.c.bf16 %v5386, %v5386
      %v5395 = vpack.c.bf16 %v5387, %v5387
      %v5396 = vpack.c.bf16 %v5388, %v5388
      %v5397 = vpack.c.bf16 %v5389, %v5389
      %v5398 = vld [vmem:[#allocation2 + $0x2] sm:$0xff]
      %v5399 = vld [vmem:[#allocation2 + $0x12] sm:$0xff]
      %v5400 = vld [vmem:[#allocation2 + $0x22] sm:$0xff]
      %v5401 = vld [vmem:[#allocation2 + $0x32] sm:$0xff]
      %v5402 = vld [vmem:[#allocation2 + $0x42] sm:$0xff]
      %v5403 = vld [vmem:[#allocation2 + $0x52] sm:$0xff]
      %v5404 = vld [vmem:[#allocation2 + $0x62] sm:$0xff]
      %v5405 = vld [vmem:[#allocation2 + $0x72] sm:$0xff]
      %v5406 = vpack.c.bf16 %v5398, %v5398
      %v5407 = vpack.c.bf16 %v5399, %v5399
      %v5408 = vpack.c.bf16 %v5400, %v5400
      %v5409 = vpack.c.bf16 %v5401, %v5401
      %v5410 = vpack.c.bf16 %v5402, %v5402
      %v5411 = vpack.c.bf16 %v5403, %v5403
      %v5412 = vpack.c.bf16 %v5404, %v5404
      %v5413 = vpack.c.bf16 %v5405, %v5405
      %v5414 = vld [vmem:[%s404] sm:$0xff]
      %v5415 = vld [vmem:[%s404 + $0x10] sm:$0xff]
      %v5416 = vld [vmem:[%s404 + $0x20] sm:$0xff]
      %v5417 = vld [vmem:[%s404 + $0x30] sm:$0xff]
      %v5418 = vld [vmem:[%s404 + $0x40] sm:$0xff]
      %v5419 = vld [vmem:[%s404 + $0x50] sm:$0xff]
      %v5420 = vld [vmem:[%s404 + $0x60] sm:$0xff]
      %v5421 = vld [vmem:[%s404 + $0x70] sm:$0xff]
      %v5422 = vpack.c.bf16 %v5414, %v5414
      %v5423 = vpack.c.bf16 %v5415, %v5415
      %v5424 = vpack.c.bf16 %v5416, %v5416
      %v5425 = vpack.c.bf16 %v5417, %v5417
      %v5426 = vpack.c.bf16 %v5418, %v5418
      %v5427 = vpack.c.bf16 %v5419, %v5419
      %v5428 = vpack.c.bf16 %v5420, %v5420
      %v5429 = vpack.c.bf16 %v5421, %v5421
      %v5430 = vld [vmem:[%s404 + $0x1] sm:$0xff]
      %v5431 = vld [vmem:[%s404 + $0x11] sm:$0xff]
      %v5432 = vld [vmem:[%s404 + $0x21] sm:$0xff]
      %v5433 = vld [vmem:[%s404 + $0x31] sm:$0xff]
      %v5434 = vld [vmem:[%s404 + $0x41] sm:$0xff]
      %v5435 = vld [vmem:[%s404 + $0x51] sm:$0xff]
      %v5436 = vld [vmem:[%s404 + $0x61] sm:$0xff]
      %v5437 = vld [vmem:[%s404 + $0x71] sm:$0xff]
      %v5438 = vpack.c.bf16 %v5430, %v5430
      %v5439 = vpack.c.bf16 %v5431, %v5431
      %v5440 = vpack.c.bf16 %v5432, %v5432
      %v5441 = vpack.c.bf16 %v5433, %v5433
      %v5442 = vpack.c.bf16 %v5434, %v5434
      %v5443 = vpack.c.bf16 %v5435, %v5435
      %v5444 = vpack.c.bf16 %v5436, %v5436
      %v5445 = vpack.c.bf16 %v5437, %v5437
      %v5446 = vld [vmem:[%s404 + $0x2] sm:$0xff]
      %v5447 = vld [vmem:[%s404 + $0x12] sm:$0xff]
      %v5448 = vld [vmem:[%s404 + $0x22] sm:$0xff]
      %v5449 = vld [vmem:[%s404 + $0x32] sm:$0xff]
      %v5450 = vld [vmem:[%s404 + $0x42] sm:$0xff]
      %v5451 = vld [vmem:[%s404 + $0x52] sm:$0xff]
      %v5452 = vld [vmem:[%s404 + $0x62] sm:$0xff]
      %v5453 = vld [vmem:[%s404 + $0x72] sm:$0xff]
      %v5454 = vpack.c.bf16 %v5446, %v5446
      %v5455 = vpack.c.bf16 %v5447, %v5447
      %v5456 = vpack.c.bf16 %v5448, %v5448
      %v5457 = vpack.c.bf16 %v5449, %v5449
      %v5458 = vpack.c.bf16 %v5450, %v5450
      %v5459 = vpack.c.bf16 %v5451, %v5451
      %v5460 = vpack.c.bf16 %v5452, %v5452
      %v5461 = vpack.c.bf16 %v5453, %v5453
      %v5462 = vld [vmem:[%s446] sm:$0xff]
      %v5463 = vld [vmem:[%s446 + $0x10] sm:$0xff]
      %v5464 = vld [vmem:[%s446 + $0x20] sm:$0xff]
      %v5465 = vld [vmem:[%s446 + $0x30] sm:$0xff]
      %v5466 = vld [vmem:[%s446 + $0x40] sm:$0xff]
      %v5467 = vld [vmem:[%s446 + $0x50] sm:$0xff]
      %v5468 = vld [vmem:[%s446 + $0x60] sm:$0xff]
      %v5469 = vld [vmem:[%s446 + $0x70] sm:$0xff]
      %v5470 = vpack.c.bf16 %v5462, %v5462
      %v5471 = vpack.c.bf16 %v5463, %v5463
      %v5472 = vpack.c.bf16 %v5464, %v5464
      %v5473 = vpack.c.bf16 %v5465, %v5465
      %v5474 = vpack.c.bf16 %v5466, %v5466
      %v5475 = vpack.c.bf16 %v5467, %v5467
      %v5476 = vpack.c.bf16 %v5468, %v5468
      %v5477 = vpack.c.bf16 %v5469, %v5469
      %v5478 = vld [vmem:[%s446 + $0x1] sm:$0xff]
      %v5479 = vld [vmem:[%s446 + $0x11] sm:$0xff]
      %v5480 = vld [vmem:[%s446 + $0x21] sm:$0xff]
      %v5481 = vld [vmem:[%s446 + $0x31] sm:$0xff]
      %v5482 = vld [vmem:[%s446 + $0x41] sm:$0xff]
      %v5483 = vld [vmem:[%s446 + $0x51] sm:$0xff]
      %v5484 = vld [vmem:[%s446 + $0x61] sm:$0xff]
      %v5485 = vld [vmem:[%s446 + $0x71] sm:$0xff]
      %v5486 = vpack.c.bf16 %v5478, %v5478
      %v5487 = vpack.c.bf16 %v5479, %v5479
      %v5488 = vpack.c.bf16 %v5480, %v5480
      %v5489 = vpack.c.bf16 %v5481, %v5481
      %v5490 = vpack.c.bf16 %v5482, %v5482
      %v5491 = vpack.c.bf16 %v5483, %v5483
      %v5492 = vpack.c.bf16 %v5484, %v5484
      %v5493 = vpack.c.bf16 %v5485, %v5485
      %v5494 = vld [vmem:[%s446 + $0x2] sm:$0xff]
      %v5495 = vld [vmem:[%s446 + $0x12] sm:$0xff]
      %v5496 = vld [vmem:[%s446 + $0x22] sm:$0xff]
      %v5497 = vld [vmem:[%s446 + $0x32] sm:$0xff]
      %v5498 = vld [vmem:[%s446 + $0x42] sm:$0xff]
      %v5499 = vld [vmem:[%s446 + $0x52] sm:$0xff]
      %v5500 = vld [vmem:[%s446 + $0x62] sm:$0xff]
      %v5501 = vld [vmem:[%s446 + $0x72] sm:$0xff]
      %v5502 = vpack.c.bf16 %v5494, %v5494
      %v5503 = vpack.c.bf16 %v5495, %v5495
      %v5504 = vpack.c.bf16 %v5496, %v5496
      %v5505 = vpack.c.bf16 %v5497, %v5497
      %v5506 = vpack.c.bf16 %v5498, %v5498
      %v5507 = vpack.c.bf16 %v5499, %v5499
      %v5508 = vpack.c.bf16 %v5500, %v5500
      %v5509 = vpack.c.bf16 %v5501, %v5501
      %v5518 = vunpack.c.l.b16 %v5374
      %v5519 = vunpack.c.l.b16 %v5375
      %v5520 = vunpack.c.l.b16 %v5376
      %v5521 = vunpack.c.l.b16 %v5377
      %v5522 = vunpack.c.l.b16 %v5378
      %v5523 = vunpack.c.l.b16 %v5379
      %v5524 = vunpack.c.l.b16 %v5380
      %v5525 = vunpack.c.l.b16 %v5381
      %v5526 = vpack.c.b16 %v5519, %v5518
      %v5527 = vpack.c.b16 %v5521, %v5520
      %v5528 = vpack.c.b16 %v5523, %v5522
      %v5529 = vpack.c.b16 %v5525, %v5524
      %v5538 = vunpack.c.l.b16 %v5390
      %v5539 = vunpack.c.l.b16 %v5391
      %v5540 = vunpack.c.l.b16 %v5392
      %v5541 = vunpack.c.l.b16 %v5393
      %v5542 = vunpack.c.l.b16 %v5394
      %v5543 = vunpack.c.l.b16 %v5395
      %v5544 = vunpack.c.l.b16 %v5396
      %v5545 = vunpack.c.l.b16 %v5397
      %v5546 = vpack.c.b16 %v5539, %v5538
      %v5547 = vpack.c.b16 %v5541, %v5540
      %v5548 = vpack.c.b16 %v5543, %v5542
      %v5549 = vpack.c.b16 %v5545, %v5544
      %5550 = vrot.lane.b32.xlu0 %v5546, 64
      %v5551 = vpop.permute.xlu0 %5550
      %5552 = vrot.lane.b32.xlu0 %v5547, 64
      %v5553 = vpop.permute.xlu0 %5552
      %5554 = vrot.lane.b32.xlu0 %v5548, 64
      %v5555 = vpop.permute.xlu0 %5554
      %5556 = vrot.lane.b32.xlu0 %v5549, 64
      %v5557 = vpop.permute.xlu0 %5556
      %v5566 = vunpack.c.l.b16 %v5406
      %v5567 = vunpack.c.l.b16 %v5407
      %v5568 = vunpack.c.l.b16 %v5408
      %v5569 = vunpack.c.l.b16 %v5409
      %v5570 = vunpack.c.l.b16 %v5410
      %v5571 = vunpack.c.l.b16 %v5411
      %v5572 = vunpack.c.l.b16 %v5412
      %v5573 = vunpack.c.l.b16 %v5413
      %v5574 = vpack.c.b16 %v5567, %v5566
      %v5575 = vpack.c.b16 %v5569, %v5568
      %v5576 = vpack.c.b16 %v5571, %v5570
      %v5577 = vpack.c.b16 %v5573, %v5572
      %v5586 = vunpack.c.l.b16 %v5422
      %v5587 = vunpack.c.l.b16 %v5423
      %v5588 = vunpack.c.l.b16 %v5424
      %v5589 = vunpack.c.l.b16 %v5425
      %v5590 = vunpack.c.l.b16 %v5426
      %v5591 = vunpack.c.l.b16 %v5427
      %v5592 = vunpack.c.l.b16 %v5428
      %v5593 = vunpack.c.l.b16 %v5429
      %v5594 = vpack.c.b16 %v5587, %v5586
      %v5595 = vpack.c.b16 %v5589, %v5588
      %v5596 = vpack.c.b16 %v5591, %v5590
      %v5597 = vpack.c.b16 %v5593, %v5592
      %5598 = vrot.lane.b32.xlu0 %v5594, 64
      %v5599 = vpop.permute.xlu0 %5598
      %5600 = vrot.lane.b32.xlu0 %v5595, 64
      %v5601 = vpop.permute.xlu0 %5600
      %5602 = vrot.lane.b32.xlu0 %v5596, 64
      %v5603 = vpop.permute.xlu0 %5602
      %5604 = vrot.lane.b32.xlu0 %v5597, 64
      %v5605 = vpop.permute.xlu0 %5604
      %v5614 = vunpack.c.l.b16 %v5438
      %v5615 = vunpack.c.l.b16 %v5439
      %v5616 = vunpack.c.l.b16 %v5440
      %v5617 = vunpack.c.l.b16 %v5441
      %v5618 = vunpack.c.l.b16 %v5442
      %v5619 = vunpack.c.l.b16 %v5443
      %v5620 = vunpack.c.l.b16 %v5444
      %v5621 = vunpack.c.l.b16 %v5445
      %v5622 = vpack.c.b16 %v5615, %v5614
      %v5623 = vpack.c.b16 %v5617, %v5616
      %v5624 = vpack.c.b16 %v5619, %v5618
      %v5625 = vpack.c.b16 %v5621, %v5620
      %v5634 = vunpack.c.l.b16 %v5454
      %v5635 = vunpack.c.l.b16 %v5455
      %v5636 = vunpack.c.l.b16 %v5456
      %v5637 = vunpack.c.l.b16 %v5457
      %v5638 = vunpack.c.l.b16 %v5458
      %v5639 = vunpack.c.l.b16 %v5459
      %v5640 = vunpack.c.l.b16 %v5460
      %v5641 = vunpack.c.l.b16 %v5461
      %v5642 = vpack.c.b16 %v5635, %v5634
      %v5643 = vpack.c.b16 %v5637, %v5636
      %v5644 = vpack.c.b16 %v5639, %v5638
      %v5645 = vpack.c.b16 %v5641, %v5640
      %5646 = vrot.lane.b32.xlu0 %v5642, 64
      %v5647 = vpop.permute.xlu0 %5646
      %5648 = vrot.lane.b32.xlu0 %v5643, 64
      %v5649 = vpop.permute.xlu0 %5648
      %5650 = vrot.lane.b32.xlu0 %v5644, 64
      %v5651 = vpop.permute.xlu0 %5650
      %5652 = vrot.lane.b32.xlu0 %v5645, 64
      %v5653 = vpop.permute.xlu0 %5652
      %v5662 = vunpack.c.l.b16 %v5470
      %v5663 = vunpack.c.l.b16 %v5471
      %v5664 = vunpack.c.l.b16 %v5472
      %v5665 = vunpack.c.l.b16 %v5473
      %v5666 = vunpack.c.l.b16 %v5474
      %v5667 = vunpack.c.l.b16 %v5475
      %v5668 = vunpack.c.l.b16 %v5476
      %v5669 = vunpack.c.l.b16 %v5477
      %v5670 = vpack.c.b16 %v5663, %v5662
      %v5671 = vpack.c.b16 %v5665, %v5664
      %v5672 = vpack.c.b16 %v5667, %v5666
      %v5673 = vpack.c.b16 %v5669, %v5668
      %v5682 = vunpack.c.l.b16 %v5486
      %v5683 = vunpack.c.l.b16 %v5487
      %v5684 = vunpack.c.l.b16 %v5488
      %v5685 = vunpack.c.l.b16 %v5489
      %v5686 = vunpack.c.l.b16 %v5490
      %v5687 = vunpack.c.l.b16 %v5491
      %v5688 = vunpack.c.l.b16 %v5492
      %v5689 = vunpack.c.l.b16 %v5493
      %v5690 = vpack.c.b16 %v5683, %v5682
      %v5691 = vpack.c.b16 %v5685, %v5684
      %v5692 = vpack.c.b16 %v5687, %v5686
      %v5693 = vpack.c.b16 %v5689, %v5688
      %5694 = vrot.lane.b32.xlu0 %v5690, 64
      %v5695 = vpop.permute.xlu0 %5694
      %5696 = vrot.lane.b32.xlu0 %v5691, 64
      %v5697 = vpop.permute.xlu0 %5696
      %5698 = vrot.lane.b32.xlu0 %v5692, 64
      %v5699 = vpop.permute.xlu0 %5698
      %5700 = vrot.lane.b32.xlu0 %v5693, 64
      %v5701 = vpop.permute.xlu0 %5700
      %v5710 = vunpack.c.l.b16 %v5502
      %v5711 = vunpack.c.l.b16 %v5503
      %v5712 = vunpack.c.l.b16 %v5504
      %v5713 = vunpack.c.l.b16 %v5505
      %v5714 = vunpack.c.l.b16 %v5506
      %v5715 = vunpack.c.l.b16 %v5507
      %v5716 = vunpack.c.l.b16 %v5508
      %v5717 = vunpack.c.l.b16 %v5509
      %v5718 = vpack.c.b16 %v5711, %v5710
      %v5719 = vpack.c.b16 %v5713, %v5712
      %v5720 = vpack.c.b16 %v5715, %v5714
      %v5721 = vpack.c.b16 %v5717, %v5716
      %v5724 = vsel %vm334, %v5526, %v5551
      %v5728 = vsel %vm334, %v5527, %v5553
      %v5732 = vsel %vm334, %v5528, %v5555
      %v5736 = vsel %vm334, %v5529, %v5557
      %v5740 = vsel %vm334, %v5574, %v5599
      %v5744 = vsel %vm334, %v5575, %v5601
      %v5748 = vsel %vm334, %v5576, %v5603
      %v5752 = vsel %vm334, %v5577, %v5605
      %v5756 = vsel %vm334, %v5622, %v5647
      %v5760 = vsel %vm334, %v5623, %v5649
      %v5764 = vsel %vm334, %v5624, %v5651
      %v5768 = vsel %vm334, %v5625, %v5653
      %v5772 = vsel %vm334, %v5670, %v5695
      %v5776 = vsel %vm334, %v5671, %v5697
      %v5780 = vsel %vm334, %v5672, %v5699
      %v5784 = vsel %vm334, %v5673, %v5701
      %v5786 = vld [vmem:[%s7 + $0x120] sm:$0xf]
      %v5787 = vld [vmem:[%s7 + $0x124] sm:$0xf]
      %v5788 = vld [vmem:[%s7 + $0x128] sm:$0xf]
      %v5789 = vld [vmem:[%s7 + $0x12c] sm:$0xf]
      %v5790 = vld [vmem:[%s7 + $0x130] sm:$0xf]
      %v5791 = vld [vmem:[%s7 + $0x134] sm:$0xf]
      %v5792 = vld [vmem:[%s7 + $0x138] sm:$0xf]
      %v5793 = vld [vmem:[%s7 + $0x13c] sm:$0xf]
      %v5794 = vld [vmem:[%s7 + $0x140] sm:$0xf]
      %v5795 = vld [vmem:[%s7 + $0x144] sm:$0xf]
      %v5796 = vld [vmem:[%s7 + $0x148] sm:$0xf]
      %v5797 = vld [vmem:[%s7 + $0x14c] sm:$0xf]
      %v5798 = vld [vmem:[%s7 + $0x150] sm:$0xf]
      %v5799 = vld [vmem:[%s7 + $0x154] sm:$0xf]
      %v5800 = vld [vmem:[%s7 + $0x158] sm:$0xf]
      %v5801 = vld [vmem:[%s7 + $0x15c] sm:$0xf]
      %v5802 = vld [vmem:[%s7 + $0x160] sm:$0xf]
      %v5803 = vld [vmem:[%s7 + $0x164] sm:$0xf]
      %v5804 = vld [vmem:[%s7 + $0x168] sm:$0xf]
      %v5805 = vld [vmem:[%s7 + $0x16c] sm:$0xf]
      %v5806 = vld [vmem:[%s7 + $0x170] sm:$0xf]
      %v5807 = vld [vmem:[%s7 + $0x174] sm:$0xf]
      %v5808 = vld [vmem:[%s7 + $0x178] sm:$0xf]
      %v5809 = vld [vmem:[%s7 + $0x17c] sm:$0xf]
      %v5810 = vld [vmem:[%s7 + $0x180] sm:$0xf]
      %v5811 = vld [vmem:[%s7 + $0x184] sm:$0xf]
      %v5812 = vld [vmem:[%s7 + $0x188] sm:$0xf]
      %v5813 = vld [vmem:[%s7 + $0x18c] sm:$0xf]
      %v5814 = vld [vmem:[%s7 + $0x190] sm:$0xf]
      %v5815 = vld [vmem:[%s7 + $0x194] sm:$0xf]
      %v5816 = vld [vmem:[%s7 + $0x198] sm:$0xf]
      %v5817 = vld [vmem:[%s7 + $0x19c] sm:$0xf]
      %v5818 = vld [vmem:[%s7 + $0x1a0] sm:$0xf]
      %v5819 = vld [vmem:[%s7 + $0x1a4] sm:$0xf]
      %v5820 = vld [vmem:[%s7 + $0x1a8] sm:$0xf]
      %v5821 = vld [vmem:[%s7 + $0x1ac] sm:$0xf]
      %v5822 = vld [vmem:[%s7 + $0x1b0] sm:$0xf]
      %v5823 = vld [vmem:[%s7 + $0x1b4] sm:$0xf]
      %v5824 = vld [vmem:[%s7 + $0x1b8] sm:$0xf]
      %v5825 = vld [vmem:[%s7 + $0x1bc] sm:$0xf]
      %v5826 = vld [vmem:[%s7 + $0x1c0] sm:$0xf]
      %v5827 = vld [vmem:[%s7 + $0x1c4] sm:$0xf]
      %v5828 = vld [vmem:[%s7 + $0x1c8] sm:$0xf]
      %v5829 = vld [vmem:[%s7 + $0x1cc] sm:$0xf]
      %v5830 = vld [vmem:[%s7 + $0x1d0] sm:$0xf]
      %v5831 = vld [vmem:[%s7 + $0x1d4] sm:$0xf]
      %v5832 = vld [vmem:[%s7 + $0x1d8] sm:$0xf]
      %v5833 = vld [vmem:[%s7 + $0x1dc] sm:$0xf]
      %v5834 = vld [vmem:[%s7 + $0x1e0] sm:$0xf]
      %v5835 = vld [vmem:[%s7 + $0x1e4] sm:$0xf]
      %v5836 = vld [vmem:[%s7 + $0x1e8] sm:$0xf]
      %v5837 = vld [vmem:[%s7 + $0x1ec] sm:$0xf]
      %v5838 = vld [vmem:[%s7 + $0x1f0] sm:$0xf]
      %v5839 = vld [vmem:[%s7 + $0x1f4] sm:$0xf]
      %v5840 = vld [vmem:[%s7 + $0x1f8] sm:$0xf]
      %v5841 = vld [vmem:[%s7 + $0x1fc] sm:$0xf]
      %v5842 = vld [vmem:[%s7 + $0x200] sm:$0xf]
      %v5843 = vld [vmem:[%s7 + $0x204] sm:$0xf]
      %v5844 = vld [vmem:[%s7 + $0x208] sm:$0xf]
      %v5845 = vld [vmem:[%s7 + $0x20c] sm:$0xf]
      %v5846 = vld [vmem:[%s7 + $0x210] sm:$0xf]
      %v5847 = vld [vmem:[%s7 + $0x214] sm:$0xf]
      %v5848 = vld [vmem:[%s7 + $0x218] sm:$0xf]
      %v5849 = vld [vmem:[%s7 + $0x21c] sm:$0xf]
      %v5850 = vld [vmem:[%s7 + $0x220] sm:$0xf]
      %v5851 = vld [vmem:[%s7 + $0x224] sm:$0xf]
      %v5852 = vld [vmem:[%s7 + $0x228] sm:$0xf]
      %v5853 = vld [vmem:[%s7 + $0x22c] sm:$0xf]
      %v5854 = vld [vmem:[%s7 + $0x230] sm:$0xf]
      %v5855 = vld [vmem:[%s7 + $0x234] sm:$0xf]
      %v5856 = vld [vmem:[%s7 + $0x238] sm:$0xf]
      %v5857 = vld [vmem:[%s7 + $0x23c] sm:$0xf]
      %v5858 = vld [vmem:[%s8 + $0x1] sm:$0x1]
      %v5859 = vperm.slane %v5858, 0
      %v5932 = vunpack.c.l.b16 %v5786
      %v5933 = vunpack.c.l.b16 %v5787
      %v5934 = vunpack.c.l.b16 %v5788
      %v5935 = vunpack.c.l.b16 %v5789
      %v5936 = vunpack.c.l.b16 %v5790
      %v5937 = vunpack.c.l.b16 %v5791
      %v5938 = vunpack.c.l.b16 %v5792
      %v5939 = vunpack.c.l.b16 %v5793
      %v5940 = vunpack.c.l.b16 %v5794
      %v5941 = vunpack.c.l.b16 %v5795
      %v5942 = vunpack.c.l.b16 %v5796
      %v5943 = vunpack.c.l.b16 %v5797
      %v5944 = vunpack.c.l.b16 %v5798
      %v5945 = vunpack.c.l.b16 %v5799
      %v5946 = vunpack.c.l.b16 %v5800
      %v5947 = vunpack.c.l.b16 %v5801
      %v5948 = vunpack.c.l.b16 %v5802
      %v5949 = vunpack.c.l.b16 %v5803
      %v5950 = vunpack.c.l.b16 %v5804
      %v5951 = vunpack.c.l.b16 %v5805
      %v5952 = vunpack.c.l.b16 %v5806
      %v5953 = vunpack.c.l.b16 %v5807
      %v5954 = vunpack.c.l.b16 %v5808
      %v5955 = vunpack.c.l.b16 %v5809
      %v5956 = vunpack.c.l.b16 %v5810
      %v5957 = vunpack.c.l.b16 %v5811
      %v5958 = vunpack.c.l.b16 %v5812
      %v5959 = vunpack.c.l.b16 %v5813
      %v5960 = vunpack.c.l.b16 %v5814
      %v5961 = vunpack.c.l.b16 %v5815
      %v5962 = vunpack.c.l.b16 %v5816
      %v5963 = vunpack.c.l.b16 %v5817
      %v5964 = vunpack.c.l.b16 %v5818
      %v5965 = vunpack.c.l.b16 %v5819
      %v5966 = vunpack.c.l.b16 %v5820
      %v5967 = vunpack.c.l.b16 %v5821
      %v5968 = vunpack.c.l.b16 %v5822
      %v5969 = vunpack.c.l.b16 %v5823
      %v5970 = vunpack.c.l.b16 %v5824
      %v5971 = vunpack.c.l.b16 %v5825
      %v5972 = vunpack.c.l.b16 %v5826
      %v5973 = vunpack.c.l.b16 %v5827
      %v5974 = vunpack.c.l.b16 %v5828
      %v5975 = vunpack.c.l.b16 %v5829
      %v5976 = vunpack.c.l.b16 %v5830
      %v5977 = vunpack.c.l.b16 %v5831
      %v5978 = vunpack.c.l.b16 %v5832
      %v5979 = vunpack.c.l.b16 %v5833
      %v5980 = vunpack.c.l.b16 %v5834
      %v5981 = vunpack.c.l.b16 %v5835
      %v5982 = vunpack.c.l.b16 %v5836
      %v5983 = vunpack.c.l.b16 %v5837
      %v5984 = vunpack.c.l.b16 %v5838
      %v5985 = vunpack.c.l.b16 %v5839
      %v5986 = vunpack.c.l.b16 %v5840
      %v5987 = vunpack.c.l.b16 %v5841
      %v5988 = vunpack.c.l.b16 %v5842
      %v5989 = vunpack.c.l.b16 %v5843
      %v5990 = vunpack.c.l.b16 %v5844
      %v5991 = vunpack.c.l.b16 %v5845
      %v5992 = vunpack.c.l.b16 %v5846
      %v5993 = vunpack.c.l.b16 %v5847
      %v5994 = vunpack.c.l.b16 %v5848
      %v5995 = vunpack.c.l.b16 %v5849
      %v5996 = vunpack.c.l.b16 %v5850
      %v5997 = vunpack.c.l.b16 %v5851
      %v5998 = vunpack.c.l.b16 %v5852
      %v5999 = vunpack.c.l.b16 %v5853
      %v6000 = vunpack.c.l.b16 %v5854
      %v6001 = vunpack.c.l.b16 %v5855
      %v6002 = vunpack.c.l.b16 %v5856
      %v6003 = vunpack.c.l.b16 %v5857
      %v6004 = vpack.c.b16 %v5933, %v5932
      %v6005 = vpack.c.b16 %v5935, %v5934
      %v6006 = vpack.c.b16 %v5937, %v5936
      %v6007 = vpack.c.b16 %v5939, %v5938
      %v6008 = vpack.c.b16 %v5941, %v5940
      %v6009 = vpack.c.b16 %v5943, %v5942
      %v6010 = vpack.c.b16 %v5945, %v5944
      %v6011 = vpack.c.b16 %v5947, %v5946
      %v6012 = vpack.c.b16 %v5949, %v5948
      %v6013 = vpack.c.b16 %v5951, %v5950
      %v6014 = vpack.c.b16 %v5953, %v5952
      %v6015 = vpack.c.b16 %v5955, %v5954
      %v6016 = vpack.c.b16 %v5957, %v5956
      %v6017 = vpack.c.b16 %v5959, %v5958
      %v6018 = vpack.c.b16 %v5961, %v5960
      %v6019 = vpack.c.b16 %v5963, %v5962
      %v6020 = vpack.c.b16 %v5965, %v5964
      %v6021 = vpack.c.b16 %v5967, %v5966
      %v6022 = vpack.c.b16 %v5969, %v5968
      %v6023 = vpack.c.b16 %v5971, %v5970
      %v6024 = vpack.c.b16 %v5973, %v5972
      %v6025 = vpack.c.b16 %v5975, %v5974
      %v6026 = vpack.c.b16 %v5977, %v5976
      %v6027 = vpack.c.b16 %v5979, %v5978
      %v6028 = vpack.c.b16 %v5981, %v5980
      %v6029 = vpack.c.b16 %v5983, %v5982
      %v6030 = vpack.c.b16 %v5985, %v5984
      %v6031 = vpack.c.b16 %v5987, %v5986
      %v6032 = vpack.c.b16 %v5989, %v5988
      %v6033 = vpack.c.b16 %v5991, %v5990
      %v6034 = vpack.c.b16 %v5993, %v5992
      %v6035 = vpack.c.b16 %v5995, %v5994
      %v6036 = vpack.c.b16 %v5997, %v5996
      %v6037 = vpack.c.b16 %v5999, %v5998
      %v6038 = vpack.c.b16 %v6001, %v6000
      %v6039 = vpack.c.b16 %v6003, %v6002
      %v6077 = vsel %vm334, %v5718, 0
      %v6080 = vsel %vm334, %v5719, 0
      %v6083 = vsel %vm334, %v5720, 0
      %v6086 = vsel %vm334, %v5721, 0
      %6088 = vmatpush.bf16.msra.mxu0 %v6011
      %6089 = vmatpush.bf16.msra.mxu0 %v6010
      %6090 = vmatpush.bf16.msra.mxu0 %v6009
      %6091 = vmatpush.bf16.msra.mxu0 %v6008
      %6092 = vmatpush.bf16.msra.mxu0 %v6007
      %6093 = vmatpush.bf16.msra.mxu0 %v6006
      %6094 = vmatpush.bf16.msra.mxu0 %v6005
      %6095 = vmatpush.bf16.msra.mxu0 %v6004
      %6096 = vmatmul.bf16.gmra.mxu0 %v5724
      %v6097 = vpop.f32.mrf.mxu0
      %v6098 = vadd.f32 %v5859, %v6097
      %v6099 = vpop.f32.mrf.mxu0
      %v6100 = vadd.f32 %v5859, %v6099
      %6101 = vmatmul.bf16.gmra.mxu0 %v5728
      %v6102 = vpop.f32.mrf.mxu0
      %v6103 = vadd.f32 %v5859, %v6102
      %v6104 = vpop.f32.mrf.mxu0
      %v6105 = vadd.f32 %v5859, %v6104
      %6106 = vmatmul.bf16.gmra.mxu0 %v5732
      %v6107 = vpop.f32.mrf.mxu0
      %v6108 = vadd.f32 %v5859, %v6107
      %v6109 = vpop.f32.mrf.mxu0
      %v6110 = vadd.f32 %v5859, %v6109
      %6111 = vmatmul.bf16.gmra.mxu0 %v5736
      %v6112 = vpop.f32.mrf.mxu0
      %v6113 = vadd.f32 %v5859, %v6112
      %v6114 = vpop.f32.mrf.mxu0
      %v6115 = vadd.f32 %v5859, %v6114
      %6116 = vdwg.mxu0
      %6117 = vmatpush.bf16.msra.mxu0 %v6019
      %6118 = vmatpush.bf16.msra.mxu0 %v6018
      %6119 = vmatpush.bf16.msra.mxu0 %v6017
      %6120 = vmatpush.bf16.msra.mxu0 %v6016
      %6121 = vmatpush.bf16.msra.mxu0 %v6015
      %6122 = vmatpush.bf16.msra.mxu0 %v6014
      %6123 = vmatpush.bf16.msra.mxu0 %v6013
      %6124 = vmatpush.bf16.msra.mxu0 %v6012
      %6125 = vmatmul.bf16.gmra.mxu0 %v5740
      %v6126 = vpop.f32.mrf.mxu0
      %v6127 = vadd.f32 %v6098, %v6126
      %v6128 = vpop.f32.mrf.mxu0
      %v6129 = vadd.f32 %v6100, %v6128
      %6130 = vmatmul.bf16.gmra.mxu0 %v5744
      %v6131 = vpop.f32.mrf.mxu0
      %v6132 = vadd.f32 %v6103, %v6131
      %v6133 = vpop.f32.mrf.mxu0
      %v6134 = vadd.f32 %v6105, %v6133
      %6135 = vmatmul.bf16.gmra.mxu0 %v5748
      %v6136 = vpop.f32.mrf.mxu0
      %v6137 = vadd.f32 %v6108, %v6136
      %v6138 = vpop.f32.mrf.mxu0
      %v6139 = vadd.f32 %v6110, %v6138
      %6140 = vmatmul.bf16.gmra.mxu0 %v5752
      %v6141 = vpop.f32.mrf.mxu0
      %v6142 = vadd.f32 %v6113, %v6141
      %v6143 = vpop.f32.mrf.mxu0
      %v6144 = vadd.f32 %v6115, %v6143
      %6145 = vdwg.mxu0
      %6146 = vmatpush.bf16.msra.mxu0 %v6027
      %6147 = vmatpush.bf16.msra.mxu0 %v6026
      %6148 = vmatpush.bf16.msra.mxu0 %v6025
      %6149 = vmatpush.bf16.msra.mxu0 %v6024
      %6150 = vmatpush.bf16.msra.mxu0 %v6023
      %6151 = vmatpush.bf16.msra.mxu0 %v6022
      %6152 = vmatpush.bf16.msra.mxu0 %v6021
      %6153 = vmatpush.bf16.msra.mxu0 %v6020
      %6154 = vmatmul.bf16.gmra.mxu0 %v5756
      %v6155 = vpop.f32.mrf.mxu0
      %v6156 = vadd.f32 %v6127, %v6155
      %v6157 = vpop.f32.mrf.mxu0
      %v6158 = vadd.f32 %v6129, %v6157
      %6159 = vmatmul.bf16.gmra.mxu0 %v5760
      %v6160 = vpop.f32.mrf.mxu0
      %v6161 = vadd.f32 %v6132, %v6160
      %v6162 = vpop.f32.mrf.mxu0
      %v6163 = vadd.f32 %v6134, %v6162
      %6164 = vmatmul.bf16.gmra.mxu0 %v5764
      %v6165 = vpop.f32.mrf.mxu0
      %v6166 = vadd.f32 %v6137, %v6165
      %v6167 = vpop.f32.mrf.mxu0
      %v6168 = vadd.f32 %v6139, %v6167
      %6169 = vmatmul.bf16.gmra.mxu0 %v5768
      %v6170 = vpop.f32.mrf.mxu0
      %v6171 = vadd.f32 %v6142, %v6170
      %v6172 = vpop.f32.mrf.mxu0
      %v6173 = vadd.f32 %v6144, %v6172
      %6174 = vdwg.mxu0
      %6175 = vmatpush.bf16.msra.mxu0 %v6035
      %6176 = vmatpush.bf16.msra.mxu0 %v6034
      %6177 = vmatpush.bf16.msra.mxu0 %v6033
      %6178 = vmatpush.bf16.msra.mxu0 %v6032
      %6179 = vmatpush.bf16.msra.mxu0 %v6031
      %6180 = vmatpush.bf16.msra.mxu0 %v6030
      %6181 = vmatpush.bf16.msra.mxu0 %v6029
      %6182 = vmatpush.bf16.msra.mxu0 %v6028
      %6183 = vmatmul.bf16.gmra.mxu0 %v5772
      %v6184 = vpop.f32.mrf.mxu0
      %v6185 = vadd.f32 %v6156, %v6184
      %v6186 = vpop.f32.mrf.mxu0
      %v6187 = vadd.f32 %v6158, %v6186
      %6188 = vmatmul.bf16.gmra.mxu0 %v5776
      %v6189 = vpop.f32.mrf.mxu0
      %v6190 = vadd.f32 %v6161, %v6189
      %v6191 = vpop.f32.mrf.mxu0
      %v6192 = vadd.f32 %v6163, %v6191
      %6193 = vmatmul.bf16.gmra.mxu0 %v5780
      %v6194 = vpop.f32.mrf.mxu0
      %v6195 = vadd.f32 %v6166, %v6194
      %v6196 = vpop.f32.mrf.mxu0
      %v6197 = vadd.f32 %v6168, %v6196
      %6198 = vmatmul.bf16.gmra.mxu0 %v5784
      %v6199 = vpop.f32.mrf.mxu0
      %v6200 = vadd.f32 %v6171, %v6199
      %v6201 = vpop.f32.mrf.mxu0
      %v6202 = vadd.f32 %v6173, %v6201
      %6203 = vdwg.mxu0
      %6204 = vmatpush.bf16.msra.mxu0 0
      %6205 = vmatpush.bf16.msra.mxu0 0
      %6206 = vmatpush.bf16.msra.mxu0 0
      %6207 = vmatpush.bf16.msra.mxu0 0
      %6208 = vmatpush.bf16.msra.mxu0 %v6039
      %6209 = vmatpush.bf16.msra.mxu0 %v6038
      %6210 = vmatpush.bf16.msra.mxu0 %v6037
      %6211 = vmatpush.bf16.msra.mxu0 %v6036
      %6212 = vmatmul.bf16.gmra.mxu0 %v6077
      %v6213 = vpop.f32.mrf.mxu0
      %v6214 = vadd.f32 %v6185, %v6213
      %v6215 = vpop.f32.mrf.mxu0
      %v6216 = vadd.f32 %v6187, %v6215
      %6217 = vmatmul.bf16.gmra.mxu0 %v6080
      %v6218 = vpop.f32.mrf.mxu0
      %v6219 = vadd.f32 %v6190, %v6218
      %v6220 = vpop.f32.mrf.mxu0
      %v6221 = vadd.f32 %v6192, %v6220
      %6222 = vmatmul.bf16.gmra.mxu0 %v6083
      %v6223 = vpop.f32.mrf.mxu0
      %v6224 = vadd.f32 %v6195, %v6223
      %v6225 = vpop.f32.mrf.mxu0
      %v6226 = vadd.f32 %v6197, %v6225
      %6227 = vmatmul.bf16.gmra.mxu0 %v6086
      %v6228 = vpop.f32.mrf.mxu0
      %v6229 = vadd.f32 %v6200, %v6228
      %v6230 = vpop.f32.mrf.mxu0
      %v6231 = vadd.f32 %v6202, %v6230
      %6232 = vdwg.mxu0
      %v6233 = vadd.f32 %v6214, %v364
      %v6234 = vadd.f32 %v6216, %v365
      %v6235 = vadd.f32 %v6219, %v366
      %v6236 = vadd.f32 %v6221, %v367
      %v6237 = vadd.f32 %v6224, %v368
      %v6238 = vadd.f32 %v6226, %v369
      %v6239 = vadd.f32 %v6229, %v370
      %v6240 = vadd.f32 %v6231, %v371
      %v6241 = vpack.c.bf16 %v6233, %v6233
      %v6242 = vpack.c.bf16 %v6234, %v6234
      %v6243 = vpack.c.bf16 %v6235, %v6235
      %v6244 = vpack.c.bf16 %v6236, %v6236
      %v6245 = vpack.c.bf16 %v6237, %v6237
      %v6246 = vpack.c.bf16 %v6238, %v6238
      %v6247 = vpack.c.bf16 %v6239, %v6239
      %v6248 = vpack.c.bf16 %v6240, %v6240
      %vm6249 = vcmask 519168
      %6250 = vst.msk [vmem:[%s332] sm:$0xf] %vm6249, %v6241
      %6251 = vst.msk [vmem:[%s332 + $0x4] sm:$0xf] %vm6249, %v6242
      %6252 = vst.msk [vmem:[%s332 + $0x8] sm:$0xf] %vm6249, %v6243
      %6253 = vst.msk [vmem:[%s332 + $0xc] sm:$0xf] %vm6249, %v6244
      %6254 = vst.msk [vmem:[%s332 + $0x10] sm:$0xf] %vm6249, %v6245
      %6255 = vst.msk [vmem:[%s332 + $0x14] sm:$0xf] %vm6249, %v6246
      %6256 = vst.msk [vmem:[%s332 + $0x18] sm:$0xf] %vm6249, %v6247
      %6257 = vst.msk [vmem:[%s332 + $0x1c] sm:$0xf] %vm6249, %v6248
      %p6258 = scmp.lt.s32.totalorder %s20, 1
      %s6259 = scalar_select %p6258, %s20, 1
      %s6260 = smul.addr %s6259, 8
      %s6261 = smul.addr %s6260, 4
      %s6262 = scalar_lea.vmem %s9, %s6261
      // Predicated region
      $region57: #{net_forward.14} parent=55 // pred_check
        %p6263 = pneg %p232
      $region58: #{net_forward.14} parent=55 // pred_check_branch
        %6265 = sbr.rel (%p6263) target = $region60
      $region59: #{net_forward.14} parent=55 // pred_region
        _
      $region60: #{net_forward.14} parent=55 // pred_fallthru
        _
    $region56: #{net_forward.14} parent=5 // pred_fallthru
      _
    %p6266 = scmp.le.s32.totalorder 2, %s15
    // Predicated region
    $region61: #{net_forward.14} parent=5 // pred_check
      %p6267 = pneg %p6266
    $region62: #{net_forward.14} parent=5 // pred_check_branch
      %6269 = sbr.rel (%p6267) target = $region64
    $region63: #{net_forward.14} parent=5 // pred_region
      %s6270 = ssub.s32 %s15, 2
      // Predicated region
      $region65: #{net_forward.14} parent=63 // pred_check
        %p6271 = pneg %p238
      $region66: #{net_forward.14} parent=63 // pred_check_branch
        %6273 = sbr.rel (%p6271) target = $region68
      $region67: #{net_forward.14} parent=63 // pred_region
        %p6274 = scmp.lt.s32.totalorder %s21, 1
        %s6275 = scalar_select %p6274, %s21, 1
        %s6276 = smul.addr %s6275, 8
        %s6277 = smul.addr %s6276, 4
        %s6278 = scalar_lea.vmem %s9, %s6277
      $region68: #{net_forward.14} parent=63 // pred_fallthru
        _
    $region64: #{net_forward.14} parent=5 // pred_fallthru
      _
  $region6: #{net_forward.14} parent=0 // loop_footer
    %s19 = sadd.s32 1, %s15
  $region7: #{net_forward.14} parent=0 // loop_footer_branch
    %14 = sbr.rel target = $region3
  $region8: #{net_forward.14} parent=0 // loop_exit
    _

</llo_original>
